<compile_context>
chip_gen: v7x
topology: tpu7x:2x2x1
jax: 0.10.0
libtpu: 0.0.40
codegen_flags: <defaults>
</compile_context>

<pallas_src>
import functools

import jax
import jax.numpy as jnp
from jax.experimental import pallas as pl
from jax.experimental.pallas import tpu as pltpu

LANE = 128


def _round_up(a, b):
    return (a + b - 1) // b * b


def _pick_row_chunk(h, wp, max_flat_rows=256):
    """Largest divisor of H whose flat chunk (TH*(W+2) rows) stays register friendly."""
    best = 1
    for d in range(1, h + 1):
        if h % d == 0 and d * wp <= max_flat_rows:
            best = d
    return best


def _eresidual_kernel(x_ref, w1_ref, b1_ref, w2_ref, b2_ref, w3_ref, b3_ref,
                      o_ref, pad2_ref, *, H, W, TH, C):
    # x_ref   : (1, PADLEN, Cin)    flat zero-padded input, row stride = W+2
    # w1_ref  : (9, Cin, LC)        conv1 taps, out-channels zero-padded to LC lanes
    # w2_ref  : (9, LC, LC)         conv2 taps (both channel dims zero-padded)
    # w3_ref  : (LC, LC)            1x1 conv
    # b*_ref  : (1, LC)
    # o_ref   : (1, H*(W+2), C)     flat output (columns w < W are the valid ones)
    # pad2_ref: (PADLEN, LC)        VMEM scratch: zero-padded relu(conv1) activation
    Wp = W + 2
    M = H * Wp                       # flat rows covering the interior
    CH = TH * Wp                     # flat rows per chunk
    n_chunks = H // TH
    padlen = pad2_ref.shape[0]
    lc = pad2_ref.shape[1]
    f32 = jnp.float32

    # Zero only the halo of the padded scratch; the interior is fully overwritten
    # below and the 2 slack columns per row are masked to zero before the store.
    pad2_ref[pl.ds(0, Wp + 1), :] = jnp.zeros((Wp + 1, lc), f32)
    tail = padlen - (Wp + 1 + M)
    pad2_ref[pl.ds(Wp + 1 + M, tail), :] = jnp.zeros((tail, lc), f32)

    # Mask selecting the W valid columns out of each (W+2)-wide flat row.
    col = jax.lax.broadcasted_iota(jnp.int32, (CH, 1), 0) % Wp
    valid_col = col < W

    taps = [(kh, kw) for kh in range(3) for kw in range(3)]

    # ---- conv1 (3x3) + ReLU -> zero-padded activation in VMEM scratch ----------
    for c in range(n_chunks):
        r0 = c * CH
        acc = jnp.zeros((CH, lc), f32)
        for t, (kh, kw) in enumerate(taps):
            off = kh * Wp + kw                                   # contiguous tap offset
            patch = x_ref[0, pl.ds(r0 + off, CH), :]             # (CH, Cin) view
            acc = acc + jnp.dot(patch, w1_ref[t],
                                preferred_element_type=f32)      # (CH, LC)
        y = jnp.maximum(acc + b1_ref[...], 0.0)
        y = jnp.where(valid_col, y, 0.0)       # slack cols become the zero padding
        pad2_ref[pl.ds(Wp + 1 + r0, CH), :] = y

    # ---- conv2 (3x3) + ReLU, conv3 (1x1), residual add, final ReLU -------------
    for c in range(n_chunks):
        r0 = c * CH
        acc = jnp.zeros((CH, lc), f32)
        for t, (kh, kw) in enumerate(taps):
            off = kh * Wp + kw
            patch = pad2_ref[pl.ds(r0 + off, CH), :]             # (CH, LC) lane-dense
            acc = acc + jnp.dot(patch, w2_ref[t],
                                preferred_element_type=f32)
        y2 = jnp.maximum(acc + b2_ref[...], 0.0)
        y3 = jnp.dot(y2, w3_ref[...], preferred_element_type=f32) + b3_ref[...]
        x_res = x_ref[0, pl.ds(Wp + 1 + r0, CH), :].astype(f32)  # residual slice
        out = jnp.maximum(y3[:, :C] + x_res, 0.0)
        o_ref[0, pl.ds(r0, CH), :] = out.astype(o_ref.dtype)


def eresidual_block_forward(x_nchw, w1, b1, w2, b2, w3, b3):
    """EResidualBlock forward.  NCHW in / NCHW out, parameters in PyTorch layout."""
    N, Cin, H, W = x_nchw.shape
    Cout = w1.shape[0]
    assert Cin == Cout, "residual add requires in_channels == out_channels"
    # TODO(synk): grouped convolution (group > 1) not implemented; module default group=1.
    C = Cout
    lc = _round_up(max(C, LANE), LANE)           # lane-padded channel width
    Wp = W + 2
    M = H * Wp
    padlen = _round_up(M + 2 * Wp + 2, 8)        # (H+2)*(W+2) + 2 rows of slack
    TH = _pick_row_chunk(H, Wp)

    # ---- glue (small tensors; XLA fuses each into a single pass) ---------------
    # input: NCHW -> NHWC -> zero-pad spatially -> flatten rows of width W+2
    x_nhwc = jnp.transpose(x_nchw, (0, 2, 3, 1))
    x_sp = jnp.pad(x_nhwc, ((0, 0), (1, 1), (1, 1), (0, 0)))
    x_flat = jnp.pad(x_sp.reshape(N, (H + 2) * Wp, Cin),
                     ((0, 0), (0, padlen - (H + 2) * Wp), (0, 0)))
    # weights: OIHW -> (tap, K, N); zero-pad channel dims to the lane width
    w1_t = jnp.transpose(w1, (2, 3, 1, 0)).reshape(9, Cin, C)
    w1_p = jnp.pad(w1_t, ((0, 0), (0, 0), (0, lc - C)))
    w2_t = jnp.transpose(w2, (2, 3, 1, 0)).reshape(9, C, C)
    w2_p = jnp.pad(w2_t, ((0, 0), (0, lc - C), (0, lc - C)))
    w3_p = jnp.pad(w3.reshape(C, C).T, ((0, lc - C), (0, lc - C)))
    b1_p = jnp.pad(b1, (0, lc - C)).reshape(1, lc)
    b2_p = jnp.pad(b2, (0, lc - C)).reshape(1, lc)
    b3_p = jnp.pad(b3, (0, lc - C)).reshape(1, lc)

    kernel = functools.partial(_eresidual_kernel, H=H, W=W, TH=TH, C=C)
    out_flat = pl.pallas_call(
        kernel,
        out_shape=jax.ShapeDtypeStruct((N, M, C), x_nchw.dtype),
        grid_spec=pltpu.PrefetchScalarGridSpec(
            num_scalar_prefetch=0,
            grid=(N,),
            in_specs=[
                pl.BlockSpec((1, padlen, Cin), lambda n: (n, 0, 0)),
                # Constant weight/bias blocks (index_map is constant, kept resident).
                pl.BlockSpec((9, Cin, lc), lambda n: (0, 0, 0)),
                pl.BlockSpec((1, lc), lambda n: (0, 0)),
                pl.BlockSpec((9, lc, lc), lambda n: (0, 0, 0)),
                pl.BlockSpec((1, lc), lambda n: (0, 0)),
                pl.BlockSpec((lc, lc), lambda n: (0, 0)),
                pl.BlockSpec((1, lc), lambda n: (0, 0)),
            ],
            out_specs=pl.BlockSpec((1, M, C), lambda n: (n, 0, 0)),
            scratch_shapes=[pltpu.VMEM((padlen, lc), jnp.float32)],
        ),
        compiler_params=pltpu.CompilerParams(
            dimension_semantics=("parallel",),        # batch sharded across cores
            vmem_limit_bytes=32 * 1024 * 1024,
        ),
    )(x_flat, w1_p, b1_p, w2_p, b2_p, w3_p, b3_p)

    out = out_flat.reshape(N, H, Wp, C)[:, :, :W, :]   # drop slack cols
    return jnp.transpose(out, (0, 3, 1, 2))            # NHWC -> NCHW


if __name__ == "__main__":
    N, C, H, W = 2, 8, 16, 16
    key = jax.random.PRNGKey(0)
    kx, k1, k2, k3 = jax.random.split(key, 4)
    x = jax.random.normal(kx, (N, C, H, W), dtype=jnp.float32)

    def conv_init(k, cout, cin, ksz):
        fan_in = cin * ksz * ksz
        bound = 1.0 / (fan_in ** 0.5)
        kw_, kb_ = jax.random.split(k)
        w = jax.random.uniform(kw_, (cout, cin, ksz, ksz), minval=-bound,
                               maxval=bound, dtype=jnp.float32)
        b = jax.random.uniform(kb_, (cout,), minval=-bound, maxval=bound,
                               dtype=jnp.float32)
        return w, b

    w1, b1 = conv_init(k1, C, C, 3)
    w2, b2 = conv_init(k2, C, C, 3)
    w3, b3 = conv_init(k3, C, C, 1)

    fwd = jax.jit(eresidual_block_forward)
    out = jax.block_until_ready(fwd(x, w1, b1, w2, b2, w3, b3))

    # Reference: same math with XLA convs (== torch Conv2d semantics).
    def conv_nchw(v, w, b, pad):
        y = jax.lax.conv_general_dilated(
            v, w, window_strides=(1, 1), padding=((pad, pad), (pad, pad)),
            dimension_numbers=("NCHW", "OIHW", "NCHW"))
        return y + b[None, :, None, None]

    ref = jnp.maximum(conv_nchw(x, w1, b1, 1), 0.0)
    ref = jnp.maximum(conv_nchw(ref, w2, b2, 1), 0.0)
    ref = conv_nchw(ref, w3, b3, 0)
    ref = jnp.maximum(ref + x, 0.0)

    assert out.shape == (N, C, H, W)
    assert jnp.allclose(out, ref, atol=1e-4, rtol=1e-4), \
        float(jnp.max(jnp.abs(out - ref)))

    print("KERNEL_OK")
</pallas_src>

<mosaic_0001>
module attributes {stable_mosaic.version = 11 : i64} {
  func.func @_eresidual_kernel(%arg0: i32, %arg1: memref<1x328x8xf32, #tpu.memory_space<vmem>>, %arg2: memref<9x8x128xf32, #tpu.memory_space<vmem>>, %arg3: memref<1x128xf32, #tpu.memory_space<vmem>>, %arg4: memref<9x128x128xf32, #tpu.memory_space<vmem>>, %arg5: memref<1x128xf32, #tpu.memory_space<vmem>>, %arg6: memref<128x128xf32, #tpu.memory_space<vmem>>, %arg7: memref<1x128xf32, #tpu.memory_space<vmem>>, %arg8: memref<1x288x8xf32, #tpu.memory_space<vmem>>, %arg9: memref<328x128xf32, #tpu.memory_space<vmem>>) attributes {dimension_semantics = [#tpu.dimension_semantics<parallel>], iteration_bounds = array<i64: 2>, scalar_prefetch = 0 : i64, scratch_operands = 1 : i64, tpu.core_type = #tpu.core_type<tc>, window_params = [{transform_indices = @transform_0, window_bounds = array<i64: 1, 328, 8>}, {pipeline_mode = #tpu.pipeline_mode<synchronous>, transform_indices = @transform_1, window_bounds = array<i64: 9, 8, 128>}, {pipeline_mode = #tpu.pipeline_mode<synchronous>, transform_indices = @transform_2, window_bounds = array<i64: 1, 128>}, {pipeline_mode = #tpu.pipeline_mode<synchronous>, transform_indices = @transform_3, window_bounds = array<i64: 9, 128, 128>}, {pipeline_mode = #tpu.pipeline_mode<synchronous>, transform_indices = @transform_4, window_bounds = array<i64: 1, 128>}, {pipeline_mode = #tpu.pipeline_mode<synchronous>, transform_indices = @transform_5, window_bounds = array<i64: 128, 128>}, {pipeline_mode = #tpu.pipeline_mode<synchronous>, transform_indices = @transform_6, window_bounds = array<i64: 1, 128>}, {transform_indices = @transform_7, window_bounds = array<i64: 1, 288, 8>}]} {
    %cst = arith.constant 0.000000e+00 : f32
    %0 = vector.broadcast %cst : f32 to vector<19x128xf32>
    %c0 = arith.constant 0 : index
    %c0_0 = arith.constant 0 : index
    %1 = vector.load %arg9[%c0, %c0_0] : memref<328x128xf32, #tpu.memory_space<vmem>>, vector<19x128xf32>
    tpu.vector_store %arg9[%c0, %c0_0], %0 {strides = array<i32>} : memref<328x128xf32, #tpu.memory_space<vmem>>, vector<19x128xf32>,
    %cst_1 = arith.constant 0.000000e+00 : f32
    %2 = vector.broadcast %cst_1 : f32 to vector<21x128xf32>
    %c307 = arith.constant 307 : index
    %c0_2 = arith.constant 0 : index
    %3 = vector.load %arg9[%c307, %c0_2] : memref<328x128xf32, #tpu.memory_space<vmem>>, vector<21x128xf32>
    tpu.vector_store %arg9[%c307, %c0_2], %2 {strides = array<i32>} : memref<328x128xf32, #tpu.memory_space<vmem>>, vector<21x128xf32>,
    %4 = tpu.iota {dimensions = array<i32: 0>} : vector<144x1xi32>
    %c18_i32 = arith.constant 18 : i32
    %c0_i32 = arith.constant 0 : i32
    %5 = arith.cmpi eq, %c18_i32, %c0_i32 : i32
    %c1_i32 = arith.constant 1 : i32
    %6 = arith.select %5, %c1_i32, %c18_i32 : i32
    %7 = vector.broadcast %6 : i32 to vector<144x1xi32>
    %8 = arith.remsi %4, %7 : vector<144x1xi32>
    %c0_i32_3 = arith.constant 0 : i32
    %9 = vector.broadcast %c0_i32_3 : i32 to vector<144x1xi32>
    %10 = arith.cmpi ne, %8, %9 : vector<144x1xi32>
    %c0_i32_4 = arith.constant 0 : i32
    %11 = vector.broadcast %c0_i32_4 : i32 to vector<144x1xi32>
    %12 = arith.cmpi slt, %8, %11 : vector<144x1xi32>
    %c0_i32_5 = arith.constant 0 : i32
    %13 = arith.cmpi slt, %6, %c0_i32_5 : i32
    %14 = vector.broadcast %13 : i1 to vector<144x1xi1>
    %15 = vector.broadcast %14 : vector<144x1xi1> to vector<144x1xi1>
    %16 = arith.xori %12, %15 : vector<144x1xi1>
    %17 = arith.andi %16, %10 : vector<144x1xi1>
    %18 = vector.broadcast %6 : i32 to vector<144x1xi32>
    %19 = arith.addi %8, %18 : vector<144x1xi32>
    %20 = arith.select %17, %19, %8 : vector<144x1xi1>, vector<144x1xi32>
    %c16_i32 = arith.constant 16 : i32
    %21 = vector.broadcast %c16_i32 : i32 to vector<144x1xi32>
    %22 = arith.cmpi slt, %20, %21 : vector<144x1xi32>
    %cst_6 = arith.constant 0.000000e+00 : f32
    %23 = vector.broadcast %cst_6 : f32 to vector<144x128xf32>
    %c0_7 = arith.constant 0 : index
    %c0_8 = arith.constant 0 : index
    %c0_9 = arith.constant 0 : index
    %24 = vector.load %arg1[%c0_7, %c0_8, %c0_9] : memref<1x328x8xf32, #tpu.memory_space<vmem>>, vector<1x144x8xf32>
    %25 = vector.shape_cast %24 : vector<1x144x8xf32> to vector<144x8xf32>
    %c0_10 = arith.constant 0 : index
    %c0_11 = arith.constant 0 : index
    %c0_12 = arith.constant 0 : index
    %26 = vector.load %arg2[%c0_10, %c0_11, %c0_12] : memref<9x8x128xf32, #tpu.memory_space<vmem>>, vector<1x8x128xf32>
    %27 = vector.shape_cast %26 : vector<1x8x128xf32> to vector<8x128xf32>
    %cst_13 = arith.constant dense<0.000000e+00> : vector<144x128xf32>
    %28 = tpu.matmul %25, %27, %cst_13 {dimension_numbers = #tpu.dot_dimension_numbers<[1], [0], [0], [1], [0, 0, 1, 1], [], []>} : vector<144x8xf32>, vector<8x128xf32>, vector<144x128xf32> -> vector<144x128xf32>
    %29 = arith.addf %23, %28 : vector<144x128xf32>
    %c0_14 = arith.constant 0 : index
    %c1 = arith.constant 1 : index
    %c0_15 = arith.constant 0 : index
    %30 = vector.load %arg1[%c0_14, %c1, %c0_15] : memref<1x328x8xf32, #tpu.memory_space<vmem>>, vector<1x144x8xf32>
    %31 = vector.shape_cast %30 : vector<1x144x8xf32> to vector<144x8xf32>
    %c1_16 = arith.constant 1 : index
    %c0_17 = arith.constant 0 : index
    %c0_18 = arith.constant 0 : index
    %32 = vector.load %arg2[%c1_16, %c0_17, %c0_18] : memref<9x8x128xf32, #tpu.memory_space<vmem>>, vector<1x8x128xf32>
    %33 = vector.shape_cast %32 : vector<1x8x128xf32> to vector<8x128xf32>
    %cst_19 = arith.constant dense<0.000000e+00> : vector<144x128xf32>
    %34 = tpu.matmul %31, %33, %cst_19 {dimension_numbers = #tpu.dot_dimension_numbers<[1], [0], [0], [1], [0, 0, 1, 1], [], []>} : vector<144x8xf32>, vector<8x128xf32>, vector<144x128xf32> -> vector<144x128xf32>
    %35 = arith.addf %29, %34 : vector<144x128xf32>
    %c0_20 = arith.constant 0 : index
    %c2 = arith.constant 2 : index
    %c0_21 = arith.constant 0 : index
    %36 = vector.load %arg1[%c0_20, %c2, %c0_21] : memref<1x328x8xf32, #tpu.memory_space<vmem>>, vector<1x144x8xf32>
    %37 = vector.shape_cast %36 : vector<1x144x8xf32> to vector<144x8xf32>
    %c2_22 = arith.constant 2 : index
    %c0_23 = arith.constant 0 : index
    %c0_24 = arith.constant 0 : index
    %38 = vector.load %arg2[%c2_22, %c0_23, %c0_24] : memref<9x8x128xf32, #tpu.memory_space<vmem>>, vector<1x8x128xf32>
    %39 = vector.shape_cast %38 : vector<1x8x128xf32> to vector<8x128xf32>
    %cst_25 = arith.constant dense<0.000000e+00> : vector<144x128xf32>
    %40 = tpu.matmul %37, %39, %cst_25 {dimension_numbers = #tpu.dot_dimension_numbers<[1], [0], [0], [1], [0, 0, 1, 1], [], []>} : vector<144x8xf32>, vector<8x128xf32>, vector<144x128xf32> -> vector<144x128xf32>
    %41 = arith.addf %35, %40 : vector<144x128xf32>
    %c0_26 = arith.constant 0 : index
    %c18 = arith.constant 18 : index
    %c0_27 = arith.constant 0 : index
    %42 = vector.load %arg1[%c0_26, %c18, %c0_27] : memref<1x328x8xf32, #tpu.memory_space<vmem>>, vector<1x144x8xf32>
    %43 = vector.shape_cast %42 : vector<1x144x8xf32> to vector<144x8xf32>
    %c3 = arith.constant 3 : index
    %c0_28 = arith.constant 0 : index
    %c0_29 = arith.constant 0 : index
    %44 = vector.load %arg2[%c3, %c0_28, %c0_29] : memref<9x8x128xf32, #tpu.memory_space<vmem>>, vector<1x8x128xf32>
    %45 = vector.shape_cast %44 : vector<1x8x128xf32> to vector<8x128xf32>
    %cst_30 = arith.constant dense<0.000000e+00> : vector<144x128xf32>
    %46 = tpu.matmul %43, %45, %cst_30 {dimension_numbers = #tpu.dot_dimension_numbers<[1], [0], [0], [1], [0, 0, 1, 1], [], []>} : vector<144x8xf32>, vector<8x128xf32>, vector<144x128xf32> -> vector<144x128xf32>
    %47 = arith.addf %41, %46 : vector<144x128xf32>
    %c0_31 = arith.constant 0 : index
    %c19 = arith.constant 19 : index
    %c0_32 = arith.constant 0 : index
    %48 = vector.load %arg1[%c0_31, %c19, %c0_32] : memref<1x328x8xf32, #tpu.memory_space<vmem>>, vector<1x144x8xf32>
    %49 = vector.shape_cast %48 : vector<1x144x8xf32> to vector<144x8xf32>
    %c4 = arith.constant 4 : index
    %c0_33 = arith.constant 0 : index
    %c0_34 = arith.constant 0 : index
    %50 = vector.load %arg2[%c4, %c0_33, %c0_34] : memref<9x8x128xf32, #tpu.memory_space<vmem>>, vector<1x8x128xf32>
    %51 = vector.shape_cast %50 : vector<1x8x128xf32> to vector<8x128xf32>
    %cst_35 = arith.constant dense<0.000000e+00> : vector<144x128xf32>
    %52 = tpu.matmul %49, %51, %cst_35 {dimension_numbers = #tpu.dot_dimension_numbers<[1], [0], [0], [1], [0, 0, 1, 1], [], []>} : vector<144x8xf32>, vector<8x128xf32>, vector<144x128xf32> -> vector<144x128xf32>
    %53 = arith.addf %47, %52 : vector<144x128xf32>
    %c0_36 = arith.constant 0 : index
    %c20 = arith.constant 20 : index
    %c0_37 = arith.constant 0 : index
    %54 = vector.load %arg1[%c0_36, %c20, %c0_37] : memref<1x328x8xf32, #tpu.memory_space<vmem>>, vector<1x144x8xf32>
    %55 = vector.shape_cast %54 : vector<1x144x8xf32> to vector<144x8xf32>
    %c5 = arith.constant 5 : index
    %c0_38 = arith.constant 0 : index
    %c0_39 = arith.constant 0 : index
    %56 = vector.load %arg2[%c5, %c0_38, %c0_39] : memref<9x8x128xf32, #tpu.memory_space<vmem>>, vector<1x8x128xf32>
    %57 = vector.shape_cast %56 : vector<1x8x128xf32> to vector<8x128xf32>
    %cst_40 = arith.constant dense<0.000000e+00> : vector<144x128xf32>
    %58 = tpu.matmul %55, %57, %cst_40 {dimension_numbers = #tpu.dot_dimension_numbers<[1], [0], [0], [1], [0, 0, 1, 1], [], []>} : vector<144x8xf32>, vector<8x128xf32>, vector<144x128xf32> -> vector<144x128xf32>
    %59 = arith.addf %53, %58 : vector<144x128xf32>
    %c0_41 = arith.constant 0 : index
    %c36 = arith.constant 36 : index
    %c0_42 = arith.constant 0 : index
    %60 = vector.load %arg1[%c0_41, %c36, %c0_42] : memref<1x328x8xf32, #tpu.memory_space<vmem>>, vector<1x144x8xf32>
    %61 = vector.shape_cast %60 : vector<1x144x8xf32> to vector<144x8xf32>
    %c6 = arith.constant 6 : index
    %c0_43 = arith.constant 0 : index
    %c0_44 = arith.constant 0 : index
    %62 = vector.load %arg2[%c6, %c0_43, %c0_44] : memref<9x8x128xf32, #tpu.memory_space<vmem>>, vector<1x8x128xf32>
    %63 = vector.shape_cast %62 : vector<1x8x128xf32> to vector<8x128xf32>
    %cst_45 = arith.constant dense<0.000000e+00> : vector<144x128xf32>
    %64 = tpu.matmul %61, %63, %cst_45 {dimension_numbers = #tpu.dot_dimension_numbers<[1], [0], [0], [1], [0, 0, 1, 1], [], []>} : vector<144x8xf32>, vector<8x128xf32>, vector<144x128xf32> -> vector<144x128xf32>
    %65 = arith.addf %59, %64 : vector<144x128xf32>
    %c0_46 = arith.constant 0 : index
    %c37 = arith.constant 37 : index
    %c0_47 = arith.constant 0 : index
    %66 = vector.load %arg1[%c0_46, %c37, %c0_47] : memref<1x328x8xf32, #tpu.memory_space<vmem>>, vector<1x144x8xf32>
    %67 = vector.shape_cast %66 : vector<1x144x8xf32> to vector<144x8xf32>
    %c7 = arith.constant 7 : index
    %c0_48 = arith.constant 0 : index
    %c0_49 = arith.constant 0 : index
    %68 = vector.load %arg2[%c7, %c0_48, %c0_49] : memref<9x8x128xf32, #tpu.memory_space<vmem>>, vector<1x8x128xf32>
    %69 = vector.shape_cast %68 : vector<1x8x128xf32> to vector<8x128xf32>
    %cst_50 = arith.constant dense<0.000000e+00> : vector<144x128xf32>
    %70 = tpu.matmul %67, %69, %cst_50 {dimension_numbers = #tpu.dot_dimension_numbers<[1], [0], [0], [1], [0, 0, 1, 1], [], []>} : vector<144x8xf32>, vector<8x128xf32>, vector<144x128xf32> -> vector<144x128xf32>
    %71 = arith.addf %65, %70 : vector<144x128xf32>
    %c0_51 = arith.constant 0 : index
    %c38 = arith.constant 38 : index
    %c0_52 = arith.constant 0 : index
    %72 = vector.load %arg1[%c0_51, %c38, %c0_52] : memref<1x328x8xf32, #tpu.memory_space<vmem>>, vector<1x144x8xf32>
    %73 = vector.shape_cast %72 : vector<1x144x8xf32> to vector<144x8xf32>
    %c8 = arith.constant 8 : index
    %c0_53 = arith.constant 0 : index
    %c0_54 = arith.constant 0 : index
    %74 = vector.load %arg2[%c8, %c0_53, %c0_54] : memref<9x8x128xf32, #tpu.memory_space<vmem>>, vector<1x8x128xf32>
    %75 = vector.shape_cast %74 : vector<1x8x128xf32> to vector<8x128xf32>
    %cst_55 = arith.constant dense<0.000000e+00> : vector<144x128xf32>
    %76 = tpu.matmul %73, %75, %cst_55 {dimension_numbers = #tpu.dot_dimension_numbers<[1], [0], [0], [1], [0, 0, 1, 1], [], []>} : vector<144x8xf32>, vector<8x128xf32>, vector<144x128xf32> -> vector<144x128xf32>
    %77 = arith.addf %71, %76 : vector<144x128xf32>
    %c0_56 = arith.constant 0 : index
    %c0_57 = arith.constant 0 : index
    %78 = vector.load %arg3[%c0_56, %c0_57] : memref<1x128xf32, #tpu.memory_space<vmem>>, vector<1x128xf32>
    %79 = vector.broadcast %78 : vector<1x128xf32> to vector<144x128xf32>
    %80 = arith.addf %77, %79 : vector<144x128xf32>
    %cst_58 = arith.constant 0.000000e+00 : f32
    %81 = vector.broadcast %cst_58 : f32 to vector<144x128xf32>
    %82 = arith.maximumf %80, %81 : vector<144x128xf32>
    %cst_59 = arith.constant 0.000000e+00 : f32
    %83 = vector.shape_cast %22 : vector<144x1xi1> to vector<144x1xi1>
    %84 = vector.broadcast %83 : vector<144x1xi1> to vector<144x128xi1>
    %85 = vector.broadcast %cst_59 : f32 to vector<144x128xf32>
    %86 = arith.select %84, %82, %85 : vector<144x128xi1>, vector<144x128xf32>
    %c19_60 = arith.constant 19 : index
    %c0_61 = arith.constant 0 : index
    %87 = vector.load %arg9[%c19_60, %c0_61] : memref<328x128xf32, #tpu.memory_space<vmem>>, vector<144x128xf32>
    tpu.vector_store %arg9[%c19_60, %c0_61], %86 {strides = array<i32>} : memref<328x128xf32, #tpu.memory_space<vmem>>, vector<144x128xf32>,
    %cst_62 = arith.constant 0.000000e+00 : f32
    %88 = vector.broadcast %cst_62 : f32 to vector<144x128xf32>
    %c0_63 = arith.constant 0 : index
    %c144 = arith.constant 144 : index
    %c0_64 = arith.constant 0 : index
    %89 = vector.load %arg1[%c0_63, %c144, %c0_64] : memref<1x328x8xf32, #tpu.memory_space<vmem>>, vector<1x144x8xf32>
    %90 = vector.shape_cast %89 : vector<1x144x8xf32> to vector<144x8xf32>
    %c0_65 = arith.constant 0 : index
    %c0_66 = arith.constant 0 : index
    %c0_67 = arith.constant 0 : index
    %91 = vector.load %arg2[%c0_65, %c0_66, %c0_67] : memref<9x8x128xf32, #tpu.memory_space<vmem>>, vector<1x8x128xf32>
    %92 = vector.shape_cast %91 : vector<1x8x128xf32> to vector<8x128xf32>
    %cst_68 = arith.constant dense<0.000000e+00> : vector<144x128xf32>
    %93 = tpu.matmul %90, %92, %cst_68 {dimension_numbers = #tpu.dot_dimension_numbers<[1], [0], [0], [1], [0, 0, 1, 1], [], []>} : vector<144x8xf32>, vector<8x128xf32>, vector<144x128xf32> -> vector<144x128xf32>
    %94 = arith.addf %88, %93 : vector<144x128xf32>
    %c0_69 = arith.constant 0 : index
    %c145 = arith.constant 145 : index
    %c0_70 = arith.constant 0 : index
    %95 = vector.load %arg1[%c0_69, %c145, %c0_70] : memref<1x328x8xf32, #tpu.memory_space<vmem>>, vector<1x144x8xf32>
    %96 = vector.shape_cast %95 : vector<1x144x8xf32> to vector<144x8xf32>
    %c1_71 = arith.constant 1 : index
    %c0_72 = arith.constant 0 : index
    %c0_73 = arith.constant 0 : index
    %97 = vector.load %arg2[%c1_71, %c0_72, %c0_73] : memref<9x8x128xf32, #tpu.memory_space<vmem>>, vector<1x8x128xf32>
    %98 = vector.shape_cast %97 : vector<1x8x128xf32> to vector<8x128xf32>
    %cst_74 = arith.constant dense<0.000000e+00> : vector<144x128xf32>
    %99 = tpu.matmul %96, %98, %cst_74 {dimension_numbers = #tpu.dot_dimension_numbers<[1], [0], [0], [1], [0, 0, 1, 1], [], []>} : vector<144x8xf32>, vector<8x128xf32>, vector<144x128xf32> -> vector<144x128xf32>
    %100 = arith.addf %94, %99 : vector<144x128xf32>
    %c0_75 = arith.constant 0 : index
    %c146 = arith.constant 146 : index
    %c0_76 = arith.constant 0 : index
    %101 = vector.load %arg1[%c0_75, %c146, %c0_76] : memref<1x328x8xf32, #tpu.memory_space<vmem>>, vector<1x144x8xf32>
    %102 = vector.shape_cast %101 : vector<1x144x8xf32> to vector<144x8xf32>
    %c2_77 = arith.constant 2 : index
    %c0_78 = arith.constant 0 : index
    %c0_79 = arith.constant 0 : index
    %103 = vector.load %arg2[%c2_77, %c0_78, %c0_79] : memref<9x8x128xf32, #tpu.memory_space<vmem>>, vector<1x8x128xf32>
    %104 = vector.shape_cast %103 : vector<1x8x128xf32> to vector<8x128xf32>
    %cst_80 = arith.constant dense<0.000000e+00> : vector<144x128xf32>
    %105 = tpu.matmul %102, %104, %cst_80 {dimension_numbers = #tpu.dot_dimension_numbers<[1], [0], [0], [1], [0, 0, 1, 1], [], []>} : vector<144x8xf32>, vector<8x128xf32>, vector<144x128xf32> -> vector<144x128xf32>
    %106 = arith.addf %100, %105 : vector<144x128xf32>
    %c0_81 = arith.constant 0 : index
    %c162 = arith.constant 162 : index
    %c0_82 = arith.constant 0 : index
    %107 = vector.load %arg1[%c0_81, %c162, %c0_82] : memref<1x328x8xf32, #tpu.memory_space<vmem>>, vector<1x144x8xf32>
    %108 = vector.shape_cast %107 : vector<1x144x8xf32> to vector<144x8xf32>
    %c3_83 = arith.constant 3 : index
    %c0_84 = arith.constant 0 : index
    %c0_85 = arith.constant 0 : index
    %109 = vector.load %arg2[%c3_83, %c0_84, %c0_85] : memref<9x8x128xf32, #tpu.memory_space<vmem>>, vector<1x8x128xf32>
    %110 = vector.shape_cast %109 : vector<1x8x128xf32> to vector<8x128xf32>
    %cst_86 = arith.constant dense<0.000000e+00> : vector<144x128xf32>
    %111 = tpu.matmul %108, %110, %cst_86 {dimension_numbers = #tpu.dot_dimension_numbers<[1], [0], [0], [1], [0, 0, 1, 1], [], []>} : vector<144x8xf32>, vector<8x128xf32>, vector<144x128xf32> -> vector<144x128xf32>
    %112 = arith.addf %106, %111 : vector<144x128xf32>
    %c0_87 = arith.constant 0 : index
    %c163 = arith.constant 163 : index
    %c0_88 = arith.constant 0 : index
    %113 = vector.load %arg1[%c0_87, %c163, %c0_88] : memref<1x328x8xf32, #tpu.memory_space<vmem>>, vector<1x144x8xf32>
    %114 = vector.shape_cast %113 : vector<1x144x8xf32> to vector<144x8xf32>
    %c4_89 = arith.constant 4 : index
    %c0_90 = arith.constant 0 : index
    %c0_91 = arith.constant 0 : index
    %115 = vector.load %arg2[%c4_89, %c0_90, %c0_91] : memref<9x8x128xf32, #tpu.memory_space<vmem>>, vector<1x8x128xf32>
    %116 = vector.shape_cast %115 : vector<1x8x128xf32> to vector<8x128xf32>
    %cst_92 = arith.constant dense<0.000000e+00> : vector<144x128xf32>
    %117 = tpu.matmul %114, %116, %cst_92 {dimension_numbers = #tpu.dot_dimension_numbers<[1], [0], [0], [1], [0, 0, 1, 1], [], []>} : vector<144x8xf32>, vector<8x128xf32>, vector<144x128xf32> -> vector<144x128xf32>
    %118 = arith.addf %112, %117 : vector<144x128xf32>
    %c0_93 = arith.constant 0 : index
    %c164 = arith.constant 164 : index
    %c0_94 = arith.constant 0 : index
    %119 = vector.load %arg1[%c0_93, %c164, %c0_94] : memref<1x328x8xf32, #tpu.memory_space<vmem>>, vector<1x144x8xf32>
    %120 = vector.shape_cast %119 : vector<1x144x8xf32> to vector<144x8xf32>
    %c5_95 = arith.constant 5 : index
    %c0_96 = arith.constant 0 : index
    %c0_97 = arith.constant 0 : index
    %121 = vector.load %arg2[%c5_95, %c0_96, %c0_97] : memref<9x8x128xf32, #tpu.memory_space<vmem>>, vector<1x8x128xf32>
    %122 = vector.shape_cast %121 : vector<1x8x128xf32> to vector<8x128xf32>
    %cst_98 = arith.constant dense<0.000000e+00> : vector<144x128xf32>
    %123 = tpu.matmul %120, %122, %cst_98 {dimension_numbers = #tpu.dot_dimension_numbers<[1], [0], [0], [1], [0, 0, 1, 1], [], []>} : vector<144x8xf32>, vector<8x128xf32>, vector<144x128xf32> -> vector<144x128xf32>
    %124 = arith.addf %118, %123 : vector<144x128xf32>
    %c0_99 = arith.constant 0 : index
    %c180 = arith.constant 180 : index
    %c0_100 = arith.constant 0 : index
    %125 = vector.load %arg1[%c0_99, %c180, %c0_100] : memref<1x328x8xf32, #tpu.memory_space<vmem>>, vector<1x144x8xf32>
    %126 = vector.shape_cast %125 : vector<1x144x8xf32> to vector<144x8xf32>
    %c6_101 = arith.constant 6 : index
    %c0_102 = arith.constant 0 : index
    %c0_103 = arith.constant 0 : index
    %127 = vector.load %arg2[%c6_101, %c0_102, %c0_103] : memref<9x8x128xf32, #tpu.memory_space<vmem>>, vector<1x8x128xf32>
    %128 = vector.shape_cast %127 : vector<1x8x128xf32> to vector<8x128xf32>
    %cst_104 = arith.constant dense<0.000000e+00> : vector<144x128xf32>
    %129 = tpu.matmul %126, %128, %cst_104 {dimension_numbers = #tpu.dot_dimension_numbers<[1], [0], [0], [1], [0, 0, 1, 1], [], []>} : vector<144x8xf32>, vector<8x128xf32>, vector<144x128xf32> -> vector<144x128xf32>
    %130 = arith.addf %124, %129 : vector<144x128xf32>
    %c0_105 = arith.constant 0 : index
    %c181 = arith.constant 181 : index
    %c0_106 = arith.constant 0 : index
    %131 = vector.load %arg1[%c0_105, %c181, %c0_106] : memref<1x328x8xf32, #tpu.memory_space<vmem>>, vector<1x144x8xf32>
    %132 = vector.shape_cast %131 : vector<1x144x8xf32> to vector<144x8xf32>
    %c7_107 = arith.constant 7 : index
    %c0_108 = arith.constant 0 : index
    %c0_109 = arith.constant 0 : index
    %133 = vector.load %arg2[%c7_107, %c0_108, %c0_109] : memref<9x8x128xf32, #tpu.memory_space<vmem>>, vector<1x8x128xf32>
    %134 = vector.shape_cast %133 : vector<1x8x128xf32> to vector<8x128xf32>
    %cst_110 = arith.constant dense<0.000000e+00> : vector<144x128xf32>
    %135 = tpu.matmul %132, %134, %cst_110 {dimension_numbers = #tpu.dot_dimension_numbers<[1], [0], [0], [1], [0, 0, 1, 1], [], []>} : vector<144x8xf32>, vector<8x128xf32>, vector<144x128xf32> -> vector<144x128xf32>
    %136 = arith.addf %130, %135 : vector<144x128xf32>
    %c0_111 = arith.constant 0 : index
    %c182 = arith.constant 182 : index
    %c0_112 = arith.constant 0 : index
    %137 = vector.load %arg1[%c0_111, %c182, %c0_112] : memref<1x328x8xf32, #tpu.memory_space<vmem>>, vector<1x144x8xf32>
    %138 = vector.shape_cast %137 : vector<1x144x8xf32> to vector<144x8xf32>
    %c8_113 = arith.constant 8 : index
    %c0_114 = arith.constant 0 : index
    %c0_115 = arith.constant 0 : index
    %139 = vector.load %arg2[%c8_113, %c0_114, %c0_115] : memref<9x8x128xf32, #tpu.memory_space<vmem>>, vector<1x8x128xf32>
    %140 = vector.shape_cast %139 : vector<1x8x128xf32> to vector<8x128xf32>
    %cst_116 = arith.constant dense<0.000000e+00> : vector<144x128xf32>
    %141 = tpu.matmul %138, %140, %cst_116 {dimension_numbers = #tpu.dot_dimension_numbers<[1], [0], [0], [1], [0, 0, 1, 1], [], []>} : vector<144x8xf32>, vector<8x128xf32>, vector<144x128xf32> -> vector<144x128xf32>
    %142 = arith.addf %136, %141 : vector<144x128xf32>
    %c0_117 = arith.constant 0 : index
    %c0_118 = arith.constant 0 : index
    %143 = vector.load %arg3[%c0_117, %c0_118] : memref<1x128xf32, #tpu.memory_space<vmem>>, vector<1x128xf32>
    %144 = vector.broadcast %143 : vector<1x128xf32> to vector<144x128xf32>
    %145 = arith.addf %142, %144 : vector<144x128xf32>
    %cst_119 = arith.constant 0.000000e+00 : f32
    %146 = vector.broadcast %cst_119 : f32 to vector<144x128xf32>
    %147 = arith.maximumf %145, %146 : vector<144x128xf32>
    %cst_120 = arith.constant 0.000000e+00 : f32
    %148 = vector.shape_cast %22 : vector<144x1xi1> to vector<144x1xi1>
    %149 = vector.broadcast %148 : vector<144x1xi1> to vector<144x128xi1>
    %150 = vector.broadcast %cst_120 : f32 to vector<144x128xf32>
    %151 = arith.select %149, %147, %150 : vector<144x128xi1>, vector<144x128xf32>
    %c163_121 = arith.constant 163 : index
    %c0_122 = arith.constant 0 : index
    %152 = vector.load %arg9[%c163_121, %c0_122] : memref<328x128xf32, #tpu.memory_space<vmem>>, vector<144x128xf32>
    tpu.vector_store %arg9[%c163_121, %c0_122], %151 {strides = array<i32>} : memref<328x128xf32, #tpu.memory_space<vmem>>, vector<144x128xf32>,
    %cst_123 = arith.constant 0.000000e+00 : f32
    %153 = vector.broadcast %cst_123 : f32 to vector<144x128xf32>
    %c0_124 = arith.constant 0 : index
    %c0_125 = arith.constant 0 : index
    %154 = vector.load %arg9[%c0_124, %c0_125] : memref<328x128xf32, #tpu.memory_space<vmem>>, vector<144x128xf32>
    %c0_126 = arith.constant 0 : index
    %c0_127 = arith.constant 0 : index
    %c0_128 = arith.constant 0 : index
    %155 = vector.load %arg4[%c0_126, %c0_127, %c0_128] : memref<9x128x128xf32, #tpu.memory_space<vmem>>, vector<1x128x128xf32>
    %156 = vector.shape_cast %155 : vector<1x128x128xf32> to vector<128x128xf32>
    %cst_129 = arith.constant dense<0.000000e+00> : vector<144x128xf32>
    %157 = tpu.matmul %154, %156, %cst_129 {dimension_numbers = #tpu.dot_dimension_numbers<[1], [0], [0], [1], [0, 0, 1, 1], [], []>} : vector<144x128xf32>, vector<128x128xf32>, vector<144x128xf32> -> vector<144x128xf32>
    %158 = arith.addf %153, %157 : vector<144x128xf32>
    %c1_130 = arith.constant 1 : index
    %c0_131 = arith.constant 0 : index
    %159 = vector.load %arg9[%c1_130, %c0_131] : memref<328x128xf32, #tpu.memory_space<vmem>>, vector<144x128xf32>
    %c1_132 = arith.constant 1 : index
    %c0_133 = arith.constant 0 : index
    %c0_134 = arith.constant 0 : index
    %160 = vector.load %arg4[%c1_132, %c0_133, %c0_134] : memref<9x128x128xf32, #tpu.memory_space<vmem>>, vector<1x128x128xf32>
    %161 = vector.shape_cast %160 : vector<1x128x128xf32> to vector<128x128xf32>
    %cst_135 = arith.constant dense<0.000000e+00> : vector<144x128xf32>
    %162 = tpu.matmul %159, %161, %cst_135 {dimension_numbers = #tpu.dot_dimension_numbers<[1], [0], [0], [1], [0, 0, 1, 1], [], []>} : vector<144x128xf32>, vector<128x128xf32>, vector<144x128xf32> -> vector<144x128xf32>
    %163 = arith.addf %158, %162 : vector<144x128xf32>
    %c2_136 = arith.constant 2 : index
    %c0_137 = arith.constant 0 : index
    %164 = vector.load %arg9[%c2_136, %c0_137] : memref<328x128xf32, #tpu.memory_space<vmem>>, vector<144x128xf32>
    %c2_138 = arith.constant 2 : index
    %c0_139 = arith.constant 0 : index
    %c0_140 = arith.constant 0 : index
    %165 = vector.load %arg4[%c2_138, %c0_139, %c0_140] : memref<9x128x128xf32, #tpu.memory_space<vmem>>, vector<1x128x128xf32>
    %166 = vector.shape_cast %165 : vector<1x128x128xf32> to vector<128x128xf32>
    %cst_141 = arith.constant dense<0.000000e+00> : vector<144x128xf32>
    %167 = tpu.matmul %164, %166, %cst_141 {dimension_numbers = #tpu.dot_dimension_numbers<[1], [0], [0], [1], [0, 0, 1, 1], [], []>} : vector<144x128xf32>, vector<128x128xf32>, vector<144x128xf32> -> vector<144x128xf32>
    %168 = arith.addf %163, %167 : vector<144x128xf32>
    %c18_142 = arith.constant 18 : index
    %c0_143 = arith.constant 0 : index
    %169 = vector.load %arg9[%c18_142, %c0_143] : memref<328x128xf32, #tpu.memory_space<vmem>>, vector<144x128xf32>
    %c3_144 = arith.constant 3 : index
    %c0_145 = arith.constant 0 : index
    %c0_146 = arith.constant 0 : index
    %170 = vector.load %arg4[%c3_144, %c0_145, %c0_146] : memref<9x128x128xf32, #tpu.memory_space<vmem>>, vector<1x128x128xf32>
    %171 = vector.shape_cast %170 : vector<1x128x128xf32> to vector<128x128xf32>
    %cst_147 = arith.constant dense<0.000000e+00> : vector<144x128xf32>
    %172 = tpu.matmul %169, %171, %cst_147 {dimension_numbers = #tpu.dot_dimension_numbers<[1], [0], [0], [1], [0, 0, 1, 1], [], []>} : vector<144x128xf32>, vector<128x128xf32>, vector<144x128xf32> -> vector<144x128xf32>
    %173 = arith.addf %168, %172 : vector<144x128xf32>
    %c19_148 = arith.constant 19 : index
    %c0_149 = arith.constant 0 : index
    %174 = vector.load %arg9[%c19_148, %c0_149] : memref<328x128xf32, #tpu.memory_space<vmem>>, vector<144x128xf32>
    %c4_150 = arith.constant 4 : index
    %c0_151 = arith.constant 0 : index
    %c0_152 = arith.constant 0 : index
    %175 = vector.load %arg4[%c4_150, %c0_151, %c0_152] : memref<9x128x128xf32, #tpu.memory_space<vmem>>, vector<1x128x128xf32>
    %176 = vector.shape_cast %175 : vector<1x128x128xf32> to vector<128x128xf32>
    %cst_153 = arith.constant dense<0.000000e+00> : vector<144x128xf32>
    %177 = tpu.matmul %174, %176, %cst_153 {dimension_numbers = #tpu.dot_dimension_numbers<[1], [0], [0], [1], [0, 0, 1, 1], [], []>} : vector<144x128xf32>, vector<128x128xf32>, vector<144x128xf32> -> vector<144x128xf32>
    %178 = arith.addf %173, %177 : vector<144x128xf32>
    %c20_154 = arith.constant 20 : index
    %c0_155 = arith.constant 0 : index
    %179 = vector.load %arg9[%c20_154, %c0_155] : memref<328x128xf32, #tpu.memory_space<vmem>>, vector<144x128xf32>
    %c5_156 = arith.constant 5 : index
    %c0_157 = arith.constant 0 : index
    %c0_158 = arith.constant 0 : index
    %180 = vector.load %arg4[%c5_156, %c0_157, %c0_158] : memref<9x128x128xf32, #tpu.memory_space<vmem>>, vector<1x128x128xf32>
    %181 = vector.shape_cast %180 : vector<1x128x128xf32> to vector<128x128xf32>
    %cst_159 = arith.constant dense<0.000000e+00> : vector<144x128xf32>
    %182 = tpu.matmul %179, %181, %cst_159 {dimension_numbers = #tpu.dot_dimension_numbers<[1], [0], [0], [1], [0, 0, 1, 1], [], []>} : vector<144x128xf32>, vector<128x128xf32>, vector<144x128xf32> -> vector<144x128xf32>
    %183 = arith.addf %178, %182 : vector<144x128xf32>
    %c36_160 = arith.constant 36 : index
    %c0_161 = arith.constant 0 : index
    %184 = vector.load %arg9[%c36_160, %c0_161] : memref<328x128xf32, #tpu.memory_space<vmem>>, vector<144x128xf32>
    %c6_162 = arith.constant 6 : index
    %c0_163 = arith.constant 0 : index
    %c0_164 = arith.constant 0 : index
    %185 = vector.load %arg4[%c6_162, %c0_163, %c0_164] : memref<9x128x128xf32, #tpu.memory_space<vmem>>, vector<1x128x128xf32>
    %186 = vector.shape_cast %185 : vector<1x128x128xf32> to vector<128x128xf32>
    %cst_165 = arith.constant dense<0.000000e+00> : vector<144x128xf32>
    %187 = tpu.matmul %184, %186, %cst_165 {dimension_numbers = #tpu.dot_dimension_numbers<[1], [0], [0], [1], [0, 0, 1, 1], [], []>} : vector<144x128xf32>, vector<128x128xf32>, vector<144x128xf32> -> vector<144x128xf32>
    %188 = arith.addf %183, %187 : vector<144x128xf32>
    %c37_166 = arith.constant 37 : index
    %c0_167 = arith.constant 0 : index
    %189 = vector.load %arg9[%c37_166, %c0_167] : memref<328x128xf32, #tpu.memory_space<vmem>>, vector<144x128xf32>
    %c7_168 = arith.constant 7 : index
    %c0_169 = arith.constant 0 : index
    %c0_170 = arith.constant 0 : index
    %190 = vector.load %arg4[%c7_168, %c0_169, %c0_170] : memref<9x128x128xf32, #tpu.memory_space<vmem>>, vector<1x128x128xf32>
    %191 = vector.shape_cast %190 : vector<1x128x128xf32> to vector<128x128xf32>
    %cst_171 = arith.constant dense<0.000000e+00> : vector<144x128xf32>
    %192 = tpu.matmul %189, %191, %cst_171 {dimension_numbers = #tpu.dot_dimension_numbers<[1], [0], [0], [1], [0, 0, 1, 1], [], []>} : vector<144x128xf32>, vector<128x128xf32>, vector<144x128xf32> -> vector<144x128xf32>
    %193 = arith.addf %188, %192 : vector<144x128xf32>
    %c38_172 = arith.constant 38 : index
    %c0_173 = arith.constant 0 : index
    %194 = vector.load %arg9[%c38_172, %c0_173] : memref<328x128xf32, #tpu.memory_space<vmem>>, vector<144x128xf32>
    %c8_174 = arith.constant 8 : index
    %c0_175 = arith.constant 0 : index
    %c0_176 = arith.constant 0 : index
    %195 = vector.load %arg4[%c8_174, %c0_175, %c0_176] : memref<9x128x128xf32, #tpu.memory_space<vmem>>, vector<1x128x128xf32>
    %196 = vector.shape_cast %195 : vector<1x128x128xf32> to vector<128x128xf32>
    %cst_177 = arith.constant dense<0.000000e+00> : vector<144x128xf32>
    %197 = tpu.matmul %194, %196, %cst_177 {dimension_numbers = #tpu.dot_dimension_numbers<[1], [0], [0], [1], [0, 0, 1, 1], [], []>} : vector<144x128xf32>, vector<128x128xf32>, vector<144x128xf32> -> vector<144x128xf32>
    %198 = arith.addf %193, %197 : vector<144x128xf32>
    %c0_178 = arith.constant 0 : index
    %c0_179 = arith.constant 0 : index
    %199 = vector.load %arg5[%c0_178, %c0_179] : memref<1x128xf32, #tpu.memory_space<vmem>>, vector<1x128xf32>
    %200 = vector.broadcast %199 : vector<1x128xf32> to vector<144x128xf32>
    %201 = arith.addf %198, %200 : vector<144x128xf32>
    %cst_180 = arith.constant 0.000000e+00 : f32
    %202 = vector.broadcast %cst_180 : f32 to vector<144x128xf32>
    %203 = arith.maximumf %201, %202 : vector<144x128xf32>
    %c0_181 = arith.constant 0 : index
    %c0_182 = arith.constant 0 : index
    %204 = vector.load %arg6[%c0_181, %c0_182] : memref<128x128xf32, #tpu.memory_space<vmem>>, vector<128x128xf32>
    %cst_183 = arith.constant dense<0.000000e+00> : vector<144x128xf32>
    %205 = tpu.matmul %203, %204, %cst_183 {dimension_numbers = #tpu.dot_dimension_numbers<[1], [0], [0], [1], [0, 0, 1, 1], [], []>} : vector<144x128xf32>, vector<128x128xf32>, vector<144x128xf32> -> vector<144x128xf32>
    %c0_184 = arith.constant 0 : index
    %c0_185 = arith.constant 0 : index
    %206 = vector.load %arg7[%c0_184, %c0_185] : memref<1x128xf32, #tpu.memory_space<vmem>>, vector<1x128xf32>
    %207 = vector.broadcast %206 : vector<1x128xf32> to vector<144x128xf32>
    %208 = arith.addf %205, %207 : vector<144x128xf32>
    %c0_186 = arith.constant 0 : index
    %c19_187 = arith.constant 19 : index
    %c0_188 = arith.constant 0 : index
    %209 = vector.load %arg1[%c0_186, %c19_187, %c0_188] : memref<1x328x8xf32, #tpu.memory_space<vmem>>, vector<1x144x8xf32>
    %210 = vector.shape_cast %209 : vector<1x144x8xf32> to vector<144x8xf32>
    %211 = vector.extract_strided_slice %208 {offsets = [0, 0], sizes = [144, 8], strides = [1, 1]} : vector<144x128xf32> to vector<144x8xf32>
    %212 = arith.addf %211, %210 : vector<144x8xf32>
    %cst_189 = arith.constant 0.000000e+00 : f32
    %213 = vector.broadcast %cst_189 : f32 to vector<144x8xf32>
    %214 = arith.maximumf %212, %213 : vector<144x8xf32>
    %c0_190 = arith.constant 0 : index
    %c0_191 = arith.constant 0 : index
    %c0_192 = arith.constant 0 : index
    %215 = vector.load %arg8[%c0_190, %c0_191, %c0_192] : memref<1x288x8xf32, #tpu.memory_space<vmem>>, vector<1x144x8xf32>
    %216 = vector.shape_cast %215 : vector<1x144x8xf32> to vector<144x8xf32>
    %217 = vector.shape_cast %214 : vector<144x8xf32> to vector<1x144x8xf32>
    tpu.vector_store %arg8[%c0_190, %c0_191, %c0_192], %217 {strides = array<i32>} : memref<1x288x8xf32, #tpu.memory_space<vmem>>, vector<1x144x8xf32>,
    %cst_193 = arith.constant 0.000000e+00 : f32
    %218 = vector.broadcast %cst_193 : f32 to vector<144x128xf32>
    %c144_194 = arith.constant 144 : index
    %c0_195 = arith.constant 0 : index
    %219 = vector.load %arg9[%c144_194, %c0_195] : memref<328x128xf32, #tpu.memory_space<vmem>>, vector<144x128xf32>
    %c0_196 = arith.constant 0 : index
    %c0_197 = arith.constant 0 : index
    %c0_198 = arith.constant 0 : index
    %220 = vector.load %arg4[%c0_196, %c0_197, %c0_198] : memref<9x128x128xf32, #tpu.memory_space<vmem>>, vector<1x128x128xf32>
    %221 = vector.shape_cast %220 : vector<1x128x128xf32> to vector<128x128xf32>
    %cst_199 = arith.constant dense<0.000000e+00> : vector<144x128xf32>
    %222 = tpu.matmul %219, %221, %cst_199 {dimension_numbers = #tpu.dot_dimension_numbers<[1], [0], [0], [1], [0, 0, 1, 1], [], []>} : vector<144x128xf32>, vector<128x128xf32>, vector<144x128xf32> -> vector<144x128xf32>
    %223 = arith.addf %218, %222 : vector<144x128xf32>
    %c145_200 = arith.constant 145 : index
    %c0_201 = arith.constant 0 : index
    %224 = vector.load %arg9[%c145_200, %c0_201] : memref<328x128xf32, #tpu.memory_space<vmem>>, vector<144x128xf32>
    %c1_202 = arith.constant 1 : index
    %c0_203 = arith.constant 0 : index
    %c0_204 = arith.constant 0 : index
    %225 = vector.load %arg4[%c1_202, %c0_203, %c0_204] : memref<9x128x128xf32, #tpu.memory_space<vmem>>, vector<1x128x128xf32>
    %226 = vector.shape_cast %225 : vector<1x128x128xf32> to vector<128x128xf32>
    %cst_205 = arith.constant dense<0.000000e+00> : vector<144x128xf32>
    %227 = tpu.matmul %224, %226, %cst_205 {dimension_numbers = #tpu.dot_dimension_numbers<[1], [0], [0], [1], [0, 0, 1, 1], [], []>} : vector<144x128xf32>, vector<128x128xf32>, vector<144x128xf32> -> vector<144x128xf32>
    %228 = arith.addf %223, %227 : vector<144x128xf32>
    %c146_206 = arith.constant 146 : index
    %c0_207 = arith.constant 0 : index
    %229 = vector.load %arg9[%c146_206, %c0_207] : memref<328x128xf32, #tpu.memory_space<vmem>>, vector<144x128xf32>
    %c2_208 = arith.constant 2 : index
    %c0_209 = arith.constant 0 : index
    %c0_210 = arith.constant 0 : index
    %230 = vector.load %arg4[%c2_208, %c0_209, %c0_210] : memref<9x128x128xf32, #tpu.memory_space<vmem>>, vector<1x128x128xf32>
    %231 = vector.shape_cast %230 : vector<1x128x128xf32> to vector<128x128xf32>
    %cst_211 = arith.constant dense<0.000000e+00> : vector<144x128xf32>
    %232 = tpu.matmul %229, %231, %cst_211 {dimension_numbers = #tpu.dot_dimension_numbers<[1], [0], [0], [1], [0, 0, 1, 1], [], []>} : vector<144x128xf32>, vector<128x128xf32>, vector<144x128xf32> -> vector<144x128xf32>
    %233 = arith.addf %228, %232 : vector<144x128xf32>
    %c162_212 = arith.constant 162 : index
    %c0_213 = arith.constant 0 : index
    %234 = vector.load %arg9[%c162_212, %c0_213] : memref<328x128xf32, #tpu.memory_space<vmem>>, vector<144x128xf32>
    %c3_214 = arith.constant 3 : index
    %c0_215 = arith.constant 0 : index
    %c0_216 = arith.constant 0 : index
    %235 = vector.load %arg4[%c3_214, %c0_215, %c0_216] : memref<9x128x128xf32, #tpu.memory_space<vmem>>, vector<1x128x128xf32>
    %236 = vector.shape_cast %235 : vector<1x128x128xf32> to vector<128x128xf32>
    %cst_217 = arith.constant dense<0.000000e+00> : vector<144x128xf32>
    %237 = tpu.matmul %234, %236, %cst_217 {dimension_numbers = #tpu.dot_dimension_numbers<[1], [0], [0], [1], [0, 0, 1, 1], [], []>} : vector<144x128xf32>, vector<128x128xf32>, vector<144x128xf32> -> vector<144x128xf32>
    %238 = arith.addf %233, %237 : vector<144x128xf32>
    %c163_218 = arith.constant 163 : index
    %c0_219 = arith.constant 0 : index
    %239 = vector.load %arg9[%c163_218, %c0_219] : memref<328x128xf32, #tpu.memory_space<vmem>>, vector<144x128xf32>
    %c4_220 = arith.constant 4 : index
    %c0_221 = arith.constant 0 : index
    %c0_222 = arith.constant 0 : index
    %240 = vector.load %arg4[%c4_220, %c0_221, %c0_222] : memref<9x128x128xf32, #tpu.memory_space<vmem>>, vector<1x128x128xf32>
    %241 = vector.shape_cast %240 : vector<1x128x128xf32> to vector<128x128xf32>
    %cst_223 = arith.constant dense<0.000000e+00> : vector<144x128xf32>
    %242 = tpu.matmul %239, %241, %cst_223 {dimension_numbers = #tpu.dot_dimension_numbers<[1], [0], [0], [1], [0, 0, 1, 1], [], []>} : vector<144x128xf32>, vector<128x128xf32>, vector<144x128xf32> -> vector<144x128xf32>
    %243 = arith.addf %238, %242 : vector<144x128xf32>
    %c164_224 = arith.constant 164 : index
    %c0_225 = arith.constant 0 : index
    %244 = vector.load %arg9[%c164_224, %c0_225] : memref<328x128xf32, #tpu.memory_space<vmem>>, vector<144x128xf32>
    %c5_226 = arith.constant 5 : index
    %c0_227 = arith.constant 0 : index
    %c0_228 = arith.constant 0 : index
    %245 = vector.load %arg4[%c5_226, %c0_227, %c0_228] : memref<9x128x128xf32, #tpu.memory_space<vmem>>, vector<1x128x128xf32>
    %246 = vector.shape_cast %245 : vector<1x128x128xf32> to vector<128x128xf32>
    %cst_229 = arith.constant dense<0.000000e+00> : vector<144x128xf32>
    %247 = tpu.matmul %244, %246, %cst_229 {dimension_numbers = #tpu.dot_dimension_numbers<[1], [0], [0], [1], [0, 0, 1, 1], [], []>} : vector<144x128xf32>, vector<128x128xf32>, vector<144x128xf32> -> vector<144x128xf32>
    %248 = arith.addf %243, %247 : vector<144x128xf32>
    %c180_230 = arith.constant 180 : index
    %c0_231 = arith.constant 0 : index
    %249 = vector.load %arg9[%c180_230, %c0_231] : memref<328x128xf32, #tpu.memory_space<vmem>>, vector<144x128xf32>
    %c6_232 = arith.constant 6 : index
    %c0_233 = arith.constant 0 : index
    %c0_234 = arith.constant 0 : index
    %250 = vector.load %arg4[%c6_232, %c0_233, %c0_234] : memref<9x128x128xf32, #tpu.memory_space<vmem>>, vector<1x128x128xf32>
    %251 = vector.shape_cast %250 : vector<1x128x128xf32> to vector<128x128xf32>
    %cst_235 = arith.constant dense<0.000000e+00> : vector<144x128xf32>
    %252 = tpu.matmul %249, %251, %cst_235 {dimension_numbers = #tpu.dot_dimension_numbers<[1], [0], [0], [1], [0, 0, 1, 1], [], []>} : vector<144x128xf32>, vector<128x128xf32>, vector<144x128xf32> -> vector<144x128xf32>
    %253 = arith.addf %248, %252 : vector<144x128xf32>
    %c181_236 = arith.constant 181 : index
    %c0_237 = arith.constant 0 : index
    %254 = vector.load %arg9[%c181_236, %c0_237] : memref<328x128xf32, #tpu.memory_space<vmem>>, vector<144x128xf32>
    %c7_238 = arith.constant 7 : index
    %c0_239 = arith.constant 0 : index
    %c0_240 = arith.constant 0 : index
    %255 = vector.load %arg4[%c7_238, %c0_239, %c0_240] : memref<9x128x128xf32, #tpu.memory_space<vmem>>, vector<1x128x128xf32>
    %256 = vector.shape_cast %255 : vector<1x128x128xf32> to vector<128x128xf32>
    %cst_241 = arith.constant dense<0.000000e+00> : vector<144x128xf32>
    %257 = tpu.matmul %254, %256, %cst_241 {dimension_numbers = #tpu.dot_dimension_numbers<[1], [0], [0], [1], [0, 0, 1, 1], [], []>} : vector<144x128xf32>, vector<128x128xf32>, vector<144x128xf32> -> vector<144x128xf32>
    %258 = arith.addf %253, %257 : vector<144x128xf32>
    %c182_242 = arith.constant 182 : index
    %c0_243 = arith.constant 0 : index
    %259 = vector.load %arg9[%c182_242, %c0_243] : memref<328x128xf32, #tpu.memory_space<vmem>>, vector<144x128xf32>
    %c8_244 = arith.constant 8 : index
    %c0_245 = arith.constant 0 : index
    %c0_246 = arith.constant 0 : index
    %260 = vector.load %arg4[%c8_244, %c0_245, %c0_246] : memref<9x128x128xf32, #tpu.memory_space<vmem>>, vector<1x128x128xf32>
    %261 = vector.shape_cast %260 : vector<1x128x128xf32> to vector<128x128xf32>
    %cst_247 = arith.constant dense<0.000000e+00> : vector<144x128xf32>
    %262 = tpu.matmul %259, %261, %cst_247 {dimension_numbers = #tpu.dot_dimension_numbers<[1], [0], [0], [1], [0, 0, 1, 1], [], []>} : vector<144x128xf32>, vector<128x128xf32>, vector<144x128xf32> -> vector<144x128xf32>
    %263 = arith.addf %258, %262 : vector<144x128xf32>
    %c0_248 = arith.constant 0 : index
    %c0_249 = arith.constant 0 : index
    %264 = vector.load %arg5[%c0_248, %c0_249] : memref<1x128xf32, #tpu.memory_space<vmem>>, vector<1x128xf32>
    %265 = vector.broadcast %264 : vector<1x128xf32> to vector<144x128xf32>
    %266 = arith.addf %263, %265 : vector<144x128xf32>
    %cst_250 = arith.constant 0.000000e+00 : f32
    %267 = vector.broadcast %cst_250 : f32 to vector<144x128xf32>
    %268 = arith.maximumf %266, %267 : vector<144x128xf32>
    %c0_251 = arith.constant 0 : index
    %c0_252 = arith.constant 0 : index
    %269 = vector.load %arg6[%c0_251, %c0_252] : memref<128x128xf32, #tpu.memory_space<vmem>>, vector<128x128xf32>
    %cst_253 = arith.constant dense<0.000000e+00> : vector<144x128xf32>
    %270 = tpu.matmul %268, %269, %cst_253 {dimension_numbers = #tpu.dot_dimension_numbers<[1], [0], [0], [1], [0, 0, 1, 1], [], []>} : vector<144x128xf32>, vector<128x128xf32>, vector<144x128xf32> -> vector<144x128xf32>
    %c0_254 = arith.constant 0 : index
    %c0_255 = arith.constant 0 : index
    %271 = vector.load %arg7[%c0_254, %c0_255] : memref<1x128xf32, #tpu.memory_space<vmem>>, vector<1x128xf32>
    %272 = vector.broadcast %271 : vector<1x128xf32> to vector<144x128xf32>
    %273 = arith.addf %270, %272 : vector<144x128xf32>
    %c0_256 = arith.constant 0 : index
    %c163_257 = arith.constant 163 : index
    %c0_258 = arith.constant 0 : index
    %274 = vector.load %arg1[%c0_256, %c163_257, %c0_258] : memref<1x328x8xf32, #tpu.memory_space<vmem>>, vector<1x144x8xf32>
    %275 = vector.shape_cast %274 : vector<1x144x8xf32> to vector<144x8xf32>
    %276 = vector.extract_strided_slice %273 {offsets = [0, 0], sizes = [144, 8], strides = [1, 1]} : vector<144x128xf32> to vector<144x8xf32>
    %277 = arith.addf %276, %275 : vector<144x8xf32>
    %cst_259 = arith.constant 0.000000e+00 : f32
    %278 = vector.broadcast %cst_259 : f32 to vector<144x8xf32>
    %279 = arith.maximumf %277, %278 : vector<144x8xf32>
    %c0_260 = arith.constant 0 : index
    %c144_261 = arith.constant 144 : index
    %c0_262 = arith.constant 0 : index
    %280 = vector.load %arg8[%c0_260, %c144_261, %c0_262] : memref<1x288x8xf32, #tpu.memory_space<vmem>>, vector<1x144x8xf32>
    %281 = vector.shape_cast %280 : vector<1x144x8xf32> to vector<144x8xf32>
    %282 = vector.shape_cast %279 : vector<144x8xf32> to vector<1x144x8xf32>
    tpu.vector_store %arg8[%c0_260, %c144_261, %c0_262], %282 {strides = array<i32>} : memref<1x288x8xf32, #tpu.memory_space<vmem>>, vector<1x144x8xf32>,
    return
  }
  func.func @transform_0(%arg0: i32) -> (i32, i32, i32) {
    %c0_i32 = arith.constant 0 : i32
    %c0_i32_0 = arith.constant 0 : i32
    %c0_i32_1 = arith.constant 0 : i32
    return %arg0, %c0_i32, %c0_i32_0 : i32, i32, i32
  }
  func.func @transform_1(%arg0: i32) -> (i32, i32, i32) {
    %c0_i32 = arith.constant 0 : i32
    %c0_i32_0 = arith.constant 0 : i32
    %c0_i32_1 = arith.constant 0 : i32
    %c0_i32_2 = arith.constant 0 : i32
    return %c0_i32, %c0_i32_0, %c0_i32_1 : i32, i32, i32
  }
  func.func @transform_2(%arg0: i32) -> (i32, i32) {
    %c0_i32 = arith.constant 0 : i32
    %c0_i32_0 = arith.constant 0 : i32
    %c0_i32_1 = arith.constant 0 : i32
    return %c0_i32, %c0_i32_0 : i32, i32
  }
  func.func @transform_3(%arg0: i32) -> (i32, i32, i32) {
    %c0_i32 = arith.constant 0 : i32
    %c0_i32_0 = arith.constant 0 : i32
    %c0_i32_1 = arith.constant 0 : i32
    %c0_i32_2 = arith.constant 0 : i32
    return %c0_i32, %c0_i32_0, %c0_i32_1 : i32, i32, i32
  }
  func.func @transform_4(%arg0: i32) -> (i32, i32) {
    %c0_i32 = arith.constant 0 : i32
    %c0_i32_0 = arith.constant 0 : i32
    %c0_i32_1 = arith.constant 0 : i32
    return %c0_i32, %c0_i32_0 : i32, i32
  }
  func.func @transform_5(%arg0: i32) -> (i32, i32) {
    %c0_i32 = arith.constant 0 : i32
    %c0_i32_0 = arith.constant 0 : i32
    %c0_i32_1 = arith.constant 0 : i32
    return %c0_i32, %c0_i32_0 : i32, i32
  }
  func.func @transform_6(%arg0: i32) -> (i32, i32) {
    %c0_i32 = arith.constant 0 : i32
    %c0_i32_0 = arith.constant 0 : i32
    %c0_i32_1 = arith.constant 0 : i32
    return %c0_i32, %c0_i32_0 : i32, i32
  }
  func.func @transform_7(%arg0: i32) -> (i32, i32, i32) {
    %c0_i32 = arith.constant 0 : i32
    %c0_i32_0 = arith.constant 0 : i32
    %c0_i32_1 = arith.constant 0 : i32
    return %arg0, %c0_i32, %c0_i32_0 : i32, i32, i32
  }
}

</mosaic_0001>

<llo_original>
// kernel: eresidual_block_forward.1
$region0: #{eresidual_block_forward.1}
  #allocation0 [shape = 'u32[]', space=smem, size = 0x4, offset = 0x4, fixed_abs, tag = 'smem constant byte address 0x4 - core index']
  #allocation1 [shape = 'u32[144,128]{1,0:T(1,128)}', space=vmem, size = 0x12000, scoped, tag = 'internal scratch']
  #allocation2 [shape = 'f32[328,128]{1,0:T(8,128)}', space=vmem, size = 0x29000, scoped, tag = 'scratch operand']
  %s0 = inlined_call_operand.vmem [shape: f32[2,328,8], index: 0, kind: input, shape index: {}]
  %s1 = inlined_call_operand.vmem [shape: f32[9,8,128], index: 1, kind: input, shape index: {}]
  %s2 = inlined_call_operand.vmem [shape: f32[1,128], index: 2, kind: input, shape index: {}]
  %s3 = inlined_call_operand.vmem [shape: f32[9,128,128], index: 3, kind: input, shape index: {}]
  %s4 = inlined_call_operand.vmem [shape: f32[1,128], index: 4, kind: input, shape index: {}]
  %s5 = inlined_call_operand.vmem [shape: f32[128,128], index: 5, kind: input, shape index: {}]
  %s6 = inlined_call_operand.vmem [shape: f32[1,128], index: 6, kind: input, shape index: {}]
  %s7 = inlined_call_operand.vmem [shape: f32[2,288,8], index: 7, kind: output, shape index: {}]
  %s8 = sld [smem:[#allocation0]]
  $region61: #{eresidual_block_forward.1} parent=0
    _
  %s10 = ssub.s32 1, %s8
  %s11 = scalar_select 0, %s10, %s8
  loop: start=0, step=1, limit=4
  $region2: #{eresidual_block_forward.1} parent=0 // loop_pre_header
    _
  $region3: #{eresidual_block_forward.1} parent=0 // loop_header
    %s13 = sphi 0, %s17
    %p14 = scmp.ge.s32.totalorder %s13, 4
    %s23 = sphi 0, %s25
    %s26 = sphi 0, %s23
    %s27 = sphi 0, %s26
    %s43 = sphi 0, %s27
    %s47 = sphi 0, %s47
    %s49 = sphi 0, %s47
    %s50 = sphi 0, %s49
    %s64 = sphi 0, %s50
    %s68 = sphi 0, %s68
    %s70 = sphi 0, %s68
    %s71 = sphi 0, %s70
    %s85 = sphi 0, %s71
    %s89 = sphi 0, %s89
    %s91 = sphi 0, %s89
    %s92 = sphi 0, %s91
    %s106 = sphi 0, %s92
    %s110 = sphi 0, %s110
    %s112 = sphi 0, %s110
    %s113 = sphi 0, %s112
    %s127 = sphi 0, %s113
    %s131 = sphi 0, %s131
    %s133 = sphi 0, %s131
    %s134 = sphi 0, %s133
    %s148 = sphi 0, %s134
    %s152 = sphi 0, %s152
    %s154 = sphi 0, %s152
    %s155 = sphi 0, %s154
    %s169 = sphi 0, %s155
    %s175 = sphi 0, %s177
    %s178 = sphi 0, %s175
    %s179 = sphi 0, %s178
    %s195 = sphi 0, %s179
  $region4: #{eresidual_block_forward.1} parent=0 // loop_header_branch
    %16 = sbr.rel (%p14) target = $region8
  $region5: #{eresidual_block_forward.1} parent=0 // loop_body
    %s18 = ssub.s32 %s13, 1
    %s19 = ssub.s32 %s13, 2
    %s20 = sadd.s32 %s13, 1
    %s21 = ssub.s32 %s13, %s20
    %p22 = scmp.eq.s32.totalorder %s21, 0
    %s24 = sadd.s32 %s23, 1
    %s25 = scalar_select %p22, %s23, %s24
    %p28 = pneg %p22
    %p29 = scmp.eq.s32.totalorder %s13, 1
    %p30 = por %p28, %p29
    %p31 = scmp.ne.s32.totalorder %s23, %s26
    %p32 = scmp.eq.s32.totalorder %s13, 0
    %p33 = por %p31, %p32
    %p34 = scmp.ne.s32.totalorder %s23, %s26
    %p35 = scmp.eq.s32.totalorder %s18, 1
    %p36 = por %p34, %p35
    %p37 = scmp.ne.s32.totalorder %s26, %s27
    %p38 = scmp.eq.s32.totalorder %s18, 0
    %p39 = por %p37, %p38
    %p40 = scmp.ne.s32.totalorder %s26, %s27
    %p41 = scmp.eq.s32.totalorder %s19, 1
    %p42 = por %p40, %p41
    %p44 = scmp.ne.s32.totalorder %s27, %s43
    %p45 = scmp.eq.s32.totalorder %s19, 0
    %p46 = por %p44, %p45
    %s48 = sadd.s32 %s47, 1
    %p51 = scmp.eq.s32.totalorder %s13, 1
    %p52 = scmp.ne.s32.totalorder %s47, %s49
    %p53 = scmp.eq.s32.totalorder %s13, 0
    %p54 = por %p52, %p53
    %p55 = scmp.ne.s32.totalorder %s47, %s49
    %p56 = scmp.eq.s32.totalorder %s18, 1
    %p57 = por %p55, %p56
    %p58 = scmp.ne.s32.totalorder %s49, %s50
    %p59 = scmp.eq.s32.totalorder %s18, 0
    %p60 = por %p58, %p59
    %p61 = scmp.ne.s32.totalorder %s49, %s50
    %p62 = scmp.eq.s32.totalorder %s19, 1
    %p63 = por %p61, %p62
    %p65 = scmp.ne.s32.totalorder %s50, %s64
    %p66 = scmp.eq.s32.totalorder %s19, 0
    %p67 = por %p65, %p66
    %s69 = sadd.s32 %s68, 1
    %p72 = scmp.eq.s32.totalorder %s13, 1
    %p73 = scmp.ne.s32.totalorder %s68, %s70
    %p74 = scmp.eq.s32.totalorder %s13, 0
    %p75 = por %p73, %p74
    %p76 = scmp.ne.s32.totalorder %s68, %s70
    %p77 = scmp.eq.s32.totalorder %s18, 1
    %p78 = por %p76, %p77
    %p79 = scmp.ne.s32.totalorder %s70, %s71
    %p80 = scmp.eq.s32.totalorder %s18, 0
    %p81 = por %p79, %p80
    %p82 = scmp.ne.s32.totalorder %s70, %s71
    %p83 = scmp.eq.s32.totalorder %s19, 1
    %p84 = por %p82, %p83
    %p86 = scmp.ne.s32.totalorder %s71, %s85
    %p87 = scmp.eq.s32.totalorder %s19, 0
    %p88 = por %p86, %p87
    %s90 = sadd.s32 %s89, 1
    %p93 = scmp.eq.s32.totalorder %s13, 1
    %p94 = scmp.ne.s32.totalorder %s89, %s91
    %p95 = scmp.eq.s32.totalorder %s13, 0
    %p96 = por %p94, %p95
    %p97 = scmp.ne.s32.totalorder %s89, %s91
    %p98 = scmp.eq.s32.totalorder %s18, 1
    %p99 = por %p97, %p98
    %p100 = scmp.ne.s32.totalorder %s91, %s92
    %p101 = scmp.eq.s32.totalorder %s18, 0
    %p102 = por %p100, %p101
    %p103 = scmp.ne.s32.totalorder %s91, %s92
    %p104 = scmp.eq.s32.totalorder %s19, 1
    %p105 = por %p103, %p104
    %p107 = scmp.ne.s32.totalorder %s92, %s106
    %p108 = scmp.eq.s32.totalorder %s19, 0
    %p109 = por %p107, %p108
    %s111 = sadd.s32 %s110, 1
    %p114 = scmp.eq.s32.totalorder %s13, 1
    %p115 = scmp.ne.s32.totalorder %s110, %s112
    %p116 = scmp.eq.s32.totalorder %s13, 0
    %p117 = por %p115, %p116
    %p118 = scmp.ne.s32.totalorder %s110, %s112
    %p119 = scmp.eq.s32.totalorder %s18, 1
    %p120 = por %p118, %p119
    %p121 = scmp.ne.s32.totalorder %s112, %s113
    %p122 = scmp.eq.s32.totalorder %s18, 0
    %p123 = por %p121, %p122
    %p124 = scmp.ne.s32.totalorder %s112, %s113
    %p125 = scmp.eq.s32.totalorder %s19, 1
    %p126 = por %p124, %p125
    %p128 = scmp.ne.s32.totalorder %s113, %s127
    %p129 = scmp.eq.s32.totalorder %s19, 0
    %p130 = por %p128, %p129
    %s132 = sadd.s32 %s131, 1
    %p135 = scmp.eq.s32.totalorder %s13, 1
    %p136 = scmp.ne.s32.totalorder %s131, %s133
    %p137 = scmp.eq.s32.totalorder %s13, 0
    %p138 = por %p136, %p137
    %p139 = scmp.ne.s32.totalorder %s131, %s133
    %p140 = scmp.eq.s32.totalorder %s18, 1
    %p141 = por %p139, %p140
    %p142 = scmp.ne.s32.totalorder %s133, %s134
    %p143 = scmp.eq.s32.totalorder %s18, 0
    %p144 = por %p142, %p143
    %p145 = scmp.ne.s32.totalorder %s133, %s134
    %p146 = scmp.eq.s32.totalorder %s19, 1
    %p147 = por %p145, %p146
    %p149 = scmp.ne.s32.totalorder %s134, %s148
    %p150 = scmp.eq.s32.totalorder %s19, 0
    %p151 = por %p149, %p150
    %s153 = sadd.s32 %s152, 1
    %p156 = scmp.eq.s32.totalorder %s13, 1
    %p157 = scmp.ne.s32.totalorder %s152, %s154
    %p158 = scmp.eq.s32.totalorder %s13, 0
    %p159 = por %p157, %p158
    %p160 = scmp.ne.s32.totalorder %s152, %s154
    %p161 = scmp.eq.s32.totalorder %s18, 1
    %p162 = por %p160, %p161
    %p163 = scmp.ne.s32.totalorder %s154, %s155
    %p164 = scmp.eq.s32.totalorder %s18, 0
    %p165 = por %p163, %p164
    %p166 = scmp.ne.s32.totalorder %s154, %s155
    %p167 = scmp.eq.s32.totalorder %s19, 1
    %p168 = por %p166, %p167
    %p170 = scmp.ne.s32.totalorder %s155, %s169
    %p171 = scmp.eq.s32.totalorder %s19, 0
    %p172 = por %p170, %p171
    %s173 = ssub.s32 %s13, %s20
    %p174 = scmp.eq.s32.totalorder %s173, 0
    %s176 = sadd.s32 %s175, 1
    %s177 = scalar_select %p174, %s175, %s176
    %p180 = pneg %p174
    %p181 = scmp.eq.s32.totalorder %s13, 1
    %p182 = por %p180, %p181
    %p183 = scmp.ne.s32.totalorder %s175, %s178
    %p184 = scmp.eq.s32.totalorder %s13, 0
    %p185 = por %p183, %p184
    %p186 = scmp.ne.s32.totalorder %s175, %s178
    %p187 = scmp.eq.s32.totalorder %s18, 1
    %p188 = por %p186, %p187
    %p189 = scmp.ne.s32.totalorder %s178, %s179
    %p190 = scmp.eq.s32.totalorder %s18, 0
    %p191 = por %p189, %p190
    %p192 = scmp.ne.s32.totalorder %s178, %s179
    %p193 = scmp.eq.s32.totalorder %s19, 1
    %p194 = por %p192, %p193
    %p196 = scmp.ne.s32.totalorder %s179, %s195
    %p197 = scmp.eq.s32.totalorder %s19, 0
    %p198 = por %p196, %p197
    %p199 = scmp.le.s32.totalorder 1, %s13
    %p200 = scmp.lt.s32.totalorder %s13, 3
    %p201 = pnand %p199, %p200
    %p202 = pneg %p201
    // Predicated region
    $region9: #{eresidual_block_forward.1} parent=5 // pred_check
      _
    $region10: #{eresidual_block_forward.1} parent=5 // pred_check_branch
      %204 = sbr.rel (%p201) target = $region12
    $region11: #{eresidual_block_forward.1} parent=5 // pred_region
      %s205 = ssub.s32 %s13, 1
      // Predicated region
      $region13: #{eresidual_block_forward.1} parent=11 // pred_check
        %p206 = pneg %p60
      $region14: #{eresidual_block_forward.1} parent=11 // pred_check_branch
        %208 = sbr.rel (%p206) target = $region16
      $region15: #{eresidual_block_forward.1} parent=11 // pred_region
        _
      $region16: #{eresidual_block_forward.1} parent=11 // pred_fallthru
        _
      // Predicated region
      $region17: #{eresidual_block_forward.1} parent=11 // pred_check
        %p209 = pneg %p81
      $region18: #{eresidual_block_forward.1} parent=11 // pred_check_branch
        %211 = sbr.rel (%p209) target = $region20
      $region19: #{eresidual_block_forward.1} parent=11 // pred_region
        _
      $region20: #{eresidual_block_forward.1} parent=11 // pred_fallthru
        _
      // Predicated region
      $region21: #{eresidual_block_forward.1} parent=11 // pred_check
        %p212 = pneg %p102
      $region22: #{eresidual_block_forward.1} parent=11 // pred_check_branch
        %214 = sbr.rel (%p212) target = $region24
      $region23: #{eresidual_block_forward.1} parent=11 // pred_region
        _
      $region24: #{eresidual_block_forward.1} parent=11 // pred_fallthru
        _
      // Predicated region
      $region25: #{eresidual_block_forward.1} parent=11 // pred_check
        %p215 = pneg %p123
      $region26: #{eresidual_block_forward.1} parent=11 // pred_check_branch
        %217 = sbr.rel (%p215) target = $region28
      $region27: #{eresidual_block_forward.1} parent=11 // pred_region
        _
      $region28: #{eresidual_block_forward.1} parent=11 // pred_fallthru
        _
      // Predicated region
      $region29: #{eresidual_block_forward.1} parent=11 // pred_check
        %p218 = pneg %p144
      $region30: #{eresidual_block_forward.1} parent=11 // pred_check_branch
        %220 = sbr.rel (%p218) target = $region32
      $region31: #{eresidual_block_forward.1} parent=11 // pred_region
        _
      $region32: #{eresidual_block_forward.1} parent=11 // pred_fallthru
        _
      // Predicated region
      $region33: #{eresidual_block_forward.1} parent=11 // pred_check
        %p221 = pneg %p165
      $region34: #{eresidual_block_forward.1} parent=11 // pred_check_branch
        %223 = sbr.rel (%p221) target = $region36
      $region35: #{eresidual_block_forward.1} parent=11 // pred_region
        _
      $region36: #{eresidual_block_forward.1} parent=11 // pred_fallthru
        _
    $region12: #{eresidual_block_forward.1} parent=5 // pred_fallthru
      _
    %p224 = scmp.lt.s32.totalorder %s13, 2
    // Predicated region
    $region37: #{eresidual_block_forward.1} parent=5 // pred_check
      %p225 = pneg %p224
    $region38: #{eresidual_block_forward.1} parent=5 // pred_check_branch
      %227 = sbr.rel (%p225) target = $region40
    $region39: #{eresidual_block_forward.1} parent=5 // pred_region
      // Predicated region
      $region41: #{eresidual_block_forward.1} parent=39 // pred_check
        %p228 = pneg %p33
      $region42: #{eresidual_block_forward.1} parent=39 // pred_check_branch
        %230 = sbr.rel (%p228) target = $region44
      $region43: #{eresidual_block_forward.1} parent=39 // pred_region
        %p231 = scmp.lt.s32.totalorder %s13, 1
        %s232 = scalar_select %p231, %s13, 1
        %s233 = smul.addr %s232, 41
        %s234 = smul.addr %s233, 8
        %s235 = scalar_lea.vmem %s0, %s234
      $region44: #{eresidual_block_forward.1} parent=39 // pred_fallthru
        _
    $region40: #{eresidual_block_forward.1} parent=5 // pred_fallthru
      _
    %p236 = scmp.le.s32.totalorder 1, %s13
    %p237 = scmp.lt.s32.totalorder %s13, 3
    %p238 = pnand %p236, %p237
    %p239 = pneg %p238
    // Predicated region
    $region45: #{eresidual_block_forward.1} parent=5 // pred_check
      _
    $region46: #{eresidual_block_forward.1} parent=5 // pred_check_branch
      %241 = sbr.rel (%p238) target = $region48
    $region47: #{eresidual_block_forward.1} parent=5 // pred_region
      %s242 = ssub.s32 %s13, 1
      %p243 = scmp.lt.s32.totalorder %s18, 1
      %s244 = scalar_select %p243, %s18, 1
      %s245 = smul.addr %s244, 41
      %s246 = smul.addr %s245, 8
      %s247 = scalar_lea.vmem %s0, %s246
      %p248 = pneg %p39
      %p249 = pneg %p36
      %p250 = pneg %p60
      %p251 = pneg %p57
      %p252 = pneg %p81
      %p253 = pneg %p78
      %p254 = pneg %p102
      %p255 = pneg %p99
      %p256 = pneg %p123
      %p257 = pneg %p120
      %p258 = pneg %p144
      %p259 = pneg %p141
      %p260 = pneg %p165
      %p261 = pneg %p162
      %p262 = pneg %p191
      %p263 = pneg %p188
      %p264 = scmp.lt.s32.totalorder %s18, 1
      %s265 = scalar_select %p264, %s18, 1
      %s266 = smul.addr %s265, 36
      %s267 = smul.addr %s266, 8
      %s268 = scalar_lea.vmem %s7, %s267
      %p269 = scmp.lt.s32.totalorder %s18, 1
      %s270 = scalar_select %p269, %s18, 1
      %s271 = smul.addr %s270, 41
      %s272 = smul.addr %s271, 8
      %s273 = scalar_lea.vmem %s0, %s272
      %p274 = scmp.lt.s32.totalorder %s18, 1
      %s275 = scalar_select %p274, %s18, 1
      %s276 = smul.addr %s275, 36
      %s277 = smul.addr %s276, 8
      %s278 = scalar_lea.vmem %s7, %s277
      %279 = vst [vmem:[#allocation2] sm:$0xff] 0.0
      %280 = vst [vmem:[#allocation2 + $0x8] sm:$0xff] 0.0
      %281 = vst [vmem:[#allocation2 + $0x10] sm:$0x7] 0.0
      %282 = vst [vmem:[#allocation2 + $0x133] sm:$0xff] 0.0
      %283 = vst [vmem:[#allocation2 + $0x13b] sm:$0xff] 0.0
      %284 = vst [vmem:[#allocation2 + $0x143] sm:$0x1f] 0.0
      %v285 = vlaneseq
      %v286 = vshrl.u32 %v285, 7
      %v287 = vadd.s32 %v286, 8
      %v288 = vadd.s32 %v286, 16
      %v289 = vadd.s32 %v286, 24
      %v290 = vadd.s32 %v286, 32
      %v291 = vadd.s32 %v286, 40
      %v292 = vadd.s32 %v286, 48
      %v293 = vadd.s32 %v286, 56
      %v294 = vadd.s32 %v286, 64
      %v295 = vadd.s32 %v286, 72
      %v296 = vadd.s32 %v286, 80
      %v297 = vadd.s32 %v286, 88
      %v298 = vadd.s32 %v286, 96
      %v299 = vadd.s32 %v286, 104
      %v300 = vadd.s32 %v286, 112
      %v301 = vadd.s32 %v286, 120
      %v302 = vadd.s32 %v286, 128
      %v303 = vadd.s32 %v286, 136
      %vm304 = vcmp.lt.s32.totalorder %v286, 0
      %v305 = vsub.s32 0, %v286
      %v306 = vsel %vm304, %v305, %v286
      %v307 = vmul.u32.u64.compose %v306, 3817748708
      %v308 = vextract.low.u32 %v307
      %v309 = vextract.high.u32 %v307
      %v310 = vshrl.u32 %v309, 4
      %v311 = vmul.u32 %v310, 18
      %v312 = vsub.s32 %v306, %v311
      %v313 = vsub.s32 0, %v312
      %v314 = vsel %vm304, %v313, %v312
      %vm315 = vcmp.lt.s32.totalorder %v287, 0
      %v316 = vsub.s32 0, %v287
      %v317 = vsel %vm315, %v316, %v287
      %v318 = vmul.u32.u64.compose %v317, 3817748708
      %v319 = vextract.low.u32 %v318
      %v320 = vextract.high.u32 %v318
      %v321 = vshrl.u32 %v320, 4
      %v322 = vmul.u32 %v321, 18
      %v323 = vsub.s32 %v317, %v322
      %v324 = vsub.s32 0, %v323
      %v325 = vsel %vm315, %v324, %v323
      %vm326 = vcmp.lt.s32.totalorder %v288, 0
      %v327 = vsub.s32 0, %v288
      %v328 = vsel %vm326, %v327, %v288
      %v329 = vmul.u32.u64.compose %v328, 3817748708
      %v330 = vextract.low.u32 %v329
      %v331 = vextract.high.u32 %v329
      %v332 = vshrl.u32 %v331, 4
      %v333 = vmul.u32 %v332, 18
      %v334 = vsub.s32 %v328, %v333
      %v335 = vsub.s32 0, %v334
      %v336 = vsel %vm326, %v335, %v334
      %vm337 = vcmp.lt.s32.totalorder %v289, 0
      %v338 = vsub.s32 0, %v289
      %v339 = vsel %vm337, %v338, %v289
      %v340 = vmul.u32.u64.compose %v339, 3817748708
      %v341 = vextract.low.u32 %v340
      %v342 = vextract.high.u32 %v340
      %v343 = vshrl.u32 %v342, 4
      %v344 = vmul.u32 %v343, 18
      %v345 = vsub.s32 %v339, %v344
      %v346 = vsub.s32 0, %v345
      %v347 = vsel %vm337, %v346, %v345
      %vm348 = vcmp.lt.s32.totalorder %v290, 0
      %v349 = vsub.s32 0, %v290
      %v350 = vsel %vm348, %v349, %v290
      %v351 = vmul.u32.u64.compose %v350, 3817748708
      %v352 = vextract.low.u32 %v351
      %v353 = vextract.high.u32 %v351
      %v354 = vshrl.u32 %v353, 4
      %v355 = vmul.u32 %v354, 18
      %v356 = vsub.s32 %v350, %v355
      %v357 = vsub.s32 0, %v356
      %v358 = vsel %vm348, %v357, %v356
      %vm359 = vcmp.lt.s32.totalorder %v291, 0
      %v360 = vsub.s32 0, %v291
      %v361 = vsel %vm359, %v360, %v291
      %v362 = vmul.u32.u64.compose %v361, 3817748708
      %v363 = vextract.low.u32 %v362
      %v364 = vextract.high.u32 %v362
      %v365 = vshrl.u32 %v364, 4
      %v366 = vmul.u32 %v365, 18
      %v367 = vsub.s32 %v361, %v366
      %v368 = vsub.s32 0, %v367
      %v369 = vsel %vm359, %v368, %v367
      %vm370 = vcmp.lt.s32.totalorder %v292, 0
      %v371 = vsub.s32 0, %v292
      %v372 = vsel %vm370, %v371, %v292
      %v373 = vmul.u32.u64.compose %v372, 3817748708
      %v374 = vextract.low.u32 %v373
      %v375 = vextract.high.u32 %v373
      %v376 = vshrl.u32 %v375, 4
      %v377 = vmul.u32 %v376, 18
      %v378 = vsub.s32 %v372, %v377
      %v379 = vsub.s32 0, %v378
      %v380 = vsel %vm370, %v379, %v378
      %vm381 = vcmp.lt.s32.totalorder %v293, 0
      %v382 = vsub.s32 0, %v293
      %v383 = vsel %vm381, %v382, %v293
      %v384 = vmul.u32.u64.compose %v383, 3817748708
      %v385 = vextract.low.u32 %v384
      %v386 = vextract.high.u32 %v384
      %v387 = vshrl.u32 %v386, 4
      %v388 = vmul.u32 %v387, 18
      %v389 = vsub.s32 %v383, %v388
      %v390 = vsub.s32 0, %v389
      %v391 = vsel %vm381, %v390, %v389
      %vm392 = vcmp.lt.s32.totalorder %v294, 0
      %v393 = vsub.s32 0, %v294
      %v394 = vsel %vm392, %v393, %v294
      %v395 = vmul.u32.u64.compose %v394, 3817748708
      %v396 = vextract.low.u32 %v395
      %v397 = vextract.high.u32 %v395
      %v398 = vshrl.u32 %v397, 4
      %v399 = vmul.u32 %v398, 18
      %v400 = vsub.s32 %v394, %v399
      %v401 = vsub.s32 0, %v400
      %v402 = vsel %vm392, %v401, %v400
      %vm403 = vcmp.lt.s32.totalorder %v295, 0
      %v404 = vsub.s32 0, %v295
      %v405 = vsel %vm403, %v404, %v295
      %v406 = vmul.u32.u64.compose %v405, 3817748708
      %v407 = vextract.low.u32 %v406
      %v408 = vextract.high.u32 %v406
      %v409 = vshrl.u32 %v408, 4
      %v410 = vmul.u32 %v409, 18
      %v411 = vsub.s32 %v405, %v410
      %v412 = vsub.s32 0, %v411
      %v413 = vsel %vm403, %v412, %v411
      %vm414 = vcmp.lt.s32.totalorder %v296, 0
      %v415 = vsub.s32 0, %v296
      %v416 = vsel %vm414, %v415, %v296
      %v417 = vmul.u32.u64.compose %v416, 3817748708
      %v418 = vextract.low.u32 %v417
      %v419 = vextract.high.u32 %v417
      %v420 = vshrl.u32 %v419, 4
      %v421 = vmul.u32 %v420, 18
      %v422 = vsub.s32 %v416, %v421
      %v423 = vsub.s32 0, %v422
      %v424 = vsel %vm414, %v423, %v422
      %vm425 = vcmp.lt.s32.totalorder %v297, 0
      %v426 = vsub.s32 0, %v297
      %v427 = vsel %vm425, %v426, %v297
      %v428 = vmul.u32.u64.compose %v427, 3817748708
      %v429 = vextract.low.u32 %v428
      %v430 = vextract.high.u32 %v428
      %v431 = vshrl.u32 %v430, 4
      %v432 = vmul.u32 %v431, 18
      %v433 = vsub.s32 %v427, %v432
      %v434 = vsub.s32 0, %v433
      %v435 = vsel %vm425, %v434, %v433
      %vm436 = vcmp.lt.s32.totalorder %v298, 0
      %v437 = vsub.s32 0, %v298
      %v438 = vsel %vm436, %v437, %v298
      %v439 = vmul.u32.u64.compose %v438, 3817748708
      %v440 = vextract.low.u32 %v439
      %v441 = vextract.high.u32 %v439
      %v442 = vshrl.u32 %v441, 4
      %v443 = vmul.u32 %v442, 18
      %v444 = vsub.s32 %v438, %v443
      %v445 = vsub.s32 0, %v444
      %v446 = vsel %vm436, %v445, %v444
      %vm447 = vcmp.lt.s32.totalorder %v299, 0
      %v448 = vsub.s32 0, %v299
      %v449 = vsel %vm447, %v448, %v299
      %v450 = vmul.u32.u64.compose %v449, 3817748708
      %v451 = vextract.low.u32 %v450
      %v452 = vextract.high.u32 %v450
      %v453 = vshrl.u32 %v452, 4
      %v454 = vmul.u32 %v453, 18
      %v455 = vsub.s32 %v449, %v454
      %v456 = vsub.s32 0, %v455
      %v457 = vsel %vm447, %v456, %v455
      %vm458 = vcmp.lt.s32.totalorder %v300, 0
      %v459 = vsub.s32 0, %v300
      %v460 = vsel %vm458, %v459, %v300
      %v461 = vmul.u32.u64.compose %v460, 3817748708
      %v462 = vextract.low.u32 %v461
      %v463 = vextract.high.u32 %v461
      %v464 = vshrl.u32 %v463, 4
      %v465 = vmul.u32 %v464, 18
      %v466 = vsub.s32 %v460, %v465
      %v467 = vsub.s32 0, %v466
      %v468 = vsel %vm458, %v467, %v466
      %vm469 = vcmp.lt.s32.totalorder %v301, 0
      %v470 = vsub.s32 0, %v301
      %v471 = vsel %vm469, %v470, %v301
      %v472 = vmul.u32.u64.compose %v471, 3817748708
      %v473 = vextract.low.u32 %v472
      %v474 = vextract.high.u32 %v472
      %v475 = vshrl.u32 %v474, 4
      %v476 = vmul.u32 %v475, 18
      %v477 = vsub.s32 %v471, %v476
      %v478 = vsub.s32 0, %v477
      %v479 = vsel %vm469, %v478, %v477
      %vm480 = vcmp.lt.s32.totalorder %v302, 0
      %v481 = vsub.s32 0, %v302
      %v482 = vsel %vm480, %v481, %v302
      %v483 = vmul.u32.u64.compose %v482, 3817748708
      %v484 = vextract.low.u32 %v483
      %v485 = vextract.high.u32 %v483
      %v486 = vshrl.u32 %v485, 4
      %v487 = vmul.u32 %v486, 18
      %v488 = vsub.s32 %v482, %v487
      %v489 = vsub.s32 0, %v488
      %v490 = vsel %vm480, %v489, %v488
      %vm491 = vcmp.lt.s32.totalorder %v303, 0
      %v492 = vsub.s32 0, %v303
      %v493 = vsel %vm491, %v492, %v303
      %v494 = vmul.u32.u64.compose %v493, 3817748708
      %v495 = vextract.low.u32 %v494
      %v496 = vextract.high.u32 %v494
      %v497 = vshrl.u32 %v496, 4
      %v498 = vmul.u32 %v497, 18
      %v499 = vsub.s32 %v493, %v498
      %v500 = vsub.s32 0, %v499
      %v501 = vsel %vm491, %v500, %v499
      %vm502 = vcmp.ne.s32.totalorder %v314, 0
      %vm503 = vcmp.ne.s32.totalorder %v325, 0
      %vm504 = vcmp.ne.s32.totalorder %v336, 0
      %vm505 = vcmp.ne.s32.totalorder %v347, 0
      %vm506 = vcmp.ne.s32.totalorder %v358, 0
      %vm507 = vcmp.ne.s32.totalorder %v369, 0
      %vm508 = vcmp.ne.s32.totalorder %v380, 0
      %vm509 = vcmp.ne.s32.totalorder %v391, 0
      %vm510 = vcmp.ne.s32.totalorder %v402, 0
      %vm511 = vcmp.ne.s32.totalorder %v413, 0
      %vm512 = vcmp.ne.s32.totalorder %v424, 0
      %vm513 = vcmp.ne.s32.totalorder %v435, 0
      %vm514 = vcmp.ne.s32.totalorder %v446, 0
      %vm515 = vcmp.ne.s32.totalorder %v457, 0
      %vm516 = vcmp.ne.s32.totalorder %v468, 0
      %vm517 = vcmp.ne.s32.totalorder %v479, 0
      %vm518 = vcmp.ne.s32.totalorder %v490, 0
      %vm519 = vcmp.ne.s32.totalorder %v501, 0
      %vm520 = vcmp.lt.s32.totalorder %v314, 0
      %vm521 = vcmp.lt.s32.totalorder %v325, 0
      %vm522 = vcmp.lt.s32.totalorder %v336, 0
      %vm523 = vcmp.lt.s32.totalorder %v347, 0
      %vm524 = vcmp.lt.s32.totalorder %v358, 0
      %vm525 = vcmp.lt.s32.totalorder %v369, 0
      %vm526 = vcmp.lt.s32.totalorder %v380, 0
      %vm527 = vcmp.lt.s32.totalorder %v391, 0
      %vm528 = vcmp.lt.s32.totalorder %v402, 0
      %vm529 = vcmp.lt.s32.totalorder %v413, 0
      %vm530 = vcmp.lt.s32.totalorder %v424, 0
      %vm531 = vcmp.lt.s32.totalorder %v435, 0
      %vm532 = vcmp.lt.s32.totalorder %v446, 0
      %vm533 = vcmp.lt.s32.totalorder %v457, 0
      %vm534 = vcmp.lt.s32.totalorder %v468, 0
      %vm535 = vcmp.lt.s32.totalorder %v479, 0
      %vm536 = vcmp.lt.s32.totalorder %v490, 0
      %vm537 = vcmp.lt.s32.totalorder %v501, 0
      %vm538 = vmand %vm520, %vm502
      %vm539 = vmand %vm521, %vm503
      %vm540 = vmand %vm522, %vm504
      %vm541 = vmand %vm523, %vm505
      %vm542 = vmand %vm524, %vm506
      %vm543 = vmand %vm525, %vm507
      %vm544 = vmand %vm526, %vm508
      %vm545 = vmand %vm527, %vm509
      %vm546 = vmand %vm528, %vm510
      %vm547 = vmand %vm529, %vm511
      %vm548 = vmand %vm530, %vm512
      %vm549 = vmand %vm531, %vm513
      %vm550 = vmand %vm532, %vm514
      %vm551 = vmand %vm533, %vm515
      %vm552 = vmand %vm534, %vm516
      %vm553 = vmand %vm535, %vm517
      %vm554 = vmand %vm536, %vm518
      %vm555 = vmand %vm537, %vm519
      %v556 = vadd.s32 %v314, 18
      %v557 = vadd.s32 %v325, 18
      %v558 = vadd.s32 %v336, 18
      %v559 = vadd.s32 %v347, 18
      %v560 = vadd.s32 %v358, 18
      %v561 = vadd.s32 %v369, 18
      %v562 = vadd.s32 %v380, 18
      %v563 = vadd.s32 %v391, 18
      %v564 = vadd.s32 %v402, 18
      %v565 = vadd.s32 %v413, 18
      %v566 = vadd.s32 %v424, 18
      %v567 = vadd.s32 %v435, 18
      %v568 = vadd.s32 %v446, 18
      %v569 = vadd.s32 %v457, 18
      %v570 = vadd.s32 %v468, 18
      %v571 = vadd.s32 %v479, 18
      %v572 = vadd.s32 %v490, 18
      %v573 = vadd.s32 %v501, 18
      %v574 = vsel %vm538, %v556, %v314
      %v575 = vsel %vm539, %v557, %v325
      %v576 = vsel %vm540, %v558, %v336
      %v577 = vsel %vm541, %v559, %v347
      %v578 = vsel %vm542, %v560, %v358
      %v579 = vsel %vm543, %v561, %v369
      %v580 = vsel %vm544, %v562, %v380
      %v581 = vsel %vm545, %v563, %v391
      %v582 = vsel %vm546, %v564, %v402
      %v583 = vsel %vm547, %v565, %v413
      %v584 = vsel %vm548, %v566, %v424
      %v585 = vsel %vm549, %v567, %v435
      %v586 = vsel %vm550, %v568, %v446
      %v587 = vsel %vm551, %v569, %v457
      %v588 = vsel %vm552, %v570, %v468
      %v589 = vsel %vm553, %v571, %v479
      %v590 = vsel %vm554, %v572, %v490
      %v591 = vsel %vm555, %v573, %v501
      %vm592 = vcmp.lt.s32.totalorder %v574, 16
      %vm593 = vcmp.lt.s32.totalorder %v575, 16
      %vm594 = vcmp.lt.s32.totalorder %v576, 16
      %vm595 = vcmp.lt.s32.totalorder %v577, 16
      %vm596 = vcmp.lt.s32.totalorder %v578, 16
      %vm597 = vcmp.lt.s32.totalorder %v579, 16
      %vm598 = vcmp.lt.s32.totalorder %v580, 16
      %vm599 = vcmp.lt.s32.totalorder %v581, 16
      %vm600 = vcmp.lt.s32.totalorder %v582, 16
      %vm601 = vcmp.lt.s32.totalorder %v583, 16
      %vm602 = vcmp.lt.s32.totalorder %v584, 16
      %vm603 = vcmp.lt.s32.totalorder %v585, 16
      %vm604 = vcmp.lt.s32.totalorder %v586, 16
      %vm605 = vcmp.lt.s32.totalorder %v587, 16
      %vm606 = vcmp.lt.s32.totalorder %v588, 16
      %vm607 = vcmp.lt.s32.totalorder %v589, 16
      %vm608 = vcmp.lt.s32.totalorder %v590, 16
      %vm609 = vcmp.lt.s32.totalorder %v591, 16
      %v610 = vld [vmem:[%s273] sm:$0xff]
      %v611 = vld [vmem:[%s273 + $0x8] sm:$0xff]
      %v612 = vld [vmem:[%s273 + $0x10] sm:$0xff]
      %v613 = vld [vmem:[%s273 + $0x18] sm:$0xff]
      %v614 = vld [vmem:[%s273 + $0x20] sm:$0xff]
      %v615 = vld [vmem:[%s273 + $0x28] sm:$0xff]
      %v616 = vld [vmem:[%s273 + $0x30] sm:$0xff]
      %v617 = vld [vmem:[%s273 + $0x38] sm:$0xff]
      %v618 = vld [vmem:[%s273 + $0x40] sm:$0xff]
      %v619 = vld [vmem:[%s273 + $0x48] sm:$0xff]
      %v620 = vld [vmem:[%s273 + $0x50] sm:$0xff]
      %v621 = vld [vmem:[%s273 + $0x58] sm:$0xff]
      %v622 = vld [vmem:[%s273 + $0x60] sm:$0xff]
      %v623 = vld [vmem:[%s273 + $0x68] sm:$0xff]
      %v624 = vld [vmem:[%s273 + $0x70] sm:$0xff]
      %v625 = vld [vmem:[%s273 + $0x78] sm:$0xff]
      %v626 = vld [vmem:[%s273 + $0x80] sm:$0xff]
      %v627 = vld [vmem:[%s273 + $0x88] sm:$0xff]
      %v628 = vld [vmem:[%s1] sm:$0xff]
      %v629 = vld [vmem:[%s273 + $0x1] sm:$0xff]
      %v630 = vld [vmem:[%s273 + $0x9] sm:$0xff]
      %v631 = vld [vmem:[%s273 + $0x11] sm:$0xff]
      %v632 = vld [vmem:[%s273 + $0x19] sm:$0xff]
      %v633 = vld [vmem:[%s273 + $0x21] sm:$0xff]
      %v634 = vld [vmem:[%s273 + $0x29] sm:$0xff]
      %v635 = vld [vmem:[%s273 + $0x31] sm:$0xff]
      %v636 = vld [vmem:[%s273 + $0x39] sm:$0xff]
      %v637 = vld [vmem:[%s273 + $0x41] sm:$0xff]
      %v638 = vld [vmem:[%s273 + $0x49] sm:$0xff]
      %v639 = vld [vmem:[%s273 + $0x51] sm:$0xff]
      %v640 = vld [vmem:[%s273 + $0x59] sm:$0xff]
      %v641 = vld [vmem:[%s273 + $0x61] sm:$0xff]
      %v642 = vld [vmem:[%s273 + $0x69] sm:$0xff]
      %v643 = vld [vmem:[%s273 + $0x71] sm:$0xff]
      %v644 = vld [vmem:[%s273 + $0x79] sm:$0xff]
      %v645 = vld [vmem:[%s273 + $0x81] sm:$0xff]
      %v646 = vld [vmem:[%s273 + $0x89] sm:$0xff]
      %s647 = scalar_lea.vmem %s1, 8
      %v648 = vld [vmem:[%s647] sm:$0xff]
      %vm649 = vcmask 64512
      %v651 = vsel %vm649, %v629, 0
      %v654 = vsel %vm649, %v630, 0
      %v657 = vsel %vm649, %v631, 0
      %v660 = vsel %vm649, %v632, 0
      %v663 = vsel %vm649, %v633, 0
      %v666 = vsel %vm649, %v634, 0
      %v669 = vsel %vm649, %v635, 0
      %v672 = vsel %vm649, %v636, 0
      %v675 = vsel %vm649, %v637, 0
      %v678 = vsel %vm649, %v638, 0
      %v681 = vsel %vm649, %v639, 0
      %v684 = vsel %vm649, %v640, 0
      %v687 = vsel %vm649, %v641, 0
      %v690 = vsel %vm649, %v642, 0
      %v693 = vsel %vm649, %v643, 0
      %v696 = vsel %vm649, %v644, 0
      %v699 = vsel %vm649, %v645, 0
      %v702 = vsel %vm649, %v646, 0
      %704 = vmatprep.subr.mxu0 0.0
      %705 = vmatpush1.msra.mxu0 %v648
      %706 = vmatprep.subr.mxu0 0.0
      %707 = vmatpush1.msra.mxu0 0.0
      %708 = vmatprep.subr.mxu0 0.0
      %709 = vmatpush1.msra.mxu0 0.0
      %710 = vmatprep.subr.mxu0 0.0
      %711 = vmatpush1.msra.mxu0 0.0
      %712 = vmatprep.subr.mxu0 0.0
      %713 = vmatpush1.msra.mxu0 0.0
      %714 = vmatprep.subr.mxu0 0.0
      %715 = vmatpush1.msra.mxu0 0.0
      %716 = vmatprep.subr.mxu0 0.0
      %717 = vmatpush1.msra.mxu0 0.0
      %718 = vmatprep.subr.mxu0 0.0
      %719 = vmatpush1.msra.mxu0 0.0
      %720 = vmatprep.subr.mxu0 0.0
      %721 = vmatpush1.msra.mxu0 0.0
      %722 = vmatprep.subr.mxu0 0.0
      %723 = vmatpush1.msra.mxu0 0.0
      %724 = vmatprep.subr.mxu0 0.0
      %725 = vmatpush1.msra.mxu0 0.0
      %726 = vmatprep.subr.mxu0 0.0
      %727 = vmatpush1.msra.mxu0 0.0
      %728 = vmatprep.subr.mxu0 0.0
      %729 = vmatpush1.msra.mxu0 0.0
      %730 = vmatprep.subr.mxu0 0.0
      %731 = vmatpush1.msra.mxu0 0.0
      %732 = vmatprep.subr.mxu0 0.0
      %733 = vmatpush1.msra.mxu0 0.0
      %734 = vmatprep.subr.mxu0 0.0
      %735 = vmatpush1.msra.mxu0 0.0
      %736 = vmatprep.subr.mxu0 0.0
      %737 = vmatpush1.msra.mxu0 0.0
      %738 = vmatprep.subr.mxu0 0.0
      %739 = vmatpush1.msra.mxu0 0.0
      %740 = vmatprep.subr.mxu0 0.0
      %741 = vmatpush1.msra.mxu0 0.0
      %742 = vmatprep.subr.mxu0 0.0
      %743 = vmatpush1.msra.mxu0 0.0
      %744 = vmatprep.subr.mxu0 0.0
      %745 = vmatpush1.msra.mxu0 0.0
      %746 = vmatprep.subr.mxu0 0.0
      %747 = vmatpush1.msra.mxu0 0.0
      %748 = vmatprep.subr.mxu0 0.0
      %749 = vmatpush1.msra.mxu0 0.0
      %750 = vmatprep.subr.mxu0 0.0
      %751 = vmatpush1.msra.mxu0 0.0
      %752 = vmatprep.subr.mxu0 0.0
      %753 = vmatpush1.msra.mxu0 0.0
      %754 = vmatprep.subr.mxu0 0.0
      %755 = vmatpush1.msra.mxu0 0.0
      %756 = vmatprep.subr.mxu0 0.0
      %757 = vmatpush1.msra.mxu0 0.0
      %758 = vmatprep.subr.mxu0 0.0
      %759 = vmatpush1.msra.mxu0 0.0
      %760 = vmatprep.subr.mxu0 0.0
      %761 = vmatpush1.msra.mxu0 0.0
      %762 = vmatprep.subr.mxu0 0.0
      %763 = vmatpush1.msra.mxu0 0.0
      %764 = vmatprep.subr.mxu0 0.0
      %765 = vmatpush1.msra.mxu0 0.0
      %766 = vmatprep.subr.mxu0 0.0
      %767 = vmatpush1.msra.mxu0 0.0
      %768 = vmatprep.mubr.f32.mxu0 0.0
      %769 = vmatmul.mubr.f32.gmra.mrb[0].mxu0 %v651
      %v770 = vpop.f32.mrb[0].mxu0
      %v771 = vadd.f32 0.0, %v770
      %v772 = vpop.f32.mrb[0].mxu0
      %773 = vmatprep.mubr.f32.mxu0 0.0
      %774 = vmatmul.mubr.f32.gmra.mrb[0].mxu0 %v654
      %v775 = vpop.f32.mrb[0].mxu0
      %v776 = vadd.f32 0.0, %v775
      %v777 = vpop.f32.mrb[0].mxu0
      %778 = vmatprep.mubr.f32.mxu0 0.0
      %779 = vmatmul.mubr.f32.gmra.mrb[0].mxu0 %v657
      %v780 = vpop.f32.mrb[0].mxu0
      %v781 = vadd.f32 0.0, %v780
      %v782 = vpop.f32.mrb[0].mxu0
      %783 = vmatprep.mubr.f32.mxu0 0.0
      %784 = vmatmul.mubr.f32.gmra.mrb[0].mxu0 %v660
      %v785 = vpop.f32.mrb[0].mxu0
      %v786 = vadd.f32 0.0, %v785
      %v787 = vpop.f32.mrb[0].mxu0
      %788 = vmatprep.mubr.f32.mxu0 0.0
      %789 = vmatmul.mubr.f32.gmra.mrb[0].mxu0 %v663
      %v790 = vpop.f32.mrb[0].mxu0
      %v791 = vadd.f32 0.0, %v790
      %v792 = vpop.f32.mrb[0].mxu0
      %793 = vmatprep.mubr.f32.mxu0 0.0
      %794 = vmatmul.mubr.f32.gmra.mrb[0].mxu0 %v666
      %v795 = vpop.f32.mrb[0].mxu0
      %v796 = vadd.f32 0.0, %v795
      %v797 = vpop.f32.mrb[0].mxu0
      %798 = vmatprep.mubr.f32.mxu0 0.0
      %799 = vmatmul.mubr.f32.gmra.mrb[0].mxu0 %v669
      %v800 = vpop.f32.mrb[0].mxu0
      %v801 = vadd.f32 0.0, %v800
      %v802 = vpop.f32.mrb[0].mxu0
      %803 = vmatprep.mubr.f32.mxu0 0.0
      %804 = vmatmul.mubr.f32.gmra.mrb[0].mxu0 %v672
      %v805 = vpop.f32.mrb[0].mxu0
      %v806 = vadd.f32 0.0, %v805
      %v807 = vpop.f32.mrb[0].mxu0
      %808 = vmatprep.mubr.f32.mxu0 0.0
      %809 = vmatmul.mubr.f32.gmra.mrb[0].mxu0 %v675
      %v810 = vpop.f32.mrb[0].mxu0
      %v811 = vadd.f32 0.0, %v810
      %v812 = vpop.f32.mrb[0].mxu0
      %813 = vmatprep.mubr.f32.mxu0 0.0
      %814 = vmatmul.mubr.f32.gmra.mrb[0].mxu0 %v678
      %v815 = vpop.f32.mrb[0].mxu0
      %v816 = vadd.f32 0.0, %v815
      %v817 = vpop.f32.mrb[0].mxu0
      %818 = vmatprep.mubr.f32.mxu0 0.0
      %819 = vmatmul.mubr.f32.gmra.mrb[0].mxu0 %v681
      %v820 = vpop.f32.mrb[0].mxu0
      %v821 = vadd.f32 0.0, %v820
      %v822 = vpop.f32.mrb[0].mxu0
      %823 = vmatprep.mubr.f32.mxu0 0.0
      %824 = vmatmul.mubr.f32.gmra.mrb[0].mxu0 %v684
      %v825 = vpop.f32.mrb[0].mxu0
      %v826 = vadd.f32 0.0, %v825
      %v827 = vpop.f32.mrb[0].mxu0
      %828 = vmatprep.mubr.f32.mxu0 0.0
      %829 = vmatmul.mubr.f32.gmra.mrb[0].mxu0 %v687
      %v830 = vpop.f32.mrb[0].mxu0
      %v831 = vadd.f32 0.0, %v830
      %v832 = vpop.f32.mrb[0].mxu0
      %833 = vmatprep.mubr.f32.mxu0 0.0
      %834 = vmatmul.mubr.f32.gmra.mrb[0].mxu0 %v690
      %v835 = vpop.f32.mrb[0].mxu0
      %v836 = vadd.f32 0.0, %v835
      %v837 = vpop.f32.mrb[0].mxu0
      %838 = vmatprep.mubr.f32.mxu0 0.0
      %839 = vmatmul.mubr.f32.gmra.mrb[0].mxu0 %v693
      %v840 = vpop.f32.mrb[0].mxu0
      %v841 = vadd.f32 0.0, %v840
      %v842 = vpop.f32.mrb[0].mxu0
      %843 = vmatprep.mubr.f32.mxu0 0.0
      %844 = vmatmul.mubr.f32.gmra.mrb[0].mxu0 %v696
      %v845 = vpop.f32.mrb[0].mxu0
      %v846 = vadd.f32 0.0, %v845
      %v847 = vpop.f32.mrb[0].mxu0
      %848 = vmatprep.mubr.f32.mxu0 0.0
      %849 = vmatmul.mubr.f32.gmra.mrb[0].mxu0 %v699
      %v850 = vpop.f32.mrb[0].mxu0
      %v851 = vadd.f32 0.0, %v850
      %v852 = vpop.f32.mrb[0].mxu0
      %853 = vmatprep.mubr.f32.mxu0 0.0
      %854 = vmatmul.mubr.f32.gmra.mrb[0].mxu0 %v702
      %v855 = vpop.f32.mrb[0].mxu0
      %v856 = vadd.f32 0.0, %v855
      %v857 = vpop.f32.mrb[0].mxu0
      %858 = vdwg.mxu0
      %v860 = vsel %vm649, %v610, 0
      %v863 = vsel %vm649, %v611, 0
      %v866 = vsel %vm649, %v612, 0
      %v869 = vsel %vm649, %v613, 0
      %v872 = vsel %vm649, %v614, 0
      %v875 = vsel %vm649, %v615, 0
      %v878 = vsel %vm649, %v616, 0
      %v881 = vsel %vm649, %v617, 0
      %v884 = vsel %vm649, %v618, 0
      %v887 = vsel %vm649, %v619, 0
      %v890 = vsel %vm649, %v620, 0
      %v893 = vsel %vm649, %v621, 0
      %v896 = vsel %vm649, %v622, 0
      %v899 = vsel %vm649, %v623, 0
      %v902 = vsel %vm649, %v624, 0
      %v905 = vsel %vm649, %v625, 0
      %v908 = vsel %vm649, %v626, 0
      %v911 = vsel %vm649, %v627, 0
      %913 = vmatprep.subr.mxu0 0.0
      %914 = vmatpush1.msra.mxu0 %v628
      %915 = vmatprep.subr.mxu0 0.0
      %916 = vmatpush1.msra.mxu0 0.0
      %917 = vmatprep.subr.mxu0 0.0
      %918 = vmatpush1.msra.mxu0 0.0
      %919 = vmatprep.subr.mxu0 0.0
      %920 = vmatpush1.msra.mxu0 0.0
      %921 = vmatprep.subr.mxu0 0.0
      %922 = vmatpush1.msra.mxu0 0.0
      %923 = vmatprep.subr.mxu0 0.0
      %924 = vmatpush1.msra.mxu0 0.0
      %925 = vmatprep.subr.mxu0 0.0
      %926 = vmatpush1.msra.mxu0 0.0
      %927 = vmatprep.subr.mxu0 0.0
      %928 = vmatpush1.msra.mxu0 0.0
      %929 = vmatprep.subr.mxu0 0.0
      %930 = vmatpush1.msra.mxu0 0.0
      %931 = vmatprep.subr.mxu0 0.0
      %932 = vmatpush1.msra.mxu0 0.0
      %933 = vmatprep.subr.mxu0 0.0
      %934 = vmatpush1.msra.mxu0 0.0
      %935 = vmatprep.subr.mxu0 0.0
      %936 = vmatpush1.msra.mxu0 0.0
      %937 = vmatprep.subr.mxu0 0.0
      %938 = vmatpush1.msra.mxu0 0.0
      %939 = vmatprep.subr.mxu0 0.0
      %940 = vmatpush1.msra.mxu0 0.0
      %941 = vmatprep.subr.mxu0 0.0
      %942 = vmatpush1.msra.mxu0 0.0
      %943 = vmatprep.subr.mxu0 0.0
      %944 = vmatpush1.msra.mxu0 0.0
      %945 = vmatprep.subr.mxu0 0.0
      %946 = vmatpush1.msra.mxu0 0.0
      %947 = vmatprep.subr.mxu0 0.0
      %948 = vmatpush1.msra.mxu0 0.0
      %949 = vmatprep.subr.mxu0 0.0
      %950 = vmatpush1.msra.mxu0 0.0
      %951 = vmatprep.subr.mxu0 0.0
      %952 = vmatpush1.msra.mxu0 0.0
      %953 = vmatprep.subr.mxu0 0.0
      %954 = vmatpush1.msra.mxu0 0.0
      %955 = vmatprep.subr.mxu0 0.0
      %956 = vmatpush1.msra.mxu0 0.0
      %957 = vmatprep.subr.mxu0 0.0
      %958 = vmatpush1.msra.mxu0 0.0
      %959 = vmatprep.subr.mxu0 0.0
      %960 = vmatpush1.msra.mxu0 0.0
      %961 = vmatprep.subr.mxu0 0.0
      %962 = vmatpush1.msra.mxu0 0.0
      %963 = vmatprep.subr.mxu0 0.0
      %964 = vmatpush1.msra.mxu0 0.0
      %965 = vmatprep.subr.mxu0 0.0
      %966 = vmatpush1.msra.mxu0 0.0
      %967 = vmatprep.subr.mxu0 0.0
      %968 = vmatpush1.msra.mxu0 0.0
      %969 = vmatprep.subr.mxu0 0.0
      %970 = vmatpush1.msra.mxu0 0.0
      %971 = vmatprep.subr.mxu0 0.0
      %972 = vmatpush1.msra.mxu0 0.0
      %973 = vmatprep.subr.mxu0 0.0
      %974 = vmatpush1.msra.mxu0 0.0
      %975 = vmatprep.subr.mxu0 0.0
      %976 = vmatpush1.msra.mxu0 0.0
      %977 = vmatprep.mubr.f32.mxu0 0.0
      %978 = vmatmul.mubr.f32.gmra.mrb[0].mxu0 %v860
      %v979 = vpop.f32.mrb[0].mxu0
      %v980 = vadd.f32 %v771, %v979
      %v981 = vpop.f32.mrb[0].mxu0
      %982 = vmatprep.mubr.f32.mxu0 0.0
      %983 = vmatmul.mubr.f32.gmra.mrb[0].mxu0 %v863
      %v984 = vpop.f32.mrb[0].mxu0
      %v985 = vadd.f32 %v776, %v984
      %v986 = vpop.f32.mrb[0].mxu0
      %987 = vmatprep.mubr.f32.mxu0 0.0
      %988 = vmatmul.mubr.f32.gmra.mrb[0].mxu0 %v866
      %v989 = vpop.f32.mrb[0].mxu0
      %v990 = vadd.f32 %v781, %v989
      %v991 = vpop.f32.mrb[0].mxu0
      %992 = vmatprep.mubr.f32.mxu0 0.0
      %993 = vmatmul.mubr.f32.gmra.mrb[0].mxu0 %v869
      %v994 = vpop.f32.mrb[0].mxu0
      %v995 = vadd.f32 %v786, %v994
      %v996 = vpop.f32.mrb[0].mxu0
      %997 = vmatprep.mubr.f32.mxu0 0.0
      %998 = vmatmul.mubr.f32.gmra.mrb[0].mxu0 %v872
      %v999 = vpop.f32.mrb[0].mxu0
      %v1000 = vadd.f32 %v791, %v999
      %v1001 = vpop.f32.mrb[0].mxu0
      %1002 = vmatprep.mubr.f32.mxu0 0.0
      %1003 = vmatmul.mubr.f32.gmra.mrb[0].mxu0 %v875
      %v1004 = vpop.f32.mrb[0].mxu0
      %v1005 = vadd.f32 %v796, %v1004
      %v1006 = vpop.f32.mrb[0].mxu0
      %1007 = vmatprep.mubr.f32.mxu0 0.0
      %1008 = vmatmul.mubr.f32.gmra.mrb[0].mxu0 %v878
      %v1009 = vpop.f32.mrb[0].mxu0
      %v1010 = vadd.f32 %v801, %v1009
      %v1011 = vpop.f32.mrb[0].mxu0
      %1012 = vmatprep.mubr.f32.mxu0 0.0
      %1013 = vmatmul.mubr.f32.gmra.mrb[0].mxu0 %v881
      %v1014 = vpop.f32.mrb[0].mxu0
      %v1015 = vadd.f32 %v806, %v1014
      %v1016 = vpop.f32.mrb[0].mxu0
      %1017 = vmatprep.mubr.f32.mxu0 0.0
      %1018 = vmatmul.mubr.f32.gmra.mrb[0].mxu0 %v884
      %v1019 = vpop.f32.mrb[0].mxu0
      %v1020 = vadd.f32 %v811, %v1019
      %v1021 = vpop.f32.mrb[0].mxu0
      %1022 = vmatprep.mubr.f32.mxu0 0.0
      %1023 = vmatmul.mubr.f32.gmra.mrb[0].mxu0 %v887
      %v1024 = vpop.f32.mrb[0].mxu0
      %v1025 = vadd.f32 %v816, %v1024
      %v1026 = vpop.f32.mrb[0].mxu0
      %1027 = vmatprep.mubr.f32.mxu0 0.0
      %1028 = vmatmul.mubr.f32.gmra.mrb[0].mxu0 %v890
      %v1029 = vpop.f32.mrb[0].mxu0
      %v1030 = vadd.f32 %v821, %v1029
      %v1031 = vpop.f32.mrb[0].mxu0
      %1032 = vmatprep.mubr.f32.mxu0 0.0
      %1033 = vmatmul.mubr.f32.gmra.mrb[0].mxu0 %v893
      %v1034 = vpop.f32.mrb[0].mxu0
      %v1035 = vadd.f32 %v826, %v1034
      %v1036 = vpop.f32.mrb[0].mxu0
      %1037 = vmatprep.mubr.f32.mxu0 0.0
      %1038 = vmatmul.mubr.f32.gmra.mrb[0].mxu0 %v896
      %v1039 = vpop.f32.mrb[0].mxu0
      %v1040 = vadd.f32 %v831, %v1039
      %v1041 = vpop.f32.mrb[0].mxu0
      %1042 = vmatprep.mubr.f32.mxu0 0.0
      %1043 = vmatmul.mubr.f32.gmra.mrb[0].mxu0 %v899
      %v1044 = vpop.f32.mrb[0].mxu0
      %v1045 = vadd.f32 %v836, %v1044
      %v1046 = vpop.f32.mrb[0].mxu0
      %1047 = vmatprep.mubr.f32.mxu0 0.0
      %1048 = vmatmul.mubr.f32.gmra.mrb[0].mxu0 %v902
      %v1049 = vpop.f32.mrb[0].mxu0
      %v1050 = vadd.f32 %v841, %v1049
      %v1051 = vpop.f32.mrb[0].mxu0
      %1052 = vmatprep.mubr.f32.mxu0 0.0
      %1053 = vmatmul.mubr.f32.gmra.mrb[0].mxu0 %v905
      %v1054 = vpop.f32.mrb[0].mxu0
      %v1055 = vadd.f32 %v846, %v1054
      %v1056 = vpop.f32.mrb[0].mxu0
      %1057 = vmatprep.mubr.f32.mxu0 0.0
      %1058 = vmatmul.mubr.f32.gmra.mrb[0].mxu0 %v908
      %v1059 = vpop.f32.mrb[0].mxu0
      %v1060 = vadd.f32 %v851, %v1059
      %v1061 = vpop.f32.mrb[0].mxu0
      %1062 = vmatprep.mubr.f32.mxu0 0.0
      %1063 = vmatmul.mubr.f32.gmra.mrb[0].mxu0 %v911
      %v1064 = vpop.f32.mrb[0].mxu0
      %v1065 = vadd.f32 %v856, %v1064
      %v1066 = vpop.f32.mrb[0].mxu0
      %1067 = vdwg.mxu0
      %v1068 = vld [vmem:[%s273 + $0x2] sm:$0xff]
      %v1069 = vld [vmem:[%s273 + $0xa] sm:$0xff]
      %v1070 = vld [vmem:[%s273 + $0x12] sm:$0xff]
      %v1071 = vld [vmem:[%s273 + $0x1a] sm:$0xff]
      %v1072 = vld [vmem:[%s273 + $0x22] sm:$0xff]
      %v1073 = vld [vmem:[%s273 + $0x2a] sm:$0xff]
      %v1074 = vld [vmem:[%s273 + $0x32] sm:$0xff]
      %v1075 = vld [vmem:[%s273 + $0x3a] sm:$0xff]
      %v1076 = vld [vmem:[%s273 + $0x42] sm:$0xff]
      %v1077 = vld [vmem:[%s273 + $0x4a] sm:$0xff]
      %v1078 = vld [vmem:[%s273 + $0x52] sm:$0xff]
      %v1079 = vld [vmem:[%s273 + $0x5a] sm:$0xff]
      %v1080 = vld [vmem:[%s273 + $0x62] sm:$0xff]
      %v1081 = vld [vmem:[%s273 + $0x6a] sm:$0xff]
      %v1082 = vld [vmem:[%s273 + $0x72] sm:$0xff]
      %v1083 = vld [vmem:[%s273 + $0x7a] sm:$0xff]
      %v1084 = vld [vmem:[%s273 + $0x82] sm:$0xff]
      %v1085 = vld [vmem:[%s273 + $0x8a] sm:$0xff]
      %s1086 = scalar_lea.vmem %s1, 16
      %v1087 = vld [vmem:[%s1086] sm:$0xff]
      %v1089 = vsel %vm649, %v1068, 0
      %v1092 = vsel %vm649, %v1069, 0
      %v1095 = vsel %vm649, %v1070, 0
      %v1098 = vsel %vm649, %v1071, 0
      %v1101 = vsel %vm649, %v1072, 0
      %v1104 = vsel %vm649, %v1073, 0
      %v1107 = vsel %vm649, %v1074, 0
      %v1110 = vsel %vm649, %v1075, 0
      %v1113 = vsel %vm649, %v1076, 0
      %v1116 = vsel %vm649, %v1077, 0
      %v1119 = vsel %vm649, %v1078, 0
      %v1122 = vsel %vm649, %v1079, 0
      %v1125 = vsel %vm649, %v1080, 0
      %v1128 = vsel %vm649, %v1081, 0
      %v1131 = vsel %vm649, %v1082, 0
      %v1134 = vsel %vm649, %v1083, 0
      %v1137 = vsel %vm649, %v1084, 0
      %v1140 = vsel %vm649, %v1085, 0
      %1142 = vmatprep.subr.mxu0 0.0
      %1143 = vmatpush1.msra.mxu0 %v1087
      %1144 = vmatprep.subr.mxu0 0.0
      %1145 = vmatpush1.msra.mxu0 0.0
      %1146 = vmatprep.subr.mxu0 0.0
      %1147 = vmatpush1.msra.mxu0 0.0
      %1148 = vmatprep.subr.mxu0 0.0
      %1149 = vmatpush1.msra.mxu0 0.0
      %1150 = vmatprep.subr.mxu0 0.0
      %1151 = vmatpush1.msra.mxu0 0.0
      %1152 = vmatprep.subr.mxu0 0.0
      %1153 = vmatpush1.msra.mxu0 0.0
      %1154 = vmatprep.subr.mxu0 0.0
      %1155 = vmatpush1.msra.mxu0 0.0
      %1156 = vmatprep.subr.mxu0 0.0
      %1157 = vmatpush1.msra.mxu0 0.0
      %1158 = vmatprep.subr.mxu0 0.0
      %1159 = vmatpush1.msra.mxu0 0.0
      %1160 = vmatprep.subr.mxu0 0.0
      %1161 = vmatpush1.msra.mxu0 0.0
      %1162 = vmatprep.subr.mxu0 0.0
      %1163 = vmatpush1.msra.mxu0 0.0
      %1164 = vmatprep.subr.mxu0 0.0
      %1165 = vmatpush1.msra.mxu0 0.0
      %1166 = vmatprep.subr.mxu0 0.0
      %1167 = vmatpush1.msra.mxu0 0.0
      %1168 = vmatprep.subr.mxu0 0.0
      %1169 = vmatpush1.msra.mxu0 0.0
      %1170 = vmatprep.subr.mxu0 0.0
      %1171 = vmatpush1.msra.mxu0 0.0
      %1172 = vmatprep.subr.mxu0 0.0
      %1173 = vmatpush1.msra.mxu0 0.0
      %1174 = vmatprep.subr.mxu0 0.0
      %1175 = vmatpush1.msra.mxu0 0.0
      %1176 = vmatprep.subr.mxu0 0.0
      %1177 = vmatpush1.msra.mxu0 0.0
      %1178 = vmatprep.subr.mxu0 0.0
      %1179 = vmatpush1.msra.mxu0 0.0
      %1180 = vmatprep.subr.mxu0 0.0
      %1181 = vmatpush1.msra.mxu0 0.0
      %1182 = vmatprep.subr.mxu0 0.0
      %1183 = vmatpush1.msra.mxu0 0.0
      %1184 = vmatprep.subr.mxu0 0.0
      %1185 = vmatpush1.msra.mxu0 0.0
      %1186 = vmatprep.subr.mxu0 0.0
      %1187 = vmatpush1.msra.mxu0 0.0
      %1188 = vmatprep.subr.mxu0 0.0
      %1189 = vmatpush1.msra.mxu0 0.0
      %1190 = vmatprep.subr.mxu0 0.0
      %1191 = vmatpush1.msra.mxu0 0.0
      %1192 = vmatprep.subr.mxu0 0.0
      %1193 = vmatpush1.msra.mxu0 0.0
      %1194 = vmatprep.subr.mxu0 0.0
      %1195 = vmatpush1.msra.mxu0 0.0
      %1196 = vmatprep.subr.mxu0 0.0
      %1197 = vmatpush1.msra.mxu0 0.0
      %1198 = vmatprep.subr.mxu0 0.0
      %1199 = vmatpush1.msra.mxu0 0.0
      %1200 = vmatprep.subr.mxu0 0.0
      %1201 = vmatpush1.msra.mxu0 0.0
      %1202 = vmatprep.subr.mxu0 0.0
      %1203 = vmatpush1.msra.mxu0 0.0
      %1204 = vmatprep.subr.mxu0 0.0
      %1205 = vmatpush1.msra.mxu0 0.0
      %1206 = vmatprep.mubr.f32.mxu0 0.0
      %1207 = vmatmul.mubr.f32.gmra.mrb[0].mxu0 %v1089
      %v1208 = vpop.f32.mrb[0].mxu0
      %v1209 = vadd.f32 0.0, %v1208
      %v1210 = vpop.f32.mrb[0].mxu0
      %1211 = vmatprep.mubr.f32.mxu0 0.0
      %1212 = vmatmul.mubr.f32.gmra.mrb[0].mxu0 %v1092
      %v1213 = vpop.f32.mrb[0].mxu0
      %v1214 = vadd.f32 0.0, %v1213
      %v1215 = vpop.f32.mrb[0].mxu0
      %1216 = vmatprep.mubr.f32.mxu0 0.0
      %1217 = vmatmul.mubr.f32.gmra.mrb[0].mxu0 %v1095
      %v1218 = vpop.f32.mrb[0].mxu0
      %v1219 = vadd.f32 0.0, %v1218
      %v1220 = vpop.f32.mrb[0].mxu0
      %1221 = vmatprep.mubr.f32.mxu0 0.0
      %1222 = vmatmul.mubr.f32.gmra.mrb[0].mxu0 %v1098
      %v1223 = vpop.f32.mrb[0].mxu0
      %v1224 = vadd.f32 0.0, %v1223
      %v1225 = vpop.f32.mrb[0].mxu0
      %1226 = vmatprep.mubr.f32.mxu0 0.0
      %1227 = vmatmul.mubr.f32.gmra.mrb[0].mxu0 %v1101
      %v1228 = vpop.f32.mrb[0].mxu0
      %v1229 = vadd.f32 0.0, %v1228
      %v1230 = vpop.f32.mrb[0].mxu0
      %1231 = vmatprep.mubr.f32.mxu0 0.0
      %1232 = vmatmul.mubr.f32.gmra.mrb[0].mxu0 %v1104
      %v1233 = vpop.f32.mrb[0].mxu0
      %v1234 = vadd.f32 0.0, %v1233
      %v1235 = vpop.f32.mrb[0].mxu0
      %1236 = vmatprep.mubr.f32.mxu0 0.0
      %1237 = vmatmul.mubr.f32.gmra.mrb[0].mxu0 %v1107
      %v1238 = vpop.f32.mrb[0].mxu0
      %v1239 = vadd.f32 0.0, %v1238
      %v1240 = vpop.f32.mrb[0].mxu0
      %1241 = vmatprep.mubr.f32.mxu0 0.0
      %1242 = vmatmul.mubr.f32.gmra.mrb[0].mxu0 %v1110
      %v1243 = vpop.f32.mrb[0].mxu0
      %v1244 = vadd.f32 0.0, %v1243
      %v1245 = vpop.f32.mrb[0].mxu0
      %1246 = vmatprep.mubr.f32.mxu0 0.0
      %1247 = vmatmul.mubr.f32.gmra.mrb[0].mxu0 %v1113
      %v1248 = vpop.f32.mrb[0].mxu0
      %v1249 = vadd.f32 0.0, %v1248
      %v1250 = vpop.f32.mrb[0].mxu0
      %1251 = vmatprep.mubr.f32.mxu0 0.0
      %1252 = vmatmul.mubr.f32.gmra.mrb[0].mxu0 %v1116
      %v1253 = vpop.f32.mrb[0].mxu0
      %v1254 = vadd.f32 0.0, %v1253
      %v1255 = vpop.f32.mrb[0].mxu0
      %1256 = vmatprep.mubr.f32.mxu0 0.0
      %1257 = vmatmul.mubr.f32.gmra.mrb[0].mxu0 %v1119
      %v1258 = vpop.f32.mrb[0].mxu0
      %v1259 = vadd.f32 0.0, %v1258
      %v1260 = vpop.f32.mrb[0].mxu0
      %1261 = vmatprep.mubr.f32.mxu0 0.0
      %1262 = vmatmul.mubr.f32.gmra.mrb[0].mxu0 %v1122
      %v1263 = vpop.f32.mrb[0].mxu0
      %v1264 = vadd.f32 0.0, %v1263
      %v1265 = vpop.f32.mrb[0].mxu0
      %1266 = vmatprep.mubr.f32.mxu0 0.0
      %1267 = vmatmul.mubr.f32.gmra.mrb[0].mxu0 %v1125
      %v1268 = vpop.f32.mrb[0].mxu0
      %v1269 = vadd.f32 0.0, %v1268
      %v1270 = vpop.f32.mrb[0].mxu0
      %1271 = vmatprep.mubr.f32.mxu0 0.0
      %1272 = vmatmul.mubr.f32.gmra.mrb[0].mxu0 %v1128
      %v1273 = vpop.f32.mrb[0].mxu0
      %v1274 = vadd.f32 0.0, %v1273
      %v1275 = vpop.f32.mrb[0].mxu0
      %1276 = vmatprep.mubr.f32.mxu0 0.0
      %1277 = vmatmul.mubr.f32.gmra.mrb[0].mxu0 %v1131
      %v1278 = vpop.f32.mrb[0].mxu0
      %v1279 = vadd.f32 0.0, %v1278
      %v1280 = vpop.f32.mrb[0].mxu0
      %1281 = vmatprep.mubr.f32.mxu0 0.0
      %1282 = vmatmul.mubr.f32.gmra.mrb[0].mxu0 %v1134
      %v1283 = vpop.f32.mrb[0].mxu0
      %v1284 = vadd.f32 0.0, %v1283
      %v1285 = vpop.f32.mrb[0].mxu0
      %1286 = vmatprep.mubr.f32.mxu0 0.0
      %1287 = vmatmul.mubr.f32.gmra.mrb[0].mxu0 %v1137
      %v1288 = vpop.f32.mrb[0].mxu0
      %v1289 = vadd.f32 0.0, %v1288
      %v1290 = vpop.f32.mrb[0].mxu0
      %1291 = vmatprep.mubr.f32.mxu0 0.0
      %1292 = vmatmul.mubr.f32.gmra.mrb[0].mxu0 %v1140
      %v1293 = vpop.f32.mrb[0].mxu0
      %v1294 = vadd.f32 0.0, %v1293
      %v1295 = vpop.f32.mrb[0].mxu0
      %1296 = vdwg.mxu0
      %v1297 = vadd.f32 %v980, %v1209
      %v1298 = vadd.f32 %v985, %v1214
      %v1299 = vadd.f32 %v990, %v1219
      %v1300 = vadd.f32 %v995, %v1224
      %v1301 = vadd.f32 %v1000, %v1229
      %v1302 = vadd.f32 %v1005, %v1234
      %v1303 = vadd.f32 %v1010, %v1239
      %v1304 = vadd.f32 %v1015, %v1244
      %v1305 = vadd.f32 %v1020, %v1249
      %v1306 = vadd.f32 %v1025, %v1254
      %v1307 = vadd.f32 %v1030, %v1259
      %v1308 = vadd.f32 %v1035, %v1264
      %v1309 = vadd.f32 %v1040, %v1269
      %v1310 = vadd.f32 %v1045, %v1274
      %v1311 = vadd.f32 %v1050, %v1279
      %v1312 = vadd.f32 %v1055, %v1284
      %v1313 = vadd.f32 %v1060, %v1289
      %v1314 = vadd.f32 %v1065, %v1294
      %v1315 = vld [vmem:[%s273 + $0x12] sm:$0xff]
      %v1316 = vld [vmem:[%s273 + $0x1a] sm:$0xff]
      %v1317 = vld [vmem:[%s273 + $0x22] sm:$0xff]
      %v1318 = vld [vmem:[%s273 + $0x2a] sm:$0xff]
      %v1319 = vld [vmem:[%s273 + $0x32] sm:$0xff]
      %v1320 = vld [vmem:[%s273 + $0x3a] sm:$0xff]
      %v1321 = vld [vmem:[%s273 + $0x42] sm:$0xff]
      %v1322 = vld [vmem:[%s273 + $0x4a] sm:$0xff]
      %v1323 = vld [vmem:[%s273 + $0x52] sm:$0xff]
      %v1324 = vld [vmem:[%s273 + $0x5a] sm:$0xff]
      %v1325 = vld [vmem:[%s273 + $0x62] sm:$0xff]
      %v1326 = vld [vmem:[%s273 + $0x6a] sm:$0xff]
      %v1327 = vld [vmem:[%s273 + $0x72] sm:$0xff]
      %v1328 = vld [vmem:[%s273 + $0x7a] sm:$0xff]
      %v1329 = vld [vmem:[%s273 + $0x82] sm:$0xff]
      %v1330 = vld [vmem:[%s273 + $0x8a] sm:$0xff]
      %v1331 = vld [vmem:[%s273 + $0x92] sm:$0xff]
      %v1332 = vld [vmem:[%s273 + $0x9a] sm:$0xff]
      %s1333 = scalar_lea.vmem %s1, 24
      %v1334 = vld [vmem:[%s1333] sm:$0xff]
      %v1336 = vsel %vm649, %v1315, 0
      %v1339 = vsel %vm649, %v1316, 0
      %v1342 = vsel %vm649, %v1317, 0
      %v1345 = vsel %vm649, %v1318, 0
      %v1348 = vsel %vm649, %v1319, 0
      %v1351 = vsel %vm649, %v1320, 0
      %v1354 = vsel %vm649, %v1321, 0
      %v1357 = vsel %vm649, %v1322, 0
      %v1360 = vsel %vm649, %v1323, 0
      %v1363 = vsel %vm649, %v1324, 0
      %v1366 = vsel %vm649, %v1325, 0
      %v1369 = vsel %vm649, %v1326, 0
      %v1372 = vsel %vm649, %v1327, 0
      %v1375 = vsel %vm649, %v1328, 0
      %v1378 = vsel %vm649, %v1329, 0
      %v1381 = vsel %vm649, %v1330, 0
      %v1384 = vsel %vm649, %v1331, 0
      %v1387 = vsel %vm649, %v1332, 0
      %1389 = vmatprep.subr.mxu0 0.0
      %1390 = vmatpush1.msra.mxu0 %v1334
      %1391 = vmatprep.subr.mxu0 0.0
      %1392 = vmatpush1.msra.mxu0 0.0
      %1393 = vmatprep.subr.mxu0 0.0
      %1394 = vmatpush1.msra.mxu0 0.0
      %1395 = vmatprep.subr.mxu0 0.0
      %1396 = vmatpush1.msra.mxu0 0.0
      %1397 = vmatprep.subr.mxu0 0.0
      %1398 = vmatpush1.msra.mxu0 0.0
      %1399 = vmatprep.subr.mxu0 0.0
      %1400 = vmatpush1.msra.mxu0 0.0
      %1401 = vmatprep.subr.mxu0 0.0
      %1402 = vmatpush1.msra.mxu0 0.0
      %1403 = vmatprep.subr.mxu0 0.0
      %1404 = vmatpush1.msra.mxu0 0.0
      %1405 = vmatprep.subr.mxu0 0.0
      %1406 = vmatpush1.msra.mxu0 0.0
      %1407 = vmatprep.subr.mxu0 0.0
      %1408 = vmatpush1.msra.mxu0 0.0
      %1409 = vmatprep.subr.mxu0 0.0
      %1410 = vmatpush1.msra.mxu0 0.0
      %1411 = vmatprep.subr.mxu0 0.0
      %1412 = vmatpush1.msra.mxu0 0.0
      %1413 = vmatprep.subr.mxu0 0.0
      %1414 = vmatpush1.msra.mxu0 0.0
      %1415 = vmatprep.subr.mxu0 0.0
      %1416 = vmatpush1.msra.mxu0 0.0
      %1417 = vmatprep.subr.mxu0 0.0
      %1418 = vmatpush1.msra.mxu0 0.0
      %1419 = vmatprep.subr.mxu0 0.0
      %1420 = vmatpush1.msra.mxu0 0.0
      %1421 = vmatprep.subr.mxu0 0.0
      %1422 = vmatpush1.msra.mxu0 0.0
      %1423 = vmatprep.subr.mxu0 0.0
      %1424 = vmatpush1.msra.mxu0 0.0
      %1425 = vmatprep.subr.mxu0 0.0
      %1426 = vmatpush1.msra.mxu0 0.0
      %1427 = vmatprep.subr.mxu0 0.0
      %1428 = vmatpush1.msra.mxu0 0.0
      %1429 = vmatprep.subr.mxu0 0.0
      %1430 = vmatpush1.msra.mxu0 0.0
      %1431 = vmatprep.subr.mxu0 0.0
      %1432 = vmatpush1.msra.mxu0 0.0
      %1433 = vmatprep.subr.mxu0 0.0
      %1434 = vmatpush1.msra.mxu0 0.0
      %1435 = vmatprep.subr.mxu0 0.0
      %1436 = vmatpush1.msra.mxu0 0.0
      %1437 = vmatprep.subr.mxu0 0.0
      %1438 = vmatpush1.msra.mxu0 0.0
      %1439 = vmatprep.subr.mxu0 0.0
      %1440 = vmatpush1.msra.mxu0 0.0
      %1441 = vmatprep.subr.mxu0 0.0
      %1442 = vmatpush1.msra.mxu0 0.0
      %1443 = vmatprep.subr.mxu0 0.0
      %1444 = vmatpush1.msra.mxu0 0.0
      %1445 = vmatprep.subr.mxu0 0.0
      %1446 = vmatpush1.msra.mxu0 0.0
      %1447 = vmatprep.subr.mxu0 0.0
      %1448 = vmatpush1.msra.mxu0 0.0
      %1449 = vmatprep.subr.mxu0 0.0
      %1450 = vmatpush1.msra.mxu0 0.0
      %1451 = vmatprep.subr.mxu0 0.0
      %1452 = vmatpush1.msra.mxu0 0.0
      %1453 = vmatprep.mubr.f32.mxu0 0.0
      %1454 = vmatmul.mubr.f32.gmra.mrb[0].mxu0 %v1336
      %v1455 = vpop.f32.mrb[0].mxu0
      %v1456 = vadd.f32 0.0, %v1455
      %v1457 = vpop.f32.mrb[0].mxu0
      %1458 = vmatprep.mubr.f32.mxu0 0.0
      %1459 = vmatmul.mubr.f32.gmra.mrb[0].mxu0 %v1339
      %v1460 = vpop.f32.mrb[0].mxu0
      %v1461 = vadd.f32 0.0, %v1460
      %v1462 = vpop.f32.mrb[0].mxu0
      %1463 = vmatprep.mubr.f32.mxu0 0.0
      %1464 = vmatmul.mubr.f32.gmra.mrb[0].mxu0 %v1342
      %v1465 = vpop.f32.mrb[0].mxu0
      %v1466 = vadd.f32 0.0, %v1465
      %v1467 = vpop.f32.mrb[0].mxu0
      %1468 = vmatprep.mubr.f32.mxu0 0.0
      %1469 = vmatmul.mubr.f32.gmra.mrb[0].mxu0 %v1345
      %v1470 = vpop.f32.mrb[0].mxu0
      %v1471 = vadd.f32 0.0, %v1470
      %v1472 = vpop.f32.mrb[0].mxu0
      %1473 = vmatprep.mubr.f32.mxu0 0.0
      %1474 = vmatmul.mubr.f32.gmra.mrb[0].mxu0 %v1348
      %v1475 = vpop.f32.mrb[0].mxu0
      %v1476 = vadd.f32 0.0, %v1475
      %v1477 = vpop.f32.mrb[0].mxu0
      %1478 = vmatprep.mubr.f32.mxu0 0.0
      %1479 = vmatmul.mubr.f32.gmra.mrb[0].mxu0 %v1351
      %v1480 = vpop.f32.mrb[0].mxu0
      %v1481 = vadd.f32 0.0, %v1480
      %v1482 = vpop.f32.mrb[0].mxu0
      %1483 = vmatprep.mubr.f32.mxu0 0.0
      %1484 = vmatmul.mubr.f32.gmra.mrb[0].mxu0 %v1354
      %v1485 = vpop.f32.mrb[0].mxu0
      %v1486 = vadd.f32 0.0, %v1485
      %v1487 = vpop.f32.mrb[0].mxu0
      %1488 = vmatprep.mubr.f32.mxu0 0.0
      %1489 = vmatmul.mubr.f32.gmra.mrb[0].mxu0 %v1357
      %v1490 = vpop.f32.mrb[0].mxu0
      %v1491 = vadd.f32 0.0, %v1490
      %v1492 = vpop.f32.mrb[0].mxu0
      %1493 = vmatprep.mubr.f32.mxu0 0.0
      %1494 = vmatmul.mubr.f32.gmra.mrb[0].mxu0 %v1360
      %v1495 = vpop.f32.mrb[0].mxu0
      %v1496 = vadd.f32 0.0, %v1495
      %v1497 = vpop.f32.mrb[0].mxu0
      %1498 = vmatprep.mubr.f32.mxu0 0.0
      %1499 = vmatmul.mubr.f32.gmra.mrb[0].mxu0 %v1363
      %v1500 = vpop.f32.mrb[0].mxu0
      %v1501 = vadd.f32 0.0, %v1500
      %v1502 = vpop.f32.mrb[0].mxu0
      %1503 = vmatprep.mubr.f32.mxu0 0.0
      %1504 = vmatmul.mubr.f32.gmra.mrb[0].mxu0 %v1366
      %v1505 = vpop.f32.mrb[0].mxu0
      %v1506 = vadd.f32 0.0, %v1505
      %v1507 = vpop.f32.mrb[0].mxu0
      %1508 = vmatprep.mubr.f32.mxu0 0.0
      %1509 = vmatmul.mubr.f32.gmra.mrb[0].mxu0 %v1369
      %v1510 = vpop.f32.mrb[0].mxu0
      %v1511 = vadd.f32 0.0, %v1510
      %v1512 = vpop.f32.mrb[0].mxu0
      %1513 = vmatprep.mubr.f32.mxu0 0.0
      %1514 = vmatmul.mubr.f32.gmra.mrb[0].mxu0 %v1372
      %v1515 = vpop.f32.mrb[0].mxu0
      %v1516 = vadd.f32 0.0, %v1515
      %v1517 = vpop.f32.mrb[0].mxu0
      %1518 = vmatprep.mubr.f32.mxu0 0.0
      %1519 = vmatmul.mubr.f32.gmra.mrb[0].mxu0 %v1375
      %v1520 = vpop.f32.mrb[0].mxu0
      %v1521 = vadd.f32 0.0, %v1520
      %v1522 = vpop.f32.mrb[0].mxu0
      %1523 = vmatprep.mubr.f32.mxu0 0.0
      %1524 = vmatmul.mubr.f32.gmra.mrb[0].mxu0 %v1378
      %v1525 = vpop.f32.mrb[0].mxu0
      %v1526 = vadd.f32 0.0, %v1525
      %v1527 = vpop.f32.mrb[0].mxu0
      %1528 = vmatprep.mubr.f32.mxu0 0.0
      %1529 = vmatmul.mubr.f32.gmra.mrb[0].mxu0 %v1381
      %v1530 = vpop.f32.mrb[0].mxu0
      %v1531 = vadd.f32 0.0, %v1530
      %v1532 = vpop.f32.mrb[0].mxu0
      %1533 = vmatprep.mubr.f32.mxu0 0.0
      %1534 = vmatmul.mubr.f32.gmra.mrb[0].mxu0 %v1384
      %v1535 = vpop.f32.mrb[0].mxu0
      %v1536 = vadd.f32 0.0, %v1535
      %v1537 = vpop.f32.mrb[0].mxu0
      %1538 = vmatprep.mubr.f32.mxu0 0.0
      %1539 = vmatmul.mubr.f32.gmra.mrb[0].mxu0 %v1387
      %v1540 = vpop.f32.mrb[0].mxu0
      %v1541 = vadd.f32 0.0, %v1540
      %v1542 = vpop.f32.mrb[0].mxu0
      %1543 = vdwg.mxu0
      %v1544 = vadd.f32 %v1297, %v1456
      %v1545 = vadd.f32 %v1298, %v1461
      %v1546 = vadd.f32 %v1299, %v1466
      %v1547 = vadd.f32 %v1300, %v1471
      %v1548 = vadd.f32 %v1301, %v1476
      %v1549 = vadd.f32 %v1302, %v1481
      %v1550 = vadd.f32 %v1303, %v1486
      %v1551 = vadd.f32 %v1304, %v1491
      %v1552 = vadd.f32 %v1305, %v1496
      %v1553 = vadd.f32 %v1306, %v1501
      %v1554 = vadd.f32 %v1307, %v1506
      %v1555 = vadd.f32 %v1308, %v1511
      %v1556 = vadd.f32 %v1309, %v1516
      %v1557 = vadd.f32 %v1310, %v1521
      %v1558 = vadd.f32 %v1311, %v1526
      %v1559 = vadd.f32 %v1312, %v1531
      %v1560 = vadd.f32 %v1313, %v1536
      %v1561 = vadd.f32 %v1314, %v1541
      %v1562 = vld [vmem:[%s273 + $0x13] sm:$0xff]
      %v1563 = vld [vmem:[%s273 + $0x1b] sm:$0xff]
      %v1564 = vld [vmem:[%s273 + $0x23] sm:$0xff]
      %v1565 = vld [vmem:[%s273 + $0x2b] sm:$0xff]
      %v1566 = vld [vmem:[%s273 + $0x33] sm:$0xff]
      %v1567 = vld [vmem:[%s273 + $0x3b] sm:$0xff]
      %v1568 = vld [vmem:[%s273 + $0x43] sm:$0xff]
      %v1569 = vld [vmem:[%s273 + $0x4b] sm:$0xff]
      %v1570 = vld [vmem:[%s273 + $0x53] sm:$0xff]
      %v1571 = vld [vmem:[%s273 + $0x5b] sm:$0xff]
      %v1572 = vld [vmem:[%s273 + $0x63] sm:$0xff]
      %v1573 = vld [vmem:[%s273 + $0x6b] sm:$0xff]
      %v1574 = vld [vmem:[%s273 + $0x73] sm:$0xff]
      %v1575 = vld [vmem:[%s273 + $0x7b] sm:$0xff]
      %v1576 = vld [vmem:[%s273 + $0x83] sm:$0xff]
      %v1577 = vld [vmem:[%s273 + $0x8b] sm:$0xff]
      %v1578 = vld [vmem:[%s273 + $0x93] sm:$0xff]
      %v1579 = vld [vmem:[%s273 + $0x9b] sm:$0xff]
      %s1580 = scalar_lea.vmem %s1, 32
      %v1581 = vld [vmem:[%s1580] sm:$0xff]
      %v1583 = vsel %vm649, %v1562, 0
      %v1586 = vsel %vm649, %v1563, 0
      %v1589 = vsel %vm649, %v1564, 0
      %v1592 = vsel %vm649, %v1565, 0
      %v1595 = vsel %vm649, %v1566, 0
      %v1598 = vsel %vm649, %v1567, 0
      %v1601 = vsel %vm649, %v1568, 0
      %v1604 = vsel %vm649, %v1569, 0
      %v1607 = vsel %vm649, %v1570, 0
      %v1610 = vsel %vm649, %v1571, 0
      %v1613 = vsel %vm649, %v1572, 0
      %v1616 = vsel %vm649, %v1573, 0
      %v1619 = vsel %vm649, %v1574, 0
      %v1622 = vsel %vm649, %v1575, 0
      %v1625 = vsel %vm649, %v1576, 0
      %v1628 = vsel %vm649, %v1577, 0
      %v1631 = vsel %vm649, %v1578, 0
      %v1634 = vsel %vm649, %v1579, 0
      %1636 = vmatprep.subr.mxu0 0.0
      %1637 = vmatpush1.msra.mxu0 %v1581
      %1638 = vmatprep.subr.mxu0 0.0
      %1639 = vmatpush1.msra.mxu0 0.0
      %1640 = vmatprep.subr.mxu0 0.0
      %1641 = vmatpush1.msra.mxu0 0.0
      %1642 = vmatprep.subr.mxu0 0.0
      %1643 = vmatpush1.msra.mxu0 0.0
      %1644 = vmatprep.subr.mxu0 0.0
      %1645 = vmatpush1.msra.mxu0 0.0
      %1646 = vmatprep.subr.mxu0 0.0
      %1647 = vmatpush1.msra.mxu0 0.0
      %1648 = vmatprep.subr.mxu0 0.0
      %1649 = vmatpush1.msra.mxu0 0.0
      %1650 = vmatprep.subr.mxu0 0.0
      %1651 = vmatpush1.msra.mxu0 0.0
      %1652 = vmatprep.subr.mxu0 0.0
      %1653 = vmatpush1.msra.mxu0 0.0
      %1654 = vmatprep.subr.mxu0 0.0
      %1655 = vmatpush1.msra.mxu0 0.0
      %1656 = vmatprep.subr.mxu0 0.0
      %1657 = vmatpush1.msra.mxu0 0.0
      %1658 = vmatprep.subr.mxu0 0.0
      %1659 = vmatpush1.msra.mxu0 0.0
      %1660 = vmatprep.subr.mxu0 0.0
      %1661 = vmatpush1.msra.mxu0 0.0
      %1662 = vmatprep.subr.mxu0 0.0
      %1663 = vmatpush1.msra.mxu0 0.0
      %1664 = vmatprep.subr.mxu0 0.0
      %1665 = vmatpush1.msra.mxu0 0.0
      %1666 = vmatprep.subr.mxu0 0.0
      %1667 = vmatpush1.msra.mxu0 0.0
      %1668 = vmatprep.subr.mxu0 0.0
      %1669 = vmatpush1.msra.mxu0 0.0
      %1670 = vmatprep.subr.mxu0 0.0
      %1671 = vmatpush1.msra.mxu0 0.0
      %1672 = vmatprep.subr.mxu0 0.0
      %1673 = vmatpush1.msra.mxu0 0.0
      %1674 = vmatprep.subr.mxu0 0.0
      %1675 = vmatpush1.msra.mxu0 0.0
      %1676 = vmatprep.subr.mxu0 0.0
      %1677 = vmatpush1.msra.mxu0 0.0
      %1678 = vmatprep.subr.mxu0 0.0
      %1679 = vmatpush1.msra.mxu0 0.0
      %1680 = vmatprep.subr.mxu0 0.0
      %1681 = vmatpush1.msra.mxu0 0.0
      %1682 = vmatprep.subr.mxu0 0.0
      %1683 = vmatpush1.msra.mxu0 0.0
      %1684 = vmatprep.subr.mxu0 0.0
      %1685 = vmatpush1.msra.mxu0 0.0
      %1686 = vmatprep.subr.mxu0 0.0
      %1687 = vmatpush1.msra.mxu0 0.0
      %1688 = vmatprep.subr.mxu0 0.0
      %1689 = vmatpush1.msra.mxu0 0.0
      %1690 = vmatprep.subr.mxu0 0.0
      %1691 = vmatpush1.msra.mxu0 0.0
      %1692 = vmatprep.subr.mxu0 0.0
      %1693 = vmatpush1.msra.mxu0 0.0
      %1694 = vmatprep.subr.mxu0 0.0
      %1695 = vmatpush1.msra.mxu0 0.0
      %1696 = vmatprep.subr.mxu0 0.0
      %1697 = vmatpush1.msra.mxu0 0.0
      %1698 = vmatprep.subr.mxu0 0.0
      %1699 = vmatpush1.msra.mxu0 0.0
      %1700 = vmatprep.mubr.f32.mxu0 0.0
      %1701 = vmatmul.mubr.f32.gmra.mrb[0].mxu0 %v1583
      %v1702 = vpop.f32.mrb[0].mxu0
      %v1703 = vadd.f32 0.0, %v1702
      %v1704 = vpop.f32.mrb[0].mxu0
      %1705 = vmatprep.mubr.f32.mxu0 0.0
      %1706 = vmatmul.mubr.f32.gmra.mrb[0].mxu0 %v1586
      %v1707 = vpop.f32.mrb[0].mxu0
      %v1708 = vadd.f32 0.0, %v1707
      %v1709 = vpop.f32.mrb[0].mxu0
      %1710 = vmatprep.mubr.f32.mxu0 0.0
      %1711 = vmatmul.mubr.f32.gmra.mrb[0].mxu0 %v1589
      %v1712 = vpop.f32.mrb[0].mxu0
      %v1713 = vadd.f32 0.0, %v1712
      %v1714 = vpop.f32.mrb[0].mxu0
      %1715 = vmatprep.mubr.f32.mxu0 0.0
      %1716 = vmatmul.mubr.f32.gmra.mrb[0].mxu0 %v1592
      %v1717 = vpop.f32.mrb[0].mxu0
      %v1718 = vadd.f32 0.0, %v1717
      %v1719 = vpop.f32.mrb[0].mxu0
      %1720 = vmatprep.mubr.f32.mxu0 0.0
      %1721 = vmatmul.mubr.f32.gmra.mrb[0].mxu0 %v1595
      %v1722 = vpop.f32.mrb[0].mxu0
      %v1723 = vadd.f32 0.0, %v1722
      %v1724 = vpop.f32.mrb[0].mxu0
      %1725 = vmatprep.mubr.f32.mxu0 0.0
      %1726 = vmatmul.mubr.f32.gmra.mrb[0].mxu0 %v1598
      %v1727 = vpop.f32.mrb[0].mxu0
      %v1728 = vadd.f32 0.0, %v1727
      %v1729 = vpop.f32.mrb[0].mxu0
      %1730 = vmatprep.mubr.f32.mxu0 0.0
      %1731 = vmatmul.mubr.f32.gmra.mrb[0].mxu0 %v1601
      %v1732 = vpop.f32.mrb[0].mxu0
      %v1733 = vadd.f32 0.0, %v1732
      %v1734 = vpop.f32.mrb[0].mxu0
      %1735 = vmatprep.mubr.f32.mxu0 0.0
      %1736 = vmatmul.mubr.f32.gmra.mrb[0].mxu0 %v1604
      %v1737 = vpop.f32.mrb[0].mxu0
      %v1738 = vadd.f32 0.0, %v1737
      %v1739 = vpop.f32.mrb[0].mxu0
      %1740 = vmatprep.mubr.f32.mxu0 0.0
      %1741 = vmatmul.mubr.f32.gmra.mrb[0].mxu0 %v1607
      %v1742 = vpop.f32.mrb[0].mxu0
      %v1743 = vadd.f32 0.0, %v1742
      %v1744 = vpop.f32.mrb[0].mxu0
      %1745 = vmatprep.mubr.f32.mxu0 0.0
      %1746 = vmatmul.mubr.f32.gmra.mrb[0].mxu0 %v1610
      %v1747 = vpop.f32.mrb[0].mxu0
      %v1748 = vadd.f32 0.0, %v1747
      %v1749 = vpop.f32.mrb[0].mxu0
      %1750 = vmatprep.mubr.f32.mxu0 0.0
      %1751 = vmatmul.mubr.f32.gmra.mrb[0].mxu0 %v1613
      %v1752 = vpop.f32.mrb[0].mxu0
      %v1753 = vadd.f32 0.0, %v1752
      %v1754 = vpop.f32.mrb[0].mxu0
      %1755 = vmatprep.mubr.f32.mxu0 0.0
      %1756 = vmatmul.mubr.f32.gmra.mrb[0].mxu0 %v1616
      %v1757 = vpop.f32.mrb[0].mxu0
      %v1758 = vadd.f32 0.0, %v1757
      %v1759 = vpop.f32.mrb[0].mxu0
      %1760 = vmatprep.mubr.f32.mxu0 0.0
      %1761 = vmatmul.mubr.f32.gmra.mrb[0].mxu0 %v1619
      %v1762 = vpop.f32.mrb[0].mxu0
      %v1763 = vadd.f32 0.0, %v1762
      %v1764 = vpop.f32.mrb[0].mxu0
      %1765 = vmatprep.mubr.f32.mxu0 0.0
      %1766 = vmatmul.mubr.f32.gmra.mrb[0].mxu0 %v1622
      %v1767 = vpop.f32.mrb[0].mxu0
      %v1768 = vadd.f32 0.0, %v1767
      %v1769 = vpop.f32.mrb[0].mxu0
      %1770 = vmatprep.mubr.f32.mxu0 0.0
      %1771 = vmatmul.mubr.f32.gmra.mrb[0].mxu0 %v1625
      %v1772 = vpop.f32.mrb[0].mxu0
      %v1773 = vadd.f32 0.0, %v1772
      %v1774 = vpop.f32.mrb[0].mxu0
      %1775 = vmatprep.mubr.f32.mxu0 0.0
      %1776 = vmatmul.mubr.f32.gmra.mrb[0].mxu0 %v1628
      %v1777 = vpop.f32.mrb[0].mxu0
      %v1778 = vadd.f32 0.0, %v1777
      %v1779 = vpop.f32.mrb[0].mxu0
      %1780 = vmatprep.mubr.f32.mxu0 0.0
      %1781 = vmatmul.mubr.f32.gmra.mrb[0].mxu0 %v1631
      %v1782 = vpop.f32.mrb[0].mxu0
      %v1783 = vadd.f32 0.0, %v1782
      %v1784 = vpop.f32.mrb[0].mxu0
      %1785 = vmatprep.mubr.f32.mxu0 0.0
      %1786 = vmatmul.mubr.f32.gmra.mrb[0].mxu0 %v1634
      %v1787 = vpop.f32.mrb[0].mxu0
      %v1788 = vadd.f32 0.0, %v1787
      %v1789 = vpop.f32.mrb[0].mxu0
      %1790 = vdwg.mxu0
      %v1791 = vadd.f32 %v1544, %v1703
      %v1792 = vadd.f32 %v1545, %v1708
      %v1793 = vadd.f32 %v1546, %v1713
      %v1794 = vadd.f32 %v1547, %v1718
      %v1795 = vadd.f32 %v1548, %v1723
      %v1796 = vadd.f32 %v1549, %v1728
      %v1797 = vadd.f32 %v1550, %v1733
      %v1798 = vadd.f32 %v1551, %v1738
      %v1799 = vadd.f32 %v1552, %v1743
      %v1800 = vadd.f32 %v1553, %v1748
      %v1801 = vadd.f32 %v1554, %v1753
      %v1802 = vadd.f32 %v1555, %v1758
      %v1803 = vadd.f32 %v1556, %v1763
      %v1804 = vadd.f32 %v1557, %v1768
      %v1805 = vadd.f32 %v1558, %v1773
      %v1806 = vadd.f32 %v1559, %v1778
      %v1807 = vadd.f32 %v1560, %v1783
      %v1808 = vadd.f32 %v1561, %v1788
      %v1809 = vld [vmem:[%s273 + $0x14] sm:$0xff]
      %v1810 = vld [vmem:[%s273 + $0x1c] sm:$0xff]
      %v1811 = vld [vmem:[%s273 + $0x24] sm:$0xff]
      %v1812 = vld [vmem:[%s273 + $0x2c] sm:$0xff]
      %v1813 = vld [vmem:[%s273 + $0x34] sm:$0xff]
      %v1814 = vld [vmem:[%s273 + $0x3c] sm:$0xff]
      %v1815 = vld [vmem:[%s273 + $0x44] sm:$0xff]
      %v1816 = vld [vmem:[%s273 + $0x4c] sm:$0xff]
      %v1817 = vld [vmem:[%s273 + $0x54] sm:$0xff]
      %v1818 = vld [vmem:[%s273 + $0x5c] sm:$0xff]
      %v1819 = vld [vmem:[%s273 + $0x64] sm:$0xff]
      %v1820 = vld [vmem:[%s273 + $0x6c] sm:$0xff]
      %v1821 = vld [vmem:[%s273 + $0x74] sm:$0xff]
      %v1822 = vld [vmem:[%s273 + $0x7c] sm:$0xff]
      %v1823 = vld [vmem:[%s273 + $0x84] sm:$0xff]
      %v1824 = vld [vmem:[%s273 + $0x8c] sm:$0xff]
      %v1825 = vld [vmem:[%s273 + $0x94] sm:$0xff]
      %v1826 = vld [vmem:[%s273 + $0x9c] sm:$0xff]
      %s1827 = scalar_lea.vmem %s1, 40
      %v1828 = vld [vmem:[%s1827] sm:$0xff]
      %v1830 = vsel %vm649, %v1809, 0
      %v1833 = vsel %vm649, %v1810, 0
      %v1836 = vsel %vm649, %v1811, 0
      %v1839 = vsel %vm649, %v1812, 0
      %v1842 = vsel %vm649, %v1813, 0
      %v1845 = vsel %vm649, %v1814, 0
      %v1848 = vsel %vm649, %v1815, 0
      %v1851 = vsel %vm649, %v1816, 0
      %v1854 = vsel %vm649, %v1817, 0
      %v1857 = vsel %vm649, %v1818, 0
      %v1860 = vsel %vm649, %v1819, 0
      %v1863 = vsel %vm649, %v1820, 0
      %v1866 = vsel %vm649, %v1821, 0
      %v1869 = vsel %vm649, %v1822, 0
      %v1872 = vsel %vm649, %v1823, 0
      %v1875 = vsel %vm649, %v1824, 0
      %v1878 = vsel %vm649, %v1825, 0
      %v1881 = vsel %vm649, %v1826, 0
      %1883 = vmatprep.subr.mxu0 0.0
      %1884 = vmatpush1.msra.mxu0 %v1828
      %1885 = vmatprep.subr.mxu0 0.0
      %1886 = vmatpush1.msra.mxu0 0.0
      %1887 = vmatprep.subr.mxu0 0.0
      %1888 = vmatpush1.msra.mxu0 0.0
      %1889 = vmatprep.subr.mxu0 0.0
      %1890 = vmatpush1.msra.mxu0 0.0
      %1891 = vmatprep.subr.mxu0 0.0
      %1892 = vmatpush1.msra.mxu0 0.0
      %1893 = vmatprep.subr.mxu0 0.0
      %1894 = vmatpush1.msra.mxu0 0.0
      %1895 = vmatprep.subr.mxu0 0.0
      %1896 = vmatpush1.msra.mxu0 0.0
      %1897 = vmatprep.subr.mxu0 0.0
      %1898 = vmatpush1.msra.mxu0 0.0
      %1899 = vmatprep.subr.mxu0 0.0
      %1900 = vmatpush1.msra.mxu0 0.0
      %1901 = vmatprep.subr.mxu0 0.0
      %1902 = vmatpush1.msra.mxu0 0.0
      %1903 = vmatprep.subr.mxu0 0.0
      %1904 = vmatpush1.msra.mxu0 0.0
      %1905 = vmatprep.subr.mxu0 0.0
      %1906 = vmatpush1.msra.mxu0 0.0
      %1907 = vmatprep.subr.mxu0 0.0
      %1908 = vmatpush1.msra.mxu0 0.0
      %1909 = vmatprep.subr.mxu0 0.0
      %1910 = vmatpush1.msra.mxu0 0.0
      %1911 = vmatprep.subr.mxu0 0.0
      %1912 = vmatpush1.msra.mxu0 0.0
      %1913 = vmatprep.subr.mxu0 0.0
      %1914 = vmatpush1.msra.mxu0 0.0
      %1915 = vmatprep.subr.mxu0 0.0
      %1916 = vmatpush1.msra.mxu0 0.0
      %1917 = vmatprep.subr.mxu0 0.0
      %1918 = vmatpush1.msra.mxu0 0.0
      %1919 = vmatprep.subr.mxu0 0.0
      %1920 = vmatpush1.msra.mxu0 0.0
      %1921 = vmatprep.subr.mxu0 0.0
      %1922 = vmatpush1.msra.mxu0 0.0
      %1923 = vmatprep.subr.mxu0 0.0
      %1924 = vmatpush1.msra.mxu0 0.0
      %1925 = vmatprep.subr.mxu0 0.0
      %1926 = vmatpush1.msra.mxu0 0.0
      %1927 = vmatprep.subr.mxu0 0.0
      %1928 = vmatpush1.msra.mxu0 0.0
      %1929 = vmatprep.subr.mxu0 0.0
      %1930 = vmatpush1.msra.mxu0 0.0
      %1931 = vmatprep.subr.mxu0 0.0
      %1932 = vmatpush1.msra.mxu0 0.0
      %1933 = vmatprep.subr.mxu0 0.0
      %1934 = vmatpush1.msra.mxu0 0.0
      %1935 = vmatprep.subr.mxu0 0.0
      %1936 = vmatpush1.msra.mxu0 0.0
      %1937 = vmatprep.subr.mxu0 0.0
      %1938 = vmatpush1.msra.mxu0 0.0
      %1939 = vmatprep.subr.mxu0 0.0
      %1940 = vmatpush1.msra.mxu0 0.0
      %1941 = vmatprep.subr.mxu0 0.0
      %1942 = vmatpush1.msra.mxu0 0.0
      %1943 = vmatprep.subr.mxu0 0.0
      %1944 = vmatpush1.msra.mxu0 0.0
      %1945 = vmatprep.subr.mxu0 0.0
      %1946 = vmatpush1.msra.mxu0 0.0
      %1947 = vmatprep.mubr.f32.mxu0 0.0
      %1948 = vmatmul.mubr.f32.gmra.mrb[0].mxu0 %v1830
      %v1949 = vpop.f32.mrb[0].mxu0
      %v1950 = vadd.f32 0.0, %v1949
      %v1951 = vpop.f32.mrb[0].mxu0
      %1952 = vmatprep.mubr.f32.mxu0 0.0
      %1953 = vmatmul.mubr.f32.gmra.mrb[0].mxu0 %v1833
      %v1954 = vpop.f32.mrb[0].mxu0
      %v1955 = vadd.f32 0.0, %v1954
      %v1956 = vpop.f32.mrb[0].mxu0
      %1957 = vmatprep.mubr.f32.mxu0 0.0
      %1958 = vmatmul.mubr.f32.gmra.mrb[0].mxu0 %v1836
      %v1959 = vpop.f32.mrb[0].mxu0
      %v1960 = vadd.f32 0.0, %v1959
      %v1961 = vpop.f32.mrb[0].mxu0
      %1962 = vmatprep.mubr.f32.mxu0 0.0
      %1963 = vmatmul.mubr.f32.gmra.mrb[0].mxu0 %v1839
      %v1964 = vpop.f32.mrb[0].mxu0
      %v1965 = vadd.f32 0.0, %v1964
      %v1966 = vpop.f32.mrb[0].mxu0
      %1967 = vmatprep.mubr.f32.mxu0 0.0
      %1968 = vmatmul.mubr.f32.gmra.mrb[0].mxu0 %v1842
      %v1969 = vpop.f32.mrb[0].mxu0
      %v1970 = vadd.f32 0.0, %v1969
      %v1971 = vpop.f32.mrb[0].mxu0
      %1972 = vmatprep.mubr.f32.mxu0 0.0
      %1973 = vmatmul.mubr.f32.gmra.mrb[0].mxu0 %v1845
      %v1974 = vpop.f32.mrb[0].mxu0
      %v1975 = vadd.f32 0.0, %v1974
      %v1976 = vpop.f32.mrb[0].mxu0
      %1977 = vmatprep.mubr.f32.mxu0 0.0
      %1978 = vmatmul.mubr.f32.gmra.mrb[0].mxu0 %v1848
      %v1979 = vpop.f32.mrb[0].mxu0
      %v1980 = vadd.f32 0.0, %v1979
      %v1981 = vpop.f32.mrb[0].mxu0
      %1982 = vmatprep.mubr.f32.mxu0 0.0
      %1983 = vmatmul.mubr.f32.gmra.mrb[0].mxu0 %v1851
      %v1984 = vpop.f32.mrb[0].mxu0
      %v1985 = vadd.f32 0.0, %v1984
      %v1986 = vpop.f32.mrb[0].mxu0
      %1987 = vmatprep.mubr.f32.mxu0 0.0
      %1988 = vmatmul.mubr.f32.gmra.mrb[0].mxu0 %v1854
      %v1989 = vpop.f32.mrb[0].mxu0
      %v1990 = vadd.f32 0.0, %v1989
      %v1991 = vpop.f32.mrb[0].mxu0
      %1992 = vmatprep.mubr.f32.mxu0 0.0
      %1993 = vmatmul.mubr.f32.gmra.mrb[0].mxu0 %v1857
      %v1994 = vpop.f32.mrb[0].mxu0
      %v1995 = vadd.f32 0.0, %v1994
      %v1996 = vpop.f32.mrb[0].mxu0
      %1997 = vmatprep.mubr.f32.mxu0 0.0
      %1998 = vmatmul.mubr.f32.gmra.mrb[0].mxu0 %v1860
      %v1999 = vpop.f32.mrb[0].mxu0
      %v2000 = vadd.f32 0.0, %v1999
      %v2001 = vpop.f32.mrb[0].mxu0
      %2002 = vmatprep.mubr.f32.mxu0 0.0
      %2003 = vmatmul.mubr.f32.gmra.mrb[0].mxu0 %v1863
      %v2004 = vpop.f32.mrb[0].mxu0
      %v2005 = vadd.f32 0.0, %v2004
      %v2006 = vpop.f32.mrb[0].mxu0
      %2007 = vmatprep.mubr.f32.mxu0 0.0
      %2008 = vmatmul.mubr.f32.gmra.mrb[0].mxu0 %v1866
      %v2009 = vpop.f32.mrb[0].mxu0
      %v2010 = vadd.f32 0.0, %v2009
      %v2011 = vpop.f32.mrb[0].mxu0
      %2012 = vmatprep.mubr.f32.mxu0 0.0
      %2013 = vmatmul.mubr.f32.gmra.mrb[0].mxu0 %v1869
      %v2014 = vpop.f32.mrb[0].mxu0
      %v2015 = vadd.f32 0.0, %v2014
      %v2016 = vpop.f32.mrb[0].mxu0
      %2017 = vmatprep.mubr.f32.mxu0 0.0
      %2018 = vmatmul.mubr.f32.gmra.mrb[0].mxu0 %v1872
      %v2019 = vpop.f32.mrb[0].mxu0
      %v2020 = vadd.f32 0.0, %v2019
      %v2021 = vpop.f32.mrb[0].mxu0
      %2022 = vmatprep.mubr.f32.mxu0 0.0
      %2023 = vmatmul.mubr.f32.gmra.mrb[0].mxu0 %v1875
      %v2024 = vpop.f32.mrb[0].mxu0
      %v2025 = vadd.f32 0.0, %v2024
      %v2026 = vpop.f32.mrb[0].mxu0
      %2027 = vmatprep.mubr.f32.mxu0 0.0
      %2028 = vmatmul.mubr.f32.gmra.mrb[0].mxu0 %v1878
      %v2029 = vpop.f32.mrb[0].mxu0
      %v2030 = vadd.f32 0.0, %v2029
      %v2031 = vpop.f32.mrb[0].mxu0
      %2032 = vmatprep.mubr.f32.mxu0 0.0
      %2033 = vmatmul.mubr.f32.gmra.mrb[0].mxu0 %v1881
      %v2034 = vpop.f32.mrb[0].mxu0
      %v2035 = vadd.f32 0.0, %v2034
      %v2036 = vpop.f32.mrb[0].mxu0
      %2037 = vdwg.mxu0
      %v2038 = vadd.f32 %v1791, %v1950
      %v2039 = vadd.f32 %v1792, %v1955
      %v2040 = vadd.f32 %v1793, %v1960
      %v2041 = vadd.f32 %v1794, %v1965
      %v2042 = vadd.f32 %v1795, %v1970
      %v2043 = vadd.f32 %v1796, %v1975
      %v2044 = vadd.f32 %v1797, %v1980
      %v2045 = vadd.f32 %v1798, %v1985
      %v2046 = vadd.f32 %v1799, %v1990
      %v2047 = vadd.f32 %v1800, %v1995
      %v2048 = vadd.f32 %v1801, %v2000
      %v2049 = vadd.f32 %v1802, %v2005
      %v2050 = vadd.f32 %v1803, %v2010
      %v2051 = vadd.f32 %v1804, %v2015
      %v2052 = vadd.f32 %v1805, %v2020
      %v2053 = vadd.f32 %v1806, %v2025
      %v2054 = vadd.f32 %v1807, %v2030
      %v2055 = vadd.f32 %v1808, %v2035
      %v2056 = vld [vmem:[%s273 + $0x24] sm:$0xff]
      %v2057 = vld [vmem:[%s273 + $0x2c] sm:$0xff]
      %v2058 = vld [vmem:[%s273 + $0x34] sm:$0xff]
      %v2059 = vld [vmem:[%s273 + $0x3c] sm:$0xff]
      %v2060 = vld [vmem:[%s273 + $0x44] sm:$0xff]
      %v2061 = vld [vmem:[%s273 + $0x4c] sm:$0xff]
      %v2062 = vld [vmem:[%s273 + $0x54] sm:$0xff]
      %v2063 = vld [vmem:[%s273 + $0x5c] sm:$0xff]
      %v2064 = vld [vmem:[%s273 + $0x64] sm:$0xff]
      %v2065 = vld [vmem:[%s273 + $0x6c] sm:$0xff]
      %v2066 = vld [vmem:[%s273 + $0x74] sm:$0xff]
      %v2067 = vld [vmem:[%s273 + $0x7c] sm:$0xff]
      %v2068 = vld [vmem:[%s273 + $0x84] sm:$0xff]
      %v2069 = vld [vmem:[%s273 + $0x8c] sm:$0xff]
      %v2070 = vld [vmem:[%s273 + $0x94] sm:$0xff]
      %v2071 = vld [vmem:[%s273 + $0x9c] sm:$0xff]
      %v2072 = vld [vmem:[%s273 + $0xa4] sm:$0xff]
      %v2073 = vld [vmem:[%s273 + $0xac] sm:$0xff]
      %s2074 = scalar_lea.vmem %s1, 48
      %v2075 = vld [vmem:[%s2074] sm:$0xff]
      %v2077 = vsel %vm649, %v2056, 0
      %v2080 = vsel %vm649, %v2057, 0
      %v2083 = vsel %vm649, %v2058, 0
      %v2086 = vsel %vm649, %v2059, 0
      %v2089 = vsel %vm649, %v2060, 0
      %v2092 = vsel %vm649, %v2061, 0
      %v2095 = vsel %vm649, %v2062, 0
      %v2098 = vsel %vm649, %v2063, 0
      %v2101 = vsel %vm649, %v2064, 0
      %v2104 = vsel %vm649, %v2065, 0
      %v2107 = vsel %vm649, %v2066, 0
      %v2110 = vsel %vm649, %v2067, 0
      %v2113 = vsel %vm649, %v2068, 0
      %v2116 = vsel %vm649, %v2069, 0
      %v2119 = vsel %vm649, %v2070, 0
      %v2122 = vsel %vm649, %v2071, 0
      %v2125 = vsel %vm649, %v2072, 0
      %v2128 = vsel %vm649, %v2073, 0
      %2130 = vmatprep.subr.mxu0 0.0
      %2131 = vmatpush1.msra.mxu0 %v2075
      %2132 = vmatprep.subr.mxu0 0.0
      %2133 = vmatpush1.msra.mxu0 0.0
      %2134 = vmatprep.subr.mxu0 0.0
      %2135 = vmatpush1.msra.mxu0 0.0
      %2136 = vmatprep.subr.mxu0 0.0
      %2137 = vmatpush1.msra.mxu0 0.0
      %2138 = vmatprep.subr.mxu0 0.0
      %2139 = vmatpush1.msra.mxu0 0.0
      %2140 = vmatprep.subr.mxu0 0.0
      %2141 = vmatpush1.msra.mxu0 0.0
      %2142 = vmatprep.subr.mxu0 0.0
      %2143 = vmatpush1.msra.mxu0 0.0
      %2144 = vmatprep.subr.mxu0 0.0
      %2145 = vmatpush1.msra.mxu0 0.0
      %2146 = vmatprep.subr.mxu0 0.0
      %2147 = vmatpush1.msra.mxu0 0.0
      %2148 = vmatprep.subr.mxu0 0.0
      %2149 = vmatpush1.msra.mxu0 0.0
      %2150 = vmatprep.subr.mxu0 0.0
      %2151 = vmatpush1.msra.mxu0 0.0
      %2152 = vmatprep.subr.mxu0 0.0
      %2153 = vmatpush1.msra.mxu0 0.0
      %2154 = vmatprep.subr.mxu0 0.0
      %2155 = vmatpush1.msra.mxu0 0.0
      %2156 = vmatprep.subr.mxu0 0.0
      %2157 = vmatpush1.msra.mxu0 0.0
      %2158 = vmatprep.subr.mxu0 0.0
      %2159 = vmatpush1.msra.mxu0 0.0
      %2160 = vmatprep.subr.mxu0 0.0
      %2161 = vmatpush1.msra.mxu0 0.0
      %2162 = vmatprep.subr.mxu0 0.0
      %2163 = vmatpush1.msra.mxu0 0.0
      %2164 = vmatprep.subr.mxu0 0.0
      %2165 = vmatpush1.msra.mxu0 0.0
      %2166 = vmatprep.subr.mxu0 0.0
      %2167 = vmatpush1.msra.mxu0 0.0
      %2168 = vmatprep.subr.mxu0 0.0
      %2169 = vmatpush1.msra.mxu0 0.0
      %2170 = vmatprep.subr.mxu0 0.0
      %2171 = vmatpush1.msra.mxu0 0.0
      %2172 = vmatprep.subr.mxu0 0.0
      %2173 = vmatpush1.msra.mxu0 0.0
      %2174 = vmatprep.subr.mxu0 0.0
      %2175 = vmatpush1.msra.mxu0 0.0
      %2176 = vmatprep.subr.mxu0 0.0
      %2177 = vmatpush1.msra.mxu0 0.0
      %2178 = vmatprep.subr.mxu0 0.0
      %2179 = vmatpush1.msra.mxu0 0.0
      %2180 = vmatprep.subr.mxu0 0.0
      %2181 = vmatpush1.msra.mxu0 0.0
      %2182 = vmatprep.subr.mxu0 0.0
      %2183 = vmatpush1.msra.mxu0 0.0
      %2184 = vmatprep.subr.mxu0 0.0
      %2185 = vmatpush1.msra.mxu0 0.0
      %2186 = vmatprep.subr.mxu0 0.0
      %2187 = vmatpush1.msra.mxu0 0.0
      %2188 = vmatprep.subr.mxu0 0.0
      %2189 = vmatpush1.msra.mxu0 0.0
      %2190 = vmatprep.subr.mxu0 0.0
      %2191 = vmatpush1.msra.mxu0 0.0
      %2192 = vmatprep.subr.mxu0 0.0
      %2193 = vmatpush1.msra.mxu0 0.0
      %2194 = vmatprep.mubr.f32.mxu0 0.0
      %2195 = vmatmul.mubr.f32.gmra.mrb[0].mxu0 %v2077
      %v2196 = vpop.f32.mrb[0].mxu0
      %v2197 = vadd.f32 0.0, %v2196
      %v2198 = vpop.f32.mrb[0].mxu0
      %2199 = vmatprep.mubr.f32.mxu0 0.0
      %2200 = vmatmul.mubr.f32.gmra.mrb[0].mxu0 %v2080
      %v2201 = vpop.f32.mrb[0].mxu0
      %v2202 = vadd.f32 0.0, %v2201
      %v2203 = vpop.f32.mrb[0].mxu0
      %2204 = vmatprep.mubr.f32.mxu0 0.0
      %2205 = vmatmul.mubr.f32.gmra.mrb[0].mxu0 %v2083
      %v2206 = vpop.f32.mrb[0].mxu0
      %v2207 = vadd.f32 0.0, %v2206
      %v2208 = vpop.f32.mrb[0].mxu0
      %2209 = vmatprep.mubr.f32.mxu0 0.0
      %2210 = vmatmul.mubr.f32.gmra.mrb[0].mxu0 %v2086
      %v2211 = vpop.f32.mrb[0].mxu0
      %v2212 = vadd.f32 0.0, %v2211
      %v2213 = vpop.f32.mrb[0].mxu0
      %2214 = vmatprep.mubr.f32.mxu0 0.0
      %2215 = vmatmul.mubr.f32.gmra.mrb[0].mxu0 %v2089
      %v2216 = vpop.f32.mrb[0].mxu0
      %v2217 = vadd.f32 0.0, %v2216
      %v2218 = vpop.f32.mrb[0].mxu0
      %2219 = vmatprep.mubr.f32.mxu0 0.0
      %2220 = vmatmul.mubr.f32.gmra.mrb[0].mxu0 %v2092
      %v2221 = vpop.f32.mrb[0].mxu0
      %v2222 = vadd.f32 0.0, %v2221
      %v2223 = vpop.f32.mrb[0].mxu0
      %2224 = vmatprep.mubr.f32.mxu0 0.0
      %2225 = vmatmul.mubr.f32.gmra.mrb[0].mxu0 %v2095
      %v2226 = vpop.f32.mrb[0].mxu0
      %v2227 = vadd.f32 0.0, %v2226
      %v2228 = vpop.f32.mrb[0].mxu0
      %2229 = vmatprep.mubr.f32.mxu0 0.0
      %2230 = vmatmul.mubr.f32.gmra.mrb[0].mxu0 %v2098
      %v2231 = vpop.f32.mrb[0].mxu0
      %v2232 = vadd.f32 0.0, %v2231
      %v2233 = vpop.f32.mrb[0].mxu0
      %2234 = vmatprep.mubr.f32.mxu0 0.0
      %2235 = vmatmul.mubr.f32.gmra.mrb[0].mxu0 %v2101
      %v2236 = vpop.f32.mrb[0].mxu0
      %v2237 = vadd.f32 0.0, %v2236
      %v2238 = vpop.f32.mrb[0].mxu0
      %2239 = vmatprep.mubr.f32.mxu0 0.0
      %2240 = vmatmul.mubr.f32.gmra.mrb[0].mxu0 %v2104
      %v2241 = vpop.f32.mrb[0].mxu0
      %v2242 = vadd.f32 0.0, %v2241
      %v2243 = vpop.f32.mrb[0].mxu0
      %2244 = vmatprep.mubr.f32.mxu0 0.0
      %2245 = vmatmul.mubr.f32.gmra.mrb[0].mxu0 %v2107
      %v2246 = vpop.f32.mrb[0].mxu0
      %v2247 = vadd.f32 0.0, %v2246
      %v2248 = vpop.f32.mrb[0].mxu0
      %2249 = vmatprep.mubr.f32.mxu0 0.0
      %2250 = vmatmul.mubr.f32.gmra.mrb[0].mxu0 %v2110
      %v2251 = vpop.f32.mrb[0].mxu0
      %v2252 = vadd.f32 0.0, %v2251
      %v2253 = vpop.f32.mrb[0].mxu0
      %2254 = vmatprep.mubr.f32.mxu0 0.0
      %2255 = vmatmul.mubr.f32.gmra.mrb[0].mxu0 %v2113
      %v2256 = vpop.f32.mrb[0].mxu0
      %v2257 = vadd.f32 0.0, %v2256
      %v2258 = vpop.f32.mrb[0].mxu0
      %2259 = vmatprep.mubr.f32.mxu0 0.0
      %2260 = vmatmul.mubr.f32.gmra.mrb[0].mxu0 %v2116
      %v2261 = vpop.f32.mrb[0].mxu0
      %v2262 = vadd.f32 0.0, %v2261
      %v2263 = vpop.f32.mrb[0].mxu0
      %2264 = vmatprep.mubr.f32.mxu0 0.0
      %2265 = vmatmul.mubr.f32.gmra.mrb[0].mxu0 %v2119
      %v2266 = vpop.f32.mrb[0].mxu0
      %v2267 = vadd.f32 0.0, %v2266
      %v2268 = vpop.f32.mrb[0].mxu0
      %2269 = vmatprep.mubr.f32.mxu0 0.0
      %2270 = vmatmul.mubr.f32.gmra.mrb[0].mxu0 %v2122
      %v2271 = vpop.f32.mrb[0].mxu0
      %v2272 = vadd.f32 0.0, %v2271
      %v2273 = vpop.f32.mrb[0].mxu0
      %2274 = vmatprep.mubr.f32.mxu0 0.0
      %2275 = vmatmul.mubr.f32.gmra.mrb[0].mxu0 %v2125
      %v2276 = vpop.f32.mrb[0].mxu0
      %v2277 = vadd.f32 0.0, %v2276
      %v2278 = vpop.f32.mrb[0].mxu0
      %2279 = vmatprep.mubr.f32.mxu0 0.0
      %2280 = vmatmul.mubr.f32.gmra.mrb[0].mxu0 %v2128
      %v2281 = vpop.f32.mrb[0].mxu0
      %v2282 = vadd.f32 0.0, %v2281
      %v2283 = vpop.f32.mrb[0].mxu0
      %2284 = vdwg.mxu0
      %v2285 = vadd.f32 %v2038, %v2197
      %v2286 = vadd.f32 %v2039, %v2202
      %v2287 = vadd.f32 %v2040, %v2207
      %v2288 = vadd.f32 %v2041, %v2212
      %v2289 = vadd.f32 %v2042, %v2217
      %v2290 = vadd.f32 %v2043, %v2222
      %v2291 = vadd.f32 %v2044, %v2227
      %v2292 = vadd.f32 %v2045, %v2232
      %v2293 = vadd.f32 %v2046, %v2237
      %v2294 = vadd.f32 %v2047, %v2242
      %v2295 = vadd.f32 %v2048, %v2247
      %v2296 = vadd.f32 %v2049, %v2252
      %v2297 = vadd.f32 %v2050, %v2257
      %v2298 = vadd.f32 %v2051, %v2262
      %v2299 = vadd.f32 %v2052, %v2267
      %v2300 = vadd.f32 %v2053, %v2272
      %v2301 = vadd.f32 %v2054, %v2277
      %v2302 = vadd.f32 %v2055, %v2282
      %v2303 = vld [vmem:[%s273 + $0x25] sm:$0xff]
      %v2304 = vld [vmem:[%s273 + $0x2d] sm:$0xff]
      %v2305 = vld [vmem:[%s273 + $0x35] sm:$0xff]
      %v2306 = vld [vmem:[%s273 + $0x3d] sm:$0xff]
      %v2307 = vld [vmem:[%s273 + $0x45] sm:$0xff]
      %v2308 = vld [vmem:[%s273 + $0x4d] sm:$0xff]
      %v2309 = vld [vmem:[%s273 + $0x55] sm:$0xff]
      %v2310 = vld [vmem:[%s273 + $0x5d] sm:$0xff]
      %v2311 = vld [vmem:[%s273 + $0x65] sm:$0xff]
      %v2312 = vld [vmem:[%s273 + $0x6d] sm:$0xff]
      %v2313 = vld [vmem:[%s273 + $0x75] sm:$0xff]
      %v2314 = vld [vmem:[%s273 + $0x7d] sm:$0xff]
      %v2315 = vld [vmem:[%s273 + $0x85] sm:$0xff]
      %v2316 = vld [vmem:[%s273 + $0x8d] sm:$0xff]
      %v2317 = vld [vmem:[%s273 + $0x95] sm:$0xff]
      %v2318 = vld [vmem:[%s273 + $0x9d] sm:$0xff]
      %v2319 = vld [vmem:[%s273 + $0xa5] sm:$0xff]
      %v2320 = vld [vmem:[%s273 + $0xad] sm:$0xff]
      %s2321 = scalar_lea.vmem %s1, 56
      %v2322 = vld [vmem:[%s2321] sm:$0xff]
      %v2324 = vsel %vm649, %v2303, 0
      %v2327 = vsel %vm649, %v2304, 0
      %v2330 = vsel %vm649, %v2305, 0
      %v2333 = vsel %vm649, %v2306, 0
      %v2336 = vsel %vm649, %v2307, 0
      %v2339 = vsel %vm649, %v2308, 0
      %v2342 = vsel %vm649, %v2309, 0
      %v2345 = vsel %vm649, %v2310, 0
      %v2348 = vsel %vm649, %v2311, 0
      %v2351 = vsel %vm649, %v2312, 0
      %v2354 = vsel %vm649, %v2313, 0
      %v2357 = vsel %vm649, %v2314, 0
      %v2360 = vsel %vm649, %v2315, 0
      %v2363 = vsel %vm649, %v2316, 0
      %v2366 = vsel %vm649, %v2317, 0
      %v2369 = vsel %vm649, %v2318, 0
      %v2372 = vsel %vm649, %v2319, 0
      %v2375 = vsel %vm649, %v2320, 0
      %2377 = vmatprep.subr.mxu0 0.0
      %2378 = vmatpush1.msra.mxu0 %v2322
      %2379 = vmatprep.subr.mxu0 0.0
      %2380 = vmatpush1.msra.mxu0 0.0
      %2381 = vmatprep.subr.mxu0 0.0
      %2382 = vmatpush1.msra.mxu0 0.0
      %2383 = vmatprep.subr.mxu0 0.0
      %2384 = vmatpush1.msra.mxu0 0.0
      %2385 = vmatprep.subr.mxu0 0.0
      %2386 = vmatpush1.msra.mxu0 0.0
      %2387 = vmatprep.subr.mxu0 0.0
      %2388 = vmatpush1.msra.mxu0 0.0
      %2389 = vmatprep.subr.mxu0 0.0
      %2390 = vmatpush1.msra.mxu0 0.0
      %2391 = vmatprep.subr.mxu0 0.0
      %2392 = vmatpush1.msra.mxu0 0.0
      %2393 = vmatprep.subr.mxu0 0.0
      %2394 = vmatpush1.msra.mxu0 0.0
      %2395 = vmatprep.subr.mxu0 0.0
      %2396 = vmatpush1.msra.mxu0 0.0
      %2397 = vmatprep.subr.mxu0 0.0
      %2398 = vmatpush1.msra.mxu0 0.0
      %2399 = vmatprep.subr.mxu0 0.0
      %2400 = vmatpush1.msra.mxu0 0.0
      %2401 = vmatprep.subr.mxu0 0.0
      %2402 = vmatpush1.msra.mxu0 0.0
      %2403 = vmatprep.subr.mxu0 0.0
      %2404 = vmatpush1.msra.mxu0 0.0
      %2405 = vmatprep.subr.mxu0 0.0
      %2406 = vmatpush1.msra.mxu0 0.0
      %2407 = vmatprep.subr.mxu0 0.0
      %2408 = vmatpush1.msra.mxu0 0.0
      %2409 = vmatprep.subr.mxu0 0.0
      %2410 = vmatpush1.msra.mxu0 0.0
      %2411 = vmatprep.subr.mxu0 0.0
      %2412 = vmatpush1.msra.mxu0 0.0
      %2413 = vmatprep.subr.mxu0 0.0
      %2414 = vmatpush1.msra.mxu0 0.0
      %2415 = vmatprep.subr.mxu0 0.0
      %2416 = vmatpush1.msra.mxu0 0.0
      %2417 = vmatprep.subr.mxu0 0.0
      %2418 = vmatpush1.msra.mxu0 0.0
      %2419 = vmatprep.subr.mxu0 0.0
      %2420 = vmatpush1.msra.mxu0 0.0
      %2421 = vmatprep.subr.mxu0 0.0
      %2422 = vmatpush1.msra.mxu0 0.0
      %2423 = vmatprep.subr.mxu0 0.0
      %2424 = vmatpush1.msra.mxu0 0.0
      %2425 = vmatprep.subr.mxu0 0.0
      %2426 = vmatpush1.msra.mxu0 0.0
      %2427 = vmatprep.subr.mxu0 0.0
      %2428 = vmatpush1.msra.mxu0 0.0
      %2429 = vmatprep.subr.mxu0 0.0
      %2430 = vmatpush1.msra.mxu0 0.0
      %2431 = vmatprep.subr.mxu0 0.0
      %2432 = vmatpush1.msra.mxu0 0.0
      %2433 = vmatprep.subr.mxu0 0.0
      %2434 = vmatpush1.msra.mxu0 0.0
      %2435 = vmatprep.subr.mxu0 0.0
      %2436 = vmatpush1.msra.mxu0 0.0
      %2437 = vmatprep.subr.mxu0 0.0
      %2438 = vmatpush1.msra.mxu0 0.0
      %2439 = vmatprep.subr.mxu0 0.0
      %2440 = vmatpush1.msra.mxu0 0.0
      %2441 = vmatprep.mubr.f32.mxu0 0.0
      %2442 = vmatmul.mubr.f32.gmra.mrb[0].mxu0 %v2324
      %v2443 = vpop.f32.mrb[0].mxu0
      %v2444 = vadd.f32 0.0, %v2443
      %v2445 = vpop.f32.mrb[0].mxu0
      %2446 = vmatprep.mubr.f32.mxu0 0.0
      %2447 = vmatmul.mubr.f32.gmra.mrb[0].mxu0 %v2327
      %v2448 = vpop.f32.mrb[0].mxu0
      %v2449 = vadd.f32 0.0, %v2448
      %v2450 = vpop.f32.mrb[0].mxu0
      %2451 = vmatprep.mubr.f32.mxu0 0.0
      %2452 = vmatmul.mubr.f32.gmra.mrb[0].mxu0 %v2330
      %v2453 = vpop.f32.mrb[0].mxu0
      %v2454 = vadd.f32 0.0, %v2453
      %v2455 = vpop.f32.mrb[0].mxu0
      %2456 = vmatprep.mubr.f32.mxu0 0.0
      %2457 = vmatmul.mubr.f32.gmra.mrb[0].mxu0 %v2333
      %v2458 = vpop.f32.mrb[0].mxu0
      %v2459 = vadd.f32 0.0, %v2458
      %v2460 = vpop.f32.mrb[0].mxu0
      %2461 = vmatprep.mubr.f32.mxu0 0.0
      %2462 = vmatmul.mubr.f32.gmra.mrb[0].mxu0 %v2336
      %v2463 = vpop.f32.mrb[0].mxu0
      %v2464 = vadd.f32 0.0, %v2463
      %v2465 = vpop.f32.mrb[0].mxu0
      %2466 = vmatprep.mubr.f32.mxu0 0.0
      %2467 = vmatmul.mubr.f32.gmra.mrb[0].mxu0 %v2339
      %v2468 = vpop.f32.mrb[0].mxu0
      %v2469 = vadd.f32 0.0, %v2468
      %v2470 = vpop.f32.mrb[0].mxu0
      %2471 = vmatprep.mubr.f32.mxu0 0.0
      %2472 = vmatmul.mubr.f32.gmra.mrb[0].mxu0 %v2342
      %v2473 = vpop.f32.mrb[0].mxu0
      %v2474 = vadd.f32 0.0, %v2473
      %v2475 = vpop.f32.mrb[0].mxu0
      %2476 = vmatprep.mubr.f32.mxu0 0.0
      %2477 = vmatmul.mubr.f32.gmra.mrb[0].mxu0 %v2345
      %v2478 = vpop.f32.mrb[0].mxu0
      %v2479 = vadd.f32 0.0, %v2478
      %v2480 = vpop.f32.mrb[0].mxu0
      %2481 = vmatprep.mubr.f32.mxu0 0.0
      %2482 = vmatmul.mubr.f32.gmra.mrb[0].mxu0 %v2348
      %v2483 = vpop.f32.mrb[0].mxu0
      %v2484 = vadd.f32 0.0, %v2483
      %v2485 = vpop.f32.mrb[0].mxu0
      %2486 = vmatprep.mubr.f32.mxu0 0.0
      %2487 = vmatmul.mubr.f32.gmra.mrb[0].mxu0 %v2351
      %v2488 = vpop.f32.mrb[0].mxu0
      %v2489 = vadd.f32 0.0, %v2488
      %v2490 = vpop.f32.mrb[0].mxu0
      %2491 = vmatprep.mubr.f32.mxu0 0.0
      %2492 = vmatmul.mubr.f32.gmra.mrb[0].mxu0 %v2354
      %v2493 = vpop.f32.mrb[0].mxu0
      %v2494 = vadd.f32 0.0, %v2493
      %v2495 = vpop.f32.mrb[0].mxu0
      %2496 = vmatprep.mubr.f32.mxu0 0.0
      %2497 = vmatmul.mubr.f32.gmra.mrb[0].mxu0 %v2357
      %v2498 = vpop.f32.mrb[0].mxu0
      %v2499 = vadd.f32 0.0, %v2498
      %v2500 = vpop.f32.mrb[0].mxu0
      %2501 = vmatprep.mubr.f32.mxu0 0.0
      %2502 = vmatmul.mubr.f32.gmra.mrb[0].mxu0 %v2360
      %v2503 = vpop.f32.mrb[0].mxu0
      %v2504 = vadd.f32 0.0, %v2503
      %v2505 = vpop.f32.mrb[0].mxu0
      %2506 = vmatprep.mubr.f32.mxu0 0.0
      %2507 = vmatmul.mubr.f32.gmra.mrb[0].mxu0 %v2363
      %v2508 = vpop.f32.mrb[0].mxu0
      %v2509 = vadd.f32 0.0, %v2508
      %v2510 = vpop.f32.mrb[0].mxu0
      %2511 = vmatprep.mubr.f32.mxu0 0.0
      %2512 = vmatmul.mubr.f32.gmra.mrb[0].mxu0 %v2366
      %v2513 = vpop.f32.mrb[0].mxu0
      %v2514 = vadd.f32 0.0, %v2513
      %v2515 = vpop.f32.mrb[0].mxu0
      %2516 = vmatprep.mubr.f32.mxu0 0.0
      %2517 = vmatmul.mubr.f32.gmra.mrb[0].mxu0 %v2369
      %v2518 = vpop.f32.mrb[0].mxu0
      %v2519 = vadd.f32 0.0, %v2518
      %v2520 = vpop.f32.mrb[0].mxu0
      %2521 = vmatprep.mubr.f32.mxu0 0.0
      %2522 = vmatmul.mubr.f32.gmra.mrb[0].mxu0 %v2372
      %v2523 = vpop.f32.mrb[0].mxu0
      %v2524 = vadd.f32 0.0, %v2523
      %v2525 = vpop.f32.mrb[0].mxu0
      %2526 = vmatprep.mubr.f32.mxu0 0.0
      %2527 = vmatmul.mubr.f32.gmra.mrb[0].mxu0 %v2375
      %v2528 = vpop.f32.mrb[0].mxu0
      %v2529 = vadd.f32 0.0, %v2528
      %v2530 = vpop.f32.mrb[0].mxu0
      %2531 = vdwg.mxu0
      %v2532 = vadd.f32 %v2285, %v2444
      %v2533 = vadd.f32 %v2286, %v2449
      %v2534 = vadd.f32 %v2287, %v2454
      %v2535 = vadd.f32 %v2288, %v2459
      %v2536 = vadd.f32 %v2289, %v2464
      %v2537 = vadd.f32 %v2290, %v2469
      %v2538 = vadd.f32 %v2291, %v2474
      %v2539 = vadd.f32 %v2292, %v2479
      %v2540 = vadd.f32 %v2293, %v2484
      %v2541 = vadd.f32 %v2294, %v2489
      %v2542 = vadd.f32 %v2295, %v2494
      %v2543 = vadd.f32 %v2296, %v2499
      %v2544 = vadd.f32 %v2297, %v2504
      %v2545 = vadd.f32 %v2298, %v2509
      %v2546 = vadd.f32 %v2299, %v2514
      %v2547 = vadd.f32 %v2300, %v2519
      %v2548 = vadd.f32 %v2301, %v2524
      %v2549 = vadd.f32 %v2302, %v2529
      %v2550 = vld [vmem:[%s273 + $0x26] sm:$0xff]
      %v2551 = vld [vmem:[%s273 + $0x2e] sm:$0xff]
      %v2552 = vld [vmem:[%s273 + $0x36] sm:$0xff]
      %v2553 = vld [vmem:[%s273 + $0x3e] sm:$0xff]
      %v2554 = vld [vmem:[%s273 + $0x46] sm:$0xff]
      %v2555 = vld [vmem:[%s273 + $0x4e] sm:$0xff]
      %v2556 = vld [vmem:[%s273 + $0x56] sm:$0xff]
      %v2557 = vld [vmem:[%s273 + $0x5e] sm:$0xff]
      %v2558 = vld [vmem:[%s273 + $0x66] sm:$0xff]
      %v2559 = vld [vmem:[%s273 + $0x6e] sm:$0xff]
      %v2560 = vld [vmem:[%s273 + $0x76] sm:$0xff]
      %v2561 = vld [vmem:[%s273 + $0x7e] sm:$0xff]
      %v2562 = vld [vmem:[%s273 + $0x86] sm:$0xff]
      %v2563 = vld [vmem:[%s273 + $0x8e] sm:$0xff]
      %v2564 = vld [vmem:[%s273 + $0x96] sm:$0xff]
      %v2565 = vld [vmem:[%s273 + $0x9e] sm:$0xff]
      %v2566 = vld [vmem:[%s273 + $0xa6] sm:$0xff]
      %v2567 = vld [vmem:[%s273 + $0xae] sm:$0xff]
      %s2568 = scalar_lea.vmem %s1, 64
      %v2569 = vld [vmem:[%s2568] sm:$0xff]
      %v2571 = vsel %vm649, %v2550, 0
      %v2574 = vsel %vm649, %v2551, 0
      %v2577 = vsel %vm649, %v2552, 0
      %v2580 = vsel %vm649, %v2553, 0
      %v2583 = vsel %vm649, %v2554, 0
      %v2586 = vsel %vm649, %v2555, 0
      %v2589 = vsel %vm649, %v2556, 0
      %v2592 = vsel %vm649, %v2557, 0
      %v2595 = vsel %vm649, %v2558, 0
      %v2598 = vsel %vm649, %v2559, 0
      %v2601 = vsel %vm649, %v2560, 0
      %v2604 = vsel %vm649, %v2561, 0
      %v2607 = vsel %vm649, %v2562, 0
      %v2610 = vsel %vm649, %v2563, 0
      %v2613 = vsel %vm649, %v2564, 0
      %v2616 = vsel %vm649, %v2565, 0
      %v2619 = vsel %vm649, %v2566, 0
      %v2622 = vsel %vm649, %v2567, 0
      %2624 = vmatprep.subr.mxu0 0.0
      %2625 = vmatpush1.msra.mxu0 %v2569
      %2626 = vmatprep.subr.mxu0 0.0
      %2627 = vmatpush1.msra.mxu0 0.0
      %2628 = vmatprep.subr.mxu0 0.0
      %2629 = vmatpush1.msra.mxu0 0.0
      %2630 = vmatprep.subr.mxu0 0.0
      %2631 = vmatpush1.msra.mxu0 0.0
      %2632 = vmatprep.subr.mxu0 0.0
      %2633 = vmatpush1.msra.mxu0 0.0
      %2634 = vmatprep.subr.mxu0 0.0
      %2635 = vmatpush1.msra.mxu0 0.0
      %2636 = vmatprep.subr.mxu0 0.0
      %2637 = vmatpush1.msra.mxu0 0.0
      %2638 = vmatprep.subr.mxu0 0.0
      %2639 = vmatpush1.msra.mxu0 0.0
      %2640 = vmatprep.subr.mxu0 0.0
      %2641 = vmatpush1.msra.mxu0 0.0
      %2642 = vmatprep.subr.mxu0 0.0
      %2643 = vmatpush1.msra.mxu0 0.0
      %2644 = vmatprep.subr.mxu0 0.0
      %2645 = vmatpush1.msra.mxu0 0.0
      %2646 = vmatprep.subr.mxu0 0.0
      %2647 = vmatpush1.msra.mxu0 0.0
      %2648 = vmatprep.subr.mxu0 0.0
      %2649 = vmatpush1.msra.mxu0 0.0
      %2650 = vmatprep.subr.mxu0 0.0
      %2651 = vmatpush1.msra.mxu0 0.0
      %2652 = vmatprep.subr.mxu0 0.0
      %2653 = vmatpush1.msra.mxu0 0.0
      %2654 = vmatprep.subr.mxu0 0.0
      %2655 = vmatpush1.msra.mxu0 0.0
      %2656 = vmatprep.subr.mxu0 0.0
      %2657 = vmatpush1.msra.mxu0 0.0
      %2658 = vmatprep.subr.mxu0 0.0
      %2659 = vmatpush1.msra.mxu0 0.0
      %2660 = vmatprep.subr.mxu0 0.0
      %2661 = vmatpush1.msra.mxu0 0.0
      %2662 = vmatprep.subr.mxu0 0.0
      %2663 = vmatpush1.msra.mxu0 0.0
      %2664 = vmatprep.subr.mxu0 0.0
      %2665 = vmatpush1.msra.mxu0 0.0
      %2666 = vmatprep.subr.mxu0 0.0
      %2667 = vmatpush1.msra.mxu0 0.0
      %2668 = vmatprep.subr.mxu0 0.0
      %2669 = vmatpush1.msra.mxu0 0.0
      %2670 = vmatprep.subr.mxu0 0.0
      %2671 = vmatpush1.msra.mxu0 0.0
      %2672 = vmatprep.subr.mxu0 0.0
      %2673 = vmatpush1.msra.mxu0 0.0
      %2674 = vmatprep.subr.mxu0 0.0
      %2675 = vmatpush1.msra.mxu0 0.0
      %2676 = vmatprep.subr.mxu0 0.0
      %2677 = vmatpush1.msra.mxu0 0.0
      %2678 = vmatprep.subr.mxu0 0.0
      %2679 = vmatpush1.msra.mxu0 0.0
      %2680 = vmatprep.subr.mxu0 0.0
      %2681 = vmatpush1.msra.mxu0 0.0
      %2682 = vmatprep.subr.mxu0 0.0
      %2683 = vmatpush1.msra.mxu0 0.0
      %2684 = vmatprep.subr.mxu0 0.0
      %2685 = vmatpush1.msra.mxu0 0.0
      %2686 = vmatprep.subr.mxu0 0.0
      %2687 = vmatpush1.msra.mxu0 0.0
      %2688 = vmatprep.mubr.f32.mxu0 0.0
      %2689 = vmatmul.mubr.f32.gmra.mrb[0].mxu0 %v2571
      %v2690 = vpop.f32.mrb[0].mxu0
      %v2691 = vadd.f32 0.0, %v2690
      %v2692 = vpop.f32.mrb[0].mxu0
      %2693 = vmatprep.mubr.f32.mxu0 0.0
      %2694 = vmatmul.mubr.f32.gmra.mrb[0].mxu0 %v2574
      %v2695 = vpop.f32.mrb[0].mxu0
      %v2696 = vadd.f32 0.0, %v2695
      %v2697 = vpop.f32.mrb[0].mxu0
      %2698 = vmatprep.mubr.f32.mxu0 0.0
      %2699 = vmatmul.mubr.f32.gmra.mrb[0].mxu0 %v2577
      %v2700 = vpop.f32.mrb[0].mxu0
      %v2701 = vadd.f32 0.0, %v2700
      %v2702 = vpop.f32.mrb[0].mxu0
      %2703 = vmatprep.mubr.f32.mxu0 0.0
      %2704 = vmatmul.mubr.f32.gmra.mrb[0].mxu0 %v2580
      %v2705 = vpop.f32.mrb[0].mxu0
      %v2706 = vadd.f32 0.0, %v2705
      %v2707 = vpop.f32.mrb[0].mxu0
      %2708 = vmatprep.mubr.f32.mxu0 0.0
      %2709 = vmatmul.mubr.f32.gmra.mrb[0].mxu0 %v2583
      %v2710 = vpop.f32.mrb[0].mxu0
      %v2711 = vadd.f32 0.0, %v2710
      %v2712 = vpop.f32.mrb[0].mxu0
      %2713 = vmatprep.mubr.f32.mxu0 0.0
      %2714 = vmatmul.mubr.f32.gmra.mrb[0].mxu0 %v2586
      %v2715 = vpop.f32.mrb[0].mxu0
      %v2716 = vadd.f32 0.0, %v2715
      %v2717 = vpop.f32.mrb[0].mxu0
      %2718 = vmatprep.mubr.f32.mxu0 0.0
      %2719 = vmatmul.mubr.f32.gmra.mrb[0].mxu0 %v2589
      %v2720 = vpop.f32.mrb[0].mxu0
      %v2721 = vadd.f32 0.0, %v2720
      %v2722 = vpop.f32.mrb[0].mxu0
      %2723 = vmatprep.mubr.f32.mxu0 0.0
      %2724 = vmatmul.mubr.f32.gmra.mrb[0].mxu0 %v2592
      %v2725 = vpop.f32.mrb[0].mxu0
      %v2726 = vadd.f32 0.0, %v2725
      %v2727 = vpop.f32.mrb[0].mxu0
      %2728 = vmatprep.mubr.f32.mxu0 0.0
      %2729 = vmatmul.mubr.f32.gmra.mrb[0].mxu0 %v2595
      %v2730 = vpop.f32.mrb[0].mxu0
      %v2731 = vadd.f32 0.0, %v2730
      %v2732 = vpop.f32.mrb[0].mxu0
      %2733 = vmatprep.mubr.f32.mxu0 0.0
      %2734 = vmatmul.mubr.f32.gmra.mrb[0].mxu0 %v2598
      %v2735 = vpop.f32.mrb[0].mxu0
      %v2736 = vadd.f32 0.0, %v2735
      %v2737 = vpop.f32.mrb[0].mxu0
      %2738 = vmatprep.mubr.f32.mxu0 0.0
      %2739 = vmatmul.mubr.f32.gmra.mrb[0].mxu0 %v2601
      %v2740 = vpop.f32.mrb[0].mxu0
      %v2741 = vadd.f32 0.0, %v2740
      %v2742 = vpop.f32.mrb[0].mxu0
      %2743 = vmatprep.mubr.f32.mxu0 0.0
      %2744 = vmatmul.mubr.f32.gmra.mrb[0].mxu0 %v2604
      %v2745 = vpop.f32.mrb[0].mxu0
      %v2746 = vadd.f32 0.0, %v2745
      %v2747 = vpop.f32.mrb[0].mxu0
      %2748 = vmatprep.mubr.f32.mxu0 0.0
      %2749 = vmatmul.mubr.f32.gmra.mrb[0].mxu0 %v2607
      %v2750 = vpop.f32.mrb[0].mxu0
      %v2751 = vadd.f32 0.0, %v2750
      %v2752 = vpop.f32.mrb[0].mxu0
      %2753 = vmatprep.mubr.f32.mxu0 0.0
      %2754 = vmatmul.mubr.f32.gmra.mrb[0].mxu0 %v2610
      %v2755 = vpop.f32.mrb[0].mxu0
      %v2756 = vadd.f32 0.0, %v2755
      %v2757 = vpop.f32.mrb[0].mxu0
      %2758 = vmatprep.mubr.f32.mxu0 0.0
      %2759 = vmatmul.mubr.f32.gmra.mrb[0].mxu0 %v2613
      %v2760 = vpop.f32.mrb[0].mxu0
      %v2761 = vadd.f32 0.0, %v2760
      %v2762 = vpop.f32.mrb[0].mxu0
      %2763 = vmatprep.mubr.f32.mxu0 0.0
      %2764 = vmatmul.mubr.f32.gmra.mrb[0].mxu0 %v2616
      %v2765 = vpop.f32.mrb[0].mxu0
      %v2766 = vadd.f32 0.0, %v2765
      %v2767 = vpop.f32.mrb[0].mxu0
      %2768 = vmatprep.mubr.f32.mxu0 0.0
      %2769 = vmatmul.mubr.f32.gmra.mrb[0].mxu0 %v2619
      %v2770 = vpop.f32.mrb[0].mxu0
      %v2771 = vadd.f32 0.0, %v2770
      %v2772 = vpop.f32.mrb[0].mxu0
      %2773 = vmatprep.mubr.f32.mxu0 0.0
      %2774 = vmatmul.mubr.f32.gmra.mrb[0].mxu0 %v2622
      %v2775 = vpop.f32.mrb[0].mxu0
      %v2776 = vadd.f32 0.0, %v2775
      %v2777 = vpop.f32.mrb[0].mxu0
      %2778 = vdwg.mxu0
      %v2779 = vadd.f32 %v2532, %v2691
      %v2780 = vadd.f32 %v2533, %v2696
      %v2781 = vadd.f32 %v2534, %v2701
      %v2782 = vadd.f32 %v2535, %v2706
      %v2783 = vadd.f32 %v2536, %v2711
      %v2784 = vadd.f32 %v2537, %v2716
      %v2785 = vadd.f32 %v2538, %v2721
      %v2786 = vadd.f32 %v2539, %v2726
      %v2787 = vadd.f32 %v2540, %v2731
      %v2788 = vadd.f32 %v2541, %v2736
      %v2789 = vadd.f32 %v2542, %v2741
      %v2790 = vadd.f32 %v2543, %v2746
      %v2791 = vadd.f32 %v2544, %v2751
      %v2792 = vadd.f32 %v2545, %v2756
      %v2793 = vadd.f32 %v2546, %v2761
      %v2794 = vadd.f32 %v2547, %v2766
      %v2795 = vadd.f32 %v2548, %v2771
      %v2796 = vadd.f32 %v2549, %v2776
      %v2797 = vld [vmem:[%s2] sm:$0x1]
      %v2799 = vlaneseq
      %v2800 = vshrl.u32 %v2799, 7
      %v2801 = vsub.s32 0, %v2800
      %v2802 = vrot.slane %v2797, %v2801
      %v2804 = vadd.f32 %v2779, %v2802
      %v2805 = vadd.f32 %v2780, %v2802
      %v2806 = vadd.f32 %v2781, %v2802
      %v2807 = vadd.f32 %v2782, %v2802
      %v2808 = vadd.f32 %v2783, %v2802
      %v2809 = vadd.f32 %v2784, %v2802
      %v2810 = vadd.f32 %v2785, %v2802
      %v2811 = vadd.f32 %v2786, %v2802
      %v2812 = vadd.f32 %v2787, %v2802
      %v2813 = vadd.f32 %v2788, %v2802
      %v2814 = vadd.f32 %v2789, %v2802
      %v2815 = vadd.f32 %v2790, %v2802
      %v2816 = vadd.f32 %v2791, %v2802
      %v2817 = vadd.f32 %v2792, %v2802
      %v2818 = vadd.f32 %v2793, %v2802
      %v2819 = vadd.f32 %v2794, %v2802
      %v2820 = vadd.f32 %v2795, %v2802
      %v2821 = vadd.f32 %v2796, %v2802
      %v2822 = vmax.f32 %v2804, 0.0
      %v2823 = vmax.f32 %v2805, 0.0
      %v2824 = vmax.f32 %v2806, 0.0
      %v2825 = vmax.f32 %v2807, 0.0
      %v2826 = vmax.f32 %v2808, 0.0
      %v2827 = vmax.f32 %v2809, 0.0
      %v2828 = vmax.f32 %v2810, 0.0
      %v2829 = vmax.f32 %v2811, 0.0
      %v2830 = vmax.f32 %v2812, 0.0
      %v2831 = vmax.f32 %v2813, 0.0
      %v2832 = vmax.f32 %v2814, 0.0
      %v2833 = vmax.f32 %v2815, 0.0
      %v2834 = vmax.f32 %v2816, 0.0
      %v2835 = vmax.f32 %v2817, 0.0
      %v2836 = vmax.f32 %v2818, 0.0
      %v2837 = vmax.f32 %v2819, 0.0
      %v2838 = vmax.f32 %v2820, 0.0
      %v2839 = vmax.f32 %v2821, 0.0
      %v2840 = vsel %vm592, 1, 0
      %v2841 = vsel %vm593, 1, 0
      %v2842 = vsel %vm594, 1, 0
      %v2843 = vsel %vm595, 1, 0
      %v2844 = vsel %vm596, 1, 0
      %v2845 = vsel %vm597, 1, 0
      %v2846 = vsel %vm598, 1, 0
      %v2847 = vsel %vm599, 1, 0
      %v2848 = vsel %vm600, 1, 0
      %v2849 = vsel %vm601, 1, 0
      %v2850 = vsel %vm602, 1, 0
      %v2851 = vsel %vm603, 1, 0
      %v2852 = vsel %vm604, 1, 0
      %v2853 = vsel %vm605, 1, 0
      %v2854 = vsel %vm606, 1, 0
      %v2855 = vsel %vm607, 1, 0
      %v2856 = vsel %vm608, 1, 0
      %v2857 = vsel %vm609, 1, 0
      %vm2858 = vcmp.eq.s32.totalorder %v2840, 1
      %vm2859 = vcmp.eq.s32.totalorder %v2841, 1
      %vm2860 = vcmp.eq.s32.totalorder %v2842, 1
      %vm2861 = vcmp.eq.s32.totalorder %v2843, 1
      %vm2862 = vcmp.eq.s32.totalorder %v2844, 1
      %vm2863 = vcmp.eq.s32.totalorder %v2845, 1
      %vm2864 = vcmp.eq.s32.totalorder %v2846, 1
      %vm2865 = vcmp.eq.s32.totalorder %v2847, 1
      %vm2866 = vcmp.eq.s32.totalorder %v2848, 1
      %vm2867 = vcmp.eq.s32.totalorder %v2849, 1
      %vm2868 = vcmp.eq.s32.totalorder %v2850, 1
      %vm2869 = vcmp.eq.s32.totalorder %v2851, 1
      %vm2870 = vcmp.eq.s32.totalorder %v2852, 1
      %vm2871 = vcmp.eq.s32.totalorder %v2853, 1
      %vm2872 = vcmp.eq.s32.totalorder %v2854, 1
      %vm2873 = vcmp.eq.s32.totalorder %v2855, 1
      %vm2874 = vcmp.eq.s32.totalorder %v2856, 1
      %vm2875 = vcmp.eq.s32.totalorder %v2857, 1
      %v2876 = vsel %vm2858, %v2822, 0.0
      %v2877 = vsel %vm2859, %v2823, 0.0
      %v2878 = vsel %vm2860, %v2824, 0.0
      %v2879 = vsel %vm2861, %v2825, 0.0
      %v2880 = vsel %vm2862, %v2826, 0.0
      %v2881 = vsel %vm2863, %v2827, 0.0
      %v2882 = vsel %vm2864, %v2828, 0.0
      %v2883 = vsel %vm2865, %v2829, 0.0
      %v2884 = vsel %vm2866, %v2830, 0.0
      %v2885 = vsel %vm2867, %v2831, 0.0
      %v2886 = vsel %vm2868, %v2832, 0.0
      %v2887 = vsel %vm2869, %v2833, 0.0
      %v2888 = vsel %vm2870, %v2834, 0.0
      %v2889 = vsel %vm2871, %v2835, 0.0
      %v2890 = vsel %vm2872, %v2836, 0.0
      %v2891 = vsel %vm2873, %v2837, 0.0
      %v2892 = vsel %vm2874, %v2838, 0.0
      %v2893 = vsel %vm2875, %v2839, 0.0
      %2894 = vst [vmem:[#allocation2 + $0x13] sm:$0xff] %v2876
      %2895 = vst [vmem:[#allocation2 + $0x1b] sm:$0xff] %v2877
      %2896 = vst [vmem:[#allocation2 + $0x23] sm:$0xff] %v2878
      %2897 = vst [vmem:[#allocation2 + $0x2b] sm:$0xff] %v2879
      %2898 = vst [vmem:[#allocation2 + $0x33] sm:$0xff] %v2880
      %2899 = vst [vmem:[#allocation2 + $0x3b] sm:$0xff] %v2881
      %2900 = vst [vmem:[#allocation2 + $0x43] sm:$0xff] %v2882
      %2901 = vst [vmem:[#allocation2 + $0x4b] sm:$0xff] %v2883
      %2902 = vst [vmem:[#allocation2 + $0x53] sm:$0xff] %v2884
      %2903 = vst [vmem:[#allocation2 + $0x5b] sm:$0xff] %v2885
      %2904 = vst [vmem:[#allocation2 + $0x63] sm:$0xff] %v2886
      %2905 = vst [vmem:[#allocation2 + $0x6b] sm:$0xff] %v2887
      %2906 = vst [vmem:[#allocation2 + $0x73] sm:$0xff] %v2888
      %2907 = vst [vmem:[#allocation2 + $0x7b] sm:$0xff] %v2889
      %2908 = vst [vmem:[#allocation2 + $0x83] sm:$0xff] %v2890
      %2909 = vst [vmem:[#allocation2 + $0x8b] sm:$0xff] %v2891
      %2910 = vst [vmem:[#allocation2 + $0x93] sm:$0xff] %v2892
      %2911 = vst [vmem:[#allocation2 + $0x9b] sm:$0xff] %v2893
      %v2912 = vld [vmem:[%s273 + $0x90] sm:$0xff]
      %v2913 = vld [vmem:[%s273 + $0x98] sm:$0xff]
      %v2914 = vld [vmem:[%s273 + $0xa0] sm:$0xff]
      %v2915 = vld [vmem:[%s273 + $0xa8] sm:$0xff]
      %v2916 = vld [vmem:[%s273 + $0xb0] sm:$0xff]
      %v2917 = vld [vmem:[%s273 + $0xb8] sm:$0xff]
      %v2918 = vld [vmem:[%s273 + $0xc0] sm:$0xff]
      %v2919 = vld [vmem:[%s273 + $0xc8] sm:$0xff]
      %v2920 = vld [vmem:[%s273 + $0xd0] sm:$0xff]
      %v2921 = vld [vmem:[%s273 + $0xd8] sm:$0xff]
      %v2922 = vld [vmem:[%s273 + $0xe0] sm:$0xff]
      %v2923 = vld [vmem:[%s273 + $0xe8] sm:$0xff]
      %v2924 = vld [vmem:[%s273 + $0xf0] sm:$0xff]
      %v2925 = vld [vmem:[%s273 + $0xf8] sm:$0xff]
      %v2926 = vld [vmem:[%s273 + $0x100] sm:$0xff]
      %v2927 = vld [vmem:[%s273 + $0x108] sm:$0xff]
      %v2928 = vld [vmem:[%s273 + $0x110] sm:$0xff]
      %v2929 = vld [vmem:[%s273 + $0x118] sm:$0xff]
      %v2930 = vld [vmem:[%s1] sm:$0xff]
      %v2931 = vld [vmem:[%s273 + $0x91] sm:$0xff]
      %v2932 = vld [vmem:[%s273 + $0x99] sm:$0xff]
      %v2933 = vld [vmem:[%s273 + $0xa1] sm:$0xff]
      %v2934 = vld [vmem:[%s273 + $0xa9] sm:$0xff]
      %v2935 = vld [vmem:[%s273 + $0xb1] sm:$0xff]
      %v2936 = vld [vmem:[%s273 + $0xb9] sm:$0xff]
      %v2937 = vld [vmem:[%s273 + $0xc1] sm:$0xff]
      %v2938 = vld [vmem:[%s273 + $0xc9] sm:$0xff]
      %v2939 = vld [vmem:[%s273 + $0xd1] sm:$0xff]
      %v2940 = vld [vmem:[%s273 + $0xd9] sm:$0xff]
      %v2941 = vld [vmem:[%s273 + $0xe1] sm:$0xff]
      %v2942 = vld [vmem:[%s273 + $0xe9] sm:$0xff]
      %v2943 = vld [vmem:[%s273 + $0xf1] sm:$0xff]
      %v2944 = vld [vmem:[%s273 + $0xf9] sm:$0xff]
      %v2945 = vld [vmem:[%s273 + $0x101] sm:$0xff]
      %v2946 = vld [vmem:[%s273 + $0x109] sm:$0xff]
      %v2947 = vld [vmem:[%s273 + $0x111] sm:$0xff]
      %v2948 = vld [vmem:[%s273 + $0x119] sm:$0xff]
      %v2949 = vld [vmem:[%s647] sm:$0xff]
      %v2951 = vsel %vm649, %v2931, 0
      %v2954 = vsel %vm649, %v2932, 0
      %v2957 = vsel %vm649, %v2933, 0
      %v2960 = vsel %vm649, %v2934, 0
      %v2963 = vsel %vm649, %v2935, 0
      %v2966 = vsel %vm649, %v2936, 0
      %v2969 = vsel %vm649, %v2937, 0
      %v2972 = vsel %vm649, %v2938, 0
      %v2975 = vsel %vm649, %v2939, 0
      %v2978 = vsel %vm649, %v2940, 0
      %v2981 = vsel %vm649, %v2941, 0
      %v2984 = vsel %vm649, %v2942, 0
      %v2987 = vsel %vm649, %v2943, 0
      %v2990 = vsel %vm649, %v2944, 0
      %v2993 = vsel %vm649, %v2945, 0
      %v2996 = vsel %vm649, %v2946, 0
      %v2999 = vsel %vm649, %v2947, 0
      %v3002 = vsel %vm649, %v2948, 0
      %3004 = vmatprep.subr.mxu0 0.0
      %3005 = vmatpush1.msra.mxu0 %v2949
      %3006 = vmatprep.subr.mxu0 0.0
      %3007 = vmatpush1.msra.mxu0 0.0
      %3008 = vmatprep.subr.mxu0 0.0
      %3009 = vmatpush1.msra.mxu0 0.0
      %3010 = vmatprep.subr.mxu0 0.0
      %3011 = vmatpush1.msra.mxu0 0.0
      %3012 = vmatprep.subr.mxu0 0.0
      %3013 = vmatpush1.msra.mxu0 0.0
      %3014 = vmatprep.subr.mxu0 0.0
      %3015 = vmatpush1.msra.mxu0 0.0
      %3016 = vmatprep.subr.mxu0 0.0
      %3017 = vmatpush1.msra.mxu0 0.0
      %3018 = vmatprep.subr.mxu0 0.0
      %3019 = vmatpush1.msra.mxu0 0.0
      %3020 = vmatprep.subr.mxu0 0.0
      %3021 = vmatpush1.msra.mxu0 0.0
      %3022 = vmatprep.subr.mxu0 0.0
      %3023 = vmatpush1.msra.mxu0 0.0
      %3024 = vmatprep.subr.mxu0 0.0
      %3025 = vmatpush1.msra.mxu0 0.0
      %3026 = vmatprep.subr.mxu0 0.0
      %3027 = vmatpush1.msra.mxu0 0.0
      %3028 = vmatprep.subr.mxu0 0.0
      %3029 = vmatpush1.msra.mxu0 0.0
      %3030 = vmatprep.subr.mxu0 0.0
      %3031 = vmatpush1.msra.mxu0 0.0
      %3032 = vmatprep.subr.mxu0 0.0
      %3033 = vmatpush1.msra.mxu0 0.0
      %3034 = vmatprep.subr.mxu0 0.0
      %3035 = vmatpush1.msra.mxu0 0.0
      %3036 = vmatprep.subr.mxu0 0.0
      %3037 = vmatpush1.msra.mxu0 0.0
      %3038 = vmatprep.subr.mxu0 0.0
      %3039 = vmatpush1.msra.mxu0 0.0
      %3040 = vmatprep.subr.mxu0 0.0
      %3041 = vmatpush1.msra.mxu0 0.0
      %3042 = vmatprep.subr.mxu0 0.0
      %3043 = vmatpush1.msra.mxu0 0.0
      %3044 = vmatprep.subr.mxu0 0.0
      %3045 = vmatpush1.msra.mxu0 0.0
      %3046 = vmatprep.subr.mxu0 0.0
      %3047 = vmatpush1.msra.mxu0 0.0
      %3048 = vmatprep.subr.mxu0 0.0
      %3049 = vmatpush1.msra.mxu0 0.0
      %3050 = vmatprep.subr.mxu0 0.0
      %3051 = vmatpush1.msra.mxu0 0.0
      %3052 = vmatprep.subr.mxu0 0.0
      %3053 = vmatpush1.msra.mxu0 0.0
      %3054 = vmatprep.subr.mxu0 0.0
      %3055 = vmatpush1.msra.mxu0 0.0
      %3056 = vmatprep.subr.mxu0 0.0
      %3057 = vmatpush1.msra.mxu0 0.0
      %3058 = vmatprep.subr.mxu0 0.0
      %3059 = vmatpush1.msra.mxu0 0.0
      %3060 = vmatprep.subr.mxu0 0.0
      %3061 = vmatpush1.msra.mxu0 0.0
      %3062 = vmatprep.subr.mxu0 0.0
      %3063 = vmatpush1.msra.mxu0 0.0
      %3064 = vmatprep.subr.mxu0 0.0
      %3065 = vmatpush1.msra.mxu0 0.0
      %3066 = vmatprep.subr.mxu0 0.0
      %3067 = vmatpush1.msra.mxu0 0.0
      %3068 = vmatprep.mubr.f32.mxu0 0.0
      %3069 = vmatmul.mubr.f32.gmra.mrb[0].mxu0 %v2951
      %v3070 = vpop.f32.mrb[0].mxu0
      %v3071 = vadd.f32 0.0, %v3070
      %v3072 = vpop.f32.mrb[0].mxu0
      %3073 = vmatprep.mubr.f32.mxu0 0.0
      %3074 = vmatmul.mubr.f32.gmra.mrb[0].mxu0 %v2954
      %v3075 = vpop.f32.mrb[0].mxu0
      %v3076 = vadd.f32 0.0, %v3075
      %v3077 = vpop.f32.mrb[0].mxu0
      %3078 = vmatprep.mubr.f32.mxu0 0.0
      %3079 = vmatmul.mubr.f32.gmra.mrb[0].mxu0 %v2957
      %v3080 = vpop.f32.mrb[0].mxu0
      %v3081 = vadd.f32 0.0, %v3080
      %v3082 = vpop.f32.mrb[0].mxu0
      %3083 = vmatprep.mubr.f32.mxu0 0.0
      %3084 = vmatmul.mubr.f32.gmra.mrb[0].mxu0 %v2960
      %v3085 = vpop.f32.mrb[0].mxu0
      %v3086 = vadd.f32 0.0, %v3085
      %v3087 = vpop.f32.mrb[0].mxu0
      %3088 = vmatprep.mubr.f32.mxu0 0.0
      %3089 = vmatmul.mubr.f32.gmra.mrb[0].mxu0 %v2963
      %v3090 = vpop.f32.mrb[0].mxu0
      %v3091 = vadd.f32 0.0, %v3090
      %v3092 = vpop.f32.mrb[0].mxu0
      %3093 = vmatprep.mubr.f32.mxu0 0.0
      %3094 = vmatmul.mubr.f32.gmra.mrb[0].mxu0 %v2966
      %v3095 = vpop.f32.mrb[0].mxu0
      %v3096 = vadd.f32 0.0, %v3095
      %v3097 = vpop.f32.mrb[0].mxu0
      %3098 = vmatprep.mubr.f32.mxu0 0.0
      %3099 = vmatmul.mubr.f32.gmra.mrb[0].mxu0 %v2969
      %v3100 = vpop.f32.mrb[0].mxu0
      %v3101 = vadd.f32 0.0, %v3100
      %v3102 = vpop.f32.mrb[0].mxu0
      %3103 = vmatprep.mubr.f32.mxu0 0.0
      %3104 = vmatmul.mubr.f32.gmra.mrb[0].mxu0 %v2972
      %v3105 = vpop.f32.mrb[0].mxu0
      %v3106 = vadd.f32 0.0, %v3105
      %v3107 = vpop.f32.mrb[0].mxu0
      %3108 = vmatprep.mubr.f32.mxu0 0.0
      %3109 = vmatmul.mubr.f32.gmra.mrb[0].mxu0 %v2975
      %v3110 = vpop.f32.mrb[0].mxu0
      %v3111 = vadd.f32 0.0, %v3110
      %v3112 = vpop.f32.mrb[0].mxu0
      %3113 = vmatprep.mubr.f32.mxu0 0.0
      %3114 = vmatmul.mubr.f32.gmra.mrb[0].mxu0 %v2978
      %v3115 = vpop.f32.mrb[0].mxu0
      %v3116 = vadd.f32 0.0, %v3115
      %v3117 = vpop.f32.mrb[0].mxu0
      %3118 = vmatprep.mubr.f32.mxu0 0.0
      %3119 = vmatmul.mubr.f32.gmra.mrb[0].mxu0 %v2981
      %v3120 = vpop.f32.mrb[0].mxu0
      %v3121 = vadd.f32 0.0, %v3120
      %v3122 = vpop.f32.mrb[0].mxu0
      %3123 = vmatprep.mubr.f32.mxu0 0.0
      %3124 = vmatmul.mubr.f32.gmra.mrb[0].mxu0 %v2984
      %v3125 = vpop.f32.mrb[0].mxu0
      %v3126 = vadd.f32 0.0, %v3125
      %v3127 = vpop.f32.mrb[0].mxu0
      %3128 = vmatprep.mubr.f32.mxu0 0.0
      %3129 = vmatmul.mubr.f32.gmra.mrb[0].mxu0 %v2987
      %v3130 = vpop.f32.mrb[0].mxu0
      %v3131 = vadd.f32 0.0, %v3130
      %v3132 = vpop.f32.mrb[0].mxu0
      %3133 = vmatprep.mubr.f32.mxu0 0.0
      %3134 = vmatmul.mubr.f32.gmra.mrb[0].mxu0 %v2990
      %v3135 = vpop.f32.mrb[0].mxu0
      %v3136 = vadd.f32 0.0, %v3135
      %v3137 = vpop.f32.mrb[0].mxu0
      %3138 = vmatprep.mubr.f32.mxu0 0.0
      %3139 = vmatmul.mubr.f32.gmra.mrb[0].mxu0 %v2993
      %v3140 = vpop.f32.mrb[0].mxu0
      %v3141 = vadd.f32 0.0, %v3140
      %v3142 = vpop.f32.mrb[0].mxu0
      %3143 = vmatprep.mubr.f32.mxu0 0.0
      %3144 = vmatmul.mubr.f32.gmra.mrb[0].mxu0 %v2996
      %v3145 = vpop.f32.mrb[0].mxu0
      %v3146 = vadd.f32 0.0, %v3145
      %v3147 = vpop.f32.mrb[0].mxu0
      %3148 = vmatprep.mubr.f32.mxu0 0.0
      %3149 = vmatmul.mubr.f32.gmra.mrb[0].mxu0 %v2999
      %v3150 = vpop.f32.mrb[0].mxu0
      %v3151 = vadd.f32 0.0, %v3150
      %v3152 = vpop.f32.mrb[0].mxu0
      %3153 = vmatprep.mubr.f32.mxu0 0.0
      %3154 = vmatmul.mubr.f32.gmra.mrb[0].mxu0 %v3002
      %v3155 = vpop.f32.mrb[0].mxu0
      %v3156 = vadd.f32 0.0, %v3155
      %v3157 = vpop.f32.mrb[0].mxu0
      %3158 = vdwg.mxu0
      %v3160 = vsel %vm649, %v2912, 0
      %v3163 = vsel %vm649, %v2913, 0
      %v3166 = vsel %vm649, %v2914, 0
      %v3169 = vsel %vm649, %v2915, 0
      %v3172 = vsel %vm649, %v2916, 0
      %v3175 = vsel %vm649, %v2917, 0
      %v3178 = vsel %vm649, %v2918, 0
      %v3181 = vsel %vm649, %v2919, 0
      %v3184 = vsel %vm649, %v2920, 0
      %v3187 = vsel %vm649, %v2921, 0
      %v3190 = vsel %vm649, %v2922, 0
      %v3193 = vsel %vm649, %v2923, 0
      %v3196 = vsel %vm649, %v2924, 0
      %v3199 = vsel %vm649, %v2925, 0
      %v3202 = vsel %vm649, %v2926, 0
      %v3205 = vsel %vm649, %v2927, 0
      %v3208 = vsel %vm649, %v2928, 0
      %v3211 = vsel %vm649, %v2929, 0
      %3213 = vmatprep.subr.mxu0 0.0
      %3214 = vmatpush1.msra.mxu0 %v2930
      %3215 = vmatprep.subr.mxu0 0.0
      %3216 = vmatpush1.msra.mxu0 0.0
      %3217 = vmatprep.subr.mxu0 0.0
      %3218 = vmatpush1.msra.mxu0 0.0
      %3219 = vmatprep.subr.mxu0 0.0
      %3220 = vmatpush1.msra.mxu0 0.0
      %3221 = vmatprep.subr.mxu0 0.0
      %3222 = vmatpush1.msra.mxu0 0.0
      %3223 = vmatprep.subr.mxu0 0.0
      %3224 = vmatpush1.msra.mxu0 0.0
      %3225 = vmatprep.subr.mxu0 0.0
      %3226 = vmatpush1.msra.mxu0 0.0
      %3227 = vmatprep.subr.mxu0 0.0
      %3228 = vmatpush1.msra.mxu0 0.0
      %3229 = vmatprep.subr.mxu0 0.0
      %3230 = vmatpush1.msra.mxu0 0.0
      %3231 = vmatprep.subr.mxu0 0.0
      %3232 = vmatpush1.msra.mxu0 0.0
      %3233 = vmatprep.subr.mxu0 0.0
      %3234 = vmatpush1.msra.mxu0 0.0
      %3235 = vmatprep.subr.mxu0 0.0
      %3236 = vmatpush1.msra.mxu0 0.0
      %3237 = vmatprep.subr.mxu0 0.0
      %3238 = vmatpush1.msra.mxu0 0.0
      %3239 = vmatprep.subr.mxu0 0.0
      %3240 = vmatpush1.msra.mxu0 0.0
      %3241 = vmatprep.subr.mxu0 0.0
      %3242 = vmatpush1.msra.mxu0 0.0
      %3243 = vmatprep.subr.mxu0 0.0
      %3244 = vmatpush1.msra.mxu0 0.0
      %3245 = vmatprep.subr.mxu0 0.0
      %3246 = vmatpush1.msra.mxu0 0.0
      %3247 = vmatprep.subr.mxu0 0.0
      %3248 = vmatpush1.msra.mxu0 0.0
      %3249 = vmatprep.subr.mxu0 0.0
      %3250 = vmatpush1.msra.mxu0 0.0
      %3251 = vmatprep.subr.mxu0 0.0
      %3252 = vmatpush1.msra.mxu0 0.0
      %3253 = vmatprep.subr.mxu0 0.0
      %3254 = vmatpush1.msra.mxu0 0.0
      %3255 = vmatprep.subr.mxu0 0.0
      %3256 = vmatpush1.msra.mxu0 0.0
      %3257 = vmatprep.subr.mxu0 0.0
      %3258 = vmatpush1.msra.mxu0 0.0
      %3259 = vmatprep.subr.mxu0 0.0
      %3260 = vmatpush1.msra.mxu0 0.0
      %3261 = vmatprep.subr.mxu0 0.0
      %3262 = vmatpush1.msra.mxu0 0.0
      %3263 = vmatprep.subr.mxu0 0.0
      %3264 = vmatpush1.msra.mxu0 0.0
      %3265 = vmatprep.subr.mxu0 0.0
      %3266 = vmatpush1.msra.mxu0 0.0
      %3267 = vmatprep.subr.mxu0 0.0
      %3268 = vmatpush1.msra.mxu0 0.0
      %3269 = vmatprep.subr.mxu0 0.0
      %3270 = vmatpush1.msra.mxu0 0.0
      %3271 = vmatprep.subr.mxu0 0.0
      %3272 = vmatpush1.msra.mxu0 0.0
      %3273 = vmatprep.subr.mxu0 0.0
      %3274 = vmatpush1.msra.mxu0 0.0
      %3275 = vmatprep.subr.mxu0 0.0
      %3276 = vmatpush1.msra.mxu0 0.0
      %3277 = vmatprep.mubr.f32.mxu0 0.0
      %3278 = vmatmul.mubr.f32.gmra.mrb[0].mxu0 %v3160
      %v3279 = vpop.f32.mrb[0].mxu0
      %v3280 = vadd.f32 %v3071, %v3279
      %v3281 = vpop.f32.mrb[0].mxu0
      %3282 = vmatprep.mubr.f32.mxu0 0.0
      %3283 = vmatmul.mubr.f32.gmra.mrb[0].mxu0 %v3163
      %v3284 = vpop.f32.mrb[0].mxu0
      %v3285 = vadd.f32 %v3076, %v3284
      %v3286 = vpop.f32.mrb[0].mxu0
      %3287 = vmatprep.mubr.f32.mxu0 0.0
      %3288 = vmatmul.mubr.f32.gmra.mrb[0].mxu0 %v3166
      %v3289 = vpop.f32.mrb[0].mxu0
      %v3290 = vadd.f32 %v3081, %v3289
      %v3291 = vpop.f32.mrb[0].mxu0
      %3292 = vmatprep.mubr.f32.mxu0 0.0
      %3293 = vmatmul.mubr.f32.gmra.mrb[0].mxu0 %v3169
      %v3294 = vpop.f32.mrb[0].mxu0
      %v3295 = vadd.f32 %v3086, %v3294
      %v3296 = vpop.f32.mrb[0].mxu0
      %3297 = vmatprep.mubr.f32.mxu0 0.0
      %3298 = vmatmul.mubr.f32.gmra.mrb[0].mxu0 %v3172
      %v3299 = vpop.f32.mrb[0].mxu0
      %v3300 = vadd.f32 %v3091, %v3299
      %v3301 = vpop.f32.mrb[0].mxu0
      %3302 = vmatprep.mubr.f32.mxu0 0.0
      %3303 = vmatmul.mubr.f32.gmra.mrb[0].mxu0 %v3175
      %v3304 = vpop.f32.mrb[0].mxu0
      %v3305 = vadd.f32 %v3096, %v3304
      %v3306 = vpop.f32.mrb[0].mxu0
      %3307 = vmatprep.mubr.f32.mxu0 0.0
      %3308 = vmatmul.mubr.f32.gmra.mrb[0].mxu0 %v3178
      %v3309 = vpop.f32.mrb[0].mxu0
      %v3310 = vadd.f32 %v3101, %v3309
      %v3311 = vpop.f32.mrb[0].mxu0
      %3312 = vmatprep.mubr.f32.mxu0 0.0
      %3313 = vmatmul.mubr.f32.gmra.mrb[0].mxu0 %v3181
      %v3314 = vpop.f32.mrb[0].mxu0
      %v3315 = vadd.f32 %v3106, %v3314
      %v3316 = vpop.f32.mrb[0].mxu0
      %3317 = vmatprep.mubr.f32.mxu0 0.0
      %3318 = vmatmul.mubr.f32.gmra.mrb[0].mxu0 %v3184
      %v3319 = vpop.f32.mrb[0].mxu0
      %v3320 = vadd.f32 %v3111, %v3319
      %v3321 = vpop.f32.mrb[0].mxu0
      %3322 = vmatprep.mubr.f32.mxu0 0.0
      %3323 = vmatmul.mubr.f32.gmra.mrb[0].mxu0 %v3187
      %v3324 = vpop.f32.mrb[0].mxu0
      %v3325 = vadd.f32 %v3116, %v3324
      %v3326 = vpop.f32.mrb[0].mxu0
      %3327 = vmatprep.mubr.f32.mxu0 0.0
      %3328 = vmatmul.mubr.f32.gmra.mrb[0].mxu0 %v3190
      %v3329 = vpop.f32.mrb[0].mxu0
      %v3330 = vadd.f32 %v3121, %v3329
      %v3331 = vpop.f32.mrb[0].mxu0
      %3332 = vmatprep.mubr.f32.mxu0 0.0
      %3333 = vmatmul.mubr.f32.gmra.mrb[0].mxu0 %v3193
      %v3334 = vpop.f32.mrb[0].mxu0
      %v3335 = vadd.f32 %v3126, %v3334
      %v3336 = vpop.f32.mrb[0].mxu0
      %3337 = vmatprep.mubr.f32.mxu0 0.0
      %3338 = vmatmul.mubr.f32.gmra.mrb[0].mxu0 %v3196
      %v3339 = vpop.f32.mrb[0].mxu0
      %v3340 = vadd.f32 %v3131, %v3339
      %v3341 = vpop.f32.mrb[0].mxu0
      %3342 = vmatprep.mubr.f32.mxu0 0.0
      %3343 = vmatmul.mubr.f32.gmra.mrb[0].mxu0 %v3199
      %v3344 = vpop.f32.mrb[0].mxu0
      %v3345 = vadd.f32 %v3136, %v3344
      %v3346 = vpop.f32.mrb[0].mxu0
      %3347 = vmatprep.mubr.f32.mxu0 0.0
      %3348 = vmatmul.mubr.f32.gmra.mrb[0].mxu0 %v3202
      %v3349 = vpop.f32.mrb[0].mxu0
      %v3350 = vadd.f32 %v3141, %v3349
      %v3351 = vpop.f32.mrb[0].mxu0
      %3352 = vmatprep.mubr.f32.mxu0 0.0
      %3353 = vmatmul.mubr.f32.gmra.mrb[0].mxu0 %v3205
      %v3354 = vpop.f32.mrb[0].mxu0
      %v3355 = vadd.f32 %v3146, %v3354
      %v3356 = vpop.f32.mrb[0].mxu0
      %3357 = vmatprep.mubr.f32.mxu0 0.0
      %3358 = vmatmul.mubr.f32.gmra.mrb[0].mxu0 %v3208
      %v3359 = vpop.f32.mrb[0].mxu0
      %v3360 = vadd.f32 %v3151, %v3359
      %v3361 = vpop.f32.mrb[0].mxu0
      %3362 = vmatprep.mubr.f32.mxu0 0.0
      %3363 = vmatmul.mubr.f32.gmra.mrb[0].mxu0 %v3211
      %v3364 = vpop.f32.mrb[0].mxu0
      %v3365 = vadd.f32 %v3156, %v3364
      %v3366 = vpop.f32.mrb[0].mxu0
      %3367 = vdwg.mxu0
      %v3368 = vld [vmem:[%s273 + $0x92] sm:$0xff]
      %v3369 = vld [vmem:[%s273 + $0x9a] sm:$0xff]
      %v3370 = vld [vmem:[%s273 + $0xa2] sm:$0xff]
      %v3371 = vld [vmem:[%s273 + $0xaa] sm:$0xff]
      %v3372 = vld [vmem:[%s273 + $0xb2] sm:$0xff]
      %v3373 = vld [vmem:[%s273 + $0xba] sm:$0xff]
      %v3374 = vld [vmem:[%s273 + $0xc2] sm:$0xff]
      %v3375 = vld [vmem:[%s273 + $0xca] sm:$0xff]
      %v3376 = vld [vmem:[%s273 + $0xd2] sm:$0xff]
      %v3377 = vld [vmem:[%s273 + $0xda] sm:$0xff]
      %v3378 = vld [vmem:[%s273 + $0xe2] sm:$0xff]
      %v3379 = vld [vmem:[%s273 + $0xea] sm:$0xff]
      %v3380 = vld [vmem:[%s273 + $0xf2] sm:$0xff]
      %v3381 = vld [vmem:[%s273 + $0xfa] sm:$0xff]
      %v3382 = vld [vmem:[%s273 + $0x102] sm:$0xff]
      %v3383 = vld [vmem:[%s273 + $0x10a] sm:$0xff]
      %v3384 = vld [vmem:[%s273 + $0x112] sm:$0xff]
      %v3385 = vld [vmem:[%s273 + $0x11a] sm:$0xff]
      %v3386 = vld [vmem:[%s1086] sm:$0xff]
      %v3388 = vsel %vm649, %v3368, 0
      %v3391 = vsel %vm649, %v3369, 0
      %v3394 = vsel %vm649, %v3370, 0
      %v3397 = vsel %vm649, %v3371, 0
      %v3400 = vsel %vm649, %v3372, 0
      %v3403 = vsel %vm649, %v3373, 0
      %v3406 = vsel %vm649, %v3374, 0
      %v3409 = vsel %vm649, %v3375, 0
      %v3412 = vsel %vm649, %v3376, 0
      %v3415 = vsel %vm649, %v3377, 0
      %v3418 = vsel %vm649, %v3378, 0
      %v3421 = vsel %vm649, %v3379, 0
      %v3424 = vsel %vm649, %v3380, 0
      %v3427 = vsel %vm649, %v3381, 0
      %v3430 = vsel %vm649, %v3382, 0
      %v3433 = vsel %vm649, %v3383, 0
      %v3436 = vsel %vm649, %v3384, 0
      %v3439 = vsel %vm649, %v3385, 0
      %3441 = vmatprep.subr.mxu0 0.0
      %3442 = vmatpush1.msra.mxu0 %v3386
      %3443 = vmatprep.subr.mxu0 0.0
      %3444 = vmatpush1.msra.mxu0 0.0
      %3445 = vmatprep.subr.mxu0 0.0
      %3446 = vmatpush1.msra.mxu0 0.0
      %3447 = vmatprep.subr.mxu0 0.0
      %3448 = vmatpush1.msra.mxu0 0.0
      %3449 = vmatprep.subr.mxu0 0.0
      %3450 = vmatpush1.msra.mxu0 0.0
      %3451 = vmatprep.subr.mxu0 0.0
      %3452 = vmatpush1.msra.mxu0 0.0
      %3453 = vmatprep.subr.mxu0 0.0
      %3454 = vmatpush1.msra.mxu0 0.0
      %3455 = vmatprep.subr.mxu0 0.0
      %3456 = vmatpush1.msra.mxu0 0.0
      %3457 = vmatprep.subr.mxu0 0.0
      %3458 = vmatpush1.msra.mxu0 0.0
      %3459 = vmatprep.subr.mxu0 0.0
      %3460 = vmatpush1.msra.mxu0 0.0
      %3461 = vmatprep.subr.mxu0 0.0
      %3462 = vmatpush1.msra.mxu0 0.0
      %3463 = vmatprep.subr.mxu0 0.0
      %3464 = vmatpush1.msra.mxu0 0.0
      %3465 = vmatprep.subr.mxu0 0.0
      %3466 = vmatpush1.msra.mxu0 0.0
      %3467 = vmatprep.subr.mxu0 0.0
      %3468 = vmatpush1.msra.mxu0 0.0
      %3469 = vmatprep.subr.mxu0 0.0
      %3470 = vmatpush1.msra.mxu0 0.0
      %3471 = vmatprep.subr.mxu0 0.0
      %3472 = vmatpush1.msra.mxu0 0.0
      %3473 = vmatprep.subr.mxu0 0.0
      %3474 = vmatpush1.msra.mxu0 0.0
      %3475 = vmatprep.subr.mxu0 0.0
      %3476 = vmatpush1.msra.mxu0 0.0
      %3477 = vmatprep.subr.mxu0 0.0
      %3478 = vmatpush1.msra.mxu0 0.0
      %3479 = vmatprep.subr.mxu0 0.0
      %3480 = vmatpush1.msra.mxu0 0.0
      %3481 = vmatprep.subr.mxu0 0.0
      %3482 = vmatpush1.msra.mxu0 0.0
      %3483 = vmatprep.subr.mxu0 0.0
      %3484 = vmatpush1.msra.mxu0 0.0
      %3485 = vmatprep.subr.mxu0 0.0
      %3486 = vmatpush1.msra.mxu0 0.0
      %3487 = vmatprep.subr.mxu0 0.0
      %3488 = vmatpush1.msra.mxu0 0.0
      %3489 = vmatprep.subr.mxu0 0.0
      %3490 = vmatpush1.msra.mxu0 0.0
      %3491 = vmatprep.subr.mxu0 0.0
      %3492 = vmatpush1.msra.mxu0 0.0
      %3493 = vmatprep.subr.mxu0 0.0
      %3494 = vmatpush1.msra.mxu0 0.0
      %3495 = vmatprep.subr.mxu0 0.0
      %3496 = vmatpush1.msra.mxu0 0.0
      %3497 = vmatprep.subr.mxu0 0.0
      %3498 = vmatpush1.msra.mxu0 0.0
      %3499 = vmatprep.subr.mxu0 0.0
      %3500 = vmatpush1.msra.mxu0 0.0
      %3501 = vmatprep.subr.mxu0 0.0
      %3502 = vmatpush1.msra.mxu0 0.0
      %3503 = vmatprep.subr.mxu0 0.0
      %3504 = vmatpush1.msra.mxu0 0.0
      %3505 = vmatprep.mubr.f32.mxu0 0.0
      %3506 = vmatmul.mubr.f32.gmra.mrb[0].mxu0 %v3388
      %v3507 = vpop.f32.mrb[0].mxu0
      %v3508 = vadd.f32 0.0, %v3507
      %v3509 = vpop.f32.mrb[0].mxu0
      %3510 = vmatprep.mubr.f32.mxu0 0.0
      %3511 = vmatmul.mubr.f32.gmra.mrb[0].mxu0 %v3391
      %v3512 = vpop.f32.mrb[0].mxu0
      %v3513 = vadd.f32 0.0, %v3512
      %v3514 = vpop.f32.mrb[0].mxu0
      %3515 = vmatprep.mubr.f32.mxu0 0.0
      %3516 = vmatmul.mubr.f32.gmra.mrb[0].mxu0 %v3394
      %v3517 = vpop.f32.mrb[0].mxu0
      %v3518 = vadd.f32 0.0, %v3517
      %v3519 = vpop.f32.mrb[0].mxu0
      %3520 = vmatprep.mubr.f32.mxu0 0.0
      %3521 = vmatmul.mubr.f32.gmra.mrb[0].mxu0 %v3397
      %v3522 = vpop.f32.mrb[0].mxu0
      %v3523 = vadd.f32 0.0, %v3522
      %v3524 = vpop.f32.mrb[0].mxu0
      %3525 = vmatprep.mubr.f32.mxu0 0.0
      %3526 = vmatmul.mubr.f32.gmra.mrb[0].mxu0 %v3400
      %v3527 = vpop.f32.mrb[0].mxu0
      %v3528 = vadd.f32 0.0, %v3527
      %v3529 = vpop.f32.mrb[0].mxu0
      %3530 = vmatprep.mubr.f32.mxu0 0.0
      %3531 = vmatmul.mubr.f32.gmra.mrb[0].mxu0 %v3403
      %v3532 = vpop.f32.mrb[0].mxu0
      %v3533 = vadd.f32 0.0, %v3532
      %v3534 = vpop.f32.mrb[0].mxu0
      %3535 = vmatprep.mubr.f32.mxu0 0.0
      %3536 = vmatmul.mubr.f32.gmra.mrb[0].mxu0 %v3406
      %v3537 = vpop.f32.mrb[0].mxu0
      %v3538 = vadd.f32 0.0, %v3537
      %v3539 = vpop.f32.mrb[0].mxu0
      %3540 = vmatprep.mubr.f32.mxu0 0.0
      %3541 = vmatmul.mubr.f32.gmra.mrb[0].mxu0 %v3409
      %v3542 = vpop.f32.mrb[0].mxu0
      %v3543 = vadd.f32 0.0, %v3542
      %v3544 = vpop.f32.mrb[0].mxu0
      %3545 = vmatprep.mubr.f32.mxu0 0.0
      %3546 = vmatmul.mubr.f32.gmra.mrb[0].mxu0 %v3412
      %v3547 = vpop.f32.mrb[0].mxu0
      %v3548 = vadd.f32 0.0, %v3547
      %v3549 = vpop.f32.mrb[0].mxu0
      %3550 = vmatprep.mubr.f32.mxu0 0.0
      %3551 = vmatmul.mubr.f32.gmra.mrb[0].mxu0 %v3415
      %v3552 = vpop.f32.mrb[0].mxu0
      %v3553 = vadd.f32 0.0, %v3552
      %v3554 = vpop.f32.mrb[0].mxu0
      %3555 = vmatprep.mubr.f32.mxu0 0.0
      %3556 = vmatmul.mubr.f32.gmra.mrb[0].mxu0 %v3418
      %v3557 = vpop.f32.mrb[0].mxu0
      %v3558 = vadd.f32 0.0, %v3557
      %v3559 = vpop.f32.mrb[0].mxu0
      %3560 = vmatprep.mubr.f32.mxu0 0.0
      %3561 = vmatmul.mubr.f32.gmra.mrb[0].mxu0 %v3421
      %v3562 = vpop.f32.mrb[0].mxu0
      %v3563 = vadd.f32 0.0, %v3562
      %v3564 = vpop.f32.mrb[0].mxu0
      %3565 = vmatprep.mubr.f32.mxu0 0.0
      %3566 = vmatmul.mubr.f32.gmra.mrb[0].mxu0 %v3424
      %v3567 = vpop.f32.mrb[0].mxu0
      %v3568 = vadd.f32 0.0, %v3567
      %v3569 = vpop.f32.mrb[0].mxu0
      %3570 = vmatprep.mubr.f32.mxu0 0.0
      %3571 = vmatmul.mubr.f32.gmra.mrb[0].mxu0 %v3427
      %v3572 = vpop.f32.mrb[0].mxu0
      %v3573 = vadd.f32 0.0, %v3572
      %v3574 = vpop.f32.mrb[0].mxu0
      %3575 = vmatprep.mubr.f32.mxu0 0.0
      %3576 = vmatmul.mubr.f32.gmra.mrb[0].mxu0 %v3430
      %v3577 = vpop.f32.mrb[0].mxu0
      %v3578 = vadd.f32 0.0, %v3577
      %v3579 = vpop.f32.mrb[0].mxu0
      %3580 = vmatprep.mubr.f32.mxu0 0.0
      %3581 = vmatmul.mubr.f32.gmra.mrb[0].mxu0 %v3433
      %v3582 = vpop.f32.mrb[0].mxu0
      %v3583 = vadd.f32 0.0, %v3582
      %v3584 = vpop.f32.mrb[0].mxu0
      %3585 = vmatprep.mubr.f32.mxu0 0.0
      %3586 = vmatmul.mubr.f32.gmra.mrb[0].mxu0 %v3436
      %v3587 = vpop.f32.mrb[0].mxu0
      %v3588 = vadd.f32 0.0, %v3587
      %v3589 = vpop.f32.mrb[0].mxu0
      %3590 = vmatprep.mubr.f32.mxu0 0.0
      %3591 = vmatmul.mubr.f32.gmra.mrb[0].mxu0 %v3439
      %v3592 = vpop.f32.mrb[0].mxu0
      %v3593 = vadd.f32 0.0, %v3592
      %v3594 = vpop.f32.mrb[0].mxu0
      %3595 = vdwg.mxu0
      %v3596 = vadd.f32 %v3280, %v3508
      %v3597 = vadd.f32 %v3285, %v3513
      %v3598 = vadd.f32 %v3290, %v3518
      %v3599 = vadd.f32 %v3295, %v3523
      %v3600 = vadd.f32 %v3300, %v3528
      %v3601 = vadd.f32 %v3305, %v3533
      %v3602 = vadd.f32 %v3310, %v3538
      %v3603 = vadd.f32 %v3315, %v3543
      %v3604 = vadd.f32 %v3320, %v3548
      %v3605 = vadd.f32 %v3325, %v3553
      %v3606 = vadd.f32 %v3330, %v3558
      %v3607 = vadd.f32 %v3335, %v3563
      %v3608 = vadd.f32 %v3340, %v3568
      %v3609 = vadd.f32 %v3345, %v3573
      %v3610 = vadd.f32 %v3350, %v3578
      %v3611 = vadd.f32 %v3355, %v3583
      %v3612 = vadd.f32 %v3360, %v3588
      %v3613 = vadd.f32 %v3365, %v3593
      %v3614 = vld [vmem:[%s273 + $0xa2] sm:$0xff]
      %v3615 = vld [vmem:[%s273 + $0xaa] sm:$0xff]
      %v3616 = vld [vmem:[%s273 + $0xb2] sm:$0xff]
      %v3617 = vld [vmem:[%s273 + $0xba] sm:$0xff]
      %v3618 = vld [vmem:[%s273 + $0xc2] sm:$0xff]
      %v3619 = vld [vmem:[%s273 + $0xca] sm:$0xff]
      %v3620 = vld [vmem:[%s273 + $0xd2] sm:$0xff]
      %v3621 = vld [vmem:[%s273 + $0xda] sm:$0xff]
      %v3622 = vld [vmem:[%s273 + $0xe2] sm:$0xff]
      %v3623 = vld [vmem:[%s273 + $0xea] sm:$0xff]
      %v3624 = vld [vmem:[%s273 + $0xf2] sm:$0xff]
      %v3625 = vld [vmem:[%s273 + $0xfa] sm:$0xff]
      %v3626 = vld [vmem:[%s273 + $0x102] sm:$0xff]
      %v3627 = vld [vmem:[%s273 + $0x10a] sm:$0xff]
      %v3628 = vld [vmem:[%s273 + $0x112] sm:$0xff]
      %v3629 = vld [vmem:[%s273 + $0x11a] sm:$0xff]
      %v3630 = vld [vmem:[%s273 + $0x122] sm:$0xff]
      %v3631 = vld [vmem:[%s273 + $0x12a] sm:$0xff]
      %v3632 = vld [vmem:[%s1333] sm:$0xff]
      %v3634 = vsel %vm649, %v3614, 0
      %v3637 = vsel %vm649, %v3615, 0
      %v3640 = vsel %vm649, %v3616, 0
      %v3643 = vsel %vm649, %v3617, 0
      %v3646 = vsel %vm649, %v3618, 0
      %v3649 = vsel %vm649, %v3619, 0
      %v3652 = vsel %vm649, %v3620, 0
      %v3655 = vsel %vm649, %v3621, 0
      %v3658 = vsel %vm649, %v3622, 0
      %v3661 = vsel %vm649, %v3623, 0
      %v3664 = vsel %vm649, %v3624, 0
      %v3667 = vsel %vm649, %v3625, 0
      %v3670 = vsel %vm649, %v3626, 0
      %v3673 = vsel %vm649, %v3627, 0
      %v3676 = vsel %vm649, %v3628, 0
      %v3679 = vsel %vm649, %v3629, 0
      %v3682 = vsel %vm649, %v3630, 0
      %v3685 = vsel %vm649, %v3631, 0
      %3687 = vmatprep.subr.mxu0 0.0
      %3688 = vmatpush1.msra.mxu0 %v3632
      %3689 = vmatprep.subr.mxu0 0.0
      %3690 = vmatpush1.msra.mxu0 0.0
      %3691 = vmatprep.subr.mxu0 0.0
      %3692 = vmatpush1.msra.mxu0 0.0
      %3693 = vmatprep.subr.mxu0 0.0
      %3694 = vmatpush1.msra.mxu0 0.0
      %3695 = vmatprep.subr.mxu0 0.0
      %3696 = vmatpush1.msra.mxu0 0.0
      %3697 = vmatprep.subr.mxu0 0.0
      %3698 = vmatpush1.msra.mxu0 0.0
      %3699 = vmatprep.subr.mxu0 0.0
      %3700 = vmatpush1.msra.mxu0 0.0
      %3701 = vmatprep.subr.mxu0 0.0
      %3702 = vmatpush1.msra.mxu0 0.0
      %3703 = vmatprep.subr.mxu0 0.0
      %3704 = vmatpush1.msra.mxu0 0.0
      %3705 = vmatprep.subr.mxu0 0.0
      %3706 = vmatpush1.msra.mxu0 0.0
      %3707 = vmatprep.subr.mxu0 0.0
      %3708 = vmatpush1.msra.mxu0 0.0
      %3709 = vmatprep.subr.mxu0 0.0
      %3710 = vmatpush1.msra.mxu0 0.0
      %3711 = vmatprep.subr.mxu0 0.0
      %3712 = vmatpush1.msra.mxu0 0.0
      %3713 = vmatprep.subr.mxu0 0.0
      %3714 = vmatpush1.msra.mxu0 0.0
      %3715 = vmatprep.subr.mxu0 0.0
      %3716 = vmatpush1.msra.mxu0 0.0
      %3717 = vmatprep.subr.mxu0 0.0
      %3718 = vmatpush1.msra.mxu0 0.0
      %3719 = vmatprep.subr.mxu0 0.0
      %3720 = vmatpush1.msra.mxu0 0.0
      %3721 = vmatprep.subr.mxu0 0.0
      %3722 = vmatpush1.msra.mxu0 0.0
      %3723 = vmatprep.subr.mxu0 0.0
      %3724 = vmatpush1.msra.mxu0 0.0
      %3725 = vmatprep.subr.mxu0 0.0
      %3726 = vmatpush1.msra.mxu0 0.0
      %3727 = vmatprep.subr.mxu0 0.0
      %3728 = vmatpush1.msra.mxu0 0.0
      %3729 = vmatprep.subr.mxu0 0.0
      %3730 = vmatpush1.msra.mxu0 0.0
      %3731 = vmatprep.subr.mxu0 0.0
      %3732 = vmatpush1.msra.mxu0 0.0
      %3733 = vmatprep.subr.mxu0 0.0
      %3734 = vmatpush1.msra.mxu0 0.0
      %3735 = vmatprep.subr.mxu0 0.0
      %3736 = vmatpush1.msra.mxu0 0.0
      %3737 = vmatprep.subr.mxu0 0.0
      %3738 = vmatpush1.msra.mxu0 0.0
      %3739 = vmatprep.subr.mxu0 0.0
      %3740 = vmatpush1.msra.mxu0 0.0
      %3741 = vmatprep.subr.mxu0 0.0
      %3742 = vmatpush1.msra.mxu0 0.0
      %3743 = vmatprep.subr.mxu0 0.0
      %3744 = vmatpush1.msra.mxu0 0.0
      %3745 = vmatprep.subr.mxu0 0.0
      %3746 = vmatpush1.msra.mxu0 0.0
      %3747 = vmatprep.subr.mxu0 0.0
      %3748 = vmatpush1.msra.mxu0 0.0
      %3749 = vmatprep.subr.mxu0 0.0
      %3750 = vmatpush1.msra.mxu0 0.0
      %3751 = vmatprep.mubr.f32.mxu0 0.0
      %3752 = vmatmul.mubr.f32.gmra.mrb[0].mxu0 %v3634
      %v3753 = vpop.f32.mrb[0].mxu0
      %v3754 = vadd.f32 0.0, %v3753
      %v3755 = vpop.f32.mrb[0].mxu0
      %3756 = vmatprep.mubr.f32.mxu0 0.0
      %3757 = vmatmul.mubr.f32.gmra.mrb[0].mxu0 %v3637
      %v3758 = vpop.f32.mrb[0].mxu0
      %v3759 = vadd.f32 0.0, %v3758
      %v3760 = vpop.f32.mrb[0].mxu0
      %3761 = vmatprep.mubr.f32.mxu0 0.0
      %3762 = vmatmul.mubr.f32.gmra.mrb[0].mxu0 %v3640
      %v3763 = vpop.f32.mrb[0].mxu0
      %v3764 = vadd.f32 0.0, %v3763
      %v3765 = vpop.f32.mrb[0].mxu0
      %3766 = vmatprep.mubr.f32.mxu0 0.0
      %3767 = vmatmul.mubr.f32.gmra.mrb[0].mxu0 %v3643
      %v3768 = vpop.f32.mrb[0].mxu0
      %v3769 = vadd.f32 0.0, %v3768
      %v3770 = vpop.f32.mrb[0].mxu0
      %3771 = vmatprep.mubr.f32.mxu0 0.0
      %3772 = vmatmul.mubr.f32.gmra.mrb[0].mxu0 %v3646
      %v3773 = vpop.f32.mrb[0].mxu0
      %v3774 = vadd.f32 0.0, %v3773
      %v3775 = vpop.f32.mrb[0].mxu0
      %3776 = vmatprep.mubr.f32.mxu0 0.0
      %3777 = vmatmul.mubr.f32.gmra.mrb[0].mxu0 %v3649
      %v3778 = vpop.f32.mrb[0].mxu0
      %v3779 = vadd.f32 0.0, %v3778
      %v3780 = vpop.f32.mrb[0].mxu0
      %3781 = vmatprep.mubr.f32.mxu0 0.0
      %3782 = vmatmul.mubr.f32.gmra.mrb[0].mxu0 %v3652
      %v3783 = vpop.f32.mrb[0].mxu0
      %v3784 = vadd.f32 0.0, %v3783
      %v3785 = vpop.f32.mrb[0].mxu0
      %3786 = vmatprep.mubr.f32.mxu0 0.0
      %3787 = vmatmul.mubr.f32.gmra.mrb[0].mxu0 %v3655
      %v3788 = vpop.f32.mrb[0].mxu0
      %v3789 = vadd.f32 0.0, %v3788
      %v3790 = vpop.f32.mrb[0].mxu0
      %3791 = vmatprep.mubr.f32.mxu0 0.0
      %3792 = vmatmul.mubr.f32.gmra.mrb[0].mxu0 %v3658
      %v3793 = vpop.f32.mrb[0].mxu0
      %v3794 = vadd.f32 0.0, %v3793
      %v3795 = vpop.f32.mrb[0].mxu0
      %3796 = vmatprep.mubr.f32.mxu0 0.0
      %3797 = vmatmul.mubr.f32.gmra.mrb[0].mxu0 %v3661
      %v3798 = vpop.f32.mrb[0].mxu0
      %v3799 = vadd.f32 0.0, %v3798
      %v3800 = vpop.f32.mrb[0].mxu0
      %3801 = vmatprep.mubr.f32.mxu0 0.0
      %3802 = vmatmul.mubr.f32.gmra.mrb[0].mxu0 %v3664
      %v3803 = vpop.f32.mrb[0].mxu0
      %v3804 = vadd.f32 0.0, %v3803
      %v3805 = vpop.f32.mrb[0].mxu0
      %3806 = vmatprep.mubr.f32.mxu0 0.0
      %3807 = vmatmul.mubr.f32.gmra.mrb[0].mxu0 %v3667
      %v3808 = vpop.f32.mrb[0].mxu0
      %v3809 = vadd.f32 0.0, %v3808
      %v3810 = vpop.f32.mrb[0].mxu0
      %3811 = vmatprep.mubr.f32.mxu0 0.0
      %3812 = vmatmul.mubr.f32.gmra.mrb[0].mxu0 %v3670
      %v3813 = vpop.f32.mrb[0].mxu0
      %v3814 = vadd.f32 0.0, %v3813
      %v3815 = vpop.f32.mrb[0].mxu0
      %3816 = vmatprep.mubr.f32.mxu0 0.0
      %3817 = vmatmul.mubr.f32.gmra.mrb[0].mxu0 %v3673
      %v3818 = vpop.f32.mrb[0].mxu0
      %v3819 = vadd.f32 0.0, %v3818
      %v3820 = vpop.f32.mrb[0].mxu0
      %3821 = vmatprep.mubr.f32.mxu0 0.0
      %3822 = vmatmul.mubr.f32.gmra.mrb[0].mxu0 %v3676
      %v3823 = vpop.f32.mrb[0].mxu0
      %v3824 = vadd.f32 0.0, %v3823
      %v3825 = vpop.f32.mrb[0].mxu0
      %3826 = vmatprep.mubr.f32.mxu0 0.0
      %3827 = vmatmul.mubr.f32.gmra.mrb[0].mxu0 %v3679
      %v3828 = vpop.f32.mrb[0].mxu0
      %v3829 = vadd.f32 0.0, %v3828
      %v3830 = vpop.f32.mrb[0].mxu0
      %3831 = vmatprep.mubr.f32.mxu0 0.0
      %3832 = vmatmul.mubr.f32.gmra.mrb[0].mxu0 %v3682
      %v3833 = vpop.f32.mrb[0].mxu0
      %v3834 = vadd.f32 0.0, %v3833
      %v3835 = vpop.f32.mrb[0].mxu0
      %3836 = vmatprep.mubr.f32.mxu0 0.0
      %3837 = vmatmul.mubr.f32.gmra.mrb[0].mxu0 %v3685
      %v3838 = vpop.f32.mrb[0].mxu0
      %v3839 = vadd.f32 0.0, %v3838
      %v3840 = vpop.f32.mrb[0].mxu0
      %3841 = vdwg.mxu0
      %v3842 = vadd.f32 %v3596, %v3754
      %v3843 = vadd.f32 %v3597, %v3759
      %v3844 = vadd.f32 %v3598, %v3764
      %v3845 = vadd.f32 %v3599, %v3769
      %v3846 = vadd.f32 %v3600, %v3774
      %v3847 = vadd.f32 %v3601, %v3779
      %v3848 = vadd.f32 %v3602, %v3784
      %v3849 = vadd.f32 %v3603, %v3789
      %v3850 = vadd.f32 %v3604, %v3794
      %v3851 = vadd.f32 %v3605, %v3799
      %v3852 = vadd.f32 %v3606, %v3804
      %v3853 = vadd.f32 %v3607, %v3809
      %v3854 = vadd.f32 %v3608, %v3814
      %v3855 = vadd.f32 %v3609, %v3819
      %v3856 = vadd.f32 %v3610, %v3824
      %v3857 = vadd.f32 %v3611, %v3829
      %v3858 = vadd.f32 %v3612, %v3834
      %v3859 = vadd.f32 %v3613, %v3839
      %v3860 = vld [vmem:[%s273 + $0xa3] sm:$0xff]
      %v3861 = vld [vmem:[%s273 + $0xab] sm:$0xff]
      %v3862 = vld [vmem:[%s273 + $0xb3] sm:$0xff]
      %v3863 = vld [vmem:[%s273 + $0xbb] sm:$0xff]
      %v3864 = vld [vmem:[%s273 + $0xc3] sm:$0xff]
      %v3865 = vld [vmem:[%s273 + $0xcb] sm:$0xff]
      %v3866 = vld [vmem:[%s273 + $0xd3] sm:$0xff]
      %v3867 = vld [vmem:[%s273 + $0xdb] sm:$0xff]
      %v3868 = vld [vmem:[%s273 + $0xe3] sm:$0xff]
      %v3869 = vld [vmem:[%s273 + $0xeb] sm:$0xff]
      %v3870 = vld [vmem:[%s273 + $0xf3] sm:$0xff]
      %v3871 = vld [vmem:[%s273 + $0xfb] sm:$0xff]
      %v3872 = vld [vmem:[%s273 + $0x103] sm:$0xff]
      %v3873 = vld [vmem:[%s273 + $0x10b] sm:$0xff]
      %v3874 = vld [vmem:[%s273 + $0x113] sm:$0xff]
      %v3875 = vld [vmem:[%s273 + $0x11b] sm:$0xff]
      %v3876 = vld [vmem:[%s273 + $0x123] sm:$0xff]
      %v3877 = vld [vmem:[%s273 + $0x12b] sm:$0xff]
      %v3878 = vld [vmem:[%s1580] sm:$0xff]
      %v3880 = vsel %vm649, %v3860, 0
      %v3883 = vsel %vm649, %v3861, 0
      %v3886 = vsel %vm649, %v3862, 0
      %v3889 = vsel %vm649, %v3863, 0
      %v3892 = vsel %vm649, %v3864, 0
      %v3895 = vsel %vm649, %v3865, 0
      %v3898 = vsel %vm649, %v3866, 0
      %v3901 = vsel %vm649, %v3867, 0
      %v3904 = vsel %vm649, %v3868, 0
      %v3907 = vsel %vm649, %v3869, 0
      %v3910 = vsel %vm649, %v3870, 0
      %v3913 = vsel %vm649, %v3871, 0
      %v3916 = vsel %vm649, %v3872, 0
      %v3919 = vsel %vm649, %v3873, 0
      %v3922 = vsel %vm649, %v3874, 0
      %v3925 = vsel %vm649, %v3875, 0
      %v3928 = vsel %vm649, %v3876, 0
      %v3931 = vsel %vm649, %v3877, 0
      %3933 = vmatprep.subr.mxu0 0.0
      %3934 = vmatpush1.msra.mxu0 %v3878
      %3935 = vmatprep.subr.mxu0 0.0
      %3936 = vmatpush1.msra.mxu0 0.0
      %3937 = vmatprep.subr.mxu0 0.0
      %3938 = vmatpush1.msra.mxu0 0.0
      %3939 = vmatprep.subr.mxu0 0.0
      %3940 = vmatpush1.msra.mxu0 0.0
      %3941 = vmatprep.subr.mxu0 0.0
      %3942 = vmatpush1.msra.mxu0 0.0
      %3943 = vmatprep.subr.mxu0 0.0
      %3944 = vmatpush1.msra.mxu0 0.0
      %3945 = vmatprep.subr.mxu0 0.0
      %3946 = vmatpush1.msra.mxu0 0.0
      %3947 = vmatprep.subr.mxu0 0.0
      %3948 = vmatpush1.msra.mxu0 0.0
      %3949 = vmatprep.subr.mxu0 0.0
      %3950 = vmatpush1.msra.mxu0 0.0
      %3951 = vmatprep.subr.mxu0 0.0
      %3952 = vmatpush1.msra.mxu0 0.0
      %3953 = vmatprep.subr.mxu0 0.0
      %3954 = vmatpush1.msra.mxu0 0.0
      %3955 = vmatprep.subr.mxu0 0.0
      %3956 = vmatpush1.msra.mxu0 0.0
      %3957 = vmatprep.subr.mxu0 0.0
      %3958 = vmatpush1.msra.mxu0 0.0
      %3959 = vmatprep.subr.mxu0 0.0
      %3960 = vmatpush1.msra.mxu0 0.0
      %3961 = vmatprep.subr.mxu0 0.0
      %3962 = vmatpush1.msra.mxu0 0.0
      %3963 = vmatprep.subr.mxu0 0.0
      %3964 = vmatpush1.msra.mxu0 0.0
      %3965 = vmatprep.subr.mxu0 0.0
      %3966 = vmatpush1.msra.mxu0 0.0
      %3967 = vmatprep.subr.mxu0 0.0
      %3968 = vmatpush1.msra.mxu0 0.0
      %3969 = vmatprep.subr.mxu0 0.0
      %3970 = vmatpush1.msra.mxu0 0.0
      %3971 = vmatprep.subr.mxu0 0.0
      %3972 = vmatpush1.msra.mxu0 0.0
      %3973 = vmatprep.subr.mxu0 0.0
      %3974 = vmatpush1.msra.mxu0 0.0
      %3975 = vmatprep.subr.mxu0 0.0
      %3976 = vmatpush1.msra.mxu0 0.0
      %3977 = vmatprep.subr.mxu0 0.0
      %3978 = vmatpush1.msra.mxu0 0.0
      %3979 = vmatprep.subr.mxu0 0.0
      %3980 = vmatpush1.msra.mxu0 0.0
      %3981 = vmatprep.subr.mxu0 0.0
      %3982 = vmatpush1.msra.mxu0 0.0
      %3983 = vmatprep.subr.mxu0 0.0
      %3984 = vmatpush1.msra.mxu0 0.0
      %3985 = vmatprep.subr.mxu0 0.0
      %3986 = vmatpush1.msra.mxu0 0.0
      %3987 = vmatprep.subr.mxu0 0.0
      %3988 = vmatpush1.msra.mxu0 0.0
      %3989 = vmatprep.subr.mxu0 0.0
      %3990 = vmatpush1.msra.mxu0 0.0
      %3991 = vmatprep.subr.mxu0 0.0
      %3992 = vmatpush1.msra.mxu0 0.0
      %3993 = vmatprep.subr.mxu0 0.0
      %3994 = vmatpush1.msra.mxu0 0.0
      %3995 = vmatprep.subr.mxu0 0.0
      %3996 = vmatpush1.msra.mxu0 0.0
      %3997 = vmatprep.mubr.f32.mxu0 0.0
      %3998 = vmatmul.mubr.f32.gmra.mrb[0].mxu0 %v3880
      %v3999 = vpop.f32.mrb[0].mxu0
      %v4000 = vadd.f32 0.0, %v3999
      %v4001 = vpop.f32.mrb[0].mxu0
      %4002 = vmatprep.mubr.f32.mxu0 0.0
      %4003 = vmatmul.mubr.f32.gmra.mrb[0].mxu0 %v3883
      %v4004 = vpop.f32.mrb[0].mxu0
      %v4005 = vadd.f32 0.0, %v4004
      %v4006 = vpop.f32.mrb[0].mxu0
      %4007 = vmatprep.mubr.f32.mxu0 0.0
      %4008 = vmatmul.mubr.f32.gmra.mrb[0].mxu0 %v3886
      %v4009 = vpop.f32.mrb[0].mxu0
      %v4010 = vadd.f32 0.0, %v4009
      %v4011 = vpop.f32.mrb[0].mxu0
      %4012 = vmatprep.mubr.f32.mxu0 0.0
      %4013 = vmatmul.mubr.f32.gmra.mrb[0].mxu0 %v3889
      %v4014 = vpop.f32.mrb[0].mxu0
      %v4015 = vadd.f32 0.0, %v4014
      %v4016 = vpop.f32.mrb[0].mxu0
      %4017 = vmatprep.mubr.f32.mxu0 0.0
      %4018 = vmatmul.mubr.f32.gmra.mrb[0].mxu0 %v3892
      %v4019 = vpop.f32.mrb[0].mxu0
      %v4020 = vadd.f32 0.0, %v4019
      %v4021 = vpop.f32.mrb[0].mxu0
      %4022 = vmatprep.mubr.f32.mxu0 0.0
      %4023 = vmatmul.mubr.f32.gmra.mrb[0].mxu0 %v3895
      %v4024 = vpop.f32.mrb[0].mxu0
      %v4025 = vadd.f32 0.0, %v4024
      %v4026 = vpop.f32.mrb[0].mxu0
      %4027 = vmatprep.mubr.f32.mxu0 0.0
      %4028 = vmatmul.mubr.f32.gmra.mrb[0].mxu0 %v3898
      %v4029 = vpop.f32.mrb[0].mxu0
      %v4030 = vadd.f32 0.0, %v4029
      %v4031 = vpop.f32.mrb[0].mxu0
      %4032 = vmatprep.mubr.f32.mxu0 0.0
      %4033 = vmatmul.mubr.f32.gmra.mrb[0].mxu0 %v3901
      %v4034 = vpop.f32.mrb[0].mxu0
      %v4035 = vadd.f32 0.0, %v4034
      %v4036 = vpop.f32.mrb[0].mxu0
      %4037 = vmatprep.mubr.f32.mxu0 0.0
      %4038 = vmatmul.mubr.f32.gmra.mrb[0].mxu0 %v3904
      %v4039 = vpop.f32.mrb[0].mxu0
      %v4040 = vadd.f32 0.0, %v4039
      %v4041 = vpop.f32.mrb[0].mxu0
      %4042 = vmatprep.mubr.f32.mxu0 0.0
      %4043 = vmatmul.mubr.f32.gmra.mrb[0].mxu0 %v3907
      %v4044 = vpop.f32.mrb[0].mxu0
      %v4045 = vadd.f32 0.0, %v4044
      %v4046 = vpop.f32.mrb[0].mxu0
      %4047 = vmatprep.mubr.f32.mxu0 0.0
      %4048 = vmatmul.mubr.f32.gmra.mrb[0].mxu0 %v3910
      %v4049 = vpop.f32.mrb[0].mxu0
      %v4050 = vadd.f32 0.0, %v4049
      %v4051 = vpop.f32.mrb[0].mxu0
      %4052 = vmatprep.mubr.f32.mxu0 0.0
      %4053 = vmatmul.mubr.f32.gmra.mrb[0].mxu0 %v3913
      %v4054 = vpop.f32.mrb[0].mxu0
      %v4055 = vadd.f32 0.0, %v4054
      %v4056 = vpop.f32.mrb[0].mxu0
      %4057 = vmatprep.mubr.f32.mxu0 0.0
      %4058 = vmatmul.mubr.f32.gmra.mrb[0].mxu0 %v3916
      %v4059 = vpop.f32.mrb[0].mxu0
      %v4060 = vadd.f32 0.0, %v4059
      %v4061 = vpop.f32.mrb[0].mxu0
      %4062 = vmatprep.mubr.f32.mxu0 0.0
      %4063 = vmatmul.mubr.f32.gmra.mrb[0].mxu0 %v3919
      %v4064 = vpop.f32.mrb[0].mxu0
      %v4065 = vadd.f32 0.0, %v4064
      %v4066 = vpop.f32.mrb[0].mxu0
      %4067 = vmatprep.mubr.f32.mxu0 0.0
      %4068 = vmatmul.mubr.f32.gmra.mrb[0].mxu0 %v3922
      %v4069 = vpop.f32.mrb[0].mxu0
      %v4070 = vadd.f32 0.0, %v4069
      %v4071 = vpop.f32.mrb[0].mxu0
      %4072 = vmatprep.mubr.f32.mxu0 0.0
      %4073 = vmatmul.mubr.f32.gmra.mrb[0].mxu0 %v3925
      %v4074 = vpop.f32.mrb[0].mxu0
      %v4075 = vadd.f32 0.0, %v4074
      %v4076 = vpop.f32.mrb[0].mxu0
      %4077 = vmatprep.mubr.f32.mxu0 0.0
      %4078 = vmatmul.mubr.f32.gmra.mrb[0].mxu0 %v3928
      %v4079 = vpop.f32.mrb[0].mxu0
      %v4080 = vadd.f32 0.0, %v4079
      %v4081 = vpop.f32.mrb[0].mxu0
      %4082 = vmatprep.mubr.f32.mxu0 0.0
      %4083 = vmatmul.mubr.f32.gmra.mrb[0].mxu0 %v3931
      %v4084 = vpop.f32.mrb[0].mxu0
      %v4085 = vadd.f32 0.0, %v4084
      %v4086 = vpop.f32.mrb[0].mxu0
      %4087 = vdwg.mxu0
      %v4088 = vadd.f32 %v3842, %v4000
      %v4089 = vadd.f32 %v3843, %v4005
      %v4090 = vadd.f32 %v3844, %v4010
      %v4091 = vadd.f32 %v3845, %v4015
      %v4092 = vadd.f32 %v3846, %v4020
      %v4093 = vadd.f32 %v3847, %v4025
      %v4094 = vadd.f32 %v3848, %v4030
      %v4095 = vadd.f32 %v3849, %v4035
      %v4096 = vadd.f32 %v3850, %v4040
      %v4097 = vadd.f32 %v3851, %v4045
      %v4098 = vadd.f32 %v3852, %v4050
      %v4099 = vadd.f32 %v3853, %v4055
      %v4100 = vadd.f32 %v3854, %v4060
      %v4101 = vadd.f32 %v3855, %v4065
      %v4102 = vadd.f32 %v3856, %v4070
      %v4103 = vadd.f32 %v3857, %v4075
      %v4104 = vadd.f32 %v3858, %v4080
      %v4105 = vadd.f32 %v3859, %v4085
      %v4106 = vld [vmem:[%s273 + $0xa4] sm:$0xff]
      %v4107 = vld [vmem:[%s273 + $0xac] sm:$0xff]
      %v4108 = vld [vmem:[%s273 + $0xb4] sm:$0xff]
      %v4109 = vld [vmem:[%s273 + $0xbc] sm:$0xff]
      %v4110 = vld [vmem:[%s273 + $0xc4] sm:$0xff]
      %v4111 = vld [vmem:[%s273 + $0xcc] sm:$0xff]
      %v4112 = vld [vmem:[%s273 + $0xd4] sm:$0xff]
      %v4113 = vld [vmem:[%s273 + $0xdc] sm:$0xff]
      %v4114 = vld [vmem:[%s273 + $0xe4] sm:$0xff]
      %v4115 = vld [vmem:[%s273 + $0xec] sm:$0xff]
      %v4116 = vld [vmem:[%s273 + $0xf4] sm:$0xff]
      %v4117 = vld [vmem:[%s273 + $0xfc] sm:$0xff]
      %v4118 = vld [vmem:[%s273 + $0x104] sm:$0xff]
      %v4119 = vld [vmem:[%s273 + $0x10c] sm:$0xff]
      %v4120 = vld [vmem:[%s273 + $0x114] sm:$0xff]
      %v4121 = vld [vmem:[%s273 + $0x11c] sm:$0xff]
      %v4122 = vld [vmem:[%s273 + $0x124] sm:$0xff]
      %v4123 = vld [vmem:[%s273 + $0x12c] sm:$0xff]
      %v4124 = vld [vmem:[%s1827] sm:$0xff]
      %v4126 = vsel %vm649, %v4106, 0
      %v4129 = vsel %vm649, %v4107, 0
      %v4132 = vsel %vm649, %v4108, 0
      %v4135 = vsel %vm649, %v4109, 0
      %v4138 = vsel %vm649, %v4110, 0
      %v4141 = vsel %vm649, %v4111, 0
      %v4144 = vsel %vm649, %v4112, 0
      %v4147 = vsel %vm649, %v4113, 0
      %v4150 = vsel %vm649, %v4114, 0
      %v4153 = vsel %vm649, %v4115, 0
      %v4156 = vsel %vm649, %v4116, 0
      %v4159 = vsel %vm649, %v4117, 0
      %v4162 = vsel %vm649, %v4118, 0
      %v4165 = vsel %vm649, %v4119, 0
      %v4168 = vsel %vm649, %v4120, 0
      %v4171 = vsel %vm649, %v4121, 0
      %v4174 = vsel %vm649, %v4122, 0
      %v4177 = vsel %vm649, %v4123, 0
      %4179 = vmatprep.subr.mxu0 0.0
      %4180 = vmatpush1.msra.mxu0 %v4124
      %4181 = vmatprep.subr.mxu0 0.0
      %4182 = vmatpush1.msra.mxu0 0.0
      %4183 = vmatprep.subr.mxu0 0.0
      %4184 = vmatpush1.msra.mxu0 0.0
      %4185 = vmatprep.subr.mxu0 0.0
      %4186 = vmatpush1.msra.mxu0 0.0
      %4187 = vmatprep.subr.mxu0 0.0
      %4188 = vmatpush1.msra.mxu0 0.0
      %4189 = vmatprep.subr.mxu0 0.0
      %4190 = vmatpush1.msra.mxu0 0.0
      %4191 = vmatprep.subr.mxu0 0.0
      %4192 = vmatpush1.msra.mxu0 0.0
      %4193 = vmatprep.subr.mxu0 0.0
      %4194 = vmatpush1.msra.mxu0 0.0
      %4195 = vmatprep.subr.mxu0 0.0
      %4196 = vmatpush1.msra.mxu0 0.0
      %4197 = vmatprep.subr.mxu0 0.0
      %4198 = vmatpush1.msra.mxu0 0.0
      %4199 = vmatprep.subr.mxu0 0.0
      %4200 = vmatpush1.msra.mxu0 0.0
      %4201 = vmatprep.subr.mxu0 0.0
      %4202 = vmatpush1.msra.mxu0 0.0
      %4203 = vmatprep.subr.mxu0 0.0
      %4204 = vmatpush1.msra.mxu0 0.0
      %4205 = vmatprep.subr.mxu0 0.0
      %4206 = vmatpush1.msra.mxu0 0.0
      %4207 = vmatprep.subr.mxu0 0.0
      %4208 = vmatpush1.msra.mxu0 0.0
      %4209 = vmatprep.subr.mxu0 0.0
      %4210 = vmatpush1.msra.mxu0 0.0
      %4211 = vmatprep.subr.mxu0 0.0
      %4212 = vmatpush1.msra.mxu0 0.0
      %4213 = vmatprep.subr.mxu0 0.0
      %4214 = vmatpush1.msra.mxu0 0.0
      %4215 = vmatprep.subr.mxu0 0.0
      %4216 = vmatpush1.msra.mxu0 0.0
      %4217 = vmatprep.subr.mxu0 0.0
      %4218 = vmatpush1.msra.mxu0 0.0
      %4219 = vmatprep.subr.mxu0 0.0
      %4220 = vmatpush1.msra.mxu0 0.0
      %4221 = vmatprep.subr.mxu0 0.0
      %4222 = vmatpush1.msra.mxu0 0.0
      %4223 = vmatprep.subr.mxu0 0.0
      %4224 = vmatpush1.msra.mxu0 0.0
      %4225 = vmatprep.subr.mxu0 0.0
      %4226 = vmatpush1.msra.mxu0 0.0
      %4227 = vmatprep.subr.mxu0 0.0
      %4228 = vmatpush1.msra.mxu0 0.0
      %4229 = vmatprep.subr.mxu0 0.0
      %4230 = vmatpush1.msra.mxu0 0.0
      %4231 = vmatprep.subr.mxu0 0.0
      %4232 = vmatpush1.msra.mxu0 0.0
      %4233 = vmatprep.subr.mxu0 0.0
      %4234 = vmatpush1.msra.mxu0 0.0
      %4235 = vmatprep.subr.mxu0 0.0
      %4236 = vmatpush1.msra.mxu0 0.0
      %4237 = vmatprep.subr.mxu0 0.0
      %4238 = vmatpush1.msra.mxu0 0.0
      %4239 = vmatprep.subr.mxu0 0.0
      %4240 = vmatpush1.msra.mxu0 0.0
      %4241 = vmatprep.subr.mxu0 0.0
      %4242 = vmatpush1.msra.mxu0 0.0
      %4243 = vmatprep.mubr.f32.mxu0 0.0
      %4244 = vmatmul.mubr.f32.gmra.mrb[0].mxu0 %v4126
      %v4245 = vpop.f32.mrb[0].mxu0
      %v4246 = vadd.f32 0.0, %v4245
      %v4247 = vpop.f32.mrb[0].mxu0
      %4248 = vmatprep.mubr.f32.mxu0 0.0
      %4249 = vmatmul.mubr.f32.gmra.mrb[0].mxu0 %v4129
      %v4250 = vpop.f32.mrb[0].mxu0
      %v4251 = vadd.f32 0.0, %v4250
      %v4252 = vpop.f32.mrb[0].mxu0
      %4253 = vmatprep.mubr.f32.mxu0 0.0
      %4254 = vmatmul.mubr.f32.gmra.mrb[0].mxu0 %v4132
      %v4255 = vpop.f32.mrb[0].mxu0
      %v4256 = vadd.f32 0.0, %v4255
      %v4257 = vpop.f32.mrb[0].mxu0
      %4258 = vmatprep.mubr.f32.mxu0 0.0
      %4259 = vmatmul.mubr.f32.gmra.mrb[0].mxu0 %v4135
      %v4260 = vpop.f32.mrb[0].mxu0
      %v4261 = vadd.f32 0.0, %v4260
      %v4262 = vpop.f32.mrb[0].mxu0
      %4263 = vmatprep.mubr.f32.mxu0 0.0
      %4264 = vmatmul.mubr.f32.gmra.mrb[0].mxu0 %v4138
      %v4265 = vpop.f32.mrb[0].mxu0
      %v4266 = vadd.f32 0.0, %v4265
      %v4267 = vpop.f32.mrb[0].mxu0
      %4268 = vmatprep.mubr.f32.mxu0 0.0
      %4269 = vmatmul.mubr.f32.gmra.mrb[0].mxu0 %v4141
      %v4270 = vpop.f32.mrb[0].mxu0
      %v4271 = vadd.f32 0.0, %v4270
      %v4272 = vpop.f32.mrb[0].mxu0
      %4273 = vmatprep.mubr.f32.mxu0 0.0
      %4274 = vmatmul.mubr.f32.gmra.mrb[0].mxu0 %v4144
      %v4275 = vpop.f32.mrb[0].mxu0
      %v4276 = vadd.f32 0.0, %v4275
      %v4277 = vpop.f32.mrb[0].mxu0
      %4278 = vmatprep.mubr.f32.mxu0 0.0
      %4279 = vmatmul.mubr.f32.gmra.mrb[0].mxu0 %v4147
      %v4280 = vpop.f32.mrb[0].mxu0
      %v4281 = vadd.f32 0.0, %v4280
      %v4282 = vpop.f32.mrb[0].mxu0
      %4283 = vmatprep.mubr.f32.mxu0 0.0
      %4284 = vmatmul.mubr.f32.gmra.mrb[0].mxu0 %v4150
      %v4285 = vpop.f32.mrb[0].mxu0
      %v4286 = vadd.f32 0.0, %v4285
      %v4287 = vpop.f32.mrb[0].mxu0
      %4288 = vmatprep.mubr.f32.mxu0 0.0
      %4289 = vmatmul.mubr.f32.gmra.mrb[0].mxu0 %v4153
      %v4290 = vpop.f32.mrb[0].mxu0
      %v4291 = vadd.f32 0.0, %v4290
      %v4292 = vpop.f32.mrb[0].mxu0
      %4293 = vmatprep.mubr.f32.mxu0 0.0
      %4294 = vmatmul.mubr.f32.gmra.mrb[0].mxu0 %v4156
      %v4295 = vpop.f32.mrb[0].mxu0
      %v4296 = vadd.f32 0.0, %v4295
      %v4297 = vpop.f32.mrb[0].mxu0
      %4298 = vmatprep.mubr.f32.mxu0 0.0
      %4299 = vmatmul.mubr.f32.gmra.mrb[0].mxu0 %v4159
      %v4300 = vpop.f32.mrb[0].mxu0
      %v4301 = vadd.f32 0.0, %v4300
      %v4302 = vpop.f32.mrb[0].mxu0
      %4303 = vmatprep.mubr.f32.mxu0 0.0
      %4304 = vmatmul.mubr.f32.gmra.mrb[0].mxu0 %v4162
      %v4305 = vpop.f32.mrb[0].mxu0
      %v4306 = vadd.f32 0.0, %v4305
      %v4307 = vpop.f32.mrb[0].mxu0
      %4308 = vmatprep.mubr.f32.mxu0 0.0
      %4309 = vmatmul.mubr.f32.gmra.mrb[0].mxu0 %v4165
      %v4310 = vpop.f32.mrb[0].mxu0
      %v4311 = vadd.f32 0.0, %v4310
      %v4312 = vpop.f32.mrb[0].mxu0
      %4313 = vmatprep.mubr.f32.mxu0 0.0
      %4314 = vmatmul.mubr.f32.gmra.mrb[0].mxu0 %v4168
      %v4315 = vpop.f32.mrb[0].mxu0
      %v4316 = vadd.f32 0.0, %v4315
      %v4317 = vpop.f32.mrb[0].mxu0
      %4318 = vmatprep.mubr.f32.mxu0 0.0
      %4319 = vmatmul.mubr.f32.gmra.mrb[0].mxu0 %v4171
      %v4320 = vpop.f32.mrb[0].mxu0
      %v4321 = vadd.f32 0.0, %v4320
      %v4322 = vpop.f32.mrb[0].mxu0
      %4323 = vmatprep.mubr.f32.mxu0 0.0
      %4324 = vmatmul.mubr.f32.gmra.mrb[0].mxu0 %v4174
      %v4325 = vpop.f32.mrb[0].mxu0
      %v4326 = vadd.f32 0.0, %v4325
      %v4327 = vpop.f32.mrb[0].mxu0
      %4328 = vmatprep.mubr.f32.mxu0 0.0
      %4329 = vmatmul.mubr.f32.gmra.mrb[0].mxu0 %v4177
      %v4330 = vpop.f32.mrb[0].mxu0
      %v4331 = vadd.f32 0.0, %v4330
      %v4332 = vpop.f32.mrb[0].mxu0
      %4333 = vdwg.mxu0
      %v4334 = vadd.f32 %v4088, %v4246
      %v4335 = vadd.f32 %v4089, %v4251
      %v4336 = vadd.f32 %v4090, %v4256
      %v4337 = vadd.f32 %v4091, %v4261
      %v4338 = vadd.f32 %v4092, %v4266
      %v4339 = vadd.f32 %v4093, %v4271
      %v4340 = vadd.f32 %v4094, %v4276
      %v4341 = vadd.f32 %v4095, %v4281
      %v4342 = vadd.f32 %v4096, %v4286
      %v4343 = vadd.f32 %v4097, %v4291
      %v4344 = vadd.f32 %v4098, %v4296
      %v4345 = vadd.f32 %v4099, %v4301
      %v4346 = vadd.f32 %v4100, %v4306
      %v4347 = vadd.f32 %v4101, %v4311
      %v4348 = vadd.f32 %v4102, %v4316
      %v4349 = vadd.f32 %v4103, %v4321
      %v4350 = vadd.f32 %v4104, %v4326
      %v4351 = vadd.f32 %v4105, %v4331
      %v4352 = vld [vmem:[%s273 + $0xb4] sm:$0xff]
      %v4353 = vld [vmem:[%s273 + $0xbc] sm:$0xff]
      %v4354 = vld [vmem:[%s273 + $0xc4] sm:$0xff]
      %v4355 = vld [vmem:[%s273 + $0xcc] sm:$0xff]
      %v4356 = vld [vmem:[%s273 + $0xd4] sm:$0xff]
      %v4357 = vld [vmem:[%s273 + $0xdc] sm:$0xff]
      %v4358 = vld [vmem:[%s273 + $0xe4] sm:$0xff]
      %v4359 = vld [vmem:[%s273 + $0xec] sm:$0xff]
      %v4360 = vld [vmem:[%s273 + $0xf4] sm:$0xff]
      %v4361 = vld [vmem:[%s273 + $0xfc] sm:$0xff]
      %v4362 = vld [vmem:[%s273 + $0x104] sm:$0xff]
      %v4363 = vld [vmem:[%s273 + $0x10c] sm:$0xff]
      %v4364 = vld [vmem:[%s273 + $0x114] sm:$0xff]
      %v4365 = vld [vmem:[%s273 + $0x11c] sm:$0xff]
      %v4366 = vld [vmem:[%s273 + $0x124] sm:$0xff]
      %v4367 = vld [vmem:[%s273 + $0x12c] sm:$0xff]
      %v4368 = vld [vmem:[%s273 + $0x134] sm:$0xff]
      %v4369 = vld [vmem:[%s273 + $0x13c] sm:$0xff]
      %v4370 = vld [vmem:[%s2074] sm:$0xff]
      %v4372 = vsel %vm649, %v4352, 0
      %v4375 = vsel %vm649, %v4353, 0
      %v4378 = vsel %vm649, %v4354, 0
      %v4381 = vsel %vm649, %v4355, 0
      %v4384 = vsel %vm649, %v4356, 0
      %v4387 = vsel %vm649, %v4357, 0
      %v4390 = vsel %vm649, %v4358, 0
      %v4393 = vsel %vm649, %v4359, 0
      %v4396 = vsel %vm649, %v4360, 0
      %v4399 = vsel %vm649, %v4361, 0
      %v4402 = vsel %vm649, %v4362, 0
      %v4405 = vsel %vm649, %v4363, 0
      %v4408 = vsel %vm649, %v4364, 0
      %v4411 = vsel %vm649, %v4365, 0
      %v4414 = vsel %vm649, %v4366, 0
      %v4417 = vsel %vm649, %v4367, 0
      %v4420 = vsel %vm649, %v4368, 0
      %v4423 = vsel %vm649, %v4369, 0
      %4425 = vmatprep.subr.mxu0 0.0
      %4426 = vmatpush1.msra.mxu0 %v4370
      %4427 = vmatprep.subr.mxu0 0.0
      %4428 = vmatpush1.msra.mxu0 0.0
      %4429 = vmatprep.subr.mxu0 0.0
      %4430 = vmatpush1.msra.mxu0 0.0
      %4431 = vmatprep.subr.mxu0 0.0
      %4432 = vmatpush1.msra.mxu0 0.0
      %4433 = vmatprep.subr.mxu0 0.0
      %4434 = vmatpush1.msra.mxu0 0.0
      %4435 = vmatprep.subr.mxu0 0.0
      %4436 = vmatpush1.msra.mxu0 0.0
      %4437 = vmatprep.subr.mxu0 0.0
      %4438 = vmatpush1.msra.mxu0 0.0
      %4439 = vmatprep.subr.mxu0 0.0
      %4440 = vmatpush1.msra.mxu0 0.0
      %4441 = vmatprep.subr.mxu0 0.0
      %4442 = vmatpush1.msra.mxu0 0.0
      %4443 = vmatprep.subr.mxu0 0.0
      %4444 = vmatpush1.msra.mxu0 0.0
      %4445 = vmatprep.subr.mxu0 0.0
      %4446 = vmatpush1.msra.mxu0 0.0
      %4447 = vmatprep.subr.mxu0 0.0
      %4448 = vmatpush1.msra.mxu0 0.0
      %4449 = vmatprep.subr.mxu0 0.0
      %4450 = vmatpush1.msra.mxu0 0.0
      %4451 = vmatprep.subr.mxu0 0.0
      %4452 = vmatpush1.msra.mxu0 0.0
      %4453 = vmatprep.subr.mxu0 0.0
      %4454 = vmatpush1.msra.mxu0 0.0
      %4455 = vmatprep.subr.mxu0 0.0
      %4456 = vmatpush1.msra.mxu0 0.0
      %4457 = vmatprep.subr.mxu0 0.0
      %4458 = vmatpush1.msra.mxu0 0.0
      %4459 = vmatprep.subr.mxu0 0.0
      %4460 = vmatpush1.msra.mxu0 0.0
      %4461 = vmatprep.subr.mxu0 0.0
      %4462 = vmatpush1.msra.mxu0 0.0
      %4463 = vmatprep.subr.mxu0 0.0
      %4464 = vmatpush1.msra.mxu0 0.0
      %4465 = vmatprep.subr.mxu0 0.0
      %4466 = vmatpush1.msra.mxu0 0.0
      %4467 = vmatprep.subr.mxu0 0.0
      %4468 = vmatpush1.msra.mxu0 0.0
      %4469 = vmatprep.subr.mxu0 0.0
      %4470 = vmatpush1.msra.mxu0 0.0
      %4471 = vmatprep.subr.mxu0 0.0
      %4472 = vmatpush1.msra.mxu0 0.0
      %4473 = vmatprep.subr.mxu0 0.0
      %4474 = vmatpush1.msra.mxu0 0.0
      %4475 = vmatprep.subr.mxu0 0.0
      %4476 = vmatpush1.msra.mxu0 0.0
      %4477 = vmatprep.subr.mxu0 0.0
      %4478 = vmatpush1.msra.mxu0 0.0
      %4479 = vmatprep.subr.mxu0 0.0
      %4480 = vmatpush1.msra.mxu0 0.0
      %4481 = vmatprep.subr.mxu0 0.0
      %4482 = vmatpush1.msra.mxu0 0.0
      %4483 = vmatprep.subr.mxu0 0.0
      %4484 = vmatpush1.msra.mxu0 0.0
      %4485 = vmatprep.subr.mxu0 0.0
      %4486 = vmatpush1.msra.mxu0 0.0
      %4487 = vmatprep.subr.mxu0 0.0
      %4488 = vmatpush1.msra.mxu0 0.0
      %4489 = vmatprep.mubr.f32.mxu0 0.0
      %4490 = vmatmul.mubr.f32.gmra.mrb[0].mxu0 %v4372
      %v4491 = vpop.f32.mrb[0].mxu0
      %v4492 = vadd.f32 0.0, %v4491
      %v4493 = vpop.f32.mrb[0].mxu0
      %4494 = vmatprep.mubr.f32.mxu0 0.0
      %4495 = vmatmul.mubr.f32.gmra.mrb[0].mxu0 %v4375
      %v4496 = vpop.f32.mrb[0].mxu0
      %v4497 = vadd.f32 0.0, %v4496
      %v4498 = vpop.f32.mrb[0].mxu0
      %4499 = vmatprep.mubr.f32.mxu0 0.0
      %4500 = vmatmul.mubr.f32.gmra.mrb[0].mxu0 %v4378
      %v4501 = vpop.f32.mrb[0].mxu0
      %v4502 = vadd.f32 0.0, %v4501
      %v4503 = vpop.f32.mrb[0].mxu0
      %4504 = vmatprep.mubr.f32.mxu0 0.0
      %4505 = vmatmul.mubr.f32.gmra.mrb[0].mxu0 %v4381
      %v4506 = vpop.f32.mrb[0].mxu0
      %v4507 = vadd.f32 0.0, %v4506
      %v4508 = vpop.f32.mrb[0].mxu0
      %4509 = vmatprep.mubr.f32.mxu0 0.0
      %4510 = vmatmul.mubr.f32.gmra.mrb[0].mxu0 %v4384
      %v4511 = vpop.f32.mrb[0].mxu0
      %v4512 = vadd.f32 0.0, %v4511
      %v4513 = vpop.f32.mrb[0].mxu0
      %4514 = vmatprep.mubr.f32.mxu0 0.0
      %4515 = vmatmul.mubr.f32.gmra.mrb[0].mxu0 %v4387
      %v4516 = vpop.f32.mrb[0].mxu0
      %v4517 = vadd.f32 0.0, %v4516
      %v4518 = vpop.f32.mrb[0].mxu0
      %4519 = vmatprep.mubr.f32.mxu0 0.0
      %4520 = vmatmul.mubr.f32.gmra.mrb[0].mxu0 %v4390
      %v4521 = vpop.f32.mrb[0].mxu0
      %v4522 = vadd.f32 0.0, %v4521
      %v4523 = vpop.f32.mrb[0].mxu0
      %4524 = vmatprep.mubr.f32.mxu0 0.0
      %4525 = vmatmul.mubr.f32.gmra.mrb[0].mxu0 %v4393
      %v4526 = vpop.f32.mrb[0].mxu0
      %v4527 = vadd.f32 0.0, %v4526
      %v4528 = vpop.f32.mrb[0].mxu0
      %4529 = vmatprep.mubr.f32.mxu0 0.0
      %4530 = vmatmul.mubr.f32.gmra.mrb[0].mxu0 %v4396
      %v4531 = vpop.f32.mrb[0].mxu0
      %v4532 = vadd.f32 0.0, %v4531
      %v4533 = vpop.f32.mrb[0].mxu0
      %4534 = vmatprep.mubr.f32.mxu0 0.0
      %4535 = vmatmul.mubr.f32.gmra.mrb[0].mxu0 %v4399
      %v4536 = vpop.f32.mrb[0].mxu0
      %v4537 = vadd.f32 0.0, %v4536
      %v4538 = vpop.f32.mrb[0].mxu0
      %4539 = vmatprep.mubr.f32.mxu0 0.0
      %4540 = vmatmul.mubr.f32.gmra.mrb[0].mxu0 %v4402
      %v4541 = vpop.f32.mrb[0].mxu0
      %v4542 = vadd.f32 0.0, %v4541
      %v4543 = vpop.f32.mrb[0].mxu0
      %4544 = vmatprep.mubr.f32.mxu0 0.0
      %4545 = vmatmul.mubr.f32.gmra.mrb[0].mxu0 %v4405
      %v4546 = vpop.f32.mrb[0].mxu0
      %v4547 = vadd.f32 0.0, %v4546
      %v4548 = vpop.f32.mrb[0].mxu0
      %4549 = vmatprep.mubr.f32.mxu0 0.0
      %4550 = vmatmul.mubr.f32.gmra.mrb[0].mxu0 %v4408
      %v4551 = vpop.f32.mrb[0].mxu0
      %v4552 = vadd.f32 0.0, %v4551
      %v4553 = vpop.f32.mrb[0].mxu0
      %4554 = vmatprep.mubr.f32.mxu0 0.0
      %4555 = vmatmul.mubr.f32.gmra.mrb[0].mxu0 %v4411
      %v4556 = vpop.f32.mrb[0].mxu0
      %v4557 = vadd.f32 0.0, %v4556
      %v4558 = vpop.f32.mrb[0].mxu0
      %4559 = vmatprep.mubr.f32.mxu0 0.0
      %4560 = vmatmul.mubr.f32.gmra.mrb[0].mxu0 %v4414
      %v4561 = vpop.f32.mrb[0].mxu0
      %v4562 = vadd.f32 0.0, %v4561
      %v4563 = vpop.f32.mrb[0].mxu0
      %4564 = vmatprep.mubr.f32.mxu0 0.0
      %4565 = vmatmul.mubr.f32.gmra.mrb[0].mxu0 %v4417
      %v4566 = vpop.f32.mrb[0].mxu0
      %v4567 = vadd.f32 0.0, %v4566
      %v4568 = vpop.f32.mrb[0].mxu0
      %4569 = vmatprep.mubr.f32.mxu0 0.0
      %4570 = vmatmul.mubr.f32.gmra.mrb[0].mxu0 %v4420
      %v4571 = vpop.f32.mrb[0].mxu0
      %v4572 = vadd.f32 0.0, %v4571
      %v4573 = vpop.f32.mrb[0].mxu0
      %4574 = vmatprep.mubr.f32.mxu0 0.0
      %4575 = vmatmul.mubr.f32.gmra.mrb[0].mxu0 %v4423
      %v4576 = vpop.f32.mrb[0].mxu0
      %v4577 = vadd.f32 0.0, %v4576
      %v4578 = vpop.f32.mrb[0].mxu0
      %4579 = vdwg.mxu0
      %v4580 = vadd.f32 %v4334, %v4492
      %v4581 = vadd.f32 %v4335, %v4497
      %v4582 = vadd.f32 %v4336, %v4502
      %v4583 = vadd.f32 %v4337, %v4507
      %v4584 = vadd.f32 %v4338, %v4512
      %v4585 = vadd.f32 %v4339, %v4517
      %v4586 = vadd.f32 %v4340, %v4522
      %v4587 = vadd.f32 %v4341, %v4527
      %v4588 = vadd.f32 %v4342, %v4532
      %v4589 = vadd.f32 %v4343, %v4537
      %v4590 = vadd.f32 %v4344, %v4542
      %v4591 = vadd.f32 %v4345, %v4547
      %v4592 = vadd.f32 %v4346, %v4552
      %v4593 = vadd.f32 %v4347, %v4557
      %v4594 = vadd.f32 %v4348, %v4562
      %v4595 = vadd.f32 %v4349, %v4567
      %v4596 = vadd.f32 %v4350, %v4572
      %v4597 = vadd.f32 %v4351, %v4577
      %v4598 = vld [vmem:[%s273 + $0xb5] sm:$0xff]
      %v4599 = vld [vmem:[%s273 + $0xbd] sm:$0xff]
      %v4600 = vld [vmem:[%s273 + $0xc5] sm:$0xff]
      %v4601 = vld [vmem:[%s273 + $0xcd] sm:$0xff]
      %v4602 = vld [vmem:[%s273 + $0xd5] sm:$0xff]
      %v4603 = vld [vmem:[%s273 + $0xdd] sm:$0xff]
      %v4604 = vld [vmem:[%s273 + $0xe5] sm:$0xff]
      %v4605 = vld [vmem:[%s273 + $0xed] sm:$0xff]
      %v4606 = vld [vmem:[%s273 + $0xf5] sm:$0xff]
      %v4607 = vld [vmem:[%s273 + $0xfd] sm:$0xff]
      %v4608 = vld [vmem:[%s273 + $0x105] sm:$0xff]
      %v4609 = vld [vmem:[%s273 + $0x10d] sm:$0xff]
      %v4610 = vld [vmem:[%s273 + $0x115] sm:$0xff]
      %v4611 = vld [vmem:[%s273 + $0x11d] sm:$0xff]
      %v4612 = vld [vmem:[%s273 + $0x125] sm:$0xff]
      %v4613 = vld [vmem:[%s273 + $0x12d] sm:$0xff]
      %v4614 = vld [vmem:[%s273 + $0x135] sm:$0xff]
      %v4615 = vld [vmem:[%s273 + $0x13d] sm:$0xff]
      %v4616 = vld [vmem:[%s2321] sm:$0xff]
      %v4618 = vsel %vm649, %v4598, 0
      %v4621 = vsel %vm649, %v4599, 0
      %v4624 = vsel %vm649, %v4600, 0
      %v4627 = vsel %vm649, %v4601, 0
      %v4630 = vsel %vm649, %v4602, 0
      %v4633 = vsel %vm649, %v4603, 0
      %v4636 = vsel %vm649, %v4604, 0
      %v4639 = vsel %vm649, %v4605, 0
      %v4642 = vsel %vm649, %v4606, 0
      %v4645 = vsel %vm649, %v4607, 0
      %v4648 = vsel %vm649, %v4608, 0
      %v4651 = vsel %vm649, %v4609, 0
      %v4654 = vsel %vm649, %v4610, 0
      %v4657 = vsel %vm649, %v4611, 0
      %v4660 = vsel %vm649, %v4612, 0
      %v4663 = vsel %vm649, %v4613, 0
      %v4666 = vsel %vm649, %v4614, 0
      %v4669 = vsel %vm649, %v4615, 0
      %4671 = vmatprep.subr.mxu0 0.0
      %4672 = vmatpush1.msra.mxu0 %v4616
      %4673 = vmatprep.subr.mxu0 0.0
      %4674 = vmatpush1.msra.mxu0 0.0
      %4675 = vmatprep.subr.mxu0 0.0
      %4676 = vmatpush1.msra.mxu0 0.0
      %4677 = vmatprep.subr.mxu0 0.0
      %4678 = vmatpush1.msra.mxu0 0.0
      %4679 = vmatprep.subr.mxu0 0.0
      %4680 = vmatpush1.msra.mxu0 0.0
      %4681 = vmatprep.subr.mxu0 0.0
      %4682 = vmatpush1.msra.mxu0 0.0
      %4683 = vmatprep.subr.mxu0 0.0
      %4684 = vmatpush1.msra.mxu0 0.0
      %4685 = vmatprep.subr.mxu0 0.0
      %4686 = vmatpush1.msra.mxu0 0.0
      %4687 = vmatprep.subr.mxu0 0.0
      %4688 = vmatpush1.msra.mxu0 0.0
      %4689 = vmatprep.subr.mxu0 0.0
      %4690 = vmatpush1.msra.mxu0 0.0
      %4691 = vmatprep.subr.mxu0 0.0
      %4692 = vmatpush1.msra.mxu0 0.0
      %4693 = vmatprep.subr.mxu0 0.0
      %4694 = vmatpush1.msra.mxu0 0.0
      %4695 = vmatprep.subr.mxu0 0.0
      %4696 = vmatpush1.msra.mxu0 0.0
      %4697 = vmatprep.subr.mxu0 0.0
      %4698 = vmatpush1.msra.mxu0 0.0
      %4699 = vmatprep.subr.mxu0 0.0
      %4700 = vmatpush1.msra.mxu0 0.0
      %4701 = vmatprep.subr.mxu0 0.0
      %4702 = vmatpush1.msra.mxu0 0.0
      %4703 = vmatprep.subr.mxu0 0.0
      %4704 = vmatpush1.msra.mxu0 0.0
      %4705 = vmatprep.subr.mxu0 0.0
      %4706 = vmatpush1.msra.mxu0 0.0
      %4707 = vmatprep.subr.mxu0 0.0
      %4708 = vmatpush1.msra.mxu0 0.0
      %4709 = vmatprep.subr.mxu0 0.0
      %4710 = vmatpush1.msra.mxu0 0.0
      %4711 = vmatprep.subr.mxu0 0.0
      %4712 = vmatpush1.msra.mxu0 0.0
      %4713 = vmatprep.subr.mxu0 0.0
      %4714 = vmatpush1.msra.mxu0 0.0
      %4715 = vmatprep.subr.mxu0 0.0
      %4716 = vmatpush1.msra.mxu0 0.0
      %4717 = vmatprep.subr.mxu0 0.0
      %4718 = vmatpush1.msra.mxu0 0.0
      %4719 = vmatprep.subr.mxu0 0.0
      %4720 = vmatpush1.msra.mxu0 0.0
      %4721 = vmatprep.subr.mxu0 0.0
      %4722 = vmatpush1.msra.mxu0 0.0
      %4723 = vmatprep.subr.mxu0 0.0
      %4724 = vmatpush1.msra.mxu0 0.0
      %4725 = vmatprep.subr.mxu0 0.0
      %4726 = vmatpush1.msra.mxu0 0.0
      %4727 = vmatprep.subr.mxu0 0.0
      %4728 = vmatpush1.msra.mxu0 0.0
      %4729 = vmatprep.subr.mxu0 0.0
      %4730 = vmatpush1.msra.mxu0 0.0
      %4731 = vmatprep.subr.mxu0 0.0
      %4732 = vmatpush1.msra.mxu0 0.0
      %4733 = vmatprep.subr.mxu0 0.0
      %4734 = vmatpush1.msra.mxu0 0.0
      %4735 = vmatprep.mubr.f32.mxu0 0.0
      %4736 = vmatmul.mubr.f32.gmra.mrb[0].mxu0 %v4618
      %v4737 = vpop.f32.mrb[0].mxu0
      %v4738 = vadd.f32 0.0, %v4737
      %v4739 = vpop.f32.mrb[0].mxu0
      %4740 = vmatprep.mubr.f32.mxu0 0.0
      %4741 = vmatmul.mubr.f32.gmra.mrb[0].mxu0 %v4621
      %v4742 = vpop.f32.mrb[0].mxu0
      %v4743 = vadd.f32 0.0, %v4742
      %v4744 = vpop.f32.mrb[0].mxu0
      %4745 = vmatprep.mubr.f32.mxu0 0.0
      %4746 = vmatmul.mubr.f32.gmra.mrb[0].mxu0 %v4624
      %v4747 = vpop.f32.mrb[0].mxu0
      %v4748 = vadd.f32 0.0, %v4747
      %v4749 = vpop.f32.mrb[0].mxu0
      %4750 = vmatprep.mubr.f32.mxu0 0.0
      %4751 = vmatmul.mubr.f32.gmra.mrb[0].mxu0 %v4627
      %v4752 = vpop.f32.mrb[0].mxu0
      %v4753 = vadd.f32 0.0, %v4752
      %v4754 = vpop.f32.mrb[0].mxu0
      %4755 = vmatprep.mubr.f32.mxu0 0.0
      %4756 = vmatmul.mubr.f32.gmra.mrb[0].mxu0 %v4630
      %v4757 = vpop.f32.mrb[0].mxu0
      %v4758 = vadd.f32 0.0, %v4757
      %v4759 = vpop.f32.mrb[0].mxu0
      %4760 = vmatprep.mubr.f32.mxu0 0.0
      %4761 = vmatmul.mubr.f32.gmra.mrb[0].mxu0 %v4633
      %v4762 = vpop.f32.mrb[0].mxu0
      %v4763 = vadd.f32 0.0, %v4762
      %v4764 = vpop.f32.mrb[0].mxu0
      %4765 = vmatprep.mubr.f32.mxu0 0.0
      %4766 = vmatmul.mubr.f32.gmra.mrb[0].mxu0 %v4636
      %v4767 = vpop.f32.mrb[0].mxu0
      %v4768 = vadd.f32 0.0, %v4767
      %v4769 = vpop.f32.mrb[0].mxu0
      %4770 = vmatprep.mubr.f32.mxu0 0.0
      %4771 = vmatmul.mubr.f32.gmra.mrb[0].mxu0 %v4639
      %v4772 = vpop.f32.mrb[0].mxu0
      %v4773 = vadd.f32 0.0, %v4772
      %v4774 = vpop.f32.mrb[0].mxu0
      %4775 = vmatprep.mubr.f32.mxu0 0.0
      %4776 = vmatmul.mubr.f32.gmra.mrb[0].mxu0 %v4642
      %v4777 = vpop.f32.mrb[0].mxu0
      %v4778 = vadd.f32 0.0, %v4777
      %v4779 = vpop.f32.mrb[0].mxu0
      %4780 = vmatprep.mubr.f32.mxu0 0.0
      %4781 = vmatmul.mubr.f32.gmra.mrb[0].mxu0 %v4645
      %v4782 = vpop.f32.mrb[0].mxu0
      %v4783 = vadd.f32 0.0, %v4782
      %v4784 = vpop.f32.mrb[0].mxu0
      %4785 = vmatprep.mubr.f32.mxu0 0.0
      %4786 = vmatmul.mubr.f32.gmra.mrb[0].mxu0 %v4648
      %v4787 = vpop.f32.mrb[0].mxu0
      %v4788 = vadd.f32 0.0, %v4787
      %v4789 = vpop.f32.mrb[0].mxu0
      %4790 = vmatprep.mubr.f32.mxu0 0.0
      %4791 = vmatmul.mubr.f32.gmra.mrb[0].mxu0 %v4651
      %v4792 = vpop.f32.mrb[0].mxu0
      %v4793 = vadd.f32 0.0, %v4792
      %v4794 = vpop.f32.mrb[0].mxu0
      %4795 = vmatprep.mubr.f32.mxu0 0.0
      %4796 = vmatmul.mubr.f32.gmra.mrb[0].mxu0 %v4654
      %v4797 = vpop.f32.mrb[0].mxu0
      %v4798 = vadd.f32 0.0, %v4797
      %v4799 = vpop.f32.mrb[0].mxu0
      %4800 = vmatprep.mubr.f32.mxu0 0.0
      %4801 = vmatmul.mubr.f32.gmra.mrb[0].mxu0 %v4657
      %v4802 = vpop.f32.mrb[0].mxu0
      %v4803 = vadd.f32 0.0, %v4802
      %v4804 = vpop.f32.mrb[0].mxu0
      %4805 = vmatprep.mubr.f32.mxu0 0.0
      %4806 = vmatmul.mubr.f32.gmra.mrb[0].mxu0 %v4660
      %v4807 = vpop.f32.mrb[0].mxu0
      %v4808 = vadd.f32 0.0, %v4807
      %v4809 = vpop.f32.mrb[0].mxu0
      %4810 = vmatprep.mubr.f32.mxu0 0.0
      %4811 = vmatmul.mubr.f32.gmra.mrb[0].mxu0 %v4663
      %v4812 = vpop.f32.mrb[0].mxu0
      %v4813 = vadd.f32 0.0, %v4812
      %v4814 = vpop.f32.mrb[0].mxu0
      %4815 = vmatprep.mubr.f32.mxu0 0.0
      %4816 = vmatmul.mubr.f32.gmra.mrb[0].mxu0 %v4666
      %v4817 = vpop.f32.mrb[0].mxu0
      %v4818 = vadd.f32 0.0, %v4817
      %v4819 = vpop.f32.mrb[0].mxu0
      %4820 = vmatprep.mubr.f32.mxu0 0.0
      %4821 = vmatmul.mubr.f32.gmra.mrb[0].mxu0 %v4669
      %v4822 = vpop.f32.mrb[0].mxu0
      %v4823 = vadd.f32 0.0, %v4822
      %v4824 = vpop.f32.mrb[0].mxu0
      %4825 = vdwg.mxu0
      %v4826 = vadd.f32 %v4580, %v4738
      %v4827 = vadd.f32 %v4581, %v4743
      %v4828 = vadd.f32 %v4582, %v4748
      %v4829 = vadd.f32 %v4583, %v4753
      %v4830 = vadd.f32 %v4584, %v4758
      %v4831 = vadd.f32 %v4585, %v4763
      %v4832 = vadd.f32 %v4586, %v4768
      %v4833 = vadd.f32 %v4587, %v4773
      %v4834 = vadd.f32 %v4588, %v4778
      %v4835 = vadd.f32 %v4589, %v4783
      %v4836 = vadd.f32 %v4590, %v4788
      %v4837 = vadd.f32 %v4591, %v4793
      %v4838 = vadd.f32 %v4592, %v4798
      %v4839 = vadd.f32 %v4593, %v4803
      %v4840 = vadd.f32 %v4594, %v4808
      %v4841 = vadd.f32 %v4595, %v4813
      %v4842 = vadd.f32 %v4596, %v4818
      %v4843 = vadd.f32 %v4597, %v4823
      %v4844 = vld [vmem:[%s273 + $0xb6] sm:$0xff]
      %v4845 = vld [vmem:[%s273 + $0xbe] sm:$0xff]
      %v4846 = vld [vmem:[%s273 + $0xc6] sm:$0xff]
      %v4847 = vld [vmem:[%s273 + $0xce] sm:$0xff]
      %v4848 = vld [vmem:[%s273 + $0xd6] sm:$0xff]
      %v4849 = vld [vmem:[%s273 + $0xde] sm:$0xff]
      %v4850 = vld [vmem:[%s273 + $0xe6] sm:$0xff]
      %v4851 = vld [vmem:[%s273 + $0xee] sm:$0xff]
      %v4852 = vld [vmem:[%s273 + $0xf6] sm:$0xff]
      %v4853 = vld [vmem:[%s273 + $0xfe] sm:$0xff]
      %v4854 = vld [vmem:[%s273 + $0x106] sm:$0xff]
      %v4855 = vld [vmem:[%s273 + $0x10e] sm:$0xff]
      %v4856 = vld [vmem:[%s273 + $0x116] sm:$0xff]
      %v4857 = vld [vmem:[%s273 + $0x11e] sm:$0xff]
      %v4858 = vld [vmem:[%s273 + $0x126] sm:$0xff]
      %v4859 = vld [vmem:[%s273 + $0x12e] sm:$0xff]
      %v4860 = vld [vmem:[%s273 + $0x136] sm:$0xff]
      %v4861 = vld [vmem:[%s273 + $0x13e] sm:$0xff]
      %v4862 = vld [vmem:[%s2568] sm:$0xff]
      %v4864 = vsel %vm649, %v4844, 0
      %v4867 = vsel %vm649, %v4845, 0
      %v4870 = vsel %vm649, %v4846, 0
      %v4873 = vsel %vm649, %v4847, 0
      %v4876 = vsel %vm649, %v4848, 0
      %v4879 = vsel %vm649, %v4849, 0
      %v4882 = vsel %vm649, %v4850, 0
      %v4885 = vsel %vm649, %v4851, 0
      %v4888 = vsel %vm649, %v4852, 0
      %v4891 = vsel %vm649, %v4853, 0
      %v4894 = vsel %vm649, %v4854, 0
      %v4897 = vsel %vm649, %v4855, 0
      %v4900 = vsel %vm649, %v4856, 0
      %v4903 = vsel %vm649, %v4857, 0
      %v4906 = vsel %vm649, %v4858, 0
      %v4909 = vsel %vm649, %v4859, 0
      %v4912 = vsel %vm649, %v4860, 0
      %v4915 = vsel %vm649, %v4861, 0
      %4917 = vmatprep.subr.mxu0 0.0
      %4918 = vmatpush1.msra.mxu0 %v4862
      %4919 = vmatprep.subr.mxu0 0.0
      %4920 = vmatpush1.msra.mxu0 0.0
      %4921 = vmatprep.subr.mxu0 0.0
      %4922 = vmatpush1.msra.mxu0 0.0
      %4923 = vmatprep.subr.mxu0 0.0
      %4924 = vmatpush1.msra.mxu0 0.0
      %4925 = vmatprep.subr.mxu0 0.0
      %4926 = vmatpush1.msra.mxu0 0.0
      %4927 = vmatprep.subr.mxu0 0.0
      %4928 = vmatpush1.msra.mxu0 0.0
      %4929 = vmatprep.subr.mxu0 0.0
      %4930 = vmatpush1.msra.mxu0 0.0
      %4931 = vmatprep.subr.mxu0 0.0
      %4932 = vmatpush1.msra.mxu0 0.0
      %4933 = vmatprep.subr.mxu0 0.0
      %4934 = vmatpush1.msra.mxu0 0.0
      %4935 = vmatprep.subr.mxu0 0.0
      %4936 = vmatpush1.msra.mxu0 0.0
      %4937 = vmatprep.subr.mxu0 0.0
      %4938 = vmatpush1.msra.mxu0 0.0
      %4939 = vmatprep.subr.mxu0 0.0
      %4940 = vmatpush1.msra.mxu0 0.0
      %4941 = vmatprep.subr.mxu0 0.0
      %4942 = vmatpush1.msra.mxu0 0.0
      %4943 = vmatprep.subr.mxu0 0.0
      %4944 = vmatpush1.msra.mxu0 0.0
      %4945 = vmatprep.subr.mxu0 0.0
      %4946 = vmatpush1.msra.mxu0 0.0
      %4947 = vmatprep.subr.mxu0 0.0
      %4948 = vmatpush1.msra.mxu0 0.0
      %4949 = vmatprep.subr.mxu0 0.0
      %4950 = vmatpush1.msra.mxu0 0.0
      %4951 = vmatprep.subr.mxu0 0.0
      %4952 = vmatpush1.msra.mxu0 0.0
      %4953 = vmatprep.subr.mxu0 0.0
      %4954 = vmatpush1.msra.mxu0 0.0
      %4955 = vmatprep.subr.mxu0 0.0
      %4956 = vmatpush1.msra.mxu0 0.0
      %4957 = vmatprep.subr.mxu0 0.0
      %4958 = vmatpush1.msra.mxu0 0.0
      %4959 = vmatprep.subr.mxu0 0.0
      %4960 = vmatpush1.msra.mxu0 0.0
      %4961 = vmatprep.subr.mxu0 0.0
      %4962 = vmatpush1.msra.mxu0 0.0
      %4963 = vmatprep.subr.mxu0 0.0
      %4964 = vmatpush1.msra.mxu0 0.0
      %4965 = vmatprep.subr.mxu0 0.0
      %4966 = vmatpush1.msra.mxu0 0.0
      %4967 = vmatprep.subr.mxu0 0.0
      %4968 = vmatpush1.msra.mxu0 0.0
      %4969 = vmatprep.subr.mxu0 0.0
      %4970 = vmatpush1.msra.mxu0 0.0
      %4971 = vmatprep.subr.mxu0 0.0
      %4972 = vmatpush1.msra.mxu0 0.0
      %4973 = vmatprep.subr.mxu0 0.0
      %4974 = vmatpush1.msra.mxu0 0.0
      %4975 = vmatprep.subr.mxu0 0.0
      %4976 = vmatpush1.msra.mxu0 0.0
      %4977 = vmatprep.subr.mxu0 0.0
      %4978 = vmatpush1.msra.mxu0 0.0
      %4979 = vmatprep.subr.mxu0 0.0
      %4980 = vmatpush1.msra.mxu0 0.0
      %4981 = vmatprep.mubr.f32.mxu0 0.0
      %4982 = vmatmul.mubr.f32.gmra.mrb[0].mxu0 %v4864
      %v4983 = vpop.f32.mrb[0].mxu0
      %v4984 = vadd.f32 0.0, %v4983
      %v4985 = vpop.f32.mrb[0].mxu0
      %4986 = vmatprep.mubr.f32.mxu0 0.0
      %4987 = vmatmul.mubr.f32.gmra.mrb[0].mxu0 %v4867
      %v4988 = vpop.f32.mrb[0].mxu0
      %v4989 = vadd.f32 0.0, %v4988
      %v4990 = vpop.f32.mrb[0].mxu0
      %4991 = vmatprep.mubr.f32.mxu0 0.0
      %4992 = vmatmul.mubr.f32.gmra.mrb[0].mxu0 %v4870
      %v4993 = vpop.f32.mrb[0].mxu0
      %v4994 = vadd.f32 0.0, %v4993
      %v4995 = vpop.f32.mrb[0].mxu0
      %4996 = vmatprep.mubr.f32.mxu0 0.0
      %4997 = vmatmul.mubr.f32.gmra.mrb[0].mxu0 %v4873
      %v4998 = vpop.f32.mrb[0].mxu0
      %v4999 = vadd.f32 0.0, %v4998
      %v5000 = vpop.f32.mrb[0].mxu0
      %5001 = vmatprep.mubr.f32.mxu0 0.0
      %5002 = vmatmul.mubr.f32.gmra.mrb[0].mxu0 %v4876
      %v5003 = vpop.f32.mrb[0].mxu0
      %v5004 = vadd.f32 0.0, %v5003
      %v5005 = vpop.f32.mrb[0].mxu0
      %5006 = vmatprep.mubr.f32.mxu0 0.0
      %5007 = vmatmul.mubr.f32.gmra.mrb[0].mxu0 %v4879
      %v5008 = vpop.f32.mrb[0].mxu0
      %v5009 = vadd.f32 0.0, %v5008
      %v5010 = vpop.f32.mrb[0].mxu0
      %5011 = vmatprep.mubr.f32.mxu0 0.0
      %5012 = vmatmul.mubr.f32.gmra.mrb[0].mxu0 %v4882
      %v5013 = vpop.f32.mrb[0].mxu0
      %v5014 = vadd.f32 0.0, %v5013
      %v5015 = vpop.f32.mrb[0].mxu0
      %5016 = vmatprep.mubr.f32.mxu0 0.0
      %5017 = vmatmul.mubr.f32.gmra.mrb[0].mxu0 %v4885
      %v5018 = vpop.f32.mrb[0].mxu0
      %v5019 = vadd.f32 0.0, %v5018
      %v5020 = vpop.f32.mrb[0].mxu0
      %5021 = vmatprep.mubr.f32.mxu0 0.0
      %5022 = vmatmul.mubr.f32.gmra.mrb[0].mxu0 %v4888
      %v5023 = vpop.f32.mrb[0].mxu0
      %v5024 = vadd.f32 0.0, %v5023
      %v5025 = vpop.f32.mrb[0].mxu0
      %5026 = vmatprep.mubr.f32.mxu0 0.0
      %5027 = vmatmul.mubr.f32.gmra.mrb[0].mxu0 %v4891
      %v5028 = vpop.f32.mrb[0].mxu0
      %v5029 = vadd.f32 0.0, %v5028
      %v5030 = vpop.f32.mrb[0].mxu0
      %5031 = vmatprep.mubr.f32.mxu0 0.0
      %5032 = vmatmul.mubr.f32.gmra.mrb[0].mxu0 %v4894
      %v5033 = vpop.f32.mrb[0].mxu0
      %v5034 = vadd.f32 0.0, %v5033
      %v5035 = vpop.f32.mrb[0].mxu0
      %5036 = vmatprep.mubr.f32.mxu0 0.0
      %5037 = vmatmul.mubr.f32.gmra.mrb[0].mxu0 %v4897
      %v5038 = vpop.f32.mrb[0].mxu0
      %v5039 = vadd.f32 0.0, %v5038
      %v5040 = vpop.f32.mrb[0].mxu0
      %5041 = vmatprep.mubr.f32.mxu0 0.0
      %5042 = vmatmul.mubr.f32.gmra.mrb[0].mxu0 %v4900
      %v5043 = vpop.f32.mrb[0].mxu0
      %v5044 = vadd.f32 0.0, %v5043
      %v5045 = vpop.f32.mrb[0].mxu0
      %5046 = vmatprep.mubr.f32.mxu0 0.0
      %5047 = vmatmul.mubr.f32.gmra.mrb[0].mxu0 %v4903
      %v5048 = vpop.f32.mrb[0].mxu0
      %v5049 = vadd.f32 0.0, %v5048
      %v5050 = vpop.f32.mrb[0].mxu0
      %5051 = vmatprep.mubr.f32.mxu0 0.0
      %5052 = vmatmul.mubr.f32.gmra.mrb[0].mxu0 %v4906
      %v5053 = vpop.f32.mrb[0].mxu0
      %v5054 = vadd.f32 0.0, %v5053
      %v5055 = vpop.f32.mrb[0].mxu0
      %5056 = vmatprep.mubr.f32.mxu0 0.0
      %5057 = vmatmul.mubr.f32.gmra.mrb[0].mxu0 %v4909
      %v5058 = vpop.f32.mrb[0].mxu0
      %v5059 = vadd.f32 0.0, %v5058
      %v5060 = vpop.f32.mrb[0].mxu0
      %5061 = vmatprep.mubr.f32.mxu0 0.0
      %5062 = vmatmul.mubr.f32.gmra.mrb[0].mxu0 %v4912
      %v5063 = vpop.f32.mrb[0].mxu0
      %v5064 = vadd.f32 0.0, %v5063
      %v5065 = vpop.f32.mrb[0].mxu0
      %5066 = vmatprep.mubr.f32.mxu0 0.0
      %5067 = vmatmul.mubr.f32.gmra.mrb[0].mxu0 %v4915
      %v5068 = vpop.f32.mrb[0].mxu0
      %v5069 = vadd.f32 0.0, %v5068
      %v5070 = vpop.f32.mrb[0].mxu0
      %5071 = vdwg.mxu0
      %v5072 = vadd.f32 %v4826, %v4984
      %v5073 = vadd.f32 %v4827, %v4989
      %v5074 = vadd.f32 %v4828, %v4994
      %v5075 = vadd.f32 %v4829, %v4999
      %v5076 = vadd.f32 %v4830, %v5004
      %v5077 = vadd.f32 %v4831, %v5009
      %v5078 = vadd.f32 %v4832, %v5014
      %v5079 = vadd.f32 %v4833, %v5019
      %v5080 = vadd.f32 %v4834, %v5024
      %v5081 = vadd.f32 %v4835, %v5029
      %v5082 = vadd.f32 %v4836, %v5034
      %v5083 = vadd.f32 %v4837, %v5039
      %v5084 = vadd.f32 %v4838, %v5044
      %v5085 = vadd.f32 %v4839, %v5049
      %v5086 = vadd.f32 %v4840, %v5054
      %v5087 = vadd.f32 %v4841, %v5059
      %v5088 = vadd.f32 %v4842, %v5064
      %v5089 = vadd.f32 %v4843, %v5069
      %v5090 = vld [vmem:[%s2] sm:$0x1]
      %v5092 = vlaneseq
      %v5093 = vshrl.u32 %v5092, 7
      %v5094 = vsub.s32 0, %v5093
      %v5095 = vrot.slane %v5090, %v5094
      %v5097 = vadd.f32 %v5072, %v5095
      %v5098 = vadd.f32 %v5073, %v5095
      %v5099 = vadd.f32 %v5074, %v5095
      %v5100 = vadd.f32 %v5075, %v5095
      %v5101 = vadd.f32 %v5076, %v5095
      %v5102 = vadd.f32 %v5077, %v5095
      %v5103 = vadd.f32 %v5078, %v5095
      %v5104 = vadd.f32 %v5079, %v5095
      %v5105 = vadd.f32 %v5080, %v5095
      %v5106 = vadd.f32 %v5081, %v5095
      %v5107 = vadd.f32 %v5082, %v5095
      %v5108 = vadd.f32 %v5083, %v5095
      %v5109 = vadd.f32 %v5084, %v5095
      %v5110 = vadd.f32 %v5085, %v5095
      %v5111 = vadd.f32 %v5086, %v5095
      %v5112 = vadd.f32 %v5087, %v5095
      %v5113 = vadd.f32 %v5088, %v5095
      %v5114 = vadd.f32 %v5089, %v5095
      %v5115 = vmax.f32 %v5097, 0.0
      %v5116 = vmax.f32 %v5098, 0.0
      %v5117 = vmax.f32 %v5099, 0.0
      %v5118 = vmax.f32 %v5100, 0.0
      %v5119 = vmax.f32 %v5101, 0.0
      %v5120 = vmax.f32 %v5102, 0.0
      %v5121 = vmax.f32 %v5103, 0.0
      %v5122 = vmax.f32 %v5104, 0.0
      %v5123 = vmax.f32 %v5105, 0.0
      %v5124 = vmax.f32 %v5106, 0.0
      %v5125 = vmax.f32 %v5107, 0.0
      %v5126 = vmax.f32 %v5108, 0.0
      %v5127 = vmax.f32 %v5109, 0.0
      %v5128 = vmax.f32 %v5110, 0.0
      %v5129 = vmax.f32 %v5111, 0.0
      %v5130 = vmax.f32 %v5112, 0.0
      %v5131 = vmax.f32 %v5113, 0.0
      %v5132 = vmax.f32 %v5114, 0.0
      %v5133 = vsel %vm2858, %v5115, 0.0
      %v5134 = vsel %vm2859, %v5116, 0.0
      %v5135 = vsel %vm2860, %v5117, 0.0
      %v5136 = vsel %vm2861, %v5118, 0.0
      %v5137 = vsel %vm2862, %v5119, 0.0
      %v5138 = vsel %vm2863, %v5120, 0.0
      %v5139 = vsel %vm2864, %v5121, 0.0
      %v5140 = vsel %vm2865, %v5122, 0.0
      %v5141 = vsel %vm2866, %v5123, 0.0
      %v5142 = vsel %vm2867, %v5124, 0.0
      %v5143 = vsel %vm2868, %v5125, 0.0
      %v5144 = vsel %vm2869, %v5126, 0.0
      %v5145 = vsel %vm2870, %v5127, 0.0
      %v5146 = vsel %vm2871, %v5128, 0.0
      %v5147 = vsel %vm2872, %v5129, 0.0
      %v5148 = vsel %vm2873, %v5130, 0.0
      %v5149 = vsel %vm2874, %v5131, 0.0
      %v5150 = vsel %vm2875, %v5132, 0.0
      %5151 = vst [vmem:[#allocation2 + $0xa3] sm:$0xff] %v5133
      %5152 = vst [vmem:[#allocation2 + $0xab] sm:$0xff] %v5134
      %5153 = vst [vmem:[#allocation2 + $0xb3] sm:$0xff] %v5135
      %5154 = vst [vmem:[#allocation2 + $0xbb] sm:$0xff] %v5136
      %5155 = vst [vmem:[#allocation2 + $0xc3] sm:$0xff] %v5137
      %5156 = vst [vmem:[#allocation2 + $0xcb] sm:$0xff] %v5138
      %5157 = vst [vmem:[#allocation2 + $0xd3] sm:$0xff] %v5139
      %5158 = vst [vmem:[#allocation2 + $0xdb] sm:$0xff] %v5140
      %5159 = vst [vmem:[#allocation2 + $0xe3] sm:$0xff] %v5141
      %5160 = vst [vmem:[#allocation2 + $0xeb] sm:$0xff] %v5142
      %5161 = vst [vmem:[#allocation2 + $0xf3] sm:$0xff] %v5143
      %5162 = vst [vmem:[#allocation2 + $0xfb] sm:$0xff] %v5144
      %5163 = vst [vmem:[#allocation2 + $0x103] sm:$0xff] %v5145
      %5164 = vst [vmem:[#allocation2 + $0x10b] sm:$0xff] %v5146
      %5165 = vst [vmem:[#allocation2 + $0x113] sm:$0xff] %v5147
      %5166 = vst [vmem:[#allocation2 + $0x11b] sm:$0xff] %v5148
      %5167 = vst [vmem:[#allocation2 + $0x123] sm:$0xff] %v5149
      %5168 = vst [vmem:[#allocation2 + $0x12b] sm:$0xff] %v5150
      %v5169 = vld [vmem:[#allocation2] sm:$0xff]
      %v5170 = vld [vmem:[#allocation2 + $0x8] sm:$0xff]
      %v5171 = vld [vmem:[#allocation2 + $0x10] sm:$0xff]
      %v5172 = vld [vmem:[#allocation2 + $0x18] sm:$0xff]
      %v5173 = vld [vmem:[#allocation2 + $0x20] sm:$0xff]
      %v5174 = vld [vmem:[#allocation2 + $0x28] sm:$0xff]
      %v5175 = vld [vmem:[#allocation2 + $0x30] sm:$0xff]
      %v5176 = vld [vmem:[#allocation2 + $0x38] sm:$0xff]
      %v5177 = vld [vmem:[#allocation2 + $0x40] sm:$0xff]
      %v5178 = vld [vmem:[#allocation2 + $0x48] sm:$0xff]
      %v5179 = vld [vmem:[#allocation2 + $0x50] sm:$0xff]
      %v5180 = vld [vmem:[#allocation2 + $0x58] sm:$0xff]
      %v5181 = vld [vmem:[#allocation2 + $0x60] sm:$0xff]
      %v5182 = vld [vmem:[#allocation2 + $0x68] sm:$0xff]
      %v5183 = vld [vmem:[#allocation2 + $0x70] sm:$0xff]
      %v5184 = vld [vmem:[#allocation2 + $0x78] sm:$0xff]
      %v5185 = vld [vmem:[#allocation2 + $0x80] sm:$0xff]
      %v5186 = vld [vmem:[#allocation2 + $0x88] sm:$0xff]
      %v5187 = vld [vmem:[%s3] sm:$0xff]
      %v5188 = vld [vmem:[%s3 + $0x8] sm:$0xff]
      %v5189 = vld [vmem:[%s3 + $0x10] sm:$0xff]
      %v5190 = vld [vmem:[%s3 + $0x18] sm:$0xff]
      %v5191 = vld [vmem:[%s3 + $0x20] sm:$0xff]
      %v5192 = vld [vmem:[%s3 + $0x28] sm:$0xff]
      %v5193 = vld [vmem:[%s3 + $0x30] sm:$0xff]
      %v5194 = vld [vmem:[%s3 + $0x38] sm:$0xff]
      %v5195 = vld [vmem:[%s3 + $0x40] sm:$0xff]
      %v5196 = vld [vmem:[%s3 + $0x48] sm:$0xff]
      %v5197 = vld [vmem:[%s3 + $0x50] sm:$0xff]
      %v5198 = vld [vmem:[%s3 + $0x58] sm:$0xff]
      %v5199 = vld [vmem:[%s3 + $0x60] sm:$0xff]
      %v5200 = vld [vmem:[%s3 + $0x68] sm:$0xff]
      %v5201 = vld [vmem:[%s3 + $0x70] sm:$0xff]
      %v5202 = vld [vmem:[%s3 + $0x78] sm:$0xff]
      %v5203 = vld [vmem:[#allocation2 + $0x1] sm:$0xff]
      %v5204 = vld [vmem:[#allocation2 + $0x9] sm:$0xff]
      %v5205 = vld [vmem:[#allocation2 + $0x11] sm:$0xff]
      %v5206 = vld [vmem:[#allocation2 + $0x19] sm:$0xff]
      %v5207 = vld [vmem:[#allocation2 + $0x21] sm:$0xff]
      %v5208 = vld [vmem:[#allocation2 + $0x29] sm:$0xff]
      %v5209 = vld [vmem:[#allocation2 + $0x31] sm:$0xff]
      %v5210 = vld [vmem:[#allocation2 + $0x39] sm:$0xff]
      %v5211 = vld [vmem:[#allocation2 + $0x41] sm:$0xff]
      %v5212 = vld [vmem:[#allocation2 + $0x49] sm:$0xff]
      %v5213 = vld [vmem:[#allocation2 + $0x51] sm:$0xff]
      %v5214 = vld [vmem:[#allocation2 + $0x59] sm:$0xff]
      %v5215 = vld [vmem:[#allocation2 + $0x61] sm:$0xff]
      %v5216 = vld [vmem:[#allocation2 + $0x69] sm:$0xff]
      %v5217 = vld [vmem:[#allocation2 + $0x71] sm:$0xff]
      %v5218 = vld [vmem:[#allocation2 + $0x79] sm:$0xff]
      %v5219 = vld [vmem:[#allocation2 + $0x81] sm:$0xff]
      %v5220 = vld [vmem:[#allocation2 + $0x89] sm:$0xff]
      %s5221 = scalar_lea.vmem %s3, 128
      %v5222 = vld [vmem:[%s5221] sm:$0xff]
      %v5223 = vld [vmem:[%s5221 + $0x8] sm:$0xff]
      %v5224 = vld [vmem:[%s5221 + $0x10] sm:$0xff]
      %v5225 = vld [vmem:[%s5221 + $0x18] sm:$0xff]
      %v5226 = vld [vmem:[%s5221 + $0x20] sm:$0xff]
      %v5227 = vld [vmem:[%s5221 + $0x28] sm:$0xff]
      %v5228 = vld [vmem:[%s5221 + $0x30] sm:$0xff]
      %v5229 = vld [vmem:[%s5221 + $0x38] sm:$0xff]
      %v5230 = vld [vmem:[%s5221 + $0x40] sm:$0xff]
      %v5231 = vld [vmem:[%s5221 + $0x48] sm:$0xff]
      %v5232 = vld [vmem:[%s5221 + $0x50] sm:$0xff]
      %v5233 = vld [vmem:[%s5221 + $0x58] sm:$0xff]
      %v5234 = vld [vmem:[%s5221 + $0x60] sm:$0xff]
      %v5235 = vld [vmem:[%s5221 + $0x68] sm:$0xff]
      %v5236 = vld [vmem:[%s5221 + $0x70] sm:$0xff]
      %v5237 = vld [vmem:[%s5221 + $0x78] sm:$0xff]
      %5238 = vmatprep.subr.mxu0 0.0
      %5239 = vmatpush1.msra.mxu0 %v5222
      %5240 = vmatprep.subr.mxu0 0.0
      %5241 = vmatpush1.msra.mxu0 %v5223
      %5242 = vmatprep.subr.mxu0 0.0
      %5243 = vmatpush1.msra.mxu0 %v5224
      %5244 = vmatprep.subr.mxu0 0.0
      %5245 = vmatpush1.msra.mxu0 %v5225
      %5246 = vmatprep.subr.mxu0 0.0
      %5247 = vmatpush1.msra.mxu0 %v5226
      %5248 = vmatprep.subr.mxu0 0.0
      %5249 = vmatpush1.msra.mxu0 %v5227
      %5250 = vmatprep.subr.mxu0 0.0
      %5251 = vmatpush1.msra.mxu0 %v5228
      %5252 = vmatprep.subr.mxu0 0.0
      %5253 = vmatpush1.msra.mxu0 %v5229
      %5254 = vmatprep.subr.mxu0 0.0
      %5255 = vmatpush1.msra.mxu0 %v5230
      %5256 = vmatprep.subr.mxu0 0.0
      %5257 = vmatpush1.msra.mxu0 %v5231
      %5258 = vmatprep.subr.mxu0 0.0
      %5259 = vmatpush1.msra.mxu0 %v5232
      %5260 = vmatprep.subr.mxu0 0.0
      %5261 = vmatpush1.msra.mxu0 %v5233
      %5262 = vmatprep.subr.mxu0 0.0
      %5263 = vmatpush1.msra.mxu0 %v5234
      %5264 = vmatprep.subr.mxu0 0.0
      %5265 = vmatpush1.msra.mxu0 %v5235
      %5266 = vmatprep.subr.mxu0 0.0
      %5267 = vmatpush1.msra.mxu0 %v5236
      %5268 = vmatprep.subr.mxu0 0.0
      %5269 = vmatpush1.msra.mxu0 %v5237
      %5270 = vmatprep.subr.mxu0 0.0
      %5271 = vmatpush1.msra.mxu0 0.0
      %5272 = vmatprep.subr.mxu0 0.0
      %5273 = vmatpush1.msra.mxu0 0.0
      %5274 = vmatprep.subr.mxu0 0.0
      %5275 = vmatpush1.msra.mxu0 0.0
      %5276 = vmatprep.subr.mxu0 0.0
      %5277 = vmatpush1.msra.mxu0 0.0
      %5278 = vmatprep.subr.mxu0 0.0
      %5279 = vmatpush1.msra.mxu0 0.0
      %5280 = vmatprep.subr.mxu0 0.0
      %5281 = vmatpush1.msra.mxu0 0.0
      %5282 = vmatprep.subr.mxu0 0.0
      %5283 = vmatpush1.msra.mxu0 0.0
      %5284 = vmatprep.subr.mxu0 0.0
      %5285 = vmatpush1.msra.mxu0 0.0
      %5286 = vmatprep.subr.mxu0 0.0
      %5287 = vmatpush1.msra.mxu0 0.0
      %5288 = vmatprep.subr.mxu0 0.0
      %5289 = vmatpush1.msra.mxu0 0.0
      %5290 = vmatprep.subr.mxu0 0.0
      %5291 = vmatpush1.msra.mxu0 0.0
      %5292 = vmatprep.subr.mxu0 0.0
      %5293 = vmatpush1.msra.mxu0 0.0
      %5294 = vmatprep.subr.mxu0 0.0
      %5295 = vmatpush1.msra.mxu0 0.0
      %5296 = vmatprep.subr.mxu0 0.0
      %5297 = vmatpush1.msra.mxu0 0.0
      %5298 = vmatprep.subr.mxu0 0.0
      %5299 = vmatpush1.msra.mxu0 0.0
      %5300 = vmatprep.subr.mxu0 0.0
      %5301 = vmatpush1.msra.mxu0 0.0
      %5302 = vmatprep.mubr.f32.mxu0 0.0
      %5303 = vmatmul.mubr.f32.gmra.mrb[0].mxu0 %v5203
      %v5304 = vpop.f32.mrb[0].mxu0
      %v5305 = vadd.f32 0.0, %v5304
      %v5306 = vpop.f32.mrb[0].mxu0
      %5307 = vmatprep.mubr.f32.mxu0 0.0
      %5308 = vmatmul.mubr.f32.gmra.mrb[0].mxu0 %v5204
      %v5309 = vpop.f32.mrb[0].mxu0
      %v5310 = vadd.f32 0.0, %v5309
      %v5311 = vpop.f32.mrb[0].mxu0
      %5312 = vmatprep.mubr.f32.mxu0 0.0
      %5313 = vmatmul.mubr.f32.gmra.mrb[0].mxu0 %v5205
      %v5314 = vpop.f32.mrb[0].mxu0
      %v5315 = vadd.f32 0.0, %v5314
      %v5316 = vpop.f32.mrb[0].mxu0
      %5317 = vmatprep.mubr.f32.mxu0 0.0
      %5318 = vmatmul.mubr.f32.gmra.mrb[0].mxu0 %v5206
      %v5319 = vpop.f32.mrb[0].mxu0
      %v5320 = vadd.f32 0.0, %v5319
      %v5321 = vpop.f32.mrb[0].mxu0
      %5322 = vmatprep.mubr.f32.mxu0 0.0
      %5323 = vmatmul.mubr.f32.gmra.mrb[0].mxu0 %v5207
      %v5324 = vpop.f32.mrb[0].mxu0
      %v5325 = vadd.f32 0.0, %v5324
      %v5326 = vpop.f32.mrb[0].mxu0
      %5327 = vmatprep.mubr.f32.mxu0 0.0
      %5328 = vmatmul.mubr.f32.gmra.mrb[0].mxu0 %v5208
      %v5329 = vpop.f32.mrb[0].mxu0
      %v5330 = vadd.f32 0.0, %v5329
      %v5331 = vpop.f32.mrb[0].mxu0
      %5332 = vmatprep.mubr.f32.mxu0 0.0
      %5333 = vmatmul.mubr.f32.gmra.mrb[0].mxu0 %v5209
      %v5334 = vpop.f32.mrb[0].mxu0
      %v5335 = vadd.f32 0.0, %v5334
      %v5336 = vpop.f32.mrb[0].mxu0
      %5337 = vmatprep.mubr.f32.mxu0 0.0
      %5338 = vmatmul.mubr.f32.gmra.mrb[0].mxu0 %v5210
      %v5339 = vpop.f32.mrb[0].mxu0
      %v5340 = vadd.f32 0.0, %v5339
      %v5341 = vpop.f32.mrb[0].mxu0
      %5342 = vmatprep.mubr.f32.mxu0 0.0
      %5343 = vmatmul.mubr.f32.gmra.mrb[0].mxu0 %v5211
      %v5344 = vpop.f32.mrb[0].mxu0
      %v5345 = vadd.f32 0.0, %v5344
      %v5346 = vpop.f32.mrb[0].mxu0
      %5347 = vmatprep.mubr.f32.mxu0 0.0
      %5348 = vmatmul.mubr.f32.gmra.mrb[0].mxu0 %v5212
      %v5349 = vpop.f32.mrb[0].mxu0
      %v5350 = vadd.f32 0.0, %v5349
      %v5351 = vpop.f32.mrb[0].mxu0
      %5352 = vmatprep.mubr.f32.mxu0 0.0
      %5353 = vmatmul.mubr.f32.gmra.mrb[0].mxu0 %v5213
      %v5354 = vpop.f32.mrb[0].mxu0
      %v5355 = vadd.f32 0.0, %v5354
      %v5356 = vpop.f32.mrb[0].mxu0
      %5357 = vmatprep.mubr.f32.mxu0 0.0
      %5358 = vmatmul.mubr.f32.gmra.mrb[0].mxu0 %v5214
      %v5359 = vpop.f32.mrb[0].mxu0
      %v5360 = vadd.f32 0.0, %v5359
      %v5361 = vpop.f32.mrb[0].mxu0
      %5362 = vmatprep.mubr.f32.mxu0 0.0
      %5363 = vmatmul.mubr.f32.gmra.mrb[0].mxu0 %v5215
      %v5364 = vpop.f32.mrb[0].mxu0
      %v5365 = vadd.f32 0.0, %v5364
      %v5366 = vpop.f32.mrb[0].mxu0
      %5367 = vmatprep.mubr.f32.mxu0 0.0
      %5368 = vmatmul.mubr.f32.gmra.mrb[0].mxu0 %v5216
      %v5369 = vpop.f32.mrb[0].mxu0
      %v5370 = vadd.f32 0.0, %v5369
      %v5371 = vpop.f32.mrb[0].mxu0
      %5372 = vmatprep.mubr.f32.mxu0 0.0
      %5373 = vmatmul.mubr.f32.gmra.mrb[0].mxu0 %v5217
      %v5374 = vpop.f32.mrb[0].mxu0
      %v5375 = vadd.f32 0.0, %v5374
      %v5376 = vpop.f32.mrb[0].mxu0
      %5377 = vmatprep.mubr.f32.mxu0 0.0
      %5378 = vmatmul.mubr.f32.gmra.mrb[0].mxu0 %v5218
      %v5379 = vpop.f32.mrb[0].mxu0
      %v5380 = vadd.f32 0.0, %v5379
      %v5381 = vpop.f32.mrb[0].mxu0
      %5382 = vmatprep.mubr.f32.mxu0 0.0
      %5383 = vmatmul.mubr.f32.gmra.mrb[0].mxu0 %v5219
      %v5384 = vpop.f32.mrb[0].mxu0
      %v5385 = vadd.f32 0.0, %v5384
      %v5386 = vpop.f32.mrb[0].mxu0
      %5387 = vmatprep.mubr.f32.mxu0 0.0
      %5388 = vmatmul.mubr.f32.gmra.mrb[0].mxu0 %v5220
      %v5389 = vpop.f32.mrb[0].mxu0
      %v5390 = vadd.f32 0.0, %v5389
      %v5391 = vpop.f32.mrb[0].mxu0
      %5392 = vdwg.mxu0
      %5393 = vmatprep.subr.mxu0 0.0
      %5394 = vmatpush1.msra.mxu0 %v5187
      %5395 = vmatprep.subr.mxu0 0.0
      %5396 = vmatpush1.msra.mxu0 %v5188
      %5397 = vmatprep.subr.mxu0 0.0
      %5398 = vmatpush1.msra.mxu0 %v5189
      %5399 = vmatprep.subr.mxu0 0.0
      %5400 = vmatpush1.msra.mxu0 %v5190
      %5401 = vmatprep.subr.mxu0 0.0
      %5402 = vmatpush1.msra.mxu0 %v5191
      %5403 = vmatprep.subr.mxu0 0.0
      %5404 = vmatpush1.msra.mxu0 %v5192
      %5405 = vmatprep.subr.mxu0 0.0
      %5406 = vmatpush1.msra.mxu0 %v5193
      %5407 = vmatprep.subr.mxu0 0.0
      %5408 = vmatpush1.msra.mxu0 %v5194
      %5409 = vmatprep.subr.mxu0 0.0
      %5410 = vmatpush1.msra.mxu0 %v5195
      %5411 = vmatprep.subr.mxu0 0.0
      %5412 = vmatpush1.msra.mxu0 %v5196
      %5413 = vmatprep.subr.mxu0 0.0
      %5414 = vmatpush1.msra.mxu0 %v5197
      %5415 = vmatprep.subr.mxu0 0.0
      %5416 = vmatpush1.msra.mxu0 %v5198
      %5417 = vmatprep.subr.mxu0 0.0
      %5418 = vmatpush1.msra.mxu0 %v5199
      %5419 = vmatprep.subr.mxu0 0.0
      %5420 = vmatpush1.msra.mxu0 %v5200
      %5421 = vmatprep.subr.mxu0 0.0
      %5422 = vmatpush1.msra.mxu0 %v5201
      %5423 = vmatprep.subr.mxu0 0.0
      %5424 = vmatpush1.msra.mxu0 %v5202
      %5425 = vmatprep.subr.mxu0 0.0
      %5426 = vmatpush1.msra.mxu0 0.0
      %5427 = vmatprep.subr.mxu0 0.0
      %5428 = vmatpush1.msra.mxu0 0.0
      %5429 = vmatprep.subr.mxu0 0.0
      %5430 = vmatpush1.msra.mxu0 0.0
      %5431 = vmatprep.subr.mxu0 0.0
      %5432 = vmatpush1.msra.mxu0 0.0
      %5433 = vmatprep.subr.mxu0 0.0
      %5434 = vmatpush1.msra.mxu0 0.0
      %5435 = vmatprep.subr.mxu0 0.0
      %5436 = vmatpush1.msra.mxu0 0.0
      %5437 = vmatprep.subr.mxu0 0.0
      %5438 = vmatpush1.msra.mxu0 0.0
      %5439 = vmatprep.subr.mxu0 0.0
      %5440 = vmatpush1.msra.mxu0 0.0
      %5441 = vmatprep.subr.mxu0 0.0
      %5442 = vmatpush1.msra.mxu0 0.0
      %5443 = vmatprep.subr.mxu0 0.0
      %5444 = vmatpush1.msra.mxu0 0.0
      %5445 = vmatprep.subr.mxu0 0.0
      %5446 = vmatpush1.msra.mxu0 0.0
      %5447 = vmatprep.subr.mxu0 0.0
      %5448 = vmatpush1.msra.mxu0 0.0
      %5449 = vmatprep.subr.mxu0 0.0
      %5450 = vmatpush1.msra.mxu0 0.0
      %5451 = vmatprep.subr.mxu0 0.0
      %5452 = vmatpush1.msra.mxu0 0.0
      %5453 = vmatprep.subr.mxu0 0.0
      %5454 = vmatpush1.msra.mxu0 0.0
      %5455 = vmatprep.subr.mxu0 0.0
      %5456 = vmatpush1.msra.mxu0 0.0
      %5457 = vmatprep.mubr.f32.mxu0 0.0
      %5458 = vmatmul.mubr.f32.gmra.mrb[0].mxu0 %v5169
      %v5459 = vpop.f32.mrb[0].mxu0
      %v5460 = vadd.f32 %v5305, %v5459
      %v5461 = vpop.f32.mrb[0].mxu0
      %5462 = vmatprep.mubr.f32.mxu0 0.0
      %5463 = vmatmul.mubr.f32.gmra.mrb[0].mxu0 %v5170
      %v5464 = vpop.f32.mrb[0].mxu0
      %v5465 = vadd.f32 %v5310, %v5464
      %v5466 = vpop.f32.mrb[0].mxu0
      %5467 = vmatprep.mubr.f32.mxu0 0.0
      %5468 = vmatmul.mubr.f32.gmra.mrb[0].mxu0 %v5171
      %v5469 = vpop.f32.mrb[0].mxu0
      %v5470 = vadd.f32 %v5315, %v5469
      %v5471 = vpop.f32.mrb[0].mxu0
      %5472 = vmatprep.mubr.f32.mxu0 0.0
      %5473 = vmatmul.mubr.f32.gmra.mrb[0].mxu0 %v5172
      %v5474 = vpop.f32.mrb[0].mxu0
      %v5475 = vadd.f32 %v5320, %v5474
      %v5476 = vpop.f32.mrb[0].mxu0
      %5477 = vmatprep.mubr.f32.mxu0 0.0
      %5478 = vmatmul.mubr.f32.gmra.mrb[0].mxu0 %v5173
      %v5479 = vpop.f32.mrb[0].mxu0
      %v5480 = vadd.f32 %v5325, %v5479
      %v5481 = vpop.f32.mrb[0].mxu0
      %5482 = vmatprep.mubr.f32.mxu0 0.0
      %5483 = vmatmul.mubr.f32.gmra.mrb[0].mxu0 %v5174
      %v5484 = vpop.f32.mrb[0].mxu0
      %v5485 = vadd.f32 %v5330, %v5484
      %v5486 = vpop.f32.mrb[0].mxu0
      %5487 = vmatprep.mubr.f32.mxu0 0.0
      %5488 = vmatmul.mubr.f32.gmra.mrb[0].mxu0 %v5175
      %v5489 = vpop.f32.mrb[0].mxu0
      %v5490 = vadd.f32 %v5335, %v5489
      %v5491 = vpop.f32.mrb[0].mxu0
      %5492 = vmatprep.mubr.f32.mxu0 0.0
      %5493 = vmatmul.mubr.f32.gmra.mrb[0].mxu0 %v5176
      %v5494 = vpop.f32.mrb[0].mxu0
      %v5495 = vadd.f32 %v5340, %v5494
      %v5496 = vpop.f32.mrb[0].mxu0
      %5497 = vmatprep.mubr.f32.mxu0 0.0
      %5498 = vmatmul.mubr.f32.gmra.mrb[0].mxu0 %v5177
      %v5499 = vpop.f32.mrb[0].mxu0
      %v5500 = vadd.f32 %v5345, %v5499
      %v5501 = vpop.f32.mrb[0].mxu0
      %5502 = vmatprep.mubr.f32.mxu0 0.0
      %5503 = vmatmul.mubr.f32.gmra.mrb[0].mxu0 %v5178
      %v5504 = vpop.f32.mrb[0].mxu0
      %v5505 = vadd.f32 %v5350, %v5504
      %v5506 = vpop.f32.mrb[0].mxu0
      %5507 = vmatprep.mubr.f32.mxu0 0.0
      %5508 = vmatmul.mubr.f32.gmra.mrb[0].mxu0 %v5179
      %v5509 = vpop.f32.mrb[0].mxu0
      %v5510 = vadd.f32 %v5355, %v5509
      %v5511 = vpop.f32.mrb[0].mxu0
      %5512 = vmatprep.mubr.f32.mxu0 0.0
      %5513 = vmatmul.mubr.f32.gmra.mrb[0].mxu0 %v5180
      %v5514 = vpop.f32.mrb[0].mxu0
      %v5515 = vadd.f32 %v5360, %v5514
      %v5516 = vpop.f32.mrb[0].mxu0
      %5517 = vmatprep.mubr.f32.mxu0 0.0
      %5518 = vmatmul.mubr.f32.gmra.mrb[0].mxu0 %v5181
      %v5519 = vpop.f32.mrb[0].mxu0
      %v5520 = vadd.f32 %v5365, %v5519
      %v5521 = vpop.f32.mrb[0].mxu0
      %5522 = vmatprep.mubr.f32.mxu0 0.0
      %5523 = vmatmul.mubr.f32.gmra.mrb[0].mxu0 %v5182
      %v5524 = vpop.f32.mrb[0].mxu0
      %v5525 = vadd.f32 %v5370, %v5524
      %v5526 = vpop.f32.mrb[0].mxu0
      %5527 = vmatprep.mubr.f32.mxu0 0.0
      %5528 = vmatmul.mubr.f32.gmra.mrb[0].mxu0 %v5183
      %v5529 = vpop.f32.mrb[0].mxu0
      %v5530 = vadd.f32 %v5375, %v5529
      %v5531 = vpop.f32.mrb[0].mxu0
      %5532 = vmatprep.mubr.f32.mxu0 0.0
      %5533 = vmatmul.mubr.f32.gmra.mrb[0].mxu0 %v5184
      %v5534 = vpop.f32.mrb[0].mxu0
      %v5535 = vadd.f32 %v5380, %v5534
      %v5536 = vpop.f32.mrb[0].mxu0
      %5537 = vmatprep.mubr.f32.mxu0 0.0
      %5538 = vmatmul.mubr.f32.gmra.mrb[0].mxu0 %v5185
      %v5539 = vpop.f32.mrb[0].mxu0
      %v5540 = vadd.f32 %v5385, %v5539
      %v5541 = vpop.f32.mrb[0].mxu0
      %5542 = vmatprep.mubr.f32.mxu0 0.0
      %5543 = vmatmul.mubr.f32.gmra.mrb[0].mxu0 %v5186
      %v5544 = vpop.f32.mrb[0].mxu0
      %v5545 = vadd.f32 %v5390, %v5544
      %v5546 = vpop.f32.mrb[0].mxu0
      %5547 = vdwg.mxu0
      %v5548 = vld [vmem:[#allocation2 + $0x2] sm:$0xff]
      %v5549 = vld [vmem:[#allocation2 + $0xa] sm:$0xff]
      %v5550 = vld [vmem:[#allocation2 + $0x12] sm:$0xff]
      %v5551 = vld [vmem:[#allocation2 + $0x1a] sm:$0xff]
      %v5552 = vld [vmem:[#allocation2 + $0x22] sm:$0xff]
      %v5553 = vld [vmem:[#allocation2 + $0x2a] sm:$0xff]
      %v5554 = vld [vmem:[#allocation2 + $0x32] sm:$0xff]
      %v5555 = vld [vmem:[#allocation2 + $0x3a] sm:$0xff]
      %v5556 = vld [vmem:[#allocation2 + $0x42] sm:$0xff]
      %v5557 = vld [vmem:[#allocation2 + $0x4a] sm:$0xff]
      %v5558 = vld [vmem:[#allocation2 + $0x52] sm:$0xff]
      %v5559 = vld [vmem:[#allocation2 + $0x5a] sm:$0xff]
      %v5560 = vld [vmem:[#allocation2 + $0x62] sm:$0xff]
      %v5561 = vld [vmem:[#allocation2 + $0x6a] sm:$0xff]
      %v5562 = vld [vmem:[#allocation2 + $0x72] sm:$0xff]
      %v5563 = vld [vmem:[#allocation2 + $0x7a] sm:$0xff]
      %v5564 = vld [vmem:[#allocation2 + $0x82] sm:$0xff]
      %v5565 = vld [vmem:[#allocation2 + $0x8a] sm:$0xff]
      %s5566 = scalar_lea.vmem %s3, 256
      %v5567 = vld [vmem:[%s5566] sm:$0xff]
      %v5568 = vld [vmem:[%s5566 + $0x8] sm:$0xff]
      %v5569 = vld [vmem:[%s5566 + $0x10] sm:$0xff]
      %v5570 = vld [vmem:[%s5566 + $0x18] sm:$0xff]
      %v5571 = vld [vmem:[%s5566 + $0x20] sm:$0xff]
      %v5572 = vld [vmem:[%s5566 + $0x28] sm:$0xff]
      %v5573 = vld [vmem:[%s5566 + $0x30] sm:$0xff]
      %v5574 = vld [vmem:[%s5566 + $0x38] sm:$0xff]
      %v5575 = vld [vmem:[%s5566 + $0x40] sm:$0xff]
      %v5576 = vld [vmem:[%s5566 + $0x48] sm:$0xff]
      %v5577 = vld [vmem:[%s5566 + $0x50] sm:$0xff]
      %v5578 = vld [vmem:[%s5566 + $0x58] sm:$0xff]
      %v5579 = vld [vmem:[%s5566 + $0x60] sm:$0xff]
      %v5580 = vld [vmem:[%s5566 + $0x68] sm:$0xff]
      %v5581 = vld [vmem:[%s5566 + $0x70] sm:$0xff]
      %v5582 = vld [vmem:[%s5566 + $0x78] sm:$0xff]
      %5583 = vmatprep.subr.mxu0 0.0
      %5584 = vmatpush1.msra.mxu0 %v5567
      %5585 = vmatprep.subr.mxu0 0.0
      %5586 = vmatpush1.msra.mxu0 %v5568
      %5587 = vmatprep.subr.mxu0 0.0
      %5588 = vmatpush1.msra.mxu0 %v5569
      %5589 = vmatprep.subr.mxu0 0.0
      %5590 = vmatpush1.msra.mxu0 %v5570
      %5591 = vmatprep.subr.mxu0 0.0
      %5592 = vmatpush1.msra.mxu0 %v5571
      %5593 = vmatprep.subr.mxu0 0.0
      %5594 = vmatpush1.msra.mxu0 %v5572
      %5595 = vmatprep.subr.mxu0 0.0
      %5596 = vmatpush1.msra.mxu0 %v5573
      %5597 = vmatprep.subr.mxu0 0.0
      %5598 = vmatpush1.msra.mxu0 %v5574
      %5599 = vmatprep.subr.mxu0 0.0
      %5600 = vmatpush1.msra.mxu0 %v5575
      %5601 = vmatprep.subr.mxu0 0.0
      %5602 = vmatpush1.msra.mxu0 %v5576
      %5603 = vmatprep.subr.mxu0 0.0
      %5604 = vmatpush1.msra.mxu0 %v5577
      %5605 = vmatprep.subr.mxu0 0.0
      %5606 = vmatpush1.msra.mxu0 %v5578
      %5607 = vmatprep.subr.mxu0 0.0
      %5608 = vmatpush1.msra.mxu0 %v5579
      %5609 = vmatprep.subr.mxu0 0.0
      %5610 = vmatpush1.msra.mxu0 %v5580
      %5611 = vmatprep.subr.mxu0 0.0
      %5612 = vmatpush1.msra.mxu0 %v5581
      %5613 = vmatprep.subr.mxu0 0.0
      %5614 = vmatpush1.msra.mxu0 %v5582
      %5615 = vmatprep.subr.mxu0 0.0
      %5616 = vmatpush1.msra.mxu0 0.0
      %5617 = vmatprep.subr.mxu0 0.0
      %5618 = vmatpush1.msra.mxu0 0.0
      %5619 = vmatprep.subr.mxu0 0.0
      %5620 = vmatpush1.msra.mxu0 0.0
      %5621 = vmatprep.subr.mxu0 0.0
      %5622 = vmatpush1.msra.mxu0 0.0
      %5623 = vmatprep.subr.mxu0 0.0
      %5624 = vmatpush1.msra.mxu0 0.0
      %5625 = vmatprep.subr.mxu0 0.0
      %5626 = vmatpush1.msra.mxu0 0.0
      %5627 = vmatprep.subr.mxu0 0.0
      %5628 = vmatpush1.msra.mxu0 0.0
      %5629 = vmatprep.subr.mxu0 0.0
      %5630 = vmatpush1.msra.mxu0 0.0
      %5631 = vmatprep.subr.mxu0 0.0
      %5632 = vmatpush1.msra.mxu0 0.0
      %5633 = vmatprep.subr.mxu0 0.0
      %5634 = vmatpush1.msra.mxu0 0.0
      %5635 = vmatprep.subr.mxu0 0.0
      %5636 = vmatpush1.msra.mxu0 0.0
      %5637 = vmatprep.subr.mxu0 0.0
      %5638 = vmatpush1.msra.mxu0 0.0
      %5639 = vmatprep.subr.mxu0 0.0
      %5640 = vmatpush1.msra.mxu0 0.0
      %5641 = vmatprep.subr.mxu0 0.0
      %5642 = vmatpush1.msra.mxu0 0.0
      %5643 = vmatprep.subr.mxu0 0.0
      %5644 = vmatpush1.msra.mxu0 0.0
      %5645 = vmatprep.subr.mxu0 0.0
      %5646 = vmatpush1.msra.mxu0 0.0
      %5647 = vmatprep.mubr.f32.mxu0 0.0
      %5648 = vmatmul.mubr.f32.gmra.mrb[0].mxu0 %v5548
      %v5649 = vpop.f32.mrb[0].mxu0
      %v5650 = vadd.f32 0.0, %v5649
      %v5651 = vpop.f32.mrb[0].mxu0
      %5652 = vmatprep.mubr.f32.mxu0 0.0
      %5653 = vmatmul.mubr.f32.gmra.mrb[0].mxu0 %v5549
      %v5654 = vpop.f32.mrb[0].mxu0
      %v5655 = vadd.f32 0.0, %v5654
      %v5656 = vpop.f32.mrb[0].mxu0
      %5657 = vmatprep.mubr.f32.mxu0 0.0
      %5658 = vmatmul.mubr.f32.gmra.mrb[0].mxu0 %v5550
      %v5659 = vpop.f32.mrb[0].mxu0
      %v5660 = vadd.f32 0.0, %v5659
      %v5661 = vpop.f32.mrb[0].mxu0
      %5662 = vmatprep.mubr.f32.mxu0 0.0
      %5663 = vmatmul.mubr.f32.gmra.mrb[0].mxu0 %v5551
      %v5664 = vpop.f32.mrb[0].mxu0
      %v5665 = vadd.f32 0.0, %v5664
      %v5666 = vpop.f32.mrb[0].mxu0
      %5667 = vmatprep.mubr.f32.mxu0 0.0
      %5668 = vmatmul.mubr.f32.gmra.mrb[0].mxu0 %v5552
      %v5669 = vpop.f32.mrb[0].mxu0
      %v5670 = vadd.f32 0.0, %v5669
      %v5671 = vpop.f32.mrb[0].mxu0
      %5672 = vmatprep.mubr.f32.mxu0 0.0
      %5673 = vmatmul.mubr.f32.gmra.mrb[0].mxu0 %v5553
      %v5674 = vpop.f32.mrb[0].mxu0
      %v5675 = vadd.f32 0.0, %v5674
      %v5676 = vpop.f32.mrb[0].mxu0
      %5677 = vmatprep.mubr.f32.mxu0 0.0
      %5678 = vmatmul.mubr.f32.gmra.mrb[0].mxu0 %v5554
      %v5679 = vpop.f32.mrb[0].mxu0
      %v5680 = vadd.f32 0.0, %v5679
      %v5681 = vpop.f32.mrb[0].mxu0
      %5682 = vmatprep.mubr.f32.mxu0 0.0
      %5683 = vmatmul.mubr.f32.gmra.mrb[0].mxu0 %v5555
      %v5684 = vpop.f32.mrb[0].mxu0
      %v5685 = vadd.f32 0.0, %v5684
      %v5686 = vpop.f32.mrb[0].mxu0
      %5687 = vmatprep.mubr.f32.mxu0 0.0
      %5688 = vmatmul.mubr.f32.gmra.mrb[0].mxu0 %v5556
      %v5689 = vpop.f32.mrb[0].mxu0
      %v5690 = vadd.f32 0.0, %v5689
      %v5691 = vpop.f32.mrb[0].mxu0
      %5692 = vmatprep.mubr.f32.mxu0 0.0
      %5693 = vmatmul.mubr.f32.gmra.mrb[0].mxu0 %v5557
      %v5694 = vpop.f32.mrb[0].mxu0
      %v5695 = vadd.f32 0.0, %v5694
      %v5696 = vpop.f32.mrb[0].mxu0
      %5697 = vmatprep.mubr.f32.mxu0 0.0
      %5698 = vmatmul.mubr.f32.gmra.mrb[0].mxu0 %v5558
      %v5699 = vpop.f32.mrb[0].mxu0
      %v5700 = vadd.f32 0.0, %v5699
      %v5701 = vpop.f32.mrb[0].mxu0
      %5702 = vmatprep.mubr.f32.mxu0 0.0
      %5703 = vmatmul.mubr.f32.gmra.mrb[0].mxu0 %v5559
      %v5704 = vpop.f32.mrb[0].mxu0
      %v5705 = vadd.f32 0.0, %v5704
      %v5706 = vpop.f32.mrb[0].mxu0
      %5707 = vmatprep.mubr.f32.mxu0 0.0
      %5708 = vmatmul.mubr.f32.gmra.mrb[0].mxu0 %v5560
      %v5709 = vpop.f32.mrb[0].mxu0
      %v5710 = vadd.f32 0.0, %v5709
      %v5711 = vpop.f32.mrb[0].mxu0
      %5712 = vmatprep.mubr.f32.mxu0 0.0
      %5713 = vmatmul.mubr.f32.gmra.mrb[0].mxu0 %v5561
      %v5714 = vpop.f32.mrb[0].mxu0
      %v5715 = vadd.f32 0.0, %v5714
      %v5716 = vpop.f32.mrb[0].mxu0
      %5717 = vmatprep.mubr.f32.mxu0 0.0
      %5718 = vmatmul.mubr.f32.gmra.mrb[0].mxu0 %v5562
      %v5719 = vpop.f32.mrb[0].mxu0
      %v5720 = vadd.f32 0.0, %v5719
      %v5721 = vpop.f32.mrb[0].mxu0
      %5722 = vmatprep.mubr.f32.mxu0 0.0
      %5723 = vmatmul.mubr.f32.gmra.mrb[0].mxu0 %v5563
      %v5724 = vpop.f32.mrb[0].mxu0
      %v5725 = vadd.f32 0.0, %v5724
      %v5726 = vpop.f32.mrb[0].mxu0
      %5727 = vmatprep.mubr.f32.mxu0 0.0
      %5728 = vmatmul.mubr.f32.gmra.mrb[0].mxu0 %v5564
      %v5729 = vpop.f32.mrb[0].mxu0
      %v5730 = vadd.f32 0.0, %v5729
      %v5731 = vpop.f32.mrb[0].mxu0
      %5732 = vmatprep.mubr.f32.mxu0 0.0
      %5733 = vmatmul.mubr.f32.gmra.mrb[0].mxu0 %v5565
      %v5734 = vpop.f32.mrb[0].mxu0
      %v5735 = vadd.f32 0.0, %v5734
      %v5736 = vpop.f32.mrb[0].mxu0
      %5737 = vdwg.mxu0
      %v5738 = vadd.f32 %v5460, %v5650
      %v5739 = vadd.f32 %v5465, %v5655
      %v5740 = vadd.f32 %v5470, %v5660
      %v5741 = vadd.f32 %v5475, %v5665
      %v5742 = vadd.f32 %v5480, %v5670
      %v5743 = vadd.f32 %v5485, %v5675
      %v5744 = vadd.f32 %v5490, %v5680
      %v5745 = vadd.f32 %v5495, %v5685
      %v5746 = vadd.f32 %v5500, %v5690
      %v5747 = vadd.f32 %v5505, %v5695
      %v5748 = vadd.f32 %v5510, %v5700
      %v5749 = vadd.f32 %v5515, %v5705
      %v5750 = vadd.f32 %v5520, %v5710
      %v5751 = vadd.f32 %v5525, %v5715
      %v5752 = vadd.f32 %v5530, %v5720
      %v5753 = vadd.f32 %v5535, %v5725
      %v5754 = vadd.f32 %v5540, %v5730
      %v5755 = vadd.f32 %v5545, %v5735
      %v5756 = vld [vmem:[#allocation2 + $0x12] sm:$0xff]
      %v5757 = vld [vmem:[#allocation2 + $0x1a] sm:$0xff]
      %v5758 = vld [vmem:[#allocation2 + $0x22] sm:$0xff]
      %v5759 = vld [vmem:[#allocation2 + $0x2a] sm:$0xff]
      %v5760 = vld [vmem:[#allocation2 + $0x32] sm:$0xff]
      %v5761 = vld [vmem:[#allocation2 + $0x3a] sm:$0xff]
      %v5762 = vld [vmem:[#allocation2 + $0x42] sm:$0xff]
      %v5763 = vld [vmem:[#allocation2 + $0x4a] sm:$0xff]
      %v5764 = vld [vmem:[#allocation2 + $0x52] sm:$0xff]
      %v5765 = vld [vmem:[#allocation2 + $0x5a] sm:$0xff]
      %v5766 = vld [vmem:[#allocation2 + $0x62] sm:$0xff]
      %v5767 = vld [vmem:[#allocation2 + $0x6a] sm:$0xff]
      %v5768 = vld [vmem:[#allocation2 + $0x72] sm:$0xff]
      %v5769 = vld [vmem:[#allocation2 + $0x7a] sm:$0xff]
      %v5770 = vld [vmem:[#allocation2 + $0x82] sm:$0xff]
      %v5771 = vld [vmem:[#allocation2 + $0x8a] sm:$0xff]
      %v5772 = vld [vmem:[#allocation2 + $0x92] sm:$0xff]
      %v5773 = vld [vmem:[#allocation2 + $0x9a] sm:$0xff]
      %s5774 = scalar_lea.vmem %s3, 384
      %v5775 = vld [vmem:[%s5774] sm:$0xff]
      %v5776 = vld [vmem:[%s5774 + $0x8] sm:$0xff]
      %v5777 = vld [vmem:[%s5774 + $0x10] sm:$0xff]
      %v5778 = vld [vmem:[%s5774 + $0x18] sm:$0xff]
      %v5779 = vld [vmem:[%s5774 + $0x20] sm:$0xff]
      %v5780 = vld [vmem:[%s5774 + $0x28] sm:$0xff]
      %v5781 = vld [vmem:[%s5774 + $0x30] sm:$0xff]
      %v5782 = vld [vmem:[%s5774 + $0x38] sm:$0xff]
      %v5783 = vld [vmem:[%s5774 + $0x40] sm:$0xff]
      %v5784 = vld [vmem:[%s5774 + $0x48] sm:$0xff]
      %v5785 = vld [vmem:[%s5774 + $0x50] sm:$0xff]
      %v5786 = vld [vmem:[%s5774 + $0x58] sm:$0xff]
      %v5787 = vld [vmem:[%s5774 + $0x60] sm:$0xff]
      %v5788 = vld [vmem:[%s5774 + $0x68] sm:$0xff]
      %v5789 = vld [vmem:[%s5774 + $0x70] sm:$0xff]
      %v5790 = vld [vmem:[%s5774 + $0x78] sm:$0xff]
      %5791 = vmatprep.subr.mxu0 0.0
      %5792 = vmatpush1.msra.mxu0 %v5775
      %5793 = vmatprep.subr.mxu0 0.0
      %5794 = vmatpush1.msra.mxu0 %v5776
      %5795 = vmatprep.subr.mxu0 0.0
      %5796 = vmatpush1.msra.mxu0 %v5777
      %5797 = vmatprep.subr.mxu0 0.0
      %5798 = vmatpush1.msra.mxu0 %v5778
      %5799 = vmatprep.subr.mxu0 0.0
      %5800 = vmatpush1.msra.mxu0 %v5779
      %5801 = vmatprep.subr.mxu0 0.0
      %5802 = vmatpush1.msra.mxu0 %v5780
      %5803 = vmatprep.subr.mxu0 0.0
      %5804 = vmatpush1.msra.mxu0 %v5781
      %5805 = vmatprep.subr.mxu0 0.0
      %5806 = vmatpush1.msra.mxu0 %v5782
      %5807 = vmatprep.subr.mxu0 0.0
      %5808 = vmatpush1.msra.mxu0 %v5783
      %5809 = vmatprep.subr.mxu0 0.0
      %5810 = vmatpush1.msra.mxu0 %v5784
      %5811 = vmatprep.subr.mxu0 0.0
      %5812 = vmatpush1.msra.mxu0 %v5785
      %5813 = vmatprep.subr.mxu0 0.0
      %5814 = vmatpush1.msra.mxu0 %v5786
      %5815 = vmatprep.subr.mxu0 0.0
      %5816 = vmatpush1.msra.mxu0 %v5787
      %5817 = vmatprep.subr.mxu0 0.0
      %5818 = vmatpush1.msra.mxu0 %v5788
      %5819 = vmatprep.subr.mxu0 0.0
      %5820 = vmatpush1.msra.mxu0 %v5789
      %5821 = vmatprep.subr.mxu0 0.0
      %5822 = vmatpush1.msra.mxu0 %v5790
      %5823 = vmatprep.subr.mxu0 0.0
      %5824 = vmatpush1.msra.mxu0 0.0
      %5825 = vmatprep.subr.mxu0 0.0
      %5826 = vmatpush1.msra.mxu0 0.0
      %5827 = vmatprep.subr.mxu0 0.0
      %5828 = vmatpush1.msra.mxu0 0.0
      %5829 = vmatprep.subr.mxu0 0.0
      %5830 = vmatpush1.msra.mxu0 0.0
      %5831 = vmatprep.subr.mxu0 0.0
      %5832 = vmatpush1.msra.mxu0 0.0
      %5833 = vmatprep.subr.mxu0 0.0
      %5834 = vmatpush1.msra.mxu0 0.0
      %5835 = vmatprep.subr.mxu0 0.0
      %5836 = vmatpush1.msra.mxu0 0.0
      %5837 = vmatprep.subr.mxu0 0.0
      %5838 = vmatpush1.msra.mxu0 0.0
      %5839 = vmatprep.subr.mxu0 0.0
      %5840 = vmatpush1.msra.mxu0 0.0
      %5841 = vmatprep.subr.mxu0 0.0
      %5842 = vmatpush1.msra.mxu0 0.0
      %5843 = vmatprep.subr.mxu0 0.0
      %5844 = vmatpush1.msra.mxu0 0.0
      %5845 = vmatprep.subr.mxu0 0.0
      %5846 = vmatpush1.msra.mxu0 0.0
      %5847 = vmatprep.subr.mxu0 0.0
      %5848 = vmatpush1.msra.mxu0 0.0
      %5849 = vmatprep.subr.mxu0 0.0
      %5850 = vmatpush1.msra.mxu0 0.0
      %5851 = vmatprep.subr.mxu0 0.0
      %5852 = vmatpush1.msra.mxu0 0.0
      %5853 = vmatprep.subr.mxu0 0.0
      %5854 = vmatpush1.msra.mxu0 0.0
      %5855 = vmatprep.mubr.f32.mxu0 0.0
      %5856 = vmatmul.mubr.f32.gmra.mrb[0].mxu0 %v5756
      %v5857 = vpop.f32.mrb[0].mxu0
      %v5858 = vadd.f32 0.0, %v5857
      %v5859 = vpop.f32.mrb[0].mxu0
      %5860 = vmatprep.mubr.f32.mxu0 0.0
      %5861 = vmatmul.mubr.f32.gmra.mrb[0].mxu0 %v5757
      %v5862 = vpop.f32.mrb[0].mxu0
      %v5863 = vadd.f32 0.0, %v5862
      %v5864 = vpop.f32.mrb[0].mxu0
      %5865 = vmatprep.mubr.f32.mxu0 0.0
      %5866 = vmatmul.mubr.f32.gmra.mrb[0].mxu0 %v5758
      %v5867 = vpop.f32.mrb[0].mxu0
      %v5868 = vadd.f32 0.0, %v5867
      %v5869 = vpop.f32.mrb[0].mxu0
      %5870 = vmatprep.mubr.f32.mxu0 0.0
      %5871 = vmatmul.mubr.f32.gmra.mrb[0].mxu0 %v5759
      %v5872 = vpop.f32.mrb[0].mxu0
      %v5873 = vadd.f32 0.0, %v5872
      %v5874 = vpop.f32.mrb[0].mxu0
      %5875 = vmatprep.mubr.f32.mxu0 0.0
      %5876 = vmatmul.mubr.f32.gmra.mrb[0].mxu0 %v5760
      %v5877 = vpop.f32.mrb[0].mxu0
      %v5878 = vadd.f32 0.0, %v5877
      %v5879 = vpop.f32.mrb[0].mxu0
      %5880 = vmatprep.mubr.f32.mxu0 0.0
      %5881 = vmatmul.mubr.f32.gmra.mrb[0].mxu0 %v5761
      %v5882 = vpop.f32.mrb[0].mxu0
      %v5883 = vadd.f32 0.0, %v5882
      %v5884 = vpop.f32.mrb[0].mxu0
      %5885 = vmatprep.mubr.f32.mxu0 0.0
      %5886 = vmatmul.mubr.f32.gmra.mrb[0].mxu0 %v5762
      %v5887 = vpop.f32.mrb[0].mxu0
      %v5888 = vadd.f32 0.0, %v5887
      %v5889 = vpop.f32.mrb[0].mxu0
      %5890 = vmatprep.mubr.f32.mxu0 0.0
      %5891 = vmatmul.mubr.f32.gmra.mrb[0].mxu0 %v5763
      %v5892 = vpop.f32.mrb[0].mxu0
      %v5893 = vadd.f32 0.0, %v5892
      %v5894 = vpop.f32.mrb[0].mxu0
      %5895 = vmatprep.mubr.f32.mxu0 0.0
      %5896 = vmatmul.mubr.f32.gmra.mrb[0].mxu0 %v5764
      %v5897 = vpop.f32.mrb[0].mxu0
      %v5898 = vadd.f32 0.0, %v5897
      %v5899 = vpop.f32.mrb[0].mxu0
      %5900 = vmatprep.mubr.f32.mxu0 0.0
      %5901 = vmatmul.mubr.f32.gmra.mrb[0].mxu0 %v5765
      %v5902 = vpop.f32.mrb[0].mxu0
      %v5903 = vadd.f32 0.0, %v5902
      %v5904 = vpop.f32.mrb[0].mxu0
      %5905 = vmatprep.mubr.f32.mxu0 0.0
      %5906 = vmatmul.mubr.f32.gmra.mrb[0].mxu0 %v5766
      %v5907 = vpop.f32.mrb[0].mxu0
      %v5908 = vadd.f32 0.0, %v5907
      %v5909 = vpop.f32.mrb[0].mxu0
      %5910 = vmatprep.mubr.f32.mxu0 0.0
      %5911 = vmatmul.mubr.f32.gmra.mrb[0].mxu0 %v5767
      %v5912 = vpop.f32.mrb[0].mxu0
      %v5913 = vadd.f32 0.0, %v5912
      %v5914 = vpop.f32.mrb[0].mxu0
      %5915 = vmatprep.mubr.f32.mxu0 0.0
      %5916 = vmatmul.mubr.f32.gmra.mrb[0].mxu0 %v5768
      %v5917 = vpop.f32.mrb[0].mxu0
      %v5918 = vadd.f32 0.0, %v5917
      %v5919 = vpop.f32.mrb[0].mxu0
      %5920 = vmatprep.mubr.f32.mxu0 0.0
      %5921 = vmatmul.mubr.f32.gmra.mrb[0].mxu0 %v5769
      %v5922 = vpop.f32.mrb[0].mxu0
      %v5923 = vadd.f32 0.0, %v5922
      %v5924 = vpop.f32.mrb[0].mxu0
      %5925 = vmatprep.mubr.f32.mxu0 0.0
      %5926 = vmatmul.mubr.f32.gmra.mrb[0].mxu0 %v5770
      %v5927 = vpop.f32.mrb[0].mxu0
      %v5928 = vadd.f32 0.0, %v5927
      %v5929 = vpop.f32.mrb[0].mxu0
      %5930 = vmatprep.mubr.f32.mxu0 0.0
      %5931 = vmatmul.mubr.f32.gmra.mrb[0].mxu0 %v5771
      %v5932 = vpop.f32.mrb[0].mxu0
      %v5933 = vadd.f32 0.0, %v5932
      %v5934 = vpop.f32.mrb[0].mxu0
      %5935 = vmatprep.mubr.f32.mxu0 0.0
      %5936 = vmatmul.mubr.f32.gmra.mrb[0].mxu0 %v5772
      %v5937 = vpop.f32.mrb[0].mxu0
      %v5938 = vadd.f32 0.0, %v5937
      %v5939 = vpop.f32.mrb[0].mxu0
      %5940 = vmatprep.mubr.f32.mxu0 0.0
      %5941 = vmatmul.mubr.f32.gmra.mrb[0].mxu0 %v5773
      %v5942 = vpop.f32.mrb[0].mxu0
      %v5943 = vadd.f32 0.0, %v5942
      %v5944 = vpop.f32.mrb[0].mxu0
      %5945 = vdwg.mxu0
      %v5946 = vadd.f32 %v5738, %v5858
      %v5947 = vadd.f32 %v5739, %v5863
      %v5948 = vadd.f32 %v5740, %v5868
      %v5949 = vadd.f32 %v5741, %v5873
      %v5950 = vadd.f32 %v5742, %v5878
      %v5951 = vadd.f32 %v5743, %v5883
      %v5952 = vadd.f32 %v5744, %v5888
      %v5953 = vadd.f32 %v5745, %v5893
      %v5954 = vadd.f32 %v5746, %v5898
      %v5955 = vadd.f32 %v5747, %v5903
      %v5956 = vadd.f32 %v5748, %v5908
      %v5957 = vadd.f32 %v5749, %v5913
      %v5958 = vadd.f32 %v5750, %v5918
      %v5959 = vadd.f32 %v5751, %v5923
      %v5960 = vadd.f32 %v5752, %v5928
      %v5961 = vadd.f32 %v5753, %v5933
      %v5962 = vadd.f32 %v5754, %v5938
      %v5963 = vadd.f32 %v5755, %v5943
      %v5964 = vld [vmem:[#allocation2 + $0x13] sm:$0xff]
      %v5965 = vld [vmem:[#allocation2 + $0x1b] sm:$0xff]
      %v5966 = vld [vmem:[#allocation2 + $0x23] sm:$0xff]
      %v5967 = vld [vmem:[#allocation2 + $0x2b] sm:$0xff]
      %v5968 = vld [vmem:[#allocation2 + $0x33] sm:$0xff]
      %v5969 = vld [vmem:[#allocation2 + $0x3b] sm:$0xff]
      %v5970 = vld [vmem:[#allocation2 + $0x43] sm:$0xff]
      %v5971 = vld [vmem:[#allocation2 + $0x4b] sm:$0xff]
      %v5972 = vld [vmem:[#allocation2 + $0x53] sm:$0xff]
      %v5973 = vld [vmem:[#allocation2 + $0x5b] sm:$0xff]
      %v5974 = vld [vmem:[#allocation2 + $0x63] sm:$0xff]
      %v5975 = vld [vmem:[#allocation2 + $0x6b] sm:$0xff]
      %v5976 = vld [vmem:[#allocation2 + $0x73] sm:$0xff]
      %v5977 = vld [vmem:[#allocation2 + $0x7b] sm:$0xff]
      %v5978 = vld [vmem:[#allocation2 + $0x83] sm:$0xff]
      %v5979 = vld [vmem:[#allocation2 + $0x8b] sm:$0xff]
      %v5980 = vld [vmem:[#allocation2 + $0x93] sm:$0xff]
      %v5981 = vld [vmem:[#allocation2 + $0x9b] sm:$0xff]
      %s5982 = scalar_lea.vmem %s3, 512
      %v5983 = vld [vmem:[%s5982] sm:$0xff]
      %v5984 = vld [vmem:[%s5982 + $0x8] sm:$0xff]
      %v5985 = vld [vmem:[%s5982 + $0x10] sm:$0xff]
      %v5986 = vld [vmem:[%s5982 + $0x18] sm:$0xff]
      %v5987 = vld [vmem:[%s5982 + $0x20] sm:$0xff]
      %v5988 = vld [vmem:[%s5982 + $0x28] sm:$0xff]
      %v5989 = vld [vmem:[%s5982 + $0x30] sm:$0xff]
      %v5990 = vld [vmem:[%s5982 + $0x38] sm:$0xff]
      %v5991 = vld [vmem:[%s5982 + $0x40] sm:$0xff]
      %v5992 = vld [vmem:[%s5982 + $0x48] sm:$0xff]
      %v5993 = vld [vmem:[%s5982 + $0x50] sm:$0xff]
      %v5994 = vld [vmem:[%s5982 + $0x58] sm:$0xff]
      %v5995 = vld [vmem:[%s5982 + $0x60] sm:$0xff]
      %v5996 = vld [vmem:[%s5982 + $0x68] sm:$0xff]
      %v5997 = vld [vmem:[%s5982 + $0x70] sm:$0xff]
      %v5998 = vld [vmem:[%s5982 + $0x78] sm:$0xff]
      %5999 = vmatprep.subr.mxu0 0.0
      %6000 = vmatpush1.msra.mxu0 %v5983
      %6001 = vmatprep.subr.mxu0 0.0
      %6002 = vmatpush1.msra.mxu0 %v5984
      %6003 = vmatprep.subr.mxu0 0.0
      %6004 = vmatpush1.msra.mxu0 %v5985
      %6005 = vmatprep.subr.mxu0 0.0
      %6006 = vmatpush1.msra.mxu0 %v5986
      %6007 = vmatprep.subr.mxu0 0.0
      %6008 = vmatpush1.msra.mxu0 %v5987
      %6009 = vmatprep.subr.mxu0 0.0
      %6010 = vmatpush1.msra.mxu0 %v5988
      %6011 = vmatprep.subr.mxu0 0.0
      %6012 = vmatpush1.msra.mxu0 %v5989
      %6013 = vmatprep.subr.mxu0 0.0
      %6014 = vmatpush1.msra.mxu0 %v5990
      %6015 = vmatprep.subr.mxu0 0.0
      %6016 = vmatpush1.msra.mxu0 %v5991
      %6017 = vmatprep.subr.mxu0 0.0
      %6018 = vmatpush1.msra.mxu0 %v5992
      %6019 = vmatprep.subr.mxu0 0.0
      %6020 = vmatpush1.msra.mxu0 %v5993
      %6021 = vmatprep.subr.mxu0 0.0
      %6022 = vmatpush1.msra.mxu0 %v5994
      %6023 = vmatprep.subr.mxu0 0.0
      %6024 = vmatpush1.msra.mxu0 %v5995
      %6025 = vmatprep.subr.mxu0 0.0
      %6026 = vmatpush1.msra.mxu0 %v5996
      %6027 = vmatprep.subr.mxu0 0.0
      %6028 = vmatpush1.msra.mxu0 %v5997
      %6029 = vmatprep.subr.mxu0 0.0
      %6030 = vmatpush1.msra.mxu0 %v5998
      %6031 = vmatprep.subr.mxu0 0.0
      %6032 = vmatpush1.msra.mxu0 0.0
      %6033 = vmatprep.subr.mxu0 0.0
      %6034 = vmatpush1.msra.mxu0 0.0
      %6035 = vmatprep.subr.mxu0 0.0
      %6036 = vmatpush1.msra.mxu0 0.0
      %6037 = vmatprep.subr.mxu0 0.0
      %6038 = vmatpush1.msra.mxu0 0.0
      %6039 = vmatprep.subr.mxu0 0.0
      %6040 = vmatpush1.msra.mxu0 0.0
      %6041 = vmatprep.subr.mxu0 0.0
      %6042 = vmatpush1.msra.mxu0 0.0
      %6043 = vmatprep.subr.mxu0 0.0
      %6044 = vmatpush1.msra.mxu0 0.0
      %6045 = vmatprep.subr.mxu0 0.0
      %6046 = vmatpush1.msra.mxu0 0.0
      %6047 = vmatprep.subr.mxu0 0.0
      %6048 = vmatpush1.msra.mxu0 0.0
      %6049 = vmatprep.subr.mxu0 0.0
      %6050 = vmatpush1.msra.mxu0 0.0
      %6051 = vmatprep.subr.mxu0 0.0
      %6052 = vmatpush1.msra.mxu0 0.0
      %6053 = vmatprep.subr.mxu0 0.0
      %6054 = vmatpush1.msra.mxu0 0.0
      %6055 = vmatprep.subr.mxu0 0.0
      %6056 = vmatpush1.msra.mxu0 0.0
      %6057 = vmatprep.subr.mxu0 0.0
      %6058 = vmatpush1.msra.mxu0 0.0
      %6059 = vmatprep.subr.mxu0 0.0
      %6060 = vmatpush1.msra.mxu0 0.0
      %6061 = vmatprep.subr.mxu0 0.0
      %6062 = vmatpush1.msra.mxu0 0.0
      %6063 = vmatprep.mubr.f32.mxu0 0.0
      %6064 = vmatmul.mubr.f32.gmra.mrb[0].mxu0 %v5964
      %v6065 = vpop.f32.mrb[0].mxu0
      %v6066 = vadd.f32 0.0, %v6065
      %v6067 = vpop.f32.mrb[0].mxu0
      %6068 = vmatprep.mubr.f32.mxu0 0.0
      %6069 = vmatmul.mubr.f32.gmra.mrb[0].mxu0 %v5965
      %v6070 = vpop.f32.mrb[0].mxu0
      %v6071 = vadd.f32 0.0, %v6070
      %v6072 = vpop.f32.mrb[0].mxu0
      %6073 = vmatprep.mubr.f32.mxu0 0.0
      %6074 = vmatmul.mubr.f32.gmra.mrb[0].mxu0 %v5966
      %v6075 = vpop.f32.mrb[0].mxu0
      %v6076 = vadd.f32 0.0, %v6075
      %v6077 = vpop.f32.mrb[0].mxu0
      %6078 = vmatprep.mubr.f32.mxu0 0.0
      %6079 = vmatmul.mubr.f32.gmra.mrb[0].mxu0 %v5967
      %v6080 = vpop.f32.mrb[0].mxu0
      %v6081 = vadd.f32 0.0, %v6080
      %v6082 = vpop.f32.mrb[0].mxu0
      %6083 = vmatprep.mubr.f32.mxu0 0.0
      %6084 = vmatmul.mubr.f32.gmra.mrb[0].mxu0 %v5968
      %v6085 = vpop.f32.mrb[0].mxu0
      %v6086 = vadd.f32 0.0, %v6085
      %v6087 = vpop.f32.mrb[0].mxu0
      %6088 = vmatprep.mubr.f32.mxu0 0.0
      %6089 = vmatmul.mubr.f32.gmra.mrb[0].mxu0 %v5969
      %v6090 = vpop.f32.mrb[0].mxu0
      %v6091 = vadd.f32 0.0, %v6090
      %v6092 = vpop.f32.mrb[0].mxu0
      %6093 = vmatprep.mubr.f32.mxu0 0.0
      %6094 = vmatmul.mubr.f32.gmra.mrb[0].mxu0 %v5970
      %v6095 = vpop.f32.mrb[0].mxu0
      %v6096 = vadd.f32 0.0, %v6095
      %v6097 = vpop.f32.mrb[0].mxu0
      %6098 = vmatprep.mubr.f32.mxu0 0.0
      %6099 = vmatmul.mubr.f32.gmra.mrb[0].mxu0 %v5971
      %v6100 = vpop.f32.mrb[0].mxu0
      %v6101 = vadd.f32 0.0, %v6100
      %v6102 = vpop.f32.mrb[0].mxu0
      %6103 = vmatprep.mubr.f32.mxu0 0.0
      %6104 = vmatmul.mubr.f32.gmra.mrb[0].mxu0 %v5972
      %v6105 = vpop.f32.mrb[0].mxu0
      %v6106 = vadd.f32 0.0, %v6105
      %v6107 = vpop.f32.mrb[0].mxu0
      %6108 = vmatprep.mubr.f32.mxu0 0.0
      %6109 = vmatmul.mubr.f32.gmra.mrb[0].mxu0 %v5973
      %v6110 = vpop.f32.mrb[0].mxu0
      %v6111 = vadd.f32 0.0, %v6110
      %v6112 = vpop.f32.mrb[0].mxu0
      %6113 = vmatprep.mubr.f32.mxu0 0.0
      %6114 = vmatmul.mubr.f32.gmra.mrb[0].mxu0 %v5974
      %v6115 = vpop.f32.mrb[0].mxu0
      %v6116 = vadd.f32 0.0, %v6115
      %v6117 = vpop.f32.mrb[0].mxu0
      %6118 = vmatprep.mubr.f32.mxu0 0.0
      %6119 = vmatmul.mubr.f32.gmra.mrb[0].mxu0 %v5975
      %v6120 = vpop.f32.mrb[0].mxu0
      %v6121 = vadd.f32 0.0, %v6120
      %v6122 = vpop.f32.mrb[0].mxu0
      %6123 = vmatprep.mubr.f32.mxu0 0.0
      %6124 = vmatmul.mubr.f32.gmra.mrb[0].mxu0 %v5976
      %v6125 = vpop.f32.mrb[0].mxu0
      %v6126 = vadd.f32 0.0, %v6125
      %v6127 = vpop.f32.mrb[0].mxu0
      %6128 = vmatprep.mubr.f32.mxu0 0.0
      %6129 = vmatmul.mubr.f32.gmra.mrb[0].mxu0 %v5977
      %v6130 = vpop.f32.mrb[0].mxu0
      %v6131 = vadd.f32 0.0, %v6130
      %v6132 = vpop.f32.mrb[0].mxu0
      %6133 = vmatprep.mubr.f32.mxu0 0.0
      %6134 = vmatmul.mubr.f32.gmra.mrb[0].mxu0 %v5978
      %v6135 = vpop.f32.mrb[0].mxu0
      %v6136 = vadd.f32 0.0, %v6135
      %v6137 = vpop.f32.mrb[0].mxu0
      %6138 = vmatprep.mubr.f32.mxu0 0.0
      %6139 = vmatmul.mubr.f32.gmra.mrb[0].mxu0 %v5979
      %v6140 = vpop.f32.mrb[0].mxu0
      %v6141 = vadd.f32 0.0, %v6140
      %v6142 = vpop.f32.mrb[0].mxu0
      %6143 = vmatprep.mubr.f32.mxu0 0.0
      %6144 = vmatmul.mubr.f32.gmra.mrb[0].mxu0 %v5980
      %v6145 = vpop.f32.mrb[0].mxu0
      %v6146 = vadd.f32 0.0, %v6145
      %v6147 = vpop.f32.mrb[0].mxu0
      %6148 = vmatprep.mubr.f32.mxu0 0.0
      %6149 = vmatmul.mubr.f32.gmra.mrb[0].mxu0 %v5981
      %v6150 = vpop.f32.mrb[0].mxu0
      %v6151 = vadd.f32 0.0, %v6150
      %v6152 = vpop.f32.mrb[0].mxu0
      %6153 = vdwg.mxu0
      %v6154 = vadd.f32 %v5946, %v6066
      %v6155 = vadd.f32 %v5947, %v6071
      %v6156 = vadd.f32 %v5948, %v6076
      %v6157 = vadd.f32 %v5949, %v6081
      %v6158 = vadd.f32 %v5950, %v6086
      %v6159 = vadd.f32 %v5951, %v6091
      %v6160 = vadd.f32 %v5952, %v6096
      %v6161 = vadd.f32 %v5953, %v6101
      %v6162 = vadd.f32 %v5954, %v6106
      %v6163 = vadd.f32 %v5955, %v6111
      %v6164 = vadd.f32 %v5956, %v6116
      %v6165 = vadd.f32 %v5957, %v6121
      %v6166 = vadd.f32 %v5958, %v6126
      %v6167 = vadd.f32 %v5959, %v6131
      %v6168 = vadd.f32 %v5960, %v6136
      %v6169 = vadd.f32 %v5961, %v6141
      %v6170 = vadd.f32 %v5962, %v6146
      %v6171 = vadd.f32 %v5963, %v6151
      %v6172 = vld [vmem:[#allocation2 + $0x14] sm:$0xff]
      %v6173 = vld [vmem:[#allocation2 + $0x1c] sm:$0xff]
      %v6174 = vld [vmem:[#allocation2 + $0x24] sm:$0xff]
      %v6175 = vld [vmem:[#allocation2 + $0x2c] sm:$0xff]
      %v6176 = vld [vmem:[#allocation2 + $0x34] sm:$0xff]
      %v6177 = vld [vmem:[#allocation2 + $0x3c] sm:$0xff]
      %v6178 = vld [vmem:[#allocation2 + $0x44] sm:$0xff]
      %v6179 = vld [vmem:[#allocation2 + $0x4c] sm:$0xff]
      %v6180 = vld [vmem:[#allocation2 + $0x54] sm:$0xff]
      %v6181 = vld [vmem:[#allocation2 + $0x5c] sm:$0xff]
      %v6182 = vld [vmem:[#allocation2 + $0x64] sm:$0xff]
      %v6183 = vld [vmem:[#allocation2 + $0x6c] sm:$0xff]
      %v6184 = vld [vmem:[#allocation2 + $0x74] sm:$0xff]
      %v6185 = vld [vmem:[#allocation2 + $0x7c] sm:$0xff]
      %v6186 = vld [vmem:[#allocation2 + $0x84] sm:$0xff]
      %v6187 = vld [vmem:[#allocation2 + $0x8c] sm:$0xff]
      %v6188 = vld [vmem:[#allocation2 + $0x94] sm:$0xff]
      %v6189 = vld [vmem:[#allocation2 + $0x9c] sm:$0xff]
      %s6190 = scalar_lea.vmem %s3, 640
      %v6191 = vld [vmem:[%s6190] sm:$0xff]
      %v6192 = vld [vmem:[%s6190 + $0x8] sm:$0xff]
      %v6193 = vld [vmem:[%s6190 + $0x10] sm:$0xff]
      %v6194 = vld [vmem:[%s6190 + $0x18] sm:$0xff]
      %v6195 = vld [vmem:[%s6190 + $0x20] sm:$0xff]
      %v6196 = vld [vmem:[%s6190 + $0x28] sm:$0xff]
      %v6197 = vld [vmem:[%s6190 + $0x30] sm:$0xff]
      %v6198 = vld [vmem:[%s6190 + $0x38] sm:$0xff]
      %v6199 = vld [vmem:[%s6190 + $0x40] sm:$0xff]
      %v6200 = vld [vmem:[%s6190 + $0x48] sm:$0xff]
      %v6201 = vld [vmem:[%s6190 + $0x50] sm:$0xff]
      %v6202 = vld [vmem:[%s6190 + $0x58] sm:$0xff]
      %v6203 = vld [vmem:[%s6190 + $0x60] sm:$0xff]
      %v6204 = vld [vmem:[%s6190 + $0x68] sm:$0xff]
      %v6205 = vld [vmem:[%s6190 + $0x70] sm:$0xff]
      %v6206 = vld [vmem:[%s6190 + $0x78] sm:$0xff]
      %6207 = vmatprep.subr.mxu0 0.0
      %6208 = vmatpush1.msra.mxu0 %v6191
      %6209 = vmatprep.subr.mxu0 0.0
      %6210 = vmatpush1.msra.mxu0 %v6192
      %6211 = vmatprep.subr.mxu0 0.0
      %6212 = vmatpush1.msra.mxu0 %v6193
      %6213 = vmatprep.subr.mxu0 0.0
      %6214 = vmatpush1.msra.mxu0 %v6194
      %6215 = vmatprep.subr.mxu0 0.0
      %6216 = vmatpush1.msra.mxu0 %v6195
      %6217 = vmatprep.subr.mxu0 0.0
      %6218 = vmatpush1.msra.mxu0 %v6196
      %6219 = vmatprep.subr.mxu0 0.0
      %6220 = vmatpush1.msra.mxu0 %v6197
      %6221 = vmatprep.subr.mxu0 0.0
      %6222 = vmatpush1.msra.mxu0 %v6198
      %6223 = vmatprep.subr.mxu0 0.0
      %6224 = vmatpush1.msra.mxu0 %v6199
      %6225 = vmatprep.subr.mxu0 0.0
      %6226 = vmatpush1.msra.mxu0 %v6200
      %6227 = vmatprep.subr.mxu0 0.0
      %6228 = vmatpush1.msra.mxu0 %v6201
      %6229 = vmatprep.subr.mxu0 0.0
      %6230 = vmatpush1.msra.mxu0 %v6202
      %6231 = vmatprep.subr.mxu0 0.0
      %6232 = vmatpush1.msra.mxu0 %v6203
      %6233 = vmatprep.subr.mxu0 0.0
      %6234 = vmatpush1.msra.mxu0 %v6204
      %6235 = vmatprep.subr.mxu0 0.0
      %6236 = vmatpush1.msra.mxu0 %v6205
      %6237 = vmatprep.subr.mxu0 0.0
      %6238 = vmatpush1.msra.mxu0 %v6206
      %6239 = vmatprep.subr.mxu0 0.0
      %6240 = vmatpush1.msra.mxu0 0.0
      %6241 = vmatprep.subr.mxu0 0.0
      %6242 = vmatpush1.msra.mxu0 0.0
      %6243 = vmatprep.subr.mxu0 0.0
      %6244 = vmatpush1.msra.mxu0 0.0
      %6245 = vmatprep.subr.mxu0 0.0
      %6246 = vmatpush1.msra.mxu0 0.0
      %6247 = vmatprep.subr.mxu0 0.0
      %6248 = vmatpush1.msra.mxu0 0.0
      %6249 = vmatprep.subr.mxu0 0.0
      %6250 = vmatpush1.msra.mxu0 0.0
      %6251 = vmatprep.subr.mxu0 0.0
      %6252 = vmatpush1.msra.mxu0 0.0
      %6253 = vmatprep.subr.mxu0 0.0
      %6254 = vmatpush1.msra.mxu0 0.0
      %6255 = vmatprep.subr.mxu0 0.0
      %6256 = vmatpush1.msra.mxu0 0.0
      %6257 = vmatprep.subr.mxu0 0.0
      %6258 = vmatpush1.msra.mxu0 0.0
      %6259 = vmatprep.subr.mxu0 0.0
      %6260 = vmatpush1.msra.mxu0 0.0
      %6261 = vmatprep.subr.mxu0 0.0
      %6262 = vmatpush1.msra.mxu0 0.0
      %6263 = vmatprep.subr.mxu0 0.0
      %6264 = vmatpush1.msra.mxu0 0.0
      %6265 = vmatprep.subr.mxu0 0.0
      %6266 = vmatpush1.msra.mxu0 0.0
      %6267 = vmatprep.subr.mxu0 0.0
      %6268 = vmatpush1.msra.mxu0 0.0
      %6269 = vmatprep.subr.mxu0 0.0
      %6270 = vmatpush1.msra.mxu0 0.0
      %6271 = vmatprep.mubr.f32.mxu0 0.0
      %6272 = vmatmul.mubr.f32.gmra.mrb[0].mxu0 %v6172
      %v6273 = vpop.f32.mrb[0].mxu0
      %v6274 = vadd.f32 0.0, %v6273
      %v6275 = vpop.f32.mrb[0].mxu0
      %6276 = vmatprep.mubr.f32.mxu0 0.0
      %6277 = vmatmul.mubr.f32.gmra.mrb[0].mxu0 %v6173
      %v6278 = vpop.f32.mrb[0].mxu0
      %v6279 = vadd.f32 0.0, %v6278
      %v6280 = vpop.f32.mrb[0].mxu0
      %6281 = vmatprep.mubr.f32.mxu0 0.0
      %6282 = vmatmul.mubr.f32.gmra.mrb[0].mxu0 %v6174
      %v6283 = vpop.f32.mrb[0].mxu0
      %v6284 = vadd.f32 0.0, %v6283
      %v6285 = vpop.f32.mrb[0].mxu0
      %6286 = vmatprep.mubr.f32.mxu0 0.0
      %6287 = vmatmul.mubr.f32.gmra.mrb[0].mxu0 %v6175
      %v6288 = vpop.f32.mrb[0].mxu0
      %v6289 = vadd.f32 0.0, %v6288
      %v6290 = vpop.f32.mrb[0].mxu0
      %6291 = vmatprep.mubr.f32.mxu0 0.0
      %6292 = vmatmul.mubr.f32.gmra.mrb[0].mxu0 %v6176
      %v6293 = vpop.f32.mrb[0].mxu0
      %v6294 = vadd.f32 0.0, %v6293
      %v6295 = vpop.f32.mrb[0].mxu0
      %6296 = vmatprep.mubr.f32.mxu0 0.0
      %6297 = vmatmul.mubr.f32.gmra.mrb[0].mxu0 %v6177
      %v6298 = vpop.f32.mrb[0].mxu0
      %v6299 = vadd.f32 0.0, %v6298
      %v6300 = vpop.f32.mrb[0].mxu0
      %6301 = vmatprep.mubr.f32.mxu0 0.0
      %6302 = vmatmul.mubr.f32.gmra.mrb[0].mxu0 %v6178
      %v6303 = vpop.f32.mrb[0].mxu0
      %v6304 = vadd.f32 0.0, %v6303
      %v6305 = vpop.f32.mrb[0].mxu0
      %6306 = vmatprep.mubr.f32.mxu0 0.0
      %6307 = vmatmul.mubr.f32.gmra.mrb[0].mxu0 %v6179
      %v6308 = vpop.f32.mrb[0].mxu0
      %v6309 = vadd.f32 0.0, %v6308
      %v6310 = vpop.f32.mrb[0].mxu0
      %6311 = vmatprep.mubr.f32.mxu0 0.0
      %6312 = vmatmul.mubr.f32.gmra.mrb[0].mxu0 %v6180
      %v6313 = vpop.f32.mrb[0].mxu0
      %v6314 = vadd.f32 0.0, %v6313
      %v6315 = vpop.f32.mrb[0].mxu0
      %6316 = vmatprep.mubr.f32.mxu0 0.0
      %6317 = vmatmul.mubr.f32.gmra.mrb[0].mxu0 %v6181
      %v6318 = vpop.f32.mrb[0].mxu0
      %v6319 = vadd.f32 0.0, %v6318
      %v6320 = vpop.f32.mrb[0].mxu0
      %6321 = vmatprep.mubr.f32.mxu0 0.0
      %6322 = vmatmul.mubr.f32.gmra.mrb[0].mxu0 %v6182
      %v6323 = vpop.f32.mrb[0].mxu0
      %v6324 = vadd.f32 0.0, %v6323
      %v6325 = vpop.f32.mrb[0].mxu0
      %6326 = vmatprep.mubr.f32.mxu0 0.0
      %6327 = vmatmul.mubr.f32.gmra.mrb[0].mxu0 %v6183
      %v6328 = vpop.f32.mrb[0].mxu0
      %v6329 = vadd.f32 0.0, %v6328
      %v6330 = vpop.f32.mrb[0].mxu0
      %6331 = vmatprep.mubr.f32.mxu0 0.0
      %6332 = vmatmul.mubr.f32.gmra.mrb[0].mxu0 %v6184
      %v6333 = vpop.f32.mrb[0].mxu0
      %v6334 = vadd.f32 0.0, %v6333
      %v6335 = vpop.f32.mrb[0].mxu0
      %6336 = vmatprep.mubr.f32.mxu0 0.0
      %6337 = vmatmul.mubr.f32.gmra.mrb[0].mxu0 %v6185
      %v6338 = vpop.f32.mrb[0].mxu0
      %v6339 = vadd.f32 0.0, %v6338
      %v6340 = vpop.f32.mrb[0].mxu0
      %6341 = vmatprep.mubr.f32.mxu0 0.0
      %6342 = vmatmul.mubr.f32.gmra.mrb[0].mxu0 %v6186
      %v6343 = vpop.f32.mrb[0].mxu0
      %v6344 = vadd.f32 0.0, %v6343
      %v6345 = vpop.f32.mrb[0].mxu0
      %6346 = vmatprep.mubr.f32.mxu0 0.0
      %6347 = vmatmul.mubr.f32.gmra.mrb[0].mxu0 %v6187
      %v6348 = vpop.f32.mrb[0].mxu0
      %v6349 = vadd.f32 0.0, %v6348
      %v6350 = vpop.f32.mrb[0].mxu0
      %6351 = vmatprep.mubr.f32.mxu0 0.0
      %6352 = vmatmul.mubr.f32.gmra.mrb[0].mxu0 %v6188
      %v6353 = vpop.f32.mrb[0].mxu0
      %v6354 = vadd.f32 0.0, %v6353
      %v6355 = vpop.f32.mrb[0].mxu0
      %6356 = vmatprep.mubr.f32.mxu0 0.0
      %6357 = vmatmul.mubr.f32.gmra.mrb[0].mxu0 %v6189
      %v6358 = vpop.f32.mrb[0].mxu0
      %v6359 = vadd.f32 0.0, %v6358
      %v6360 = vpop.f32.mrb[0].mxu0
      %6361 = vdwg.mxu0
      %v6362 = vadd.f32 %v6154, %v6274
      %v6363 = vadd.f32 %v6155, %v6279
      %v6364 = vadd.f32 %v6156, %v6284
      %v6365 = vadd.f32 %v6157, %v6289
      %v6366 = vadd.f32 %v6158, %v6294
      %v6367 = vadd.f32 %v6159, %v6299
      %v6368 = vadd.f32 %v6160, %v6304
      %v6369 = vadd.f32 %v6161, %v6309
      %v6370 = vadd.f32 %v6162, %v6314
      %v6371 = vadd.f32 %v6163, %v6319
      %v6372 = vadd.f32 %v6164, %v6324
      %v6373 = vadd.f32 %v6165, %v6329
      %v6374 = vadd.f32 %v6166, %v6334
      %v6375 = vadd.f32 %v6167, %v6339
      %v6376 = vadd.f32 %v6168, %v6344
      %v6377 = vadd.f32 %v6169, %v6349
      %v6378 = vadd.f32 %v6170, %v6354
      %v6379 = vadd.f32 %v6171, %v6359
      %v6380 = vld [vmem:[#allocation2 + $0x24] sm:$0xff]
      %v6381 = vld [vmem:[#allocation2 + $0x2c] sm:$0xff]
      %v6382 = vld [vmem:[#allocation2 + $0x34] sm:$0xff]
      %v6383 = vld [vmem:[#allocation2 + $0x3c] sm:$0xff]
      %v6384 = vld [vmem:[#allocation2 + $0x44] sm:$0xff]
      %v6385 = vld [vmem:[#allocation2 + $0x4c] sm:$0xff]
      %v6386 = vld [vmem:[#allocation2 + $0x54] sm:$0xff]
      %v6387 = vld [vmem:[#allocation2 + $0x5c] sm:$0xff]
      %v6388 = vld [vmem:[#allocation2 + $0x64] sm:$0xff]
      %v6389 = vld [vmem:[#allocation2 + $0x6c] sm:$0xff]
      %v6390 = vld [vmem:[#allocation2 + $0x74] sm:$0xff]
      %v6391 = vld [vmem:[#allocation2 + $0x7c] sm:$0xff]
      %v6392 = vld [vmem:[#allocation2 + $0x84] sm:$0xff]
      %v6393 = vld [vmem:[#allocation2 + $0x8c] sm:$0xff]
      %v6394 = vld [vmem:[#allocation2 + $0x94] sm:$0xff]
      %v6395 = vld [vmem:[#allocation2 + $0x9c] sm:$0xff]
      %v6396 = vld [vmem:[#allocation2 + $0xa4] sm:$0xff]
      %v6397 = vld [vmem:[#allocation2 + $0xac] sm:$0xff]
      %s6398 = scalar_lea.vmem %s3, 768
      %v6399 = vld [vmem:[%s6398] sm:$0xff]
      %v6400 = vld [vmem:[%s6398 + $0x8] sm:$0xff]
      %v6401 = vld [vmem:[%s6398 + $0x10] sm:$0xff]
      %v6402 = vld [vmem:[%s6398 + $0x18] sm:$0xff]
      %v6403 = vld [vmem:[%s6398 + $0x20] sm:$0xff]
      %v6404 = vld [vmem:[%s6398 + $0x28] sm:$0xff]
      %v6405 = vld [vmem:[%s6398 + $0x30] sm:$0xff]
      %v6406 = vld [vmem:[%s6398 + $0x38] sm:$0xff]
      %v6407 = vld [vmem:[%s6398 + $0x40] sm:$0xff]
      %v6408 = vld [vmem:[%s6398 + $0x48] sm:$0xff]
      %v6409 = vld [vmem:[%s6398 + $0x50] sm:$0xff]
      %v6410 = vld [vmem:[%s6398 + $0x58] sm:$0xff]
      %v6411 = vld [vmem:[%s6398 + $0x60] sm:$0xff]
      %v6412 = vld [vmem:[%s6398 + $0x68] sm:$0xff]
      %v6413 = vld [vmem:[%s6398 + $0x70] sm:$0xff]
      %v6414 = vld [vmem:[%s6398 + $0x78] sm:$0xff]
      %6415 = vmatprep.subr.mxu0 0.0
      %6416 = vmatpush1.msra.mxu0 %v6399
      %6417 = vmatprep.subr.mxu0 0.0
      %6418 = vmatpush1.msra.mxu0 %v6400
      %6419 = vmatprep.subr.mxu0 0.0
      %6420 = vmatpush1.msra.mxu0 %v6401
      %6421 = vmatprep.subr.mxu0 0.0
      %6422 = vmatpush1.msra.mxu0 %v6402
      %6423 = vmatprep.subr.mxu0 0.0
      %6424 = vmatpush1.msra.mxu0 %v6403
      %6425 = vmatprep.subr.mxu0 0.0
      %6426 = vmatpush1.msra.mxu0 %v6404
      %6427 = vmatprep.subr.mxu0 0.0
      %6428 = vmatpush1.msra.mxu0 %v6405
      %6429 = vmatprep.subr.mxu0 0.0
      %6430 = vmatpush1.msra.mxu0 %v6406
      %6431 = vmatprep.subr.mxu0 0.0
      %6432 = vmatpush1.msra.mxu0 %v6407
      %6433 = vmatprep.subr.mxu0 0.0
      %6434 = vmatpush1.msra.mxu0 %v6408
      %6435 = vmatprep.subr.mxu0 0.0
      %6436 = vmatpush1.msra.mxu0 %v6409
      %6437 = vmatprep.subr.mxu0 0.0
      %6438 = vmatpush1.msra.mxu0 %v6410
      %6439 = vmatprep.subr.mxu0 0.0
      %6440 = vmatpush1.msra.mxu0 %v6411
      %6441 = vmatprep.subr.mxu0 0.0
      %6442 = vmatpush1.msra.mxu0 %v6412
      %6443 = vmatprep.subr.mxu0 0.0
      %6444 = vmatpush1.msra.mxu0 %v6413
      %6445 = vmatprep.subr.mxu0 0.0
      %6446 = vmatpush1.msra.mxu0 %v6414
      %6447 = vmatprep.subr.mxu0 0.0
      %6448 = vmatpush1.msra.mxu0 0.0
      %6449 = vmatprep.subr.mxu0 0.0
      %6450 = vmatpush1.msra.mxu0 0.0
      %6451 = vmatprep.subr.mxu0 0.0
      %6452 = vmatpush1.msra.mxu0 0.0
      %6453 = vmatprep.subr.mxu0 0.0
      %6454 = vmatpush1.msra.mxu0 0.0
      %6455 = vmatprep.subr.mxu0 0.0
      %6456 = vmatpush1.msra.mxu0 0.0
      %6457 = vmatprep.subr.mxu0 0.0
      %6458 = vmatpush1.msra.mxu0 0.0
      %6459 = vmatprep.subr.mxu0 0.0
      %6460 = vmatpush1.msra.mxu0 0.0
      %6461 = vmatprep.subr.mxu0 0.0
      %6462 = vmatpush1.msra.mxu0 0.0
      %6463 = vmatprep.subr.mxu0 0.0
      %6464 = vmatpush1.msra.mxu0 0.0
      %6465 = vmatprep.subr.mxu0 0.0
      %6466 = vmatpush1.msra.mxu0 0.0
      %6467 = vmatprep.subr.mxu0 0.0
      %6468 = vmatpush1.msra.mxu0 0.0
      %6469 = vmatprep.subr.mxu0 0.0
      %6470 = vmatpush1.msra.mxu0 0.0
      %6471 = vmatprep.subr.mxu0 0.0
      %6472 = vmatpush1.msra.mxu0 0.0
      %6473 = vmatprep.subr.mxu0 0.0
      %6474 = vmatpush1.msra.mxu0 0.0
      %6475 = vmatprep.subr.mxu0 0.0
      %6476 = vmatpush1.msra.mxu0 0.0
      %6477 = vmatprep.subr.mxu0 0.0
      %6478 = vmatpush1.msra.mxu0 0.0
      %6479 = vmatprep.mubr.f32.mxu0 0.0
      %6480 = vmatmul.mubr.f32.gmra.mrb[0].mxu0 %v6380
      %v6481 = vpop.f32.mrb[0].mxu0
      %v6482 = vadd.f32 0.0, %v6481
      %v6483 = vpop.f32.mrb[0].mxu0
      %6484 = vmatprep.mubr.f32.mxu0 0.0
      %6485 = vmatmul.mubr.f32.gmra.mrb[0].mxu0 %v6381
      %v6486 = vpop.f32.mrb[0].mxu0
      %v6487 = vadd.f32 0.0, %v6486
      %v6488 = vpop.f32.mrb[0].mxu0
      %6489 = vmatprep.mubr.f32.mxu0 0.0
      %6490 = vmatmul.mubr.f32.gmra.mrb[0].mxu0 %v6382
      %v6491 = vpop.f32.mrb[0].mxu0
      %v6492 = vadd.f32 0.0, %v6491
      %v6493 = vpop.f32.mrb[0].mxu0
      %6494 = vmatprep.mubr.f32.mxu0 0.0
      %6495 = vmatmul.mubr.f32.gmra.mrb[0].mxu0 %v6383
      %v6496 = vpop.f32.mrb[0].mxu0
      %v6497 = vadd.f32 0.0, %v6496
      %v6498 = vpop.f32.mrb[0].mxu0
      %6499 = vmatprep.mubr.f32.mxu0 0.0
      %6500 = vmatmul.mubr.f32.gmra.mrb[0].mxu0 %v6384
      %v6501 = vpop.f32.mrb[0].mxu0
      %v6502 = vadd.f32 0.0, %v6501
      %v6503 = vpop.f32.mrb[0].mxu0
      %6504 = vmatprep.mubr.f32.mxu0 0.0
      %6505 = vmatmul.mubr.f32.gmra.mrb[0].mxu0 %v6385
      %v6506 = vpop.f32.mrb[0].mxu0
      %v6507 = vadd.f32 0.0, %v6506
      %v6508 = vpop.f32.mrb[0].mxu0
      %6509 = vmatprep.mubr.f32.mxu0 0.0
      %6510 = vmatmul.mubr.f32.gmra.mrb[0].mxu0 %v6386
      %v6511 = vpop.f32.mrb[0].mxu0
      %v6512 = vadd.f32 0.0, %v6511
      %v6513 = vpop.f32.mrb[0].mxu0
      %6514 = vmatprep.mubr.f32.mxu0 0.0
      %6515 = vmatmul.mubr.f32.gmra.mrb[0].mxu0 %v6387
      %v6516 = vpop.f32.mrb[0].mxu0
      %v6517 = vadd.f32 0.0, %v6516
      %v6518 = vpop.f32.mrb[0].mxu0
      %6519 = vmatprep.mubr.f32.mxu0 0.0
      %6520 = vmatmul.mubr.f32.gmra.mrb[0].mxu0 %v6388
      %v6521 = vpop.f32.mrb[0].mxu0
      %v6522 = vadd.f32 0.0, %v6521
      %v6523 = vpop.f32.mrb[0].mxu0
      %6524 = vmatprep.mubr.f32.mxu0 0.0
      %6525 = vmatmul.mubr.f32.gmra.mrb[0].mxu0 %v6389
      %v6526 = vpop.f32.mrb[0].mxu0
      %v6527 = vadd.f32 0.0, %v6526
      %v6528 = vpop.f32.mrb[0].mxu0
      %6529 = vmatprep.mubr.f32.mxu0 0.0
      %6530 = vmatmul.mubr.f32.gmra.mrb[0].mxu0 %v6390
      %v6531 = vpop.f32.mrb[0].mxu0
      %v6532 = vadd.f32 0.0, %v6531
      %v6533 = vpop.f32.mrb[0].mxu0
      %6534 = vmatprep.mubr.f32.mxu0 0.0
      %6535 = vmatmul.mubr.f32.gmra.mrb[0].mxu0 %v6391
      %v6536 = vpop.f32.mrb[0].mxu0
      %v6537 = vadd.f32 0.0, %v6536
      %v6538 = vpop.f32.mrb[0].mxu0
      %6539 = vmatprep.mubr.f32.mxu0 0.0
      %6540 = vmatmul.mubr.f32.gmra.mrb[0].mxu0 %v6392
      %v6541 = vpop.f32.mrb[0].mxu0
      %v6542 = vadd.f32 0.0, %v6541
      %v6543 = vpop.f32.mrb[0].mxu0
      %6544 = vmatprep.mubr.f32.mxu0 0.0
      %6545 = vmatmul.mubr.f32.gmra.mrb[0].mxu0 %v6393
      %v6546 = vpop.f32.mrb[0].mxu0
      %v6547 = vadd.f32 0.0, %v6546
      %v6548 = vpop.f32.mrb[0].mxu0
      %6549 = vmatprep.mubr.f32.mxu0 0.0
      %6550 = vmatmul.mubr.f32.gmra.mrb[0].mxu0 %v6394
      %v6551 = vpop.f32.mrb[0].mxu0
      %v6552 = vadd.f32 0.0, %v6551
      %v6553 = vpop.f32.mrb[0].mxu0
      %6554 = vmatprep.mubr.f32.mxu0 0.0
      %6555 = vmatmul.mubr.f32.gmra.mrb[0].mxu0 %v6395
      %v6556 = vpop.f32.mrb[0].mxu0
      %v6557 = vadd.f32 0.0, %v6556
      %v6558 = vpop.f32.mrb[0].mxu0
      %6559 = vmatprep.mubr.f32.mxu0 0.0
      %6560 = vmatmul.mubr.f32.gmra.mrb[0].mxu0 %v6396
      %v6561 = vpop.f32.mrb[0].mxu0
      %v6562 = vadd.f32 0.0, %v6561
      %v6563 = vpop.f32.mrb[0].mxu0
      %6564 = vmatprep.mubr.f32.mxu0 0.0
      %6565 = vmatmul.mubr.f32.gmra.mrb[0].mxu0 %v6397
      %v6566 = vpop.f32.mrb[0].mxu0
      %v6567 = vadd.f32 0.0, %v6566
      %v6568 = vpop.f32.mrb[0].mxu0
      %6569 = vdwg.mxu0
      %v6570 = vadd.f32 %v6362, %v6482
      %v6571 = vadd.f32 %v6363, %v6487
      %v6572 = vadd.f32 %v6364, %v6492
      %v6573 = vadd.f32 %v6365, %v6497
      %v6574 = vadd.f32 %v6366, %v6502
      %v6575 = vadd.f32 %v6367, %v6507
      %v6576 = vadd.f32 %v6368, %v6512
      %v6577 = vadd.f32 %v6369, %v6517
      %v6578 = vadd.f32 %v6370, %v6522
      %v6579 = vadd.f32 %v6371, %v6527
      %v6580 = vadd.f32 %v6372, %v6532
      %v6581 = vadd.f32 %v6373, %v6537
      %v6582 = vadd.f32 %v6374, %v6542
      %v6583 = vadd.f32 %v6375, %v6547
      %v6584 = vadd.f32 %v6376, %v6552
      %v6585 = vadd.f32 %v6377, %v6557
      %v6586 = vadd.f32 %v6378, %v6562
      %v6587 = vadd.f32 %v6379, %v6567
      %v6588 = vld [vmem:[#allocation2 + $0x25] sm:$0xff]
      %v6589 = vld [vmem:[#allocation2 + $0x2d] sm:$0xff]
      %v6590 = vld [vmem:[#allocation2 + $0x35] sm:$0xff]
      %v6591 = vld [vmem:[#allocation2 + $0x3d] sm:$0xff]
      %v6592 = vld [vmem:[#allocation2 + $0x45] sm:$0xff]
      %v6593 = vld [vmem:[#allocation2 + $0x4d] sm:$0xff]
      %v6594 = vld [vmem:[#allocation2 + $0x55] sm:$0xff]
      %v6595 = vld [vmem:[#allocation2 + $0x5d] sm:$0xff]
      %v6596 = vld [vmem:[#allocation2 + $0x65] sm:$0xff]
      %v6597 = vld [vmem:[#allocation2 + $0x6d] sm:$0xff]
      %v6598 = vld [vmem:[#allocation2 + $0x75] sm:$0xff]
      %v6599 = vld [vmem:[#allocation2 + $0x7d] sm:$0xff]
      %v6600 = vld [vmem:[#allocation2 + $0x85] sm:$0xff]
      %v6601 = vld [vmem:[#allocation2 + $0x8d] sm:$0xff]
      %v6602 = vld [vmem:[#allocation2 + $0x95] sm:$0xff]
      %v6603 = vld [vmem:[#allocation2 + $0x9d] sm:$0xff]
      %v6604 = vld [vmem:[#allocation2 + $0xa5] sm:$0xff]
      %v6605 = vld [vmem:[#allocation2 + $0xad] sm:$0xff]
      %s6606 = scalar_lea.vmem %s3, 896
      %v6607 = vld [vmem:[%s6606] sm:$0xff]
      %v6608 = vld [vmem:[%s6606 + $0x8] sm:$0xff]
      %v6609 = vld [vmem:[%s6606 + $0x10] sm:$0xff]
      %v6610 = vld [vmem:[%s6606 + $0x18] sm:$0xff]
      %v6611 = vld [vmem:[%s6606 + $0x20] sm:$0xff]
      %v6612 = vld [vmem:[%s6606 + $0x28] sm:$0xff]
      %v6613 = vld [vmem:[%s6606 + $0x30] sm:$0xff]
      %v6614 = vld [vmem:[%s6606 + $0x38] sm:$0xff]
      %v6615 = vld [vmem:[%s6606 + $0x40] sm:$0xff]
      %v6616 = vld [vmem:[%s6606 + $0x48] sm:$0xff]
      %v6617 = vld [vmem:[%s6606 + $0x50] sm:$0xff]
      %v6618 = vld [vmem:[%s6606 + $0x58] sm:$0xff]
      %v6619 = vld [vmem:[%s6606 + $0x60] sm:$0xff]
      %v6620 = vld [vmem:[%s6606 + $0x68] sm:$0xff]
      %v6621 = vld [vmem:[%s6606 + $0x70] sm:$0xff]
      %v6622 = vld [vmem:[%s6606 + $0x78] sm:$0xff]
      %6623 = vmatprep.subr.mxu0 0.0
      %6624 = vmatpush1.msra.mxu0 %v6607
      %6625 = vmatprep.subr.mxu0 0.0
      %6626 = vmatpush1.msra.mxu0 %v6608
      %6627 = vmatprep.subr.mxu0 0.0
      %6628 = vmatpush1.msra.mxu0 %v6609
      %6629 = vmatprep.subr.mxu0 0.0
      %6630 = vmatpush1.msra.mxu0 %v6610
      %6631 = vmatprep.subr.mxu0 0.0
      %6632 = vmatpush1.msra.mxu0 %v6611
      %6633 = vmatprep.subr.mxu0 0.0
      %6634 = vmatpush1.msra.mxu0 %v6612
      %6635 = vmatprep.subr.mxu0 0.0
      %6636 = vmatpush1.msra.mxu0 %v6613
      %6637 = vmatprep.subr.mxu0 0.0
      %6638 = vmatpush1.msra.mxu0 %v6614
      %6639 = vmatprep.subr.mxu0 0.0
      %6640 = vmatpush1.msra.mxu0 %v6615
      %6641 = vmatprep.subr.mxu0 0.0
      %6642 = vmatpush1.msra.mxu0 %v6616
      %6643 = vmatprep.subr.mxu0 0.0
      %6644 = vmatpush1.msra.mxu0 %v6617
      %6645 = vmatprep.subr.mxu0 0.0
      %6646 = vmatpush1.msra.mxu0 %v6618
      %6647 = vmatprep.subr.mxu0 0.0
      %6648 = vmatpush1.msra.mxu0 %v6619
      %6649 = vmatprep.subr.mxu0 0.0
      %6650 = vmatpush1.msra.mxu0 %v6620
      %6651 = vmatprep.subr.mxu0 0.0
      %6652 = vmatpush1.msra.mxu0 %v6621
      %6653 = vmatprep.subr.mxu0 0.0
      %6654 = vmatpush1.msra.mxu0 %v6622
      %6655 = vmatprep.subr.mxu0 0.0
      %6656 = vmatpush1.msra.mxu0 0.0
      %6657 = vmatprep.subr.mxu0 0.0
      %6658 = vmatpush1.msra.mxu0 0.0
      %6659 = vmatprep.subr.mxu0 0.0
      %6660 = vmatpush1.msra.mxu0 0.0
      %6661 = vmatprep.subr.mxu0 0.0
      %6662 = vmatpush1.msra.mxu0 0.0
      %6663 = vmatprep.subr.mxu0 0.0
      %6664 = vmatpush1.msra.mxu0 0.0
      %6665 = vmatprep.subr.mxu0 0.0
      %6666 = vmatpush1.msra.mxu0 0.0
      %6667 = vmatprep.subr.mxu0 0.0
      %6668 = vmatpush1.msra.mxu0 0.0
      %6669 = vmatprep.subr.mxu0 0.0
      %6670 = vmatpush1.msra.mxu0 0.0
      %6671 = vmatprep.subr.mxu0 0.0
      %6672 = vmatpush1.msra.mxu0 0.0
      %6673 = vmatprep.subr.mxu0 0.0
      %6674 = vmatpush1.msra.mxu0 0.0
      %6675 = vmatprep.subr.mxu0 0.0
      %6676 = vmatpush1.msra.mxu0 0.0
      %6677 = vmatprep.subr.mxu0 0.0
      %6678 = vmatpush1.msra.mxu0 0.0
      %6679 = vmatprep.subr.mxu0 0.0
      %6680 = vmatpush1.msra.mxu0 0.0
      %6681 = vmatprep.subr.mxu0 0.0
      %6682 = vmatpush1.msra.mxu0 0.0
      %6683 = vmatprep.subr.mxu0 0.0
      %6684 = vmatpush1.msra.mxu0 0.0
      %6685 = vmatprep.subr.mxu0 0.0
      %6686 = vmatpush1.msra.mxu0 0.0
      %6687 = vmatprep.mubr.f32.mxu0 0.0
      %6688 = vmatmul.mubr.f32.gmra.mrb[0].mxu0 %v6588
      %v6689 = vpop.f32.mrb[0].mxu0
      %v6690 = vadd.f32 0.0, %v6689
      %v6691 = vpop.f32.mrb[0].mxu0
      %6692 = vmatprep.mubr.f32.mxu0 0.0
      %6693 = vmatmul.mubr.f32.gmra.mrb[0].mxu0 %v6589
      %v6694 = vpop.f32.mrb[0].mxu0
      %v6695 = vadd.f32 0.0, %v6694
      %v6696 = vpop.f32.mrb[0].mxu0
      %6697 = vmatprep.mubr.f32.mxu0 0.0
      %6698 = vmatmul.mubr.f32.gmra.mrb[0].mxu0 %v6590
      %v6699 = vpop.f32.mrb[0].mxu0
      %v6700 = vadd.f32 0.0, %v6699
      %v6701 = vpop.f32.mrb[0].mxu0
      %6702 = vmatprep.mubr.f32.mxu0 0.0
      %6703 = vmatmul.mubr.f32.gmra.mrb[0].mxu0 %v6591
      %v6704 = vpop.f32.mrb[0].mxu0
      %v6705 = vadd.f32 0.0, %v6704
      %v6706 = vpop.f32.mrb[0].mxu0
      %6707 = vmatprep.mubr.f32.mxu0 0.0
      %6708 = vmatmul.mubr.f32.gmra.mrb[0].mxu0 %v6592
      %v6709 = vpop.f32.mrb[0].mxu0
      %v6710 = vadd.f32 0.0, %v6709
      %v6711 = vpop.f32.mrb[0].mxu0
      %6712 = vmatprep.mubr.f32.mxu0 0.0
      %6713 = vmatmul.mubr.f32.gmra.mrb[0].mxu0 %v6593
      %v6714 = vpop.f32.mrb[0].mxu0
      %v6715 = vadd.f32 0.0, %v6714
      %v6716 = vpop.f32.mrb[0].mxu0
      %6717 = vmatprep.mubr.f32.mxu0 0.0
      %6718 = vmatmul.mubr.f32.gmra.mrb[0].mxu0 %v6594
      %v6719 = vpop.f32.mrb[0].mxu0
      %v6720 = vadd.f32 0.0, %v6719
      %v6721 = vpop.f32.mrb[0].mxu0
      %6722 = vmatprep.mubr.f32.mxu0 0.0
      %6723 = vmatmul.mubr.f32.gmra.mrb[0].mxu0 %v6595
      %v6724 = vpop.f32.mrb[0].mxu0
      %v6725 = vadd.f32 0.0, %v6724
      %v6726 = vpop.f32.mrb[0].mxu0
      %6727 = vmatprep.mubr.f32.mxu0 0.0
      %6728 = vmatmul.mubr.f32.gmra.mrb[0].mxu0 %v6596
      %v6729 = vpop.f32.mrb[0].mxu0
      %v6730 = vadd.f32 0.0, %v6729
      %v6731 = vpop.f32.mrb[0].mxu0
      %6732 = vmatprep.mubr.f32.mxu0 0.0
      %6733 = vmatmul.mubr.f32.gmra.mrb[0].mxu0 %v6597
      %v6734 = vpop.f32.mrb[0].mxu0
      %v6735 = vadd.f32 0.0, %v6734
      %v6736 = vpop.f32.mrb[0].mxu0
      %6737 = vmatprep.mubr.f32.mxu0 0.0
      %6738 = vmatmul.mubr.f32.gmra.mrb[0].mxu0 %v6598
      %v6739 = vpop.f32.mrb[0].mxu0
      %v6740 = vadd.f32 0.0, %v6739
      %v6741 = vpop.f32.mrb[0].mxu0
      %6742 = vmatprep.mubr.f32.mxu0 0.0
      %6743 = vmatmul.mubr.f32.gmra.mrb[0].mxu0 %v6599
      %v6744 = vpop.f32.mrb[0].mxu0
      %v6745 = vadd.f32 0.0, %v6744
      %v6746 = vpop.f32.mrb[0].mxu0
      %6747 = vmatprep.mubr.f32.mxu0 0.0
      %6748 = vmatmul.mubr.f32.gmra.mrb[0].mxu0 %v6600
      %v6749 = vpop.f32.mrb[0].mxu0
      %v6750 = vadd.f32 0.0, %v6749
      %v6751 = vpop.f32.mrb[0].mxu0
      %6752 = vmatprep.mubr.f32.mxu0 0.0
      %6753 = vmatmul.mubr.f32.gmra.mrb[0].mxu0 %v6601
      %v6754 = vpop.f32.mrb[0].mxu0
      %v6755 = vadd.f32 0.0, %v6754
      %v6756 = vpop.f32.mrb[0].mxu0
      %6757 = vmatprep.mubr.f32.mxu0 0.0
      %6758 = vmatmul.mubr.f32.gmra.mrb[0].mxu0 %v6602
      %v6759 = vpop.f32.mrb[0].mxu0
      %v6760 = vadd.f32 0.0, %v6759
      %v6761 = vpop.f32.mrb[0].mxu0
      %6762 = vmatprep.mubr.f32.mxu0 0.0
      %6763 = vmatmul.mubr.f32.gmra.mrb[0].mxu0 %v6603
      %v6764 = vpop.f32.mrb[0].mxu0
      %v6765 = vadd.f32 0.0, %v6764
      %v6766 = vpop.f32.mrb[0].mxu0
      %6767 = vmatprep.mubr.f32.mxu0 0.0
      %6768 = vmatmul.mubr.f32.gmra.mrb[0].mxu0 %v6604
      %v6769 = vpop.f32.mrb[0].mxu0
      %v6770 = vadd.f32 0.0, %v6769
      %v6771 = vpop.f32.mrb[0].mxu0
      %6772 = vmatprep.mubr.f32.mxu0 0.0
      %6773 = vmatmul.mubr.f32.gmra.mrb[0].mxu0 %v6605
      %v6774 = vpop.f32.mrb[0].mxu0
      %v6775 = vadd.f32 0.0, %v6774
      %v6776 = vpop.f32.mrb[0].mxu0
      %6777 = vdwg.mxu0
      %v6778 = vadd.f32 %v6570, %v6690
      %v6779 = vadd.f32 %v6571, %v6695
      %v6780 = vadd.f32 %v6572, %v6700
      %v6781 = vadd.f32 %v6573, %v6705
      %v6782 = vadd.f32 %v6574, %v6710
      %v6783 = vadd.f32 %v6575, %v6715
      %v6784 = vadd.f32 %v6576, %v6720
      %v6785 = vadd.f32 %v6577, %v6725
      %v6786 = vadd.f32 %v6578, %v6730
      %v6787 = vadd.f32 %v6579, %v6735
      %v6788 = vadd.f32 %v6580, %v6740
      %v6789 = vadd.f32 %v6581, %v6745
      %v6790 = vadd.f32 %v6582, %v6750
      %v6791 = vadd.f32 %v6583, %v6755
      %v6792 = vadd.f32 %v6584, %v6760
      %v6793 = vadd.f32 %v6585, %v6765
      %v6794 = vadd.f32 %v6586, %v6770
      %v6795 = vadd.f32 %v6587, %v6775
      %v6796 = vld [vmem:[#allocation2 + $0x26] sm:$0xff]
      %v6797 = vld [vmem:[#allocation2 + $0x2e] sm:$0xff]
      %v6798 = vld [vmem:[#allocation2 + $0x36] sm:$0xff]
      %v6799 = vld [vmem:[#allocation2 + $0x3e] sm:$0xff]
      %v6800 = vld [vmem:[#allocation2 + $0x46] sm:$0xff]
      %v6801 = vld [vmem:[#allocation2 + $0x4e] sm:$0xff]
      %v6802 = vld [vmem:[#allocation2 + $0x56] sm:$0xff]
      %v6803 = vld [vmem:[#allocation2 + $0x5e] sm:$0xff]
      %v6804 = vld [vmem:[#allocation2 + $0x66] sm:$0xff]
      %v6805 = vld [vmem:[#allocation2 + $0x6e] sm:$0xff]
      %v6806 = vld [vmem:[#allocation2 + $0x76] sm:$0xff]
      %v6807 = vld [vmem:[#allocation2 + $0x7e] sm:$0xff]
      %v6808 = vld [vmem:[#allocation2 + $0x86] sm:$0xff]
      %v6809 = vld [vmem:[#allocation2 + $0x8e] sm:$0xff]
      %v6810 = vld [vmem:[#allocation2 + $0x96] sm:$0xff]
      %v6811 = vld [vmem:[#allocation2 + $0x9e] sm:$0xff]
      %v6812 = vld [vmem:[#allocation2 + $0xa6] sm:$0xff]
      %v6813 = vld [vmem:[#allocation2 + $0xae] sm:$0xff]
      %s6814 = scalar_lea.vmem %s3, 1024
      %v6815 = vld [vmem:[%s6814] sm:$0xff]
      %v6816 = vld [vmem:[%s6814 + $0x8] sm:$0xff]
      %v6817 = vld [vmem:[%s6814 + $0x10] sm:$0xff]
      %v6818 = vld [vmem:[%s6814 + $0x18] sm:$0xff]
      %v6819 = vld [vmem:[%s6814 + $0x20] sm:$0xff]
      %v6820 = vld [vmem:[%s6814 + $0x28] sm:$0xff]
      %v6821 = vld [vmem:[%s6814 + $0x30] sm:$0xff]
      %v6822 = vld [vmem:[%s6814 + $0x38] sm:$0xff]
      %v6823 = vld [vmem:[%s6814 + $0x40] sm:$0xff]
      %v6824 = vld [vmem:[%s6814 + $0x48] sm:$0xff]
      %v6825 = vld [vmem:[%s6814 + $0x50] sm:$0xff]
      %v6826 = vld [vmem:[%s6814 + $0x58] sm:$0xff]
      %v6827 = vld [vmem:[%s6814 + $0x60] sm:$0xff]
      %v6828 = vld [vmem:[%s6814 + $0x68] sm:$0xff]
      %v6829 = vld [vmem:[%s6814 + $0x70] sm:$0xff]
      %v6830 = vld [vmem:[%s6814 + $0x78] sm:$0xff]
      %6831 = vmatprep.subr.mxu0 0.0
      %6832 = vmatpush1.msra.mxu0 %v6815
      %6833 = vmatprep.subr.mxu0 0.0
      %6834 = vmatpush1.msra.mxu0 %v6816
      %6835 = vmatprep.subr.mxu0 0.0
      %6836 = vmatpush1.msra.mxu0 %v6817
      %6837 = vmatprep.subr.mxu0 0.0
      %6838 = vmatpush1.msra.mxu0 %v6818
      %6839 = vmatprep.subr.mxu0 0.0
      %6840 = vmatpush1.msra.mxu0 %v6819
      %6841 = vmatprep.subr.mxu0 0.0
      %6842 = vmatpush1.msra.mxu0 %v6820
      %6843 = vmatprep.subr.mxu0 0.0
      %6844 = vmatpush1.msra.mxu0 %v6821
      %6845 = vmatprep.subr.mxu0 0.0
      %6846 = vmatpush1.msra.mxu0 %v6822
      %6847 = vmatprep.subr.mxu0 0.0
      %6848 = vmatpush1.msra.mxu0 %v6823
      %6849 = vmatprep.subr.mxu0 0.0
      %6850 = vmatpush1.msra.mxu0 %v6824
      %6851 = vmatprep.subr.mxu0 0.0
      %6852 = vmatpush1.msra.mxu0 %v6825
      %6853 = vmatprep.subr.mxu0 0.0
      %6854 = vmatpush1.msra.mxu0 %v6826
      %6855 = vmatprep.subr.mxu0 0.0
      %6856 = vmatpush1.msra.mxu0 %v6827
      %6857 = vmatprep.subr.mxu0 0.0
      %6858 = vmatpush1.msra.mxu0 %v6828
      %6859 = vmatprep.subr.mxu0 0.0
      %6860 = vmatpush1.msra.mxu0 %v6829
      %6861 = vmatprep.subr.mxu0 0.0
      %6862 = vmatpush1.msra.mxu0 %v6830
      %6863 = vmatprep.subr.mxu0 0.0
      %6864 = vmatpush1.msra.mxu0 0.0
      %6865 = vmatprep.subr.mxu0 0.0
      %6866 = vmatpush1.msra.mxu0 0.0
      %6867 = vmatprep.subr.mxu0 0.0
      %6868 = vmatpush1.msra.mxu0 0.0
      %6869 = vmatprep.subr.mxu0 0.0
      %6870 = vmatpush1.msra.mxu0 0.0
      %6871 = vmatprep.subr.mxu0 0.0
      %6872 = vmatpush1.msra.mxu0 0.0
      %6873 = vmatprep.subr.mxu0 0.0
      %6874 = vmatpush1.msra.mxu0 0.0
      %6875 = vmatprep.subr.mxu0 0.0
      %6876 = vmatpush1.msra.mxu0 0.0
      %6877 = vmatprep.subr.mxu0 0.0
      %6878 = vmatpush1.msra.mxu0 0.0
      %6879 = vmatprep.subr.mxu0 0.0
      %6880 = vmatpush1.msra.mxu0 0.0
      %6881 = vmatprep.subr.mxu0 0.0
      %6882 = vmatpush1.msra.mxu0 0.0
      %6883 = vmatprep.subr.mxu0 0.0
      %6884 = vmatpush1.msra.mxu0 0.0
      %6885 = vmatprep.subr.mxu0 0.0
      %6886 = vmatpush1.msra.mxu0 0.0
      %6887 = vmatprep.subr.mxu0 0.0
      %6888 = vmatpush1.msra.mxu0 0.0
      %6889 = vmatprep.subr.mxu0 0.0
      %6890 = vmatpush1.msra.mxu0 0.0
      %6891 = vmatprep.subr.mxu0 0.0
      %6892 = vmatpush1.msra.mxu0 0.0
      %6893 = vmatprep.subr.mxu0 0.0
      %6894 = vmatpush1.msra.mxu0 0.0
      %6895 = vmatprep.mubr.f32.mxu0 0.0
      %6896 = vmatmul.mubr.f32.gmra.mrb[0].mxu0 %v6796
      %v6897 = vpop.f32.mrb[0].mxu0
      %v6898 = vadd.f32 0.0, %v6897
      %v6899 = vpop.f32.mrb[0].mxu0
      %6900 = vmatprep.mubr.f32.mxu0 0.0
      %6901 = vmatmul.mubr.f32.gmra.mrb[0].mxu0 %v6797
      %v6902 = vpop.f32.mrb[0].mxu0
      %v6903 = vadd.f32 0.0, %v6902
      %v6904 = vpop.f32.mrb[0].mxu0
      %6905 = vmatprep.mubr.f32.mxu0 0.0
      %6906 = vmatmul.mubr.f32.gmra.mrb[0].mxu0 %v6798
      %v6907 = vpop.f32.mrb[0].mxu0
      %v6908 = vadd.f32 0.0, %v6907
      %v6909 = vpop.f32.mrb[0].mxu0
      %6910 = vmatprep.mubr.f32.mxu0 0.0
      %6911 = vmatmul.mubr.f32.gmra.mrb[0].mxu0 %v6799
      %v6912 = vpop.f32.mrb[0].mxu0
      %v6913 = vadd.f32 0.0, %v6912
      %v6914 = vpop.f32.mrb[0].mxu0
      %6915 = vmatprep.mubr.f32.mxu0 0.0
      %6916 = vmatmul.mubr.f32.gmra.mrb[0].mxu0 %v6800
      %v6917 = vpop.f32.mrb[0].mxu0
      %v6918 = vadd.f32 0.0, %v6917
      %v6919 = vpop.f32.mrb[0].mxu0
      %6920 = vmatprep.mubr.f32.mxu0 0.0
      %6921 = vmatmul.mubr.f32.gmra.mrb[0].mxu0 %v6801
      %v6922 = vpop.f32.mrb[0].mxu0
      %v6923 = vadd.f32 0.0, %v6922
      %v6924 = vpop.f32.mrb[0].mxu0
      %6925 = vmatprep.mubr.f32.mxu0 0.0
      %6926 = vmatmul.mubr.f32.gmra.mrb[0].mxu0 %v6802
      %v6927 = vpop.f32.mrb[0].mxu0
      %v6928 = vadd.f32 0.0, %v6927
      %v6929 = vpop.f32.mrb[0].mxu0
      %6930 = vmatprep.mubr.f32.mxu0 0.0
      %6931 = vmatmul.mubr.f32.gmra.mrb[0].mxu0 %v6803
      %v6932 = vpop.f32.mrb[0].mxu0
      %v6933 = vadd.f32 0.0, %v6932
      %v6934 = vpop.f32.mrb[0].mxu0
      %6935 = vmatprep.mubr.f32.mxu0 0.0
      %6936 = vmatmul.mubr.f32.gmra.mrb[0].mxu0 %v6804
      %v6937 = vpop.f32.mrb[0].mxu0
      %v6938 = vadd.f32 0.0, %v6937
      %v6939 = vpop.f32.mrb[0].mxu0
      %6940 = vmatprep.mubr.f32.mxu0 0.0
      %6941 = vmatmul.mubr.f32.gmra.mrb[0].mxu0 %v6805
      %v6942 = vpop.f32.mrb[0].mxu0
      %v6943 = vadd.f32 0.0, %v6942
      %v6944 = vpop.f32.mrb[0].mxu0
      %6945 = vmatprep.mubr.f32.mxu0 0.0
      %6946 = vmatmul.mubr.f32.gmra.mrb[0].mxu0 %v6806
      %v6947 = vpop.f32.mrb[0].mxu0
      %v6948 = vadd.f32 0.0, %v6947
      %v6949 = vpop.f32.mrb[0].mxu0
      %6950 = vmatprep.mubr.f32.mxu0 0.0
      %6951 = vmatmul.mubr.f32.gmra.mrb[0].mxu0 %v6807
      %v6952 = vpop.f32.mrb[0].mxu0
      %v6953 = vadd.f32 0.0, %v6952
      %v6954 = vpop.f32.mrb[0].mxu0
      %6955 = vmatprep.mubr.f32.mxu0 0.0
      %6956 = vmatmul.mubr.f32.gmra.mrb[0].mxu0 %v6808
      %v6957 = vpop.f32.mrb[0].mxu0
      %v6958 = vadd.f32 0.0, %v6957
      %v6959 = vpop.f32.mrb[0].mxu0
      %6960 = vmatprep.mubr.f32.mxu0 0.0
      %6961 = vmatmul.mubr.f32.gmra.mrb[0].mxu0 %v6809
      %v6962 = vpop.f32.mrb[0].mxu0
      %v6963 = vadd.f32 0.0, %v6962
      %v6964 = vpop.f32.mrb[0].mxu0
      %6965 = vmatprep.mubr.f32.mxu0 0.0
      %6966 = vmatmul.mubr.f32.gmra.mrb[0].mxu0 %v6810
      %v6967 = vpop.f32.mrb[0].mxu0
      %v6968 = vadd.f32 0.0, %v6967
      %v6969 = vpop.f32.mrb[0].mxu0
      %6970 = vmatprep.mubr.f32.mxu0 0.0
      %6971 = vmatmul.mubr.f32.gmra.mrb[0].mxu0 %v6811
      %v6972 = vpop.f32.mrb[0].mxu0
      %v6973 = vadd.f32 0.0, %v6972
      %v6974 = vpop.f32.mrb[0].mxu0
      %6975 = vmatprep.mubr.f32.mxu0 0.0
      %6976 = vmatmul.mubr.f32.gmra.mrb[0].mxu0 %v6812
      %v6977 = vpop.f32.mrb[0].mxu0
      %v6978 = vadd.f32 0.0, %v6977
      %v6979 = vpop.f32.mrb[0].mxu0
      %6980 = vmatprep.mubr.f32.mxu0 0.0
      %6981 = vmatmul.mubr.f32.gmra.mrb[0].mxu0 %v6813
      %v6982 = vpop.f32.mrb[0].mxu0
      %v6983 = vadd.f32 0.0, %v6982
      %v6984 = vpop.f32.mrb[0].mxu0
      %6985 = vdwg.mxu0
      %v6986 = vadd.f32 %v6778, %v6898
      %v6987 = vadd.f32 %v6779, %v6903
      %v6988 = vadd.f32 %v6780, %v6908
      %v6989 = vadd.f32 %v6781, %v6913
      %v6990 = vadd.f32 %v6782, %v6918
      %v6991 = vadd.f32 %v6783, %v6923
      %v6992 = vadd.f32 %v6784, %v6928
      %v6993 = vadd.f32 %v6785, %v6933
      %v6994 = vadd.f32 %v6786, %v6938
      %v6995 = vadd.f32 %v6787, %v6943
      %v6996 = vadd.f32 %v6788, %v6948
      %v6997 = vadd.f32 %v6789, %v6953
      %v6998 = vadd.f32 %v6790, %v6958
      %v6999 = vadd.f32 %v6791, %v6963
      %v7000 = vadd.f32 %v6792, %v6968
      %v7001 = vadd.f32 %v6793, %v6973
      %v7002 = vadd.f32 %v6794, %v6978
      %v7003 = vadd.f32 %v6795, %v6983
      %v7004 = vld [vmem:[%s4] sm:$0x1]
      %v7006 = vlaneseq
      %v7007 = vshrl.u32 %v7006, 7
      %v7008 = vsub.s32 0, %v7007
      %v7009 = vrot.slane %v7004, %v7008
      %v7011 = vadd.f32 %v6986, %v7009
      %v7012 = vadd.f32 %v6987, %v7009
      %v7013 = vadd.f32 %v6988, %v7009
      %v7014 = vadd.f32 %v6989, %v7009
      %v7015 = vadd.f32 %v6990, %v7009
      %v7016 = vadd.f32 %v6991, %v7009
      %v7017 = vadd.f32 %v6992, %v7009
      %v7018 = vadd.f32 %v6993, %v7009
      %v7019 = vadd.f32 %v6994, %v7009
      %v7020 = vadd.f32 %v6995, %v7009
      %v7021 = vadd.f32 %v6996, %v7009
      %v7022 = vadd.f32 %v6997, %v7009
      %v7023 = vadd.f32 %v6998, %v7009
      %v7024 = vadd.f32 %v6999, %v7009
      %v7025 = vadd.f32 %v7000, %v7009
      %v7026 = vadd.f32 %v7001, %v7009
      %v7027 = vadd.f32 %v7002, %v7009
      %v7028 = vadd.f32 %v7003, %v7009
      %v7029 = vmax.f32 %v7011, 0.0
      %v7030 = vmax.f32 %v7012, 0.0
      %v7031 = vmax.f32 %v7013, 0.0
      %v7032 = vmax.f32 %v7014, 0.0
      %v7033 = vmax.f32 %v7015, 0.0
      %v7034 = vmax.f32 %v7016, 0.0
      %v7035 = vmax.f32 %v7017, 0.0
      %v7036 = vmax.f32 %v7018, 0.0
      %v7037 = vmax.f32 %v7019, 0.0
      %v7038 = vmax.f32 %v7020, 0.0
      %v7039 = vmax.f32 %v7021, 0.0
      %v7040 = vmax.f32 %v7022, 0.0
      %v7041 = vmax.f32 %v7023, 0.0
      %v7042 = vmax.f32 %v7024, 0.0
      %v7043 = vmax.f32 %v7025, 0.0
      %v7044 = vmax.f32 %v7026, 0.0
      %v7045 = vmax.f32 %v7027, 0.0
      %v7046 = vmax.f32 %v7028, 0.0
      %v7047 = vld [vmem:[%s5] sm:$0xff]
      %v7048 = vld [vmem:[%s5 + $0x8] sm:$0xff]
      %v7049 = vld [vmem:[%s5 + $0x10] sm:$0xff]
      %v7050 = vld [vmem:[%s5 + $0x18] sm:$0xff]
      %v7051 = vld [vmem:[%s5 + $0x20] sm:$0xff]
      %v7052 = vld [vmem:[%s5 + $0x28] sm:$0xff]
      %v7053 = vld [vmem:[%s5 + $0x30] sm:$0xff]
      %v7054 = vld [vmem:[%s5 + $0x38] sm:$0xff]
      %v7055 = vld [vmem:[%s5 + $0x40] sm:$0xff]
      %v7056 = vld [vmem:[%s5 + $0x48] sm:$0xff]
      %v7057 = vld [vmem:[%s5 + $0x50] sm:$0xff]
      %v7058 = vld [vmem:[%s5 + $0x58] sm:$0xff]
      %v7059 = vld [vmem:[%s5 + $0x60] sm:$0xff]
      %v7060 = vld [vmem:[%s5 + $0x68] sm:$0xff]
      %v7061 = vld [vmem:[%s5 + $0x70] sm:$0xff]
      %v7062 = vld [vmem:[%s5 + $0x78] sm:$0xff]
      %v7063 = vld [vmem:[%s6] sm:$0x1]
      %v7065 = vlaneseq
      %v7066 = vshrl.u32 %v7065, 7
      %v7067 = vsub.s32 0, %v7066
      %v7068 = vrot.slane %v7063, %v7067
      %7070 = vmatprep.subr.mxu0 0.0
      %7071 = vmatpush1.msra.mxu0 %v7047
      %7072 = vmatprep.subr.mxu0 0.0
      %7073 = vmatpush1.msra.mxu0 %v7048
      %7074 = vmatprep.subr.mxu0 0.0
      %7075 = vmatpush1.msra.mxu0 %v7049
      %7076 = vmatprep.subr.mxu0 0.0
      %7077 = vmatpush1.msra.mxu0 %v7050
      %7078 = vmatprep.subr.mxu0 0.0
      %7079 = vmatpush1.msra.mxu0 %v7051
      %7080 = vmatprep.subr.mxu0 0.0
      %7081 = vmatpush1.msra.mxu0 %v7052
      %7082 = vmatprep.subr.mxu0 0.0
      %7083 = vmatpush1.msra.mxu0 %v7053
      %7084 = vmatprep.subr.mxu0 0.0
      %7085 = vmatpush1.msra.mxu0 %v7054
      %7086 = vmatprep.subr.mxu0 0.0
      %7087 = vmatpush1.msra.mxu0 %v7055
      %7088 = vmatprep.subr.mxu0 0.0
      %7089 = vmatpush1.msra.mxu0 %v7056
      %7090 = vmatprep.subr.mxu0 0.0
      %7091 = vmatpush1.msra.mxu0 %v7057
      %7092 = vmatprep.subr.mxu0 0.0
      %7093 = vmatpush1.msra.mxu0 %v7058
      %7094 = vmatprep.subr.mxu0 0.0
      %7095 = vmatpush1.msra.mxu0 %v7059
      %7096 = vmatprep.subr.mxu0 0.0
      %7097 = vmatpush1.msra.mxu0 %v7060
      %7098 = vmatprep.subr.mxu0 0.0
      %7099 = vmatpush1.msra.mxu0 %v7061
      %7100 = vmatprep.subr.mxu0 0.0
      %7101 = vmatpush1.msra.mxu0 %v7062
      %7102 = vmatprep.subr.mxu0 0.0
      %7103 = vmatpush1.msra.mxu0 0.0
      %7104 = vmatprep.subr.mxu0 0.0
      %7105 = vmatpush1.msra.mxu0 0.0
      %7106 = vmatprep.subr.mxu0 0.0
      %7107 = vmatpush1.msra.mxu0 0.0
      %7108 = vmatprep.subr.mxu0 0.0
      %7109 = vmatpush1.msra.mxu0 0.0
      %7110 = vmatprep.subr.mxu0 0.0
      %7111 = vmatpush1.msra.mxu0 0.0
      %7112 = vmatprep.subr.mxu0 0.0
      %7113 = vmatpush1.msra.mxu0 0.0
      %7114 = vmatprep.subr.mxu0 0.0
      %7115 = vmatpush1.msra.mxu0 0.0
      %7116 = vmatprep.subr.mxu0 0.0
      %7117 = vmatpush1.msra.mxu0 0.0
      %7118 = vmatprep.subr.mxu0 0.0
      %7119 = vmatpush1.msra.mxu0 0.0
      %7120 = vmatprep.subr.mxu0 0.0
      %7121 = vmatpush1.msra.mxu0 0.0
      %7122 = vmatprep.subr.mxu0 0.0
      %7123 = vmatpush1.msra.mxu0 0.0
      %7124 = vmatprep.subr.mxu0 0.0
      %7125 = vmatpush1.msra.mxu0 0.0
      %7126 = vmatprep.subr.mxu0 0.0
      %7127 = vmatpush1.msra.mxu0 0.0
      %7128 = vmatprep.subr.mxu0 0.0
      %7129 = vmatpush1.msra.mxu0 0.0
      %7130 = vmatprep.subr.mxu0 0.0
      %7131 = vmatpush1.msra.mxu0 0.0
      %7132 = vmatprep.subr.mxu0 0.0
      %7133 = vmatpush1.msra.mxu0 0.0
      %7134 = vmatprep.mubr.f32.mxu0 0.0
      %7135 = vmatmul.mubr.f32.gmra.mrb[0].mxu0 %v7029
      %v7136 = vpop.f32.mrb[0].mxu0
      %v7137 = vadd.f32 %v7068, %v7136
      %v7138 = vpop.f32.mrb[0].mxu0
      %7139 = vmatprep.mubr.f32.mxu0 0.0
      %7140 = vmatmul.mubr.f32.gmra.mrb[0].mxu0 %v7030
      %v7141 = vpop.f32.mrb[0].mxu0
      %v7142 = vadd.f32 %v7068, %v7141
      %v7143 = vpop.f32.mrb[0].mxu0
      %7144 = vmatprep.mubr.f32.mxu0 0.0
      %7145 = vmatmul.mubr.f32.gmra.mrb[0].mxu0 %v7031
      %v7146 = vpop.f32.mrb[0].mxu0
      %v7147 = vadd.f32 %v7068, %v7146
      %v7148 = vpop.f32.mrb[0].mxu0
      %7149 = vmatprep.mubr.f32.mxu0 0.0
      %7150 = vmatmul.mubr.f32.gmra.mrb[0].mxu0 %v7032
      %v7151 = vpop.f32.mrb[0].mxu0
      %v7152 = vadd.f32 %v7068, %v7151
      %v7153 = vpop.f32.mrb[0].mxu0
      %7154 = vmatprep.mubr.f32.mxu0 0.0
      %7155 = vmatmul.mubr.f32.gmra.mrb[0].mxu0 %v7033
      %v7156 = vpop.f32.mrb[0].mxu0
      %v7157 = vadd.f32 %v7068, %v7156
      %v7158 = vpop.f32.mrb[0].mxu0
      %7159 = vmatprep.mubr.f32.mxu0 0.0
      %7160 = vmatmul.mubr.f32.gmra.mrb[0].mxu0 %v7034
      %v7161 = vpop.f32.mrb[0].mxu0
      %v7162 = vadd.f32 %v7068, %v7161
      %v7163 = vpop.f32.mrb[0].mxu0
      %7164 = vmatprep.mubr.f32.mxu0 0.0
      %7165 = vmatmul.mubr.f32.gmra.mrb[0].mxu0 %v7035
      %v7166 = vpop.f32.mrb[0].mxu0
      %v7167 = vadd.f32 %v7068, %v7166
      %v7168 = vpop.f32.mrb[0].mxu0
      %7169 = vmatprep.mubr.f32.mxu0 0.0
      %7170 = vmatmul.mubr.f32.gmra.mrb[0].mxu0 %v7036
      %v7171 = vpop.f32.mrb[0].mxu0
      %v7172 = vadd.f32 %v7068, %v7171
      %v7173 = vpop.f32.mrb[0].mxu0
      %7174 = vmatprep.mubr.f32.mxu0 0.0
      %7175 = vmatmul.mubr.f32.gmra.mrb[0].mxu0 %v7037
      %v7176 = vpop.f32.mrb[0].mxu0
      %v7177 = vadd.f32 %v7068, %v7176
      %v7178 = vpop.f32.mrb[0].mxu0
      %7179 = vmatprep.mubr.f32.mxu0 0.0
      %7180 = vmatmul.mubr.f32.gmra.mrb[0].mxu0 %v7038
      %v7181 = vpop.f32.mrb[0].mxu0
      %v7182 = vadd.f32 %v7068, %v7181
      %v7183 = vpop.f32.mrb[0].mxu0
      %7184 = vmatprep.mubr.f32.mxu0 0.0
      %7185 = vmatmul.mubr.f32.gmra.mrb[0].mxu0 %v7039
      %v7186 = vpop.f32.mrb[0].mxu0
      %v7187 = vadd.f32 %v7068, %v7186
      %v7188 = vpop.f32.mrb[0].mxu0
      %7189 = vmatprep.mubr.f32.mxu0 0.0
      %7190 = vmatmul.mubr.f32.gmra.mrb[0].mxu0 %v7040
      %v7191 = vpop.f32.mrb[0].mxu0
      %v7192 = vadd.f32 %v7068, %v7191
      %v7193 = vpop.f32.mrb[0].mxu0
      %7194 = vmatprep.mubr.f32.mxu0 0.0
      %7195 = vmatmul.mubr.f32.gmra.mrb[0].mxu0 %v7041
      %v7196 = vpop.f32.mrb[0].mxu0
      %v7197 = vadd.f32 %v7068, %v7196
      %v7198 = vpop.f32.mrb[0].mxu0
      %7199 = vmatprep.mubr.f32.mxu0 0.0
      %7200 = vmatmul.mubr.f32.gmra.mrb[0].mxu0 %v7042
      %v7201 = vpop.f32.mrb[0].mxu0
      %v7202 = vadd.f32 %v7068, %v7201
      %v7203 = vpop.f32.mrb[0].mxu0
      %7204 = vmatprep.mubr.f32.mxu0 0.0
      %7205 = vmatmul.mubr.f32.gmra.mrb[0].mxu0 %v7043
      %v7206 = vpop.f32.mrb[0].mxu0
      %v7207 = vadd.f32 %v7068, %v7206
      %v7208 = vpop.f32.mrb[0].mxu0
      %7209 = vmatprep.mubr.f32.mxu0 0.0
      %7210 = vmatmul.mubr.f32.gmra.mrb[0].mxu0 %v7044
      %v7211 = vpop.f32.mrb[0].mxu0
      %v7212 = vadd.f32 %v7068, %v7211
      %v7213 = vpop.f32.mrb[0].mxu0
      %7214 = vmatprep.mubr.f32.mxu0 0.0
      %7215 = vmatmul.mubr.f32.gmra.mrb[0].mxu0 %v7045
      %v7216 = vpop.f32.mrb[0].mxu0
      %v7217 = vadd.f32 %v7068, %v7216
      %v7218 = vpop.f32.mrb[0].mxu0
      %7219 = vmatprep.mubr.f32.mxu0 0.0
      %7220 = vmatmul.mubr.f32.gmra.mrb[0].mxu0 %v7046
      %v7221 = vpop.f32.mrb[0].mxu0
      %v7222 = vadd.f32 %v7068, %v7221
      %v7223 = vpop.f32.mrb[0].mxu0
      %7224 = vdwg.mxu0
      %v7225 = vld [vmem:[%s273 + $0x13] sm:$0xff]
      %v7226 = vld [vmem:[%s273 + $0x1b] sm:$0xff]
      %v7227 = vld [vmem:[%s273 + $0x23] sm:$0xff]
      %v7228 = vld [vmem:[%s273 + $0x2b] sm:$0xff]
      %v7229 = vld [vmem:[%s273 + $0x33] sm:$0xff]
      %v7230 = vld [vmem:[%s273 + $0x3b] sm:$0xff]
      %v7231 = vld [vmem:[%s273 + $0x43] sm:$0xff]
      %v7232 = vld [vmem:[%s273 + $0x4b] sm:$0xff]
      %v7233 = vld [vmem:[%s273 + $0x53] sm:$0xff]
      %v7234 = vld [vmem:[%s273 + $0x5b] sm:$0xff]
      %v7235 = vld [vmem:[%s273 + $0x63] sm:$0xff]
      %v7236 = vld [vmem:[%s273 + $0x6b] sm:$0xff]
      %v7237 = vld [vmem:[%s273 + $0x73] sm:$0xff]
      %v7238 = vld [vmem:[%s273 + $0x7b] sm:$0xff]
      %v7239 = vld [vmem:[%s273 + $0x83] sm:$0xff]
      %v7240 = vld [vmem:[%s273 + $0x8b] sm:$0xff]
      %v7241 = vld [vmem:[%s273 + $0x93] sm:$0xff]
      %v7242 = vld [vmem:[%s273 + $0x9b] sm:$0xff]
      %v7243 = vadd.f32 %v7137, %v7225
      %v7244 = vadd.f32 %v7142, %v7226
      %v7245 = vadd.f32 %v7147, %v7227
      %v7246 = vadd.f32 %v7152, %v7228
      %v7247 = vadd.f32 %v7157, %v7229
      %v7248 = vadd.f32 %v7162, %v7230
      %v7249 = vadd.f32 %v7167, %v7231
      %v7250 = vadd.f32 %v7172, %v7232
      %v7251 = vadd.f32 %v7177, %v7233
      %v7252 = vadd.f32 %v7182, %v7234
      %v7253 = vadd.f32 %v7187, %v7235
      %v7254 = vadd.f32 %v7192, %v7236
      %v7255 = vadd.f32 %v7197, %v7237
      %v7256 = vadd.f32 %v7202, %v7238
      %v7257 = vadd.f32 %v7207, %v7239
      %v7258 = vadd.f32 %v7212, %v7240
      %v7259 = vadd.f32 %v7217, %v7241
      %v7260 = vadd.f32 %v7222, %v7242
      %v7261 = vmax.f32 %v7243, 0.0
      %v7262 = vmax.f32 %v7244, 0.0
      %v7263 = vmax.f32 %v7245, 0.0
      %v7264 = vmax.f32 %v7246, 0.0
      %v7265 = vmax.f32 %v7247, 0.0
      %v7266 = vmax.f32 %v7248, 0.0
      %v7267 = vmax.f32 %v7249, 0.0
      %v7268 = vmax.f32 %v7250, 0.0
      %v7269 = vmax.f32 %v7251, 0.0
      %v7270 = vmax.f32 %v7252, 0.0
      %v7271 = vmax.f32 %v7253, 0.0
      %v7272 = vmax.f32 %v7254, 0.0
      %v7273 = vmax.f32 %v7255, 0.0
      %v7274 = vmax.f32 %v7256, 0.0
      %v7275 = vmax.f32 %v7257, 0.0
      %v7276 = vmax.f32 %v7258, 0.0
      %v7277 = vmax.f32 %v7259, 0.0
      %v7278 = vmax.f32 %v7260, 0.0
      %7279 = vst.msk [vmem:[%s278] sm:$0xff] %vm649, %v7261
      %7280 = vst.msk [vmem:[%s278 + $0x8] sm:$0xff] %vm649, %v7262
      %7281 = vst.msk [vmem:[%s278 + $0x10] sm:$0xff] %vm649, %v7263
      %7282 = vst.msk [vmem:[%s278 + $0x18] sm:$0xff] %vm649, %v7264
      %7283 = vst.msk [vmem:[%s278 + $0x20] sm:$0xff] %vm649, %v7265
      %7284 = vst.msk [vmem:[%s278 + $0x28] sm:$0xff] %vm649, %v7266
      %7285 = vst.msk [vmem:[%s278 + $0x30] sm:$0xff] %vm649, %v7267
      %7286 = vst.msk [vmem:[%s278 + $0x38] sm:$0xff] %vm649, %v7268
      %7287 = vst.msk [vmem:[%s278 + $0x40] sm:$0xff] %vm649, %v7269
      %7288 = vst.msk [vmem:[%s278 + $0x48] sm:$0xff] %vm649, %v7270
      %7289 = vst.msk [vmem:[%s278 + $0x50] sm:$0xff] %vm649, %v7271
      %7290 = vst.msk [vmem:[%s278 + $0x58] sm:$0xff] %vm649, %v7272
      %7291 = vst.msk [vmem:[%s278 + $0x60] sm:$0xff] %vm649, %v7273
      %7292 = vst.msk [vmem:[%s278 + $0x68] sm:$0xff] %vm649, %v7274
      %7293 = vst.msk [vmem:[%s278 + $0x70] sm:$0xff] %vm649, %v7275
      %7294 = vst.msk [vmem:[%s278 + $0x78] sm:$0xff] %vm649, %v7276
      %7295 = vst.msk [vmem:[%s278 + $0x80] sm:$0xff] %vm649, %v7277
      %7296 = vst.msk [vmem:[%s278 + $0x88] sm:$0xff] %vm649, %v7278
      %v7297 = vld [vmem:[#allocation2 + $0x90] sm:$0xff]
      %v7298 = vld [vmem:[#allocation2 + $0x98] sm:$0xff]
      %v7299 = vld [vmem:[#allocation2 + $0xa0] sm:$0xff]
      %v7300 = vld [vmem:[#allocation2 + $0xa8] sm:$0xff]
      %v7301 = vld [vmem:[#allocation2 + $0xb0] sm:$0xff]
      %v7302 = vld [vmem:[#allocation2 + $0xb8] sm:$0xff]
      %v7303 = vld [vmem:[#allocation2 + $0xc0] sm:$0xff]
      %v7304 = vld [vmem:[#allocation2 + $0xc8] sm:$0xff]
      %v7305 = vld [vmem:[#allocation2 + $0xd0] sm:$0xff]
      %v7306 = vld [vmem:[#allocation2 + $0xd8] sm:$0xff]
      %v7307 = vld [vmem:[#allocation2 + $0xe0] sm:$0xff]
      %v7308 = vld [vmem:[#allocation2 + $0xe8] sm:$0xff]
      %v7309 = vld [vmem:[#allocation2 + $0xf0] sm:$0xff]
      %v7310 = vld [vmem:[#allocation2 + $0xf8] sm:$0xff]
      %v7311 = vld [vmem:[#allocation2 + $0x100] sm:$0xff]
      %v7312 = vld [vmem:[#allocation2 + $0x108] sm:$0xff]
      %v7313 = vld [vmem:[#allocation2 + $0x110] sm:$0xff]
      %v7314 = vld [vmem:[#allocation2 + $0x118] sm:$0xff]
      %v7315 = vld [vmem:[%s3] sm:$0xff]
      %v7316 = vld [vmem:[%s3 + $0x8] sm:$0xff]
      %v7317 = vld [vmem:[%s3 + $0x10] sm:$0xff]
      %v7318 = vld [vmem:[%s3 + $0x18] sm:$0xff]
      %v7319 = vld [vmem:[%s3 + $0x20] sm:$0xff]
      %v7320 = vld [vmem:[%s3 + $0x28] sm:$0xff]
      %v7321 = vld [vmem:[%s3 + $0x30] sm:$0xff]
      %v7322 = vld [vmem:[%s3 + $0x38] sm:$0xff]
      %v7323 = vld [vmem:[%s3 + $0x40] sm:$0xff]
      %v7324 = vld [vmem:[%s3 + $0x48] sm:$0xff]
      %v7325 = vld [vmem:[%s3 + $0x50] sm:$0xff]
      %v7326 = vld [vmem:[%s3 + $0x58] sm:$0xff]
      %v7327 = vld [vmem:[%s3 + $0x60] sm:$0xff]
      %v7328 = vld [vmem:[%s3 + $0x68] sm:$0xff]
      %v7329 = vld [vmem:[%s3 + $0x70] sm:$0xff]
      %v7330 = vld [vmem:[%s3 + $0x78] sm:$0xff]
      %v7331 = vld [vmem:[#allocation2 + $0x91] sm:$0xff]
      %v7332 = vld [vmem:[#allocation2 + $0x99] sm:$0xff]
      %v7333 = vld [vmem:[#allocation2 + $0xa1] sm:$0xff]
      %v7334 = vld [vmem:[#allocation2 + $0xa9] sm:$0xff]
      %v7335 = vld [vmem:[#allocation2 + $0xb1] sm:$0xff]
      %v7336 = vld [vmem:[#allocation2 + $0xb9] sm:$0xff]
      %v7337 = vld [vmem:[#allocation2 + $0xc1] sm:$0xff]
      %v7338 = vld [vmem:[#allocation2 + $0xc9] sm:$0xff]
      %v7339 = vld [vmem:[#allocation2 + $0xd1] sm:$0xff]
      %v7340 = vld [vmem:[#allocation2 + $0xd9] sm:$0xff]
      %v7341 = vld [vmem:[#allocation2 + $0xe1] sm:$0xff]
      %v7342 = vld [vmem:[#allocation2 + $0xe9] sm:$0xff]
      %v7343 = vld [vmem:[#allocation2 + $0xf1] sm:$0xff]
      %v7344 = vld [vmem:[#allocation2 + $0xf9] sm:$0xff]
      %v7345 = vld [vmem:[#allocation2 + $0x101] sm:$0xff]
      %v7346 = vld [vmem:[#allocation2 + $0x109] sm:$0xff]
      %v7347 = vld [vmem:[#allocation2 + $0x111] sm:$0xff]
      %v7348 = vld [vmem:[#allocation2 + $0x119] sm:$0xff]
      %v7349 = vld [vmem:[%s5221] sm:$0xff]
      %v7350 = vld [vmem:[%s5221 + $0x8] sm:$0xff]
      %v7351 = vld [vmem:[%s5221 + $0x10] sm:$0xff]
      %v7352 = vld [vmem:[%s5221 + $0x18] sm:$0xff]
      %v7353 = vld [vmem:[%s5221 + $0x20] sm:$0xff]
      %v7354 = vld [vmem:[%s5221 + $0x28] sm:$0xff]
      %v7355 = vld [vmem:[%s5221 + $0x30] sm:$0xff]
      %v7356 = vld [vmem:[%s5221 + $0x38] sm:$0xff]
      %v7357 = vld [vmem:[%s5221 + $0x40] sm:$0xff]
      %v7358 = vld [vmem:[%s5221 + $0x48] sm:$0xff]
      %v7359 = vld [vmem:[%s5221 + $0x50] sm:$0xff]
      %v7360 = vld [vmem:[%s5221 + $0x58] sm:$0xff]
      %v7361 = vld [vmem:[%s5221 + $0x60] sm:$0xff]
      %v7362 = vld [vmem:[%s5221 + $0x68] sm:$0xff]
      %v7363 = vld [vmem:[%s5221 + $0x70] sm:$0xff]
      %v7364 = vld [vmem:[%s5221 + $0x78] sm:$0xff]
      %7365 = vmatprep.subr.mxu0 0.0
      %7366 = vmatpush1.msra.mxu0 %v7349
      %7367 = vmatprep.subr.mxu0 0.0
      %7368 = vmatpush1.msra.mxu0 %v7350
      %7369 = vmatprep.subr.mxu0 0.0
      %7370 = vmatpush1.msra.mxu0 %v7351
      %7371 = vmatprep.subr.mxu0 0.0
      %7372 = vmatpush1.msra.mxu0 %v7352
      %7373 = vmatprep.subr.mxu0 0.0
      %7374 = vmatpush1.msra.mxu0 %v7353
      %7375 = vmatprep.subr.mxu0 0.0
      %7376 = vmatpush1.msra.mxu0 %v7354
      %7377 = vmatprep.subr.mxu0 0.0
      %7378 = vmatpush1.msra.mxu0 %v7355
      %7379 = vmatprep.subr.mxu0 0.0
      %7380 = vmatpush1.msra.mxu0 %v7356
      %7381 = vmatprep.subr.mxu0 0.0
      %7382 = vmatpush1.msra.mxu0 %v7357
      %7383 = vmatprep.subr.mxu0 0.0
      %7384 = vmatpush1.msra.mxu0 %v7358
      %7385 = vmatprep.subr.mxu0 0.0
      %7386 = vmatpush1.msra.mxu0 %v7359
      %7387 = vmatprep.subr.mxu0 0.0
      %7388 = vmatpush1.msra.mxu0 %v7360
      %7389 = vmatprep.subr.mxu0 0.0
      %7390 = vmatpush1.msra.mxu0 %v7361
      %7391 = vmatprep.subr.mxu0 0.0
      %7392 = vmatpush1.msra.mxu0 %v7362
      %7393 = vmatprep.subr.mxu0 0.0
      %7394 = vmatpush1.msra.mxu0 %v7363
      %7395 = vmatprep.subr.mxu0 0.0
      %7396 = vmatpush1.msra.mxu0 %v7364
      %7397 = vmatprep.subr.mxu0 0.0
      %7398 = vmatpush1.msra.mxu0 0.0
      %7399 = vmatprep.subr.mxu0 0.0
      %7400 = vmatpush1.msra.mxu0 0.0
      %7401 = vmatprep.subr.mxu0 0.0
      %7402 = vmatpush1.msra.mxu0 0.0
      %7403 = vmatprep.subr.mxu0 0.0
      %7404 = vmatpush1.msra.mxu0 0.0
      %7405 = vmatprep.subr.mxu0 0.0
      %7406 = vmatpush1.msra.mxu0 0.0
      %7407 = vmatprep.subr.mxu0 0.0
      %7408 = vmatpush1.msra.mxu0 0.0
      %7409 = vmatprep.subr.mxu0 0.0
      %7410 = vmatpush1.msra.mxu0 0.0
      %7411 = vmatprep.subr.mxu0 0.0
      %7412 = vmatpush1.msra.mxu0 0.0
      %7413 = vmatprep.subr.mxu0 0.0
      %7414 = vmatpush1.msra.mxu0 0.0
      %7415 = vmatprep.subr.mxu0 0.0
      %7416 = vmatpush1.msra.mxu0 0.0
      %7417 = vmatprep.subr.mxu0 0.0
      %7418 = vmatpush1.msra.mxu0 0.0
      %7419 = vmatprep.subr.mxu0 0.0
      %7420 = vmatpush1.msra.mxu0 0.0
      %7421 = vmatprep.subr.mxu0 0.0
      %7422 = vmatpush1.msra.mxu0 0.0
      %7423 = vmatprep.subr.mxu0 0.0
      %7424 = vmatpush1.msra.mxu0 0.0
      %7425 = vmatprep.subr.mxu0 0.0
      %7426 = vmatpush1.msra.mxu0 0.0
      %7427 = vmatprep.subr.mxu0 0.0
      %7428 = vmatpush1.msra.mxu0 0.0
      %7429 = vmatprep.mubr.f32.mxu0 0.0
      %7430 = vmatmul.mubr.f32.gmra.mrb[0].mxu0 %v7331
      %v7431 = vpop.f32.mrb[0].mxu0
      %v7432 = vadd.f32 0.0, %v7431
      %v7433 = vpop.f32.mrb[0].mxu0
      %7434 = vmatprep.mubr.f32.mxu0 0.0
      %7435 = vmatmul.mubr.f32.gmra.mrb[0].mxu0 %v7332
      %v7436 = vpop.f32.mrb[0].mxu0
      %v7437 = vadd.f32 0.0, %v7436
      %v7438 = vpop.f32.mrb[0].mxu0
      %7439 = vmatprep.mubr.f32.mxu0 0.0
      %7440 = vmatmul.mubr.f32.gmra.mrb[0].mxu0 %v7333
      %v7441 = vpop.f32.mrb[0].mxu0
      %v7442 = vadd.f32 0.0, %v7441
      %v7443 = vpop.f32.mrb[0].mxu0
      %7444 = vmatprep.mubr.f32.mxu0 0.0
      %7445 = vmatmul.mubr.f32.gmra.mrb[0].mxu0 %v7334
      %v7446 = vpop.f32.mrb[0].mxu0
      %v7447 = vadd.f32 0.0, %v7446
      %v7448 = vpop.f32.mrb[0].mxu0
      %7449 = vmatprep.mubr.f32.mxu0 0.0
      %7450 = vmatmul.mubr.f32.gmra.mrb[0].mxu0 %v7335
      %v7451 = vpop.f32.mrb[0].mxu0
      %v7452 = vadd.f32 0.0, %v7451
      %v7453 = vpop.f32.mrb[0].mxu0
      %7454 = vmatprep.mubr.f32.mxu0 0.0
      %7455 = vmatmul.mubr.f32.gmra.mrb[0].mxu0 %v7336
      %v7456 = vpop.f32.mrb[0].mxu0
      %v7457 = vadd.f32 0.0, %v7456
      %v7458 = vpop.f32.mrb[0].mxu0
      %7459 = vmatprep.mubr.f32.mxu0 0.0
      %7460 = vmatmul.mubr.f32.gmra.mrb[0].mxu0 %v7337
      %v7461 = vpop.f32.mrb[0].mxu0
      %v7462 = vadd.f32 0.0, %v7461
      %v7463 = vpop.f32.mrb[0].mxu0
      %7464 = vmatprep.mubr.f32.mxu0 0.0
      %7465 = vmatmul.mubr.f32.gmra.mrb[0].mxu0 %v7338
      %v7466 = vpop.f32.mrb[0].mxu0
      %v7467 = vadd.f32 0.0, %v7466
      %v7468 = vpop.f32.mrb[0].mxu0
      %7469 = vmatprep.mubr.f32.mxu0 0.0
      %7470 = vmatmul.mubr.f32.gmra.mrb[0].mxu0 %v7339
      %v7471 = vpop.f32.mrb[0].mxu0
      %v7472 = vadd.f32 0.0, %v7471
      %v7473 = vpop.f32.mrb[0].mxu0
      %7474 = vmatprep.mubr.f32.mxu0 0.0
      %7475 = vmatmul.mubr.f32.gmra.mrb[0].mxu0 %v7340
      %v7476 = vpop.f32.mrb[0].mxu0
      %v7477 = vadd.f32 0.0, %v7476
      %v7478 = vpop.f32.mrb[0].mxu0
      %7479 = vmatprep.mubr.f32.mxu0 0.0
      %7480 = vmatmul.mubr.f32.gmra.mrb[0].mxu0 %v7341
      %v7481 = vpop.f32.mrb[0].mxu0
      %v7482 = vadd.f32 0.0, %v7481
      %v7483 = vpop.f32.mrb[0].mxu0
      %7484 = vmatprep.mubr.f32.mxu0 0.0
      %7485 = vmatmul.mubr.f32.gmra.mrb[0].mxu0 %v7342
      %v7486 = vpop.f32.mrb[0].mxu0
      %v7487 = vadd.f32 0.0, %v7486
      %v7488 = vpop.f32.mrb[0].mxu0
      %7489 = vmatprep.mubr.f32.mxu0 0.0
      %7490 = vmatmul.mubr.f32.gmra.mrb[0].mxu0 %v7343
      %v7491 = vpop.f32.mrb[0].mxu0
      %v7492 = vadd.f32 0.0, %v7491
      %v7493 = vpop.f32.mrb[0].mxu0
      %7494 = vmatprep.mubr.f32.mxu0 0.0
      %7495 = vmatmul.mubr.f32.gmra.mrb[0].mxu0 %v7344
      %v7496 = vpop.f32.mrb[0].mxu0
      %v7497 = vadd.f32 0.0, %v7496
      %v7498 = vpop.f32.mrb[0].mxu0
      %7499 = vmatprep.mubr.f32.mxu0 0.0
      %7500 = vmatmul.mubr.f32.gmra.mrb[0].mxu0 %v7345
      %v7501 = vpop.f32.mrb[0].mxu0
      %v7502 = vadd.f32 0.0, %v7501
      %v7503 = vpop.f32.mrb[0].mxu0
      %7504 = vmatprep.mubr.f32.mxu0 0.0
      %7505 = vmatmul.mubr.f32.gmra.mrb[0].mxu0 %v7346
      %v7506 = vpop.f32.mrb[0].mxu0
      %v7507 = vadd.f32 0.0, %v7506
      %v7508 = vpop.f32.mrb[0].mxu0
      %7509 = vmatprep.mubr.f32.mxu0 0.0
      %7510 = vmatmul.mubr.f32.gmra.mrb[0].mxu0 %v7347
      %v7511 = vpop.f32.mrb[0].mxu0
      %v7512 = vadd.f32 0.0, %v7511
      %v7513 = vpop.f32.mrb[0].mxu0
      %7514 = vmatprep.mubr.f32.mxu0 0.0
      %7515 = vmatmul.mubr.f32.gmra.mrb[0].mxu0 %v7348
      %v7516 = vpop.f32.mrb[0].mxu0
      %v7517 = vadd.f32 0.0, %v7516
      %v7518 = vpop.f32.mrb[0].mxu0
      %7519 = vdwg.mxu0
      %7520 = vmatprep.subr.mxu0 0.0
      %7521 = vmatpush1.msra.mxu0 %v7315
      %7522 = vmatprep.subr.mxu0 0.0
      %7523 = vmatpush1.msra.mxu0 %v7316
      %7524 = vmatprep.subr.mxu0 0.0
      %7525 = vmatpush1.msra.mxu0 %v7317
      %7526 = vmatprep.subr.mxu0 0.0
      %7527 = vmatpush1.msra.mxu0 %v7318
      %7528 = vmatprep.subr.mxu0 0.0
      %7529 = vmatpush1.msra.mxu0 %v7319
      %7530 = vmatprep.subr.mxu0 0.0
      %7531 = vmatpush1.msra.mxu0 %v7320
      %7532 = vmatprep.subr.mxu0 0.0
      %7533 = vmatpush1.msra.mxu0 %v7321
      %7534 = vmatprep.subr.mxu0 0.0
      %7535 = vmatpush1.msra.mxu0 %v7322
      %7536 = vmatprep.subr.mxu0 0.0
      %7537 = vmatpush1.msra.mxu0 %v7323
      %7538 = vmatprep.subr.mxu0 0.0
      %7539 = vmatpush1.msra.mxu0 %v7324
      %7540 = vmatprep.subr.mxu0 0.0
      %7541 = vmatpush1.msra.mxu0 %v7325
      %7542 = vmatprep.subr.mxu0 0.0
      %7543 = vmatpush1.msra.mxu0 %v7326
      %7544 = vmatprep.subr.mxu0 0.0
      %7545 = vmatpush1.msra.mxu0 %v7327
      %7546 = vmatprep.subr.mxu0 0.0
      %7547 = vmatpush1.msra.mxu0 %v7328
      %7548 = vmatprep.subr.mxu0 0.0
      %7549 = vmatpush1.msra.mxu0 %v7329
      %7550 = vmatprep.subr.mxu0 0.0
      %7551 = vmatpush1.msra.mxu0 %v7330
      %7552 = vmatprep.subr.mxu0 0.0
      %7553 = vmatpush1.msra.mxu0 0.0
      %7554 = vmatprep.subr.mxu0 0.0
      %7555 = vmatpush1.msra.mxu0 0.0
      %7556 = vmatprep.subr.mxu0 0.0
      %7557 = vmatpush1.msra.mxu0 0.0
      %7558 = vmatprep.subr.mxu0 0.0
      %7559 = vmatpush1.msra.mxu0 0.0
      %7560 = vmatprep.subr.mxu0 0.0
      %7561 = vmatpush1.msra.mxu0 0.0
      %7562 = vmatprep.subr.mxu0 0.0
      %7563 = vmatpush1.msra.mxu0 0.0
      %7564 = vmatprep.subr.mxu0 0.0
      %7565 = vmatpush1.msra.mxu0 0.0
      %7566 = vmatprep.subr.mxu0 0.0
      %7567 = vmatpush1.msra.mxu0 0.0
      %7568 = vmatprep.subr.mxu0 0.0
      %7569 = vmatpush1.msra.mxu0 0.0
      %7570 = vmatprep.subr.mxu0 0.0
      %7571 = vmatpush1.msra.mxu0 0.0
      %7572 = vmatprep.subr.mxu0 0.0
      %7573 = vmatpush1.msra.mxu0 0.0
      %7574 = vmatprep.subr.mxu0 0.0
      %7575 = vmatpush1.msra.mxu0 0.0
      %7576 = vmatprep.subr.mxu0 0.0
      %7577 = vmatpush1.msra.mxu0 0.0
      %7578 = vmatprep.subr.mxu0 0.0
      %7579 = vmatpush1.msra.mxu0 0.0
      %7580 = vmatprep.subr.mxu0 0.0
      %7581 = vmatpush1.msra.mxu0 0.0
      %7582 = vmatprep.subr.mxu0 0.0
      %7583 = vmatpush1.msra.mxu0 0.0
      %7584 = vmatprep.mubr.f32.mxu0 0.0
      %7585 = vmatmul.mubr.f32.gmra.mrb[0].mxu0 %v7297
      %v7586 = vpop.f32.mrb[0].mxu0
      %v7587 = vadd.f32 %v7432, %v7586
      %v7588 = vpop.f32.mrb[0].mxu0
      %7589 = vmatprep.mubr.f32.mxu0 0.0
      %7590 = vmatmul.mubr.f32.gmra.mrb[0].mxu0 %v7298
      %v7591 = vpop.f32.mrb[0].mxu0
      %v7592 = vadd.f32 %v7437, %v7591
      %v7593 = vpop.f32.mrb[0].mxu0
      %7594 = vmatprep.mubr.f32.mxu0 0.0
      %7595 = vmatmul.mubr.f32.gmra.mrb[0].mxu0 %v7299
      %v7596 = vpop.f32.mrb[0].mxu0
      %v7597 = vadd.f32 %v7442, %v7596
      %v7598 = vpop.f32.mrb[0].mxu0
      %7599 = vmatprep.mubr.f32.mxu0 0.0
      %7600 = vmatmul.mubr.f32.gmra.mrb[0].mxu0 %v7300
      %v7601 = vpop.f32.mrb[0].mxu0
      %v7602 = vadd.f32 %v7447, %v7601
      %v7603 = vpop.f32.mrb[0].mxu0
      %7604 = vmatprep.mubr.f32.mxu0 0.0
      %7605 = vmatmul.mubr.f32.gmra.mrb[0].mxu0 %v7301
      %v7606 = vpop.f32.mrb[0].mxu0
      %v7607 = vadd.f32 %v7452, %v7606
      %v7608 = vpop.f32.mrb[0].mxu0
      %7609 = vmatprep.mubr.f32.mxu0 0.0
      %7610 = vmatmul.mubr.f32.gmra.mrb[0].mxu0 %v7302
      %v7611 = vpop.f32.mrb[0].mxu0
      %v7612 = vadd.f32 %v7457, %v7611
      %v7613 = vpop.f32.mrb[0].mxu0
      %7614 = vmatprep.mubr.f32.mxu0 0.0
      %7615 = vmatmul.mubr.f32.gmra.mrb[0].mxu0 %v7303
      %v7616 = vpop.f32.mrb[0].mxu0
      %v7617 = vadd.f32 %v7462, %v7616
      %v7618 = vpop.f32.mrb[0].mxu0
      %7619 = vmatprep.mubr.f32.mxu0 0.0
      %7620 = vmatmul.mubr.f32.gmra.mrb[0].mxu0 %v7304
      %v7621 = vpop.f32.mrb[0].mxu0
      %v7622 = vadd.f32 %v7467, %v7621
      %v7623 = vpop.f32.mrb[0].mxu0
      %7624 = vmatprep.mubr.f32.mxu0 0.0
      %7625 = vmatmul.mubr.f32.gmra.mrb[0].mxu0 %v7305
      %v7626 = vpop.f32.mrb[0].mxu0
      %v7627 = vadd.f32 %v7472, %v7626
      %v7628 = vpop.f32.mrb[0].mxu0
      %7629 = vmatprep.mubr.f32.mxu0 0.0
      %7630 = vmatmul.mubr.f32.gmra.mrb[0].mxu0 %v7306
      %v7631 = vpop.f32.mrb[0].mxu0
      %v7632 = vadd.f32 %v7477, %v7631
      %v7633 = vpop.f32.mrb[0].mxu0
      %7634 = vmatprep.mubr.f32.mxu0 0.0
      %7635 = vmatmul.mubr.f32.gmra.mrb[0].mxu0 %v7307
      %v7636 = vpop.f32.mrb[0].mxu0
      %v7637 = vadd.f32 %v7482, %v7636
      %v7638 = vpop.f32.mrb[0].mxu0
      %7639 = vmatprep.mubr.f32.mxu0 0.0
      %7640 = vmatmul.mubr.f32.gmra.mrb[0].mxu0 %v7308
      %v7641 = vpop.f32.mrb[0].mxu0
      %v7642 = vadd.f32 %v7487, %v7641
      %v7643 = vpop.f32.mrb[0].mxu0
      %7644 = vmatprep.mubr.f32.mxu0 0.0
      %7645 = vmatmul.mubr.f32.gmra.mrb[0].mxu0 %v7309
      %v7646 = vpop.f32.mrb[0].mxu0
      %v7647 = vadd.f32 %v7492, %v7646
      %v7648 = vpop.f32.mrb[0].mxu0
      %7649 = vmatprep.mubr.f32.mxu0 0.0
      %7650 = vmatmul.mubr.f32.gmra.mrb[0].mxu0 %v7310
      %v7651 = vpop.f32.mrb[0].mxu0
      %v7652 = vadd.f32 %v7497, %v7651
      %v7653 = vpop.f32.mrb[0].mxu0
      %7654 = vmatprep.mubr.f32.mxu0 0.0
      %7655 = vmatmul.mubr.f32.gmra.mrb[0].mxu0 %v7311
      %v7656 = vpop.f32.mrb[0].mxu0
      %v7657 = vadd.f32 %v7502, %v7656
      %v7658 = vpop.f32.mrb[0].mxu0
      %7659 = vmatprep.mubr.f32.mxu0 0.0
      %7660 = vmatmul.mubr.f32.gmra.mrb[0].mxu0 %v7312
      %v7661 = vpop.f32.mrb[0].mxu0
      %v7662 = vadd.f32 %v7507, %v7661
      %v7663 = vpop.f32.mrb[0].mxu0
      %7664 = vmatprep.mubr.f32.mxu0 0.0
      %7665 = vmatmul.mubr.f32.gmra.mrb[0].mxu0 %v7313
      %v7666 = vpop.f32.mrb[0].mxu0
      %v7667 = vadd.f32 %v7512, %v7666
      %v7668 = vpop.f32.mrb[0].mxu0
      %7669 = vmatprep.mubr.f32.mxu0 0.0
      %7670 = vmatmul.mubr.f32.gmra.mrb[0].mxu0 %v7314
      %v7671 = vpop.f32.mrb[0].mxu0
      %v7672 = vadd.f32 %v7517, %v7671
      %v7673 = vpop.f32.mrb[0].mxu0
      %7674 = vdwg.mxu0
      %v7675 = vld [vmem:[#allocation2 + $0x92] sm:$0xff]
      %v7676 = vld [vmem:[#allocation2 + $0x9a] sm:$0xff]
      %v7677 = vld [vmem:[#allocation2 + $0xa2] sm:$0xff]
      %v7678 = vld [vmem:[#allocation2 + $0xaa] sm:$0xff]
      %v7679 = vld [vmem:[#allocation2 + $0xb2] sm:$0xff]
      %v7680 = vld [vmem:[#allocation2 + $0xba] sm:$0xff]
      %v7681 = vld [vmem:[#allocation2 + $0xc2] sm:$0xff]
      %v7682 = vld [vmem:[#allocation2 + $0xca] sm:$0xff]
      %v7683 = vld [vmem:[#allocation2 + $0xd2] sm:$0xff]
      %v7684 = vld [vmem:[#allocation2 + $0xda] sm:$0xff]
      %v7685 = vld [vmem:[#allocation2 + $0xe2] sm:$0xff]
      %v7686 = vld [vmem:[#allocation2 + $0xea] sm:$0xff]
      %v7687 = vld [vmem:[#allocation2 + $0xf2] sm:$0xff]
      %v7688 = vld [vmem:[#allocation2 + $0xfa] sm:$0xff]
      %v7689 = vld [vmem:[#allocation2 + $0x102] sm:$0xff]
      %v7690 = vld [vmem:[#allocation2 + $0x10a] sm:$0xff]
      %v7691 = vld [vmem:[#allocation2 + $0x112] sm:$0xff]
      %v7692 = vld [vmem:[#allocation2 + $0x11a] sm:$0xff]
      %v7693 = vld [vmem:[%s5566] sm:$0xff]
      %v7694 = vld [vmem:[%s5566 + $0x8] sm:$0xff]
      %v7695 = vld [vmem:[%s5566 + $0x10] sm:$0xff]
      %v7696 = vld [vmem:[%s5566 + $0x18] sm:$0xff]
      %v7697 = vld [vmem:[%s5566 + $0x20] sm:$0xff]
      %v7698 = vld [vmem:[%s5566 + $0x28] sm:$0xff]
      %v7699 = vld [vmem:[%s5566 + $0x30] sm:$0xff]
      %v7700 = vld [vmem:[%s5566 + $0x38] sm:$0xff]
      %v7701 = vld [vmem:[%s5566 + $0x40] sm:$0xff]
      %v7702 = vld [vmem:[%s5566 + $0x48] sm:$0xff]
      %v7703 = vld [vmem:[%s5566 + $0x50] sm:$0xff]
      %v7704 = vld [vmem:[%s5566 + $0x58] sm:$0xff]
      %v7705 = vld [vmem:[%s5566 + $0x60] sm:$0xff]
      %v7706 = vld [vmem:[%s5566 + $0x68] sm:$0xff]
      %v7707 = vld [vmem:[%s5566 + $0x70] sm:$0xff]
      %v7708 = vld [vmem:[%s5566 + $0x78] sm:$0xff]
      %7709 = vmatprep.subr.mxu0 0.0
      %7710 = vmatpush1.msra.mxu0 %v7693
      %7711 = vmatprep.subr.mxu0 0.0
      %7712 = vmatpush1.msra.mxu0 %v7694
      %7713 = vmatprep.subr.mxu0 0.0
      %7714 = vmatpush1.msra.mxu0 %v7695
      %7715 = vmatprep.subr.mxu0 0.0
      %7716 = vmatpush1.msra.mxu0 %v7696
      %7717 = vmatprep.subr.mxu0 0.0
      %7718 = vmatpush1.msra.mxu0 %v7697
      %7719 = vmatprep.subr.mxu0 0.0
      %7720 = vmatpush1.msra.mxu0 %v7698
      %7721 = vmatprep.subr.mxu0 0.0
      %7722 = vmatpush1.msra.mxu0 %v7699
      %7723 = vmatprep.subr.mxu0 0.0
      %7724 = vmatpush1.msra.mxu0 %v7700
      %7725 = vmatprep.subr.mxu0 0.0
      %7726 = vmatpush1.msra.mxu0 %v7701
      %7727 = vmatprep.subr.mxu0 0.0
      %7728 = vmatpush1.msra.mxu0 %v7702
      %7729 = vmatprep.subr.mxu0 0.0
      %7730 = vmatpush1.msra.mxu0 %v7703
      %7731 = vmatprep.subr.mxu0 0.0
      %7732 = vmatpush1.msra.mxu0 %v7704
      %7733 = vmatprep.subr.mxu0 0.0
      %7734 = vmatpush1.msra.mxu0 %v7705
      %7735 = vmatprep.subr.mxu0 0.0
      %7736 = vmatpush1.msra.mxu0 %v7706
      %7737 = vmatprep.subr.mxu0 0.0
      %7738 = vmatpush1.msra.mxu0 %v7707
      %7739 = vmatprep.subr.mxu0 0.0
      %7740 = vmatpush1.msra.mxu0 %v7708
      %7741 = vmatprep.subr.mxu0 0.0
      %7742 = vmatpush1.msra.mxu0 0.0
      %7743 = vmatprep.subr.mxu0 0.0
      %7744 = vmatpush1.msra.mxu0 0.0
      %7745 = vmatprep.subr.mxu0 0.0
      %7746 = vmatpush1.msra.mxu0 0.0
      %7747 = vmatprep.subr.mxu0 0.0
      %7748 = vmatpush1.msra.mxu0 0.0
      %7749 = vmatprep.subr.mxu0 0.0
      %7750 = vmatpush1.msra.mxu0 0.0
      %7751 = vmatprep.subr.mxu0 0.0
      %7752 = vmatpush1.msra.mxu0 0.0
      %7753 = vmatprep.subr.mxu0 0.0
      %7754 = vmatpush1.msra.mxu0 0.0
      %7755 = vmatprep.subr.mxu0 0.0
      %7756 = vmatpush1.msra.mxu0 0.0
      %7757 = vmatprep.subr.mxu0 0.0
      %7758 = vmatpush1.msra.mxu0 0.0
      %7759 = vmatprep.subr.mxu0 0.0
      %7760 = vmatpush1.msra.mxu0 0.0
      %7761 = vmatprep.subr.mxu0 0.0
      %7762 = vmatpush1.msra.mxu0 0.0
      %7763 = vmatprep.subr.mxu0 0.0
      %7764 = vmatpush1.msra.mxu0 0.0
      %7765 = vmatprep.subr.mxu0 0.0
      %7766 = vmatpush1.msra.mxu0 0.0
      %7767 = vmatprep.subr.mxu0 0.0
      %7768 = vmatpush1.msra.mxu0 0.0
      %7769 = vmatprep.subr.mxu0 0.0
      %7770 = vmatpush1.msra.mxu0 0.0
      %7771 = vmatprep.subr.mxu0 0.0
      %7772 = vmatpush1.msra.mxu0 0.0
      %7773 = vmatprep.mubr.f32.mxu0 0.0
      %7774 = vmatmul.mubr.f32.gmra.mrb[0].mxu0 %v7675
      %v7775 = vpop.f32.mrb[0].mxu0
      %v7776 = vadd.f32 0.0, %v7775
      %v7777 = vpop.f32.mrb[0].mxu0
      %7778 = vmatprep.mubr.f32.mxu0 0.0
      %7779 = vmatmul.mubr.f32.gmra.mrb[0].mxu0 %v7676
      %v7780 = vpop.f32.mrb[0].mxu0
      %v7781 = vadd.f32 0.0, %v7780
      %v7782 = vpop.f32.mrb[0].mxu0
      %7783 = vmatprep.mubr.f32.mxu0 0.0
      %7784 = vmatmul.mubr.f32.gmra.mrb[0].mxu0 %v7677
      %v7785 = vpop.f32.mrb[0].mxu0
      %v7786 = vadd.f32 0.0, %v7785
      %v7787 = vpop.f32.mrb[0].mxu0
      %7788 = vmatprep.mubr.f32.mxu0 0.0
      %7789 = vmatmul.mubr.f32.gmra.mrb[0].mxu0 %v7678
      %v7790 = vpop.f32.mrb[0].mxu0
      %v7791 = vadd.f32 0.0, %v7790
      %v7792 = vpop.f32.mrb[0].mxu0
      %7793 = vmatprep.mubr.f32.mxu0 0.0
      %7794 = vmatmul.mubr.f32.gmra.mrb[0].mxu0 %v7679
      %v7795 = vpop.f32.mrb[0].mxu0
      %v7796 = vadd.f32 0.0, %v7795
      %v7797 = vpop.f32.mrb[0].mxu0
      %7798 = vmatprep.mubr.f32.mxu0 0.0
      %7799 = vmatmul.mubr.f32.gmra.mrb[0].mxu0 %v7680
      %v7800 = vpop.f32.mrb[0].mxu0
      %v7801 = vadd.f32 0.0, %v7800
      %v7802 = vpop.f32.mrb[0].mxu0
      %7803 = vmatprep.mubr.f32.mxu0 0.0
      %7804 = vmatmul.mubr.f32.gmra.mrb[0].mxu0 %v7681
      %v7805 = vpop.f32.mrb[0].mxu0
      %v7806 = vadd.f32 0.0, %v7805
      %v7807 = vpop.f32.mrb[0].mxu0
      %7808 = vmatprep.mubr.f32.mxu0 0.0
      %7809 = vmatmul.mubr.f32.gmra.mrb[0].mxu0 %v7682
      %v7810 = vpop.f32.mrb[0].mxu0
      %v7811 = vadd.f32 0.0, %v7810
      %v7812 = vpop.f32.mrb[0].mxu0
      %7813 = vmatprep.mubr.f32.mxu0 0.0
      %7814 = vmatmul.mubr.f32.gmra.mrb[0].mxu0 %v7683
      %v7815 = vpop.f32.mrb[0].mxu0
      %v7816 = vadd.f32 0.0, %v7815
      %v7817 = vpop.f32.mrb[0].mxu0
      %7818 = vmatprep.mubr.f32.mxu0 0.0
      %7819 = vmatmul.mubr.f32.gmra.mrb[0].mxu0 %v7684
      %v7820 = vpop.f32.mrb[0].mxu0
      %v7821 = vadd.f32 0.0, %v7820
      %v7822 = vpop.f32.mrb[0].mxu0
      %7823 = vmatprep.mubr.f32.mxu0 0.0
      %7824 = vmatmul.mubr.f32.gmra.mrb[0].mxu0 %v7685
      %v7825 = vpop.f32.mrb[0].mxu0
      %v7826 = vadd.f32 0.0, %v7825
      %v7827 = vpop.f32.mrb[0].mxu0
      %7828 = vmatprep.mubr.f32.mxu0 0.0
      %7829 = vmatmul.mubr.f32.gmra.mrb[0].mxu0 %v7686
      %v7830 = vpop.f32.mrb[0].mxu0
      %v7831 = vadd.f32 0.0, %v7830
      %v7832 = vpop.f32.mrb[0].mxu0
      %7833 = vmatprep.mubr.f32.mxu0 0.0
      %7834 = vmatmul.mubr.f32.gmra.mrb[0].mxu0 %v7687
      %v7835 = vpop.f32.mrb[0].mxu0
      %v7836 = vadd.f32 0.0, %v7835
      %v7837 = vpop.f32.mrb[0].mxu0
      %7838 = vmatprep.mubr.f32.mxu0 0.0
      %7839 = vmatmul.mubr.f32.gmra.mrb[0].mxu0 %v7688
      %v7840 = vpop.f32.mrb[0].mxu0
      %v7841 = vadd.f32 0.0, %v7840
      %v7842 = vpop.f32.mrb[0].mxu0
      %7843 = vmatprep.mubr.f32.mxu0 0.0
      %7844 = vmatmul.mubr.f32.gmra.mrb[0].mxu0 %v7689
      %v7845 = vpop.f32.mrb[0].mxu0
      %v7846 = vadd.f32 0.0, %v7845
      %v7847 = vpop.f32.mrb[0].mxu0
      %7848 = vmatprep.mubr.f32.mxu0 0.0
      %7849 = vmatmul.mubr.f32.gmra.mrb[0].mxu0 %v7690
      %v7850 = vpop.f32.mrb[0].mxu0
      %v7851 = vadd.f32 0.0, %v7850
      %v7852 = vpop.f32.mrb[0].mxu0
      %7853 = vmatprep.mubr.f32.mxu0 0.0
      %7854 = vmatmul.mubr.f32.gmra.mrb[0].mxu0 %v7691
      %v7855 = vpop.f32.mrb[0].mxu0
      %v7856 = vadd.f32 0.0, %v7855
      %v7857 = vpop.f32.mrb[0].mxu0
      %7858 = vmatprep.mubr.f32.mxu0 0.0
      %7859 = vmatmul.mubr.f32.gmra.mrb[0].mxu0 %v7692
      %v7860 = vpop.f32.mrb[0].mxu0
      %v7861 = vadd.f32 0.0, %v7860
      %v7862 = vpop.f32.mrb[0].mxu0
      %7863 = vdwg.mxu0
      %v7864 = vadd.f32 %v7587, %v7776
      %v7865 = vadd.f32 %v7592, %v7781
      %v7866 = vadd.f32 %v7597, %v7786
      %v7867 = vadd.f32 %v7602, %v7791
      %v7868 = vadd.f32 %v7607, %v7796
      %v7869 = vadd.f32 %v7612, %v7801
      %v7870 = vadd.f32 %v7617, %v7806
      %v7871 = vadd.f32 %v7622, %v7811
      %v7872 = vadd.f32 %v7627, %v7816
      %v7873 = vadd.f32 %v7632, %v7821
      %v7874 = vadd.f32 %v7637, %v7826
      %v7875 = vadd.f32 %v7642, %v7831
      %v7876 = vadd.f32 %v7647, %v7836
      %v7877 = vadd.f32 %v7652, %v7841
      %v7878 = vadd.f32 %v7657, %v7846
      %v7879 = vadd.f32 %v7662, %v7851
      %v7880 = vadd.f32 %v7667, %v7856
      %v7881 = vadd.f32 %v7672, %v7861
      %v7882 = vld [vmem:[#allocation2 + $0xa2] sm:$0xff]
      %v7883 = vld [vmem:[#allocation2 + $0xaa] sm:$0xff]
      %v7884 = vld [vmem:[#allocation2 + $0xb2] sm:$0xff]
      %v7885 = vld [vmem:[#allocation2 + $0xba] sm:$0xff]
      %v7886 = vld [vmem:[#allocation2 + $0xc2] sm:$0xff]
      %v7887 = vld [vmem:[#allocation2 + $0xca] sm:$0xff]
      %v7888 = vld [vmem:[#allocation2 + $0xd2] sm:$0xff]
      %v7889 = vld [vmem:[#allocation2 + $0xda] sm:$0xff]
      %v7890 = vld [vmem:[#allocation2 + $0xe2] sm:$0xff]
      %v7891 = vld [vmem:[#allocation2 + $0xea] sm:$0xff]
      %v7892 = vld [vmem:[#allocation2 + $0xf2] sm:$0xff]
      %v7893 = vld [vmem:[#allocation2 + $0xfa] sm:$0xff]
      %v7894 = vld [vmem:[#allocation2 + $0x102] sm:$0xff]
      %v7895 = vld [vmem:[#allocation2 + $0x10a] sm:$0xff]
      %v7896 = vld [vmem:[#allocation2 + $0x112] sm:$0xff]
      %v7897 = vld [vmem:[#allocation2 + $0x11a] sm:$0xff]
      %v7898 = vld [vmem:[#allocation2 + $0x122] sm:$0xff]
      %v7899 = vld [vmem:[#allocation2 + $0x12a] sm:$0xff]
      %v7900 = vld [vmem:[%s5774] sm:$0xff]
      %v7901 = vld [vmem:[%s5774 + $0x8] sm:$0xff]
      %v7902 = vld [vmem:[%s5774 + $0x10] sm:$0xff]
      %v7903 = vld [vmem:[%s5774 + $0x18] sm:$0xff]
      %v7904 = vld [vmem:[%s5774 + $0x20] sm:$0xff]
      %v7905 = vld [vmem:[%s5774 + $0x28] sm:$0xff]
      %v7906 = vld [vmem:[%s5774 + $0x30] sm:$0xff]
      %v7907 = vld [vmem:[%s5774 + $0x38] sm:$0xff]
      %v7908 = vld [vmem:[%s5774 + $0x40] sm:$0xff]
      %v7909 = vld [vmem:[%s5774 + $0x48] sm:$0xff]
      %v7910 = vld [vmem:[%s5774 + $0x50] sm:$0xff]
      %v7911 = vld [vmem:[%s5774 + $0x58] sm:$0xff]
      %v7912 = vld [vmem:[%s5774 + $0x60] sm:$0xff]
      %v7913 = vld [vmem:[%s5774 + $0x68] sm:$0xff]
      %v7914 = vld [vmem:[%s5774 + $0x70] sm:$0xff]
      %v7915 = vld [vmem:[%s5774 + $0x78] sm:$0xff]
      %7916 = vmatprep.subr.mxu0 0.0
      %7917 = vmatpush1.msra.mxu0 %v7900
      %7918 = vmatprep.subr.mxu0 0.0
      %7919 = vmatpush1.msra.mxu0 %v7901
      %7920 = vmatprep.subr.mxu0 0.0
      %7921 = vmatpush1.msra.mxu0 %v7902
      %7922 = vmatprep.subr.mxu0 0.0
      %7923 = vmatpush1.msra.mxu0 %v7903
      %7924 = vmatprep.subr.mxu0 0.0
      %7925 = vmatpush1.msra.mxu0 %v7904
      %7926 = vmatprep.subr.mxu0 0.0
      %7927 = vmatpush1.msra.mxu0 %v7905
      %7928 = vmatprep.subr.mxu0 0.0
      %7929 = vmatpush1.msra.mxu0 %v7906
      %7930 = vmatprep.subr.mxu0 0.0
      %7931 = vmatpush1.msra.mxu0 %v7907
      %7932 = vmatprep.subr.mxu0 0.0
      %7933 = vmatpush1.msra.mxu0 %v7908
      %7934 = vmatprep.subr.mxu0 0.0
      %7935 = vmatpush1.msra.mxu0 %v7909
      %7936 = vmatprep.subr.mxu0 0.0
      %7937 = vmatpush1.msra.mxu0 %v7910
      %7938 = vmatprep.subr.mxu0 0.0
      %7939 = vmatpush1.msra.mxu0 %v7911
      %7940 = vmatprep.subr.mxu0 0.0
      %7941 = vmatpush1.msra.mxu0 %v7912
      %7942 = vmatprep.subr.mxu0 0.0
      %7943 = vmatpush1.msra.mxu0 %v7913
      %7944 = vmatprep.subr.mxu0 0.0
      %7945 = vmatpush1.msra.mxu0 %v7914
      %7946 = vmatprep.subr.mxu0 0.0
      %7947 = vmatpush1.msra.mxu0 %v7915
      %7948 = vmatprep.subr.mxu0 0.0
      %7949 = vmatpush1.msra.mxu0 0.0
      %7950 = vmatprep.subr.mxu0 0.0
      %7951 = vmatpush1.msra.mxu0 0.0
      %7952 = vmatprep.subr.mxu0 0.0
      %7953 = vmatpush1.msra.mxu0 0.0
      %7954 = vmatprep.subr.mxu0 0.0
      %7955 = vmatpush1.msra.mxu0 0.0
      %7956 = vmatprep.subr.mxu0 0.0
      %7957 = vmatpush1.msra.mxu0 0.0
      %7958 = vmatprep.subr.mxu0 0.0
      %7959 = vmatpush1.msra.mxu0 0.0
      %7960 = vmatprep.subr.mxu0 0.0
      %7961 = vmatpush1.msra.mxu0 0.0
      %7962 = vmatprep.subr.mxu0 0.0
      %7963 = vmatpush1.msra.mxu0 0.0
      %7964 = vmatprep.subr.mxu0 0.0
      %7965 = vmatpush1.msra.mxu0 0.0
      %7966 = vmatprep.subr.mxu0 0.0
      %7967 = vmatpush1.msra.mxu0 0.0
      %7968 = vmatprep.subr.mxu0 0.0
      %7969 = vmatpush1.msra.mxu0 0.0
      %7970 = vmatprep.subr.mxu0 0.0
      %7971 = vmatpush1.msra.mxu0 0.0
      %7972 = vmatprep.subr.mxu0 0.0
      %7973 = vmatpush1.msra.mxu0 0.0
      %7974 = vmatprep.subr.mxu0 0.0
      %7975 = vmatpush1.msra.mxu0 0.0
      %7976 = vmatprep.subr.mxu0 0.0
      %7977 = vmatpush1.msra.mxu0 0.0
      %7978 = vmatprep.subr.mxu0 0.0
      %7979 = vmatpush1.msra.mxu0 0.0
      %7980 = vmatprep.mubr.f32.mxu0 0.0
      %7981 = vmatmul.mubr.f32.gmra.mrb[0].mxu0 %v7882
      %v7982 = vpop.f32.mrb[0].mxu0
      %v7983 = vadd.f32 0.0, %v7982
      %v7984 = vpop.f32.mrb[0].mxu0
      %7985 = vmatprep.mubr.f32.mxu0 0.0
      %7986 = vmatmul.mubr.f32.gmra.mrb[0].mxu0 %v7883
      %v7987 = vpop.f32.mrb[0].mxu0
      %v7988 = vadd.f32 0.0, %v7987
      %v7989 = vpop.f32.mrb[0].mxu0
      %7990 = vmatprep.mubr.f32.mxu0 0.0
      %7991 = vmatmul.mubr.f32.gmra.mrb[0].mxu0 %v7884
      %v7992 = vpop.f32.mrb[0].mxu0
      %v7993 = vadd.f32 0.0, %v7992
      %v7994 = vpop.f32.mrb[0].mxu0
      %7995 = vmatprep.mubr.f32.mxu0 0.0
      %7996 = vmatmul.mubr.f32.gmra.mrb[0].mxu0 %v7885
      %v7997 = vpop.f32.mrb[0].mxu0
      %v7998 = vadd.f32 0.0, %v7997
      %v7999 = vpop.f32.mrb[0].mxu0
      %8000 = vmatprep.mubr.f32.mxu0 0.0
      %8001 = vmatmul.mubr.f32.gmra.mrb[0].mxu0 %v7886
      %v8002 = vpop.f32.mrb[0].mxu0
      %v8003 = vadd.f32 0.0, %v8002
      %v8004 = vpop.f32.mrb[0].mxu0
      %8005 = vmatprep.mubr.f32.mxu0 0.0
      %8006 = vmatmul.mubr.f32.gmra.mrb[0].mxu0 %v7887
      %v8007 = vpop.f32.mrb[0].mxu0
      %v8008 = vadd.f32 0.0, %v8007
      %v8009 = vpop.f32.mrb[0].mxu0
      %8010 = vmatprep.mubr.f32.mxu0 0.0
      %8011 = vmatmul.mubr.f32.gmra.mrb[0].mxu0 %v7888
      %v8012 = vpop.f32.mrb[0].mxu0
      %v8013 = vadd.f32 0.0, %v8012
      %v8014 = vpop.f32.mrb[0].mxu0
      %8015 = vmatprep.mubr.f32.mxu0 0.0
      %8016 = vmatmul.mubr.f32.gmra.mrb[0].mxu0 %v7889
      %v8017 = vpop.f32.mrb[0].mxu0
      %v8018 = vadd.f32 0.0, %v8017
      %v8019 = vpop.f32.mrb[0].mxu0
      %8020 = vmatprep.mubr.f32.mxu0 0.0
      %8021 = vmatmul.mubr.f32.gmra.mrb[0].mxu0 %v7890
      %v8022 = vpop.f32.mrb[0].mxu0
      %v8023 = vadd.f32 0.0, %v8022
      %v8024 = vpop.f32.mrb[0].mxu0
      %8025 = vmatprep.mubr.f32.mxu0 0.0
      %8026 = vmatmul.mubr.f32.gmra.mrb[0].mxu0 %v7891
      %v8027 = vpop.f32.mrb[0].mxu0
      %v8028 = vadd.f32 0.0, %v8027
      %v8029 = vpop.f32.mrb[0].mxu0
      %8030 = vmatprep.mubr.f32.mxu0 0.0
      %8031 = vmatmul.mubr.f32.gmra.mrb[0].mxu0 %v7892
      %v8032 = vpop.f32.mrb[0].mxu0
      %v8033 = vadd.f32 0.0, %v8032
      %v8034 = vpop.f32.mrb[0].mxu0
      %8035 = vmatprep.mubr.f32.mxu0 0.0
      %8036 = vmatmul.mubr.f32.gmra.mrb[0].mxu0 %v7893
      %v8037 = vpop.f32.mrb[0].mxu0
      %v8038 = vadd.f32 0.0, %v8037
      %v8039 = vpop.f32.mrb[0].mxu0
      %8040 = vmatprep.mubr.f32.mxu0 0.0
      %8041 = vmatmul.mubr.f32.gmra.mrb[0].mxu0 %v7894
      %v8042 = vpop.f32.mrb[0].mxu0
      %v8043 = vadd.f32 0.0, %v8042
      %v8044 = vpop.f32.mrb[0].mxu0
      %8045 = vmatprep.mubr.f32.mxu0 0.0
      %8046 = vmatmul.mubr.f32.gmra.mrb[0].mxu0 %v7895
      %v8047 = vpop.f32.mrb[0].mxu0
      %v8048 = vadd.f32 0.0, %v8047
      %v8049 = vpop.f32.mrb[0].mxu0
      %8050 = vmatprep.mubr.f32.mxu0 0.0
      %8051 = vmatmul.mubr.f32.gmra.mrb[0].mxu0 %v7896
      %v8052 = vpop.f32.mrb[0].mxu0
      %v8053 = vadd.f32 0.0, %v8052
      %v8054 = vpop.f32.mrb[0].mxu0
      %8055 = vmatprep.mubr.f32.mxu0 0.0
      %8056 = vmatmul.mubr.f32.gmra.mrb[0].mxu0 %v7897
      %v8057 = vpop.f32.mrb[0].mxu0
      %v8058 = vadd.f32 0.0, %v8057
      %v8059 = vpop.f32.mrb[0].mxu0
      %8060 = vmatprep.mubr.f32.mxu0 0.0
      %8061 = vmatmul.mubr.f32.gmra.mrb[0].mxu0 %v7898
      %v8062 = vpop.f32.mrb[0].mxu0
      %v8063 = vadd.f32 0.0, %v8062
      %v8064 = vpop.f32.mrb[0].mxu0
      %8065 = vmatprep.mubr.f32.mxu0 0.0
      %8066 = vmatmul.mubr.f32.gmra.mrb[0].mxu0 %v7899
      %v8067 = vpop.f32.mrb[0].mxu0
      %v8068 = vadd.f32 0.0, %v8067
      %v8069 = vpop.f32.mrb[0].mxu0
      %8070 = vdwg.mxu0
      %v8071 = vadd.f32 %v7864, %v7983
      %v8072 = vadd.f32 %v7865, %v7988
      %v8073 = vadd.f32 %v7866, %v7993
      %v8074 = vadd.f32 %v7867, %v7998
      %v8075 = vadd.f32 %v7868, %v8003
      %v8076 = vadd.f32 %v7869, %v8008
      %v8077 = vadd.f32 %v7870, %v8013
      %v8078 = vadd.f32 %v7871, %v8018
      %v8079 = vadd.f32 %v7872, %v8023
      %v8080 = vadd.f32 %v7873, %v8028
      %v8081 = vadd.f32 %v7874, %v8033
      %v8082 = vadd.f32 %v7875, %v8038
      %v8083 = vadd.f32 %v7876, %v8043
      %v8084 = vadd.f32 %v7877, %v8048
      %v8085 = vadd.f32 %v7878, %v8053
      %v8086 = vadd.f32 %v7879, %v8058
      %v8087 = vadd.f32 %v7880, %v8063
      %v8088 = vadd.f32 %v7881, %v8068
      %v8089 = vld [vmem:[#allocation2 + $0xa3] sm:$0xff]
      %v8090 = vld [vmem:[#allocation2 + $0xab] sm:$0xff]
      %v8091 = vld [vmem:[#allocation2 + $0xb3] sm:$0xff]
      %v8092 = vld [vmem:[#allocation2 + $0xbb] sm:$0xff]
      %v8093 = vld [vmem:[#allocation2 + $0xc3] sm:$0xff]
      %v8094 = vld [vmem:[#allocation2 + $0xcb] sm:$0xff]
      %v8095 = vld [vmem:[#allocation2 + $0xd3] sm:$0xff]
      %v8096 = vld [vmem:[#allocation2 + $0xdb] sm:$0xff]
      %v8097 = vld [vmem:[#allocation2 + $0xe3] sm:$0xff]
      %v8098 = vld [vmem:[#allocation2 + $0xeb] sm:$0xff]
      %v8099 = vld [vmem:[#allocation2 + $0xf3] sm:$0xff]
      %v8100 = vld [vmem:[#allocation2 + $0xfb] sm:$0xff]
      %v8101 = vld [vmem:[#allocation2 + $0x103] sm:$0xff]
      %v8102 = vld [vmem:[#allocation2 + $0x10b] sm:$0xff]
      %v8103 = vld [vmem:[#allocation2 + $0x113] sm:$0xff]
      %v8104 = vld [vmem:[#allocation2 + $0x11b] sm:$0xff]
      %v8105 = vld [vmem:[#allocation2 + $0x123] sm:$0xff]
      %v8106 = vld [vmem:[#allocation2 + $0x12b] sm:$0xff]
      %v8107 = vld [vmem:[%s5982] sm:$0xff]
      %v8108 = vld [vmem:[%s5982 + $0x8] sm:$0xff]
      %v8109 = vld [vmem:[%s5982 + $0x10] sm:$0xff]
      %v8110 = vld [vmem:[%s5982 + $0x18] sm:$0xff]
      %v8111 = vld [vmem:[%s5982 + $0x20] sm:$0xff]
      %v8112 = vld [vmem:[%s5982 + $0x28] sm:$0xff]
      %v8113 = vld [vmem:[%s5982 + $0x30] sm:$0xff]
      %v8114 = vld [vmem:[%s5982 + $0x38] sm:$0xff]
      %v8115 = vld [vmem:[%s5982 + $0x40] sm:$0xff]
      %v8116 = vld [vmem:[%s5982 + $0x48] sm:$0xff]
      %v8117 = vld [vmem:[%s5982 + $0x50] sm:$0xff]
      %v8118 = vld [vmem:[%s5982 + $0x58] sm:$0xff]
      %v8119 = vld [vmem:[%s5982 + $0x60] sm:$0xff]
      %v8120 = vld [vmem:[%s5982 + $0x68] sm:$0xff]
      %v8121 = vld [vmem:[%s5982 + $0x70] sm:$0xff]
      %v8122 = vld [vmem:[%s5982 + $0x78] sm:$0xff]
      %8123 = vmatprep.subr.mxu0 0.0
      %8124 = vmatpush1.msra.mxu0 %v8107
      %8125 = vmatprep.subr.mxu0 0.0
      %8126 = vmatpush1.msra.mxu0 %v8108
      %8127 = vmatprep.subr.mxu0 0.0
      %8128 = vmatpush1.msra.mxu0 %v8109
      %8129 = vmatprep.subr.mxu0 0.0
      %8130 = vmatpush1.msra.mxu0 %v8110
      %8131 = vmatprep.subr.mxu0 0.0
      %8132 = vmatpush1.msra.mxu0 %v8111
      %8133 = vmatprep.subr.mxu0 0.0
      %8134 = vmatpush1.msra.mxu0 %v8112
      %8135 = vmatprep.subr.mxu0 0.0
      %8136 = vmatpush1.msra.mxu0 %v8113
      %8137 = vmatprep.subr.mxu0 0.0
      %8138 = vmatpush1.msra.mxu0 %v8114
      %8139 = vmatprep.subr.mxu0 0.0
      %8140 = vmatpush1.msra.mxu0 %v8115
      %8141 = vmatprep.subr.mxu0 0.0
      %8142 = vmatpush1.msra.mxu0 %v8116
      %8143 = vmatprep.subr.mxu0 0.0
      %8144 = vmatpush1.msra.mxu0 %v8117
      %8145 = vmatprep.subr.mxu0 0.0
      %8146 = vmatpush1.msra.mxu0 %v8118
      %8147 = vmatprep.subr.mxu0 0.0
      %8148 = vmatpush1.msra.mxu0 %v8119
      %8149 = vmatprep.subr.mxu0 0.0
      %8150 = vmatpush1.msra.mxu0 %v8120
      %8151 = vmatprep.subr.mxu0 0.0
      %8152 = vmatpush1.msra.mxu0 %v8121
      %8153 = vmatprep.subr.mxu0 0.0
      %8154 = vmatpush1.msra.mxu0 %v8122
      %8155 = vmatprep.subr.mxu0 0.0
      %8156 = vmatpush1.msra.mxu0 0.0
      %8157 = vmatprep.subr.mxu0 0.0
      %8158 = vmatpush1.msra.mxu0 0.0
      %8159 = vmatprep.subr.mxu0 0.0
      %8160 = vmatpush1.msra.mxu0 0.0
      %8161 = vmatprep.subr.mxu0 0.0
      %8162 = vmatpush1.msra.mxu0 0.0
      %8163 = vmatprep.subr.mxu0 0.0
      %8164 = vmatpush1.msra.mxu0 0.0
      %8165 = vmatprep.subr.mxu0 0.0
      %8166 = vmatpush1.msra.mxu0 0.0
      %8167 = vmatprep.subr.mxu0 0.0
      %8168 = vmatpush1.msra.mxu0 0.0
      %8169 = vmatprep.subr.mxu0 0.0
      %8170 = vmatpush1.msra.mxu0 0.0
      %8171 = vmatprep.subr.mxu0 0.0
      %8172 = vmatpush1.msra.mxu0 0.0
      %8173 = vmatprep.subr.mxu0 0.0
      %8174 = vmatpush1.msra.mxu0 0.0
      %8175 = vmatprep.subr.mxu0 0.0
      %8176 = vmatpush1.msra.mxu0 0.0
      %8177 = vmatprep.subr.mxu0 0.0
      %8178 = vmatpush1.msra.mxu0 0.0
      %8179 = vmatprep.subr.mxu0 0.0
      %8180 = vmatpush1.msra.mxu0 0.0
      %8181 = vmatprep.subr.mxu0 0.0
      %8182 = vmatpush1.msra.mxu0 0.0
      %8183 = vmatprep.subr.mxu0 0.0
      %8184 = vmatpush1.msra.mxu0 0.0
      %8185 = vmatprep.subr.mxu0 0.0
      %8186 = vmatpush1.msra.mxu0 0.0
      %8187 = vmatprep.mubr.f32.mxu0 0.0
      %8188 = vmatmul.mubr.f32.gmra.mrb[0].mxu0 %v8089
      %v8189 = vpop.f32.mrb[0].mxu0
      %v8190 = vadd.f32 0.0, %v8189
      %v8191 = vpop.f32.mrb[0].mxu0
      %8192 = vmatprep.mubr.f32.mxu0 0.0
      %8193 = vmatmul.mubr.f32.gmra.mrb[0].mxu0 %v8090
      %v8194 = vpop.f32.mrb[0].mxu0
      %v8195 = vadd.f32 0.0, %v8194
      %v8196 = vpop.f32.mrb[0].mxu0
      %8197 = vmatprep.mubr.f32.mxu0 0.0
      %8198 = vmatmul.mubr.f32.gmra.mrb[0].mxu0 %v8091
      %v8199 = vpop.f32.mrb[0].mxu0
      %v8200 = vadd.f32 0.0, %v8199
      %v8201 = vpop.f32.mrb[0].mxu0
      %8202 = vmatprep.mubr.f32.mxu0 0.0
      %8203 = vmatmul.mubr.f32.gmra.mrb[0].mxu0 %v8092
      %v8204 = vpop.f32.mrb[0].mxu0
      %v8205 = vadd.f32 0.0, %v8204
      %v8206 = vpop.f32.mrb[0].mxu0
      %8207 = vmatprep.mubr.f32.mxu0 0.0
      %8208 = vmatmul.mubr.f32.gmra.mrb[0].mxu0 %v8093
      %v8209 = vpop.f32.mrb[0].mxu0
      %v8210 = vadd.f32 0.0, %v8209
      %v8211 = vpop.f32.mrb[0].mxu0
      %8212 = vmatprep.mubr.f32.mxu0 0.0
      %8213 = vmatmul.mubr.f32.gmra.mrb[0].mxu0 %v8094
      %v8214 = vpop.f32.mrb[0].mxu0
      %v8215 = vadd.f32 0.0, %v8214
      %v8216 = vpop.f32.mrb[0].mxu0
      %8217 = vmatprep.mubr.f32.mxu0 0.0
      %8218 = vmatmul.mubr.f32.gmra.mrb[0].mxu0 %v8095
      %v8219 = vpop.f32.mrb[0].mxu0
      %v8220 = vadd.f32 0.0, %v8219
      %v8221 = vpop.f32.mrb[0].mxu0
      %8222 = vmatprep.mubr.f32.mxu0 0.0
      %8223 = vmatmul.mubr.f32.gmra.mrb[0].mxu0 %v8096
      %v8224 = vpop.f32.mrb[0].mxu0
      %v8225 = vadd.f32 0.0, %v8224
      %v8226 = vpop.f32.mrb[0].mxu0
      %8227 = vmatprep.mubr.f32.mxu0 0.0
      %8228 = vmatmul.mubr.f32.gmra.mrb[0].mxu0 %v8097
      %v8229 = vpop.f32.mrb[0].mxu0
      %v8230 = vadd.f32 0.0, %v8229
      %v8231 = vpop.f32.mrb[0].mxu0
      %8232 = vmatprep.mubr.f32.mxu0 0.0
      %8233 = vmatmul.mubr.f32.gmra.mrb[0].mxu0 %v8098
      %v8234 = vpop.f32.mrb[0].mxu0
      %v8235 = vadd.f32 0.0, %v8234
      %v8236 = vpop.f32.mrb[0].mxu0
      %8237 = vmatprep.mubr.f32.mxu0 0.0
      %8238 = vmatmul.mubr.f32.gmra.mrb[0].mxu0 %v8099
      %v8239 = vpop.f32.mrb[0].mxu0
      %v8240 = vadd.f32 0.0, %v8239
      %v8241 = vpop.f32.mrb[0].mxu0
      %8242 = vmatprep.mubr.f32.mxu0 0.0
      %8243 = vmatmul.mubr.f32.gmra.mrb[0].mxu0 %v8100
      %v8244 = vpop.f32.mrb[0].mxu0
      %v8245 = vadd.f32 0.0, %v8244
      %v8246 = vpop.f32.mrb[0].mxu0
      %8247 = vmatprep.mubr.f32.mxu0 0.0
      %8248 = vmatmul.mubr.f32.gmra.mrb[0].mxu0 %v8101
      %v8249 = vpop.f32.mrb[0].mxu0
      %v8250 = vadd.f32 0.0, %v8249
      %v8251 = vpop.f32.mrb[0].mxu0
      %8252 = vmatprep.mubr.f32.mxu0 0.0
      %8253 = vmatmul.mubr.f32.gmra.mrb[0].mxu0 %v8102
      %v8254 = vpop.f32.mrb[0].mxu0
      %v8255 = vadd.f32 0.0, %v8254
      %v8256 = vpop.f32.mrb[0].mxu0
      %8257 = vmatprep.mubr.f32.mxu0 0.0
      %8258 = vmatmul.mubr.f32.gmra.mrb[0].mxu0 %v8103
      %v8259 = vpop.f32.mrb[0].mxu0
      %v8260 = vadd.f32 0.0, %v8259
      %v8261 = vpop.f32.mrb[0].mxu0
      %8262 = vmatprep.mubr.f32.mxu0 0.0
      %8263 = vmatmul.mubr.f32.gmra.mrb[0].mxu0 %v8104
      %v8264 = vpop.f32.mrb[0].mxu0
      %v8265 = vadd.f32 0.0, %v8264
      %v8266 = vpop.f32.mrb[0].mxu0
      %8267 = vmatprep.mubr.f32.mxu0 0.0
      %8268 = vmatmul.mubr.f32.gmra.mrb[0].mxu0 %v8105
      %v8269 = vpop.f32.mrb[0].mxu0
      %v8270 = vadd.f32 0.0, %v8269
      %v8271 = vpop.f32.mrb[0].mxu0
      %8272 = vmatprep.mubr.f32.mxu0 0.0
      %8273 = vmatmul.mubr.f32.gmra.mrb[0].mxu0 %v8106
      %v8274 = vpop.f32.mrb[0].mxu0
      %v8275 = vadd.f32 0.0, %v8274
      %v8276 = vpop.f32.mrb[0].mxu0
      %8277 = vdwg.mxu0
      %v8278 = vadd.f32 %v8071, %v8190
      %v8279 = vadd.f32 %v8072, %v8195
      %v8280 = vadd.f32 %v8073, %v8200
      %v8281 = vadd.f32 %v8074, %v8205
      %v8282 = vadd.f32 %v8075, %v8210
      %v8283 = vadd.f32 %v8076, %v8215
      %v8284 = vadd.f32 %v8077, %v8220
      %v8285 = vadd.f32 %v8078, %v8225
      %v8286 = vadd.f32 %v8079, %v8230
      %v8287 = vadd.f32 %v8080, %v8235
      %v8288 = vadd.f32 %v8081, %v8240
      %v8289 = vadd.f32 %v8082, %v8245
      %v8290 = vadd.f32 %v8083, %v8250
      %v8291 = vadd.f32 %v8084, %v8255
      %v8292 = vadd.f32 %v8085, %v8260
      %v8293 = vadd.f32 %v8086, %v8265
      %v8294 = vadd.f32 %v8087, %v8270
      %v8295 = vadd.f32 %v8088, %v8275
      %v8296 = vld [vmem:[#allocation2 + $0xa4] sm:$0xff]
      %v8297 = vld [vmem:[#allocation2 + $0xac] sm:$0xff]
      %v8298 = vld [vmem:[#allocation2 + $0xb4] sm:$0xff]
      %v8299 = vld [vmem:[#allocation2 + $0xbc] sm:$0xff]
      %v8300 = vld [vmem:[#allocation2 + $0xc4] sm:$0xff]
      %v8301 = vld [vmem:[#allocation2 + $0xcc] sm:$0xff]
      %v8302 = vld [vmem:[#allocation2 + $0xd4] sm:$0xff]
      %v8303 = vld [vmem:[#allocation2 + $0xdc] sm:$0xff]
      %v8304 = vld [vmem:[#allocation2 + $0xe4] sm:$0xff]
      %v8305 = vld [vmem:[#allocation2 + $0xec] sm:$0xff]
      %v8306 = vld [vmem:[#allocation2 + $0xf4] sm:$0xff]
      %v8307 = vld [vmem:[#allocation2 + $0xfc] sm:$0xff]
      %v8308 = vld [vmem:[#allocation2 + $0x104] sm:$0xff]
      %v8309 = vld [vmem:[#allocation2 + $0x10c] sm:$0xff]
      %v8310 = vld [vmem:[#allocation2 + $0x114] sm:$0xff]
      %v8311 = vld [vmem:[#allocation2 + $0x11c] sm:$0xff]
      %v8312 = vld [vmem:[#allocation2 + $0x124] sm:$0xff]
      %v8313 = vld [vmem:[#allocation2 + $0x12c] sm:$0xff]
      %v8314 = vld [vmem:[%s6190] sm:$0xff]
      %v8315 = vld [vmem:[%s6190 + $0x8] sm:$0xff]
      %v8316 = vld [vmem:[%s6190 + $0x10] sm:$0xff]
      %v8317 = vld [vmem:[%s6190 + $0x18] sm:$0xff]
      %v8318 = vld [vmem:[%s6190 + $0x20] sm:$0xff]
      %v8319 = vld [vmem:[%s6190 + $0x28] sm:$0xff]
      %v8320 = vld [vmem:[%s6190 + $0x30] sm:$0xff]
      %v8321 = vld [vmem:[%s6190 + $0x38] sm:$0xff]
      %v8322 = vld [vmem:[%s6190 + $0x40] sm:$0xff]
      %v8323 = vld [vmem:[%s6190 + $0x48] sm:$0xff]
      %v8324 = vld [vmem:[%s6190 + $0x50] sm:$0xff]
      %v8325 = vld [vmem:[%s6190 + $0x58] sm:$0xff]
      %v8326 = vld [vmem:[%s6190 + $0x60] sm:$0xff]
      %v8327 = vld [vmem:[%s6190 + $0x68] sm:$0xff]
      %v8328 = vld [vmem:[%s6190 + $0x70] sm:$0xff]
      %v8329 = vld [vmem:[%s6190 + $0x78] sm:$0xff]
      %8330 = vmatprep.subr.mxu0 0.0
      %8331 = vmatpush1.msra.mxu0 %v8314
      %8332 = vmatprep.subr.mxu0 0.0
      %8333 = vmatpush1.msra.mxu0 %v8315
      %8334 = vmatprep.subr.mxu0 0.0
      %8335 = vmatpush1.msra.mxu0 %v8316
      %8336 = vmatprep.subr.mxu0 0.0
      %8337 = vmatpush1.msra.mxu0 %v8317
      %8338 = vmatprep.subr.mxu0 0.0
      %8339 = vmatpush1.msra.mxu0 %v8318
      %8340 = vmatprep.subr.mxu0 0.0
      %8341 = vmatpush1.msra.mxu0 %v8319
      %8342 = vmatprep.subr.mxu0 0.0
      %8343 = vmatpush1.msra.mxu0 %v8320
      %8344 = vmatprep.subr.mxu0 0.0
      %8345 = vmatpush1.msra.mxu0 %v8321
      %8346 = vmatprep.subr.mxu0 0.0
      %8347 = vmatpush1.msra.mxu0 %v8322
      %8348 = vmatprep.subr.mxu0 0.0
      %8349 = vmatpush1.msra.mxu0 %v8323
      %8350 = vmatprep.subr.mxu0 0.0
      %8351 = vmatpush1.msra.mxu0 %v8324
      %8352 = vmatprep.subr.mxu0 0.0
      %8353 = vmatpush1.msra.mxu0 %v8325
      %8354 = vmatprep.subr.mxu0 0.0
      %8355 = vmatpush1.msra.mxu0 %v8326
      %8356 = vmatprep.subr.mxu0 0.0
      %8357 = vmatpush1.msra.mxu0 %v8327
      %8358 = vmatprep.subr.mxu0 0.0
      %8359 = vmatpush1.msra.mxu0 %v8328
      %8360 = vmatprep.subr.mxu0 0.0
      %8361 = vmatpush1.msra.mxu0 %v8329
      %8362 = vmatprep.subr.mxu0 0.0
      %8363 = vmatpush1.msra.mxu0 0.0
      %8364 = vmatprep.subr.mxu0 0.0
      %8365 = vmatpush1.msra.mxu0 0.0
      %8366 = vmatprep.subr.mxu0 0.0
      %8367 = vmatpush1.msra.mxu0 0.0
      %8368 = vmatprep.subr.mxu0 0.0
      %8369 = vmatpush1.msra.mxu0 0.0
      %8370 = vmatprep.subr.mxu0 0.0
      %8371 = vmatpush1.msra.mxu0 0.0
      %8372 = vmatprep.subr.mxu0 0.0
      %8373 = vmatpush1.msra.mxu0 0.0
      %8374 = vmatprep.subr.mxu0 0.0
      %8375 = vmatpush1.msra.mxu0 0.0
      %8376 = vmatprep.subr.mxu0 0.0
      %8377 = vmatpush1.msra.mxu0 0.0
      %8378 = vmatprep.subr.mxu0 0.0
      %8379 = vmatpush1.msra.mxu0 0.0
      %8380 = vmatprep.subr.mxu0 0.0
      %8381 = vmatpush1.msra.mxu0 0.0
      %8382 = vmatprep.subr.mxu0 0.0
      %8383 = vmatpush1.msra.mxu0 0.0
      %8384 = vmatprep.subr.mxu0 0.0
      %8385 = vmatpush1.msra.mxu0 0.0
      %8386 = vmatprep.subr.mxu0 0.0
      %8387 = vmatpush1.msra.mxu0 0.0
      %8388 = vmatprep.subr.mxu0 0.0
      %8389 = vmatpush1.msra.mxu0 0.0
      %8390 = vmatprep.subr.mxu0 0.0
      %8391 = vmatpush1.msra.mxu0 0.0
      %8392 = vmatprep.subr.mxu0 0.0
      %8393 = vmatpush1.msra.mxu0 0.0
      %8394 = vmatprep.mubr.f32.mxu0 0.0
      %8395 = vmatmul.mubr.f32.gmra.mrb[0].mxu0 %v8296
      %v8396 = vpop.f32.mrb[0].mxu0
      %v8397 = vadd.f32 0.0, %v8396
      %v8398 = vpop.f32.mrb[0].mxu0
      %8399 = vmatprep.mubr.f32.mxu0 0.0
      %8400 = vmatmul.mubr.f32.gmra.mrb[0].mxu0 %v8297
      %v8401 = vpop.f32.mrb[0].mxu0
      %v8402 = vadd.f32 0.0, %v8401
      %v8403 = vpop.f32.mrb[0].mxu0
      %8404 = vmatprep.mubr.f32.mxu0 0.0
      %8405 = vmatmul.mubr.f32.gmra.mrb[0].mxu0 %v8298
      %v8406 = vpop.f32.mrb[0].mxu0
      %v8407 = vadd.f32 0.0, %v8406
      %v8408 = vpop.f32.mrb[0].mxu0
      %8409 = vmatprep.mubr.f32.mxu0 0.0
      %8410 = vmatmul.mubr.f32.gmra.mrb[0].mxu0 %v8299
      %v8411 = vpop.f32.mrb[0].mxu0
      %v8412 = vadd.f32 0.0, %v8411
      %v8413 = vpop.f32.mrb[0].mxu0
      %8414 = vmatprep.mubr.f32.mxu0 0.0
      %8415 = vmatmul.mubr.f32.gmra.mrb[0].mxu0 %v8300
      %v8416 = vpop.f32.mrb[0].mxu0
      %v8417 = vadd.f32 0.0, %v8416
      %v8418 = vpop.f32.mrb[0].mxu0
      %8419 = vmatprep.mubr.f32.mxu0 0.0
      %8420 = vmatmul.mubr.f32.gmra.mrb[0].mxu0 %v8301
      %v8421 = vpop.f32.mrb[0].mxu0
      %v8422 = vadd.f32 0.0, %v8421
      %v8423 = vpop.f32.mrb[0].mxu0
      %8424 = vmatprep.mubr.f32.mxu0 0.0
      %8425 = vmatmul.mubr.f32.gmra.mrb[0].mxu0 %v8302
      %v8426 = vpop.f32.mrb[0].mxu0
      %v8427 = vadd.f32 0.0, %v8426
      %v8428 = vpop.f32.mrb[0].mxu0
      %8429 = vmatprep.mubr.f32.mxu0 0.0
      %8430 = vmatmul.mubr.f32.gmra.mrb[0].mxu0 %v8303
      %v8431 = vpop.f32.mrb[0].mxu0
      %v8432 = vadd.f32 0.0, %v8431
      %v8433 = vpop.f32.mrb[0].mxu0
      %8434 = vmatprep.mubr.f32.mxu0 0.0
      %8435 = vmatmul.mubr.f32.gmra.mrb[0].mxu0 %v8304
      %v8436 = vpop.f32.mrb[0].mxu0
      %v8437 = vadd.f32 0.0, %v8436
      %v8438 = vpop.f32.mrb[0].mxu0
      %8439 = vmatprep.mubr.f32.mxu0 0.0
      %8440 = vmatmul.mubr.f32.gmra.mrb[0].mxu0 %v8305
      %v8441 = vpop.f32.mrb[0].mxu0
      %v8442 = vadd.f32 0.0, %v8441
      %v8443 = vpop.f32.mrb[0].mxu0
      %8444 = vmatprep.mubr.f32.mxu0 0.0
      %8445 = vmatmul.mubr.f32.gmra.mrb[0].mxu0 %v8306
      %v8446 = vpop.f32.mrb[0].mxu0
      %v8447 = vadd.f32 0.0, %v8446
      %v8448 = vpop.f32.mrb[0].mxu0
      %8449 = vmatprep.mubr.f32.mxu0 0.0
      %8450 = vmatmul.mubr.f32.gmra.mrb[0].mxu0 %v8307
      %v8451 = vpop.f32.mrb[0].mxu0
      %v8452 = vadd.f32 0.0, %v8451
      %v8453 = vpop.f32.mrb[0].mxu0
      %8454 = vmatprep.mubr.f32.mxu0 0.0
      %8455 = vmatmul.mubr.f32.gmra.mrb[0].mxu0 %v8308
      %v8456 = vpop.f32.mrb[0].mxu0
      %v8457 = vadd.f32 0.0, %v8456
      %v8458 = vpop.f32.mrb[0].mxu0
      %8459 = vmatprep.mubr.f32.mxu0 0.0
      %8460 = vmatmul.mubr.f32.gmra.mrb[0].mxu0 %v8309
      %v8461 = vpop.f32.mrb[0].mxu0
      %v8462 = vadd.f32 0.0, %v8461
      %v8463 = vpop.f32.mrb[0].mxu0
      %8464 = vmatprep.mubr.f32.mxu0 0.0
      %8465 = vmatmul.mubr.f32.gmra.mrb[0].mxu0 %v8310
      %v8466 = vpop.f32.mrb[0].mxu0
      %v8467 = vadd.f32 0.0, %v8466
      %v8468 = vpop.f32.mrb[0].mxu0
      %8469 = vmatprep.mubr.f32.mxu0 0.0
      %8470 = vmatmul.mubr.f32.gmra.mrb[0].mxu0 %v8311
      %v8471 = vpop.f32.mrb[0].mxu0
      %v8472 = vadd.f32 0.0, %v8471
      %v8473 = vpop.f32.mrb[0].mxu0
      %8474 = vmatprep.mubr.f32.mxu0 0.0
      %8475 = vmatmul.mubr.f32.gmra.mrb[0].mxu0 %v8312
      %v8476 = vpop.f32.mrb[0].mxu0
      %v8477 = vadd.f32 0.0, %v8476
      %v8478 = vpop.f32.mrb[0].mxu0
      %8479 = vmatprep.mubr.f32.mxu0 0.0
      %8480 = vmatmul.mubr.f32.gmra.mrb[0].mxu0 %v8313
      %v8481 = vpop.f32.mrb[0].mxu0
      %v8482 = vadd.f32 0.0, %v8481
      %v8483 = vpop.f32.mrb[0].mxu0
      %8484 = vdwg.mxu0
      %v8485 = vadd.f32 %v8278, %v8397
      %v8486 = vadd.f32 %v8279, %v8402
      %v8487 = vadd.f32 %v8280, %v8407
      %v8488 = vadd.f32 %v8281, %v8412
      %v8489 = vadd.f32 %v8282, %v8417
      %v8490 = vadd.f32 %v8283, %v8422
      %v8491 = vadd.f32 %v8284, %v8427
      %v8492 = vadd.f32 %v8285, %v8432
      %v8493 = vadd.f32 %v8286, %v8437
      %v8494 = vadd.f32 %v8287, %v8442
      %v8495 = vadd.f32 %v8288, %v8447
      %v8496 = vadd.f32 %v8289, %v8452
      %v8497 = vadd.f32 %v8290, %v8457
      %v8498 = vadd.f32 %v8291, %v8462
      %v8499 = vadd.f32 %v8292, %v8467
      %v8500 = vadd.f32 %v8293, %v8472
      %v8501 = vadd.f32 %v8294, %v8477
      %v8502 = vadd.f32 %v8295, %v8482
      %v8503 = vld [vmem:[#allocation2 + $0xb4] sm:$0xff]
      %v8504 = vld [vmem:[#allocation2 + $0xbc] sm:$0xff]
      %v8505 = vld [vmem:[#allocation2 + $0xc4] sm:$0xff]
      %v8506 = vld [vmem:[#allocation2 + $0xcc] sm:$0xff]
      %v8507 = vld [vmem:[#allocation2 + $0xd4] sm:$0xff]
      %v8508 = vld [vmem:[#allocation2 + $0xdc] sm:$0xff]
      %v8509 = vld [vmem:[#allocation2 + $0xe4] sm:$0xff]
      %v8510 = vld [vmem:[#allocation2 + $0xec] sm:$0xff]
      %v8511 = vld [vmem:[#allocation2 + $0xf4] sm:$0xff]
      %v8512 = vld [vmem:[#allocation2 + $0xfc] sm:$0xff]
      %v8513 = vld [vmem:[#allocation2 + $0x104] sm:$0xff]
      %v8514 = vld [vmem:[#allocation2 + $0x10c] sm:$0xff]
      %v8515 = vld [vmem:[#allocation2 + $0x114] sm:$0xff]
      %v8516 = vld [vmem:[#allocation2 + $0x11c] sm:$0xff]
      %v8517 = vld [vmem:[#allocation2 + $0x124] sm:$0xff]
      %v8518 = vld [vmem:[#allocation2 + $0x12c] sm:$0xff]
      %v8519 = vld [vmem:[#allocation2 + $0x134] sm:$0xff]
      %v8520 = vld [vmem:[#allocation2 + $0x13c] sm:$0xff]
      %v8521 = vld [vmem:[%s6398] sm:$0xff]
      %v8522 = vld [vmem:[%s6398 + $0x8] sm:$0xff]
      %v8523 = vld [vmem:[%s6398 + $0x10] sm:$0xff]
      %v8524 = vld [vmem:[%s6398 + $0x18] sm:$0xff]
      %v8525 = vld [vmem:[%s6398 + $0x20] sm:$0xff]
      %v8526 = vld [vmem:[%s6398 + $0x28] sm:$0xff]
      %v8527 = vld [vmem:[%s6398 + $0x30] sm:$0xff]
      %v8528 = vld [vmem:[%s6398 + $0x38] sm:$0xff]
      %v8529 = vld [vmem:[%s6398 + $0x40] sm:$0xff]
      %v8530 = vld [vmem:[%s6398 + $0x48] sm:$0xff]
      %v8531 = vld [vmem:[%s6398 + $0x50] sm:$0xff]
      %v8532 = vld [vmem:[%s6398 + $0x58] sm:$0xff]
      %v8533 = vld [vmem:[%s6398 + $0x60] sm:$0xff]
      %v8534 = vld [vmem:[%s6398 + $0x68] sm:$0xff]
      %v8535 = vld [vmem:[%s6398 + $0x70] sm:$0xff]
      %v8536 = vld [vmem:[%s6398 + $0x78] sm:$0xff]
      %8537 = vmatprep.subr.mxu0 0.0
      %8538 = vmatpush1.msra.mxu0 %v8521
      %8539 = vmatprep.subr.mxu0 0.0
      %8540 = vmatpush1.msra.mxu0 %v8522
      %8541 = vmatprep.subr.mxu0 0.0
      %8542 = vmatpush1.msra.mxu0 %v8523
      %8543 = vmatprep.subr.mxu0 0.0
      %8544 = vmatpush1.msra.mxu0 %v8524
      %8545 = vmatprep.subr.mxu0 0.0
      %8546 = vmatpush1.msra.mxu0 %v8525
      %8547 = vmatprep.subr.mxu0 0.0
      %8548 = vmatpush1.msra.mxu0 %v8526
      %8549 = vmatprep.subr.mxu0 0.0
      %8550 = vmatpush1.msra.mxu0 %v8527
      %8551 = vmatprep.subr.mxu0 0.0
      %8552 = vmatpush1.msra.mxu0 %v8528
      %8553 = vmatprep.subr.mxu0 0.0
      %8554 = vmatpush1.msra.mxu0 %v8529
      %8555 = vmatprep.subr.mxu0 0.0
      %8556 = vmatpush1.msra.mxu0 %v8530
      %8557 = vmatprep.subr.mxu0 0.0
      %8558 = vmatpush1.msra.mxu0 %v8531
      %8559 = vmatprep.subr.mxu0 0.0
      %8560 = vmatpush1.msra.mxu0 %v8532
      %8561 = vmatprep.subr.mxu0 0.0
      %8562 = vmatpush1.msra.mxu0 %v8533
      %8563 = vmatprep.subr.mxu0 0.0
      %8564 = vmatpush1.msra.mxu0 %v8534
      %8565 = vmatprep.subr.mxu0 0.0
      %8566 = vmatpush1.msra.mxu0 %v8535
      %8567 = vmatprep.subr.mxu0 0.0
      %8568 = vmatpush1.msra.mxu0 %v8536
      %8569 = vmatprep.subr.mxu0 0.0
      %8570 = vmatpush1.msra.mxu0 0.0
      %8571 = vmatprep.subr.mxu0 0.0
      %8572 = vmatpush1.msra.mxu0 0.0
      %8573 = vmatprep.subr.mxu0 0.0
      %8574 = vmatpush1.msra.mxu0 0.0
      %8575 = vmatprep.subr.mxu0 0.0
      %8576 = vmatpush1.msra.mxu0 0.0
      %8577 = vmatprep.subr.mxu0 0.0
      %8578 = vmatpush1.msra.mxu0 0.0
      %8579 = vmatprep.subr.mxu0 0.0
      %8580 = vmatpush1.msra.mxu0 0.0
      %8581 = vmatprep.subr.mxu0 0.0
      %8582 = vmatpush1.msra.mxu0 0.0
      %8583 = vmatprep.subr.mxu0 0.0
      %8584 = vmatpush1.msra.mxu0 0.0
      %8585 = vmatprep.subr.mxu0 0.0
      %8586 = vmatpush1.msra.mxu0 0.0
      %8587 = vmatprep.subr.mxu0 0.0
      %8588 = vmatpush1.msra.mxu0 0.0
      %8589 = vmatprep.subr.mxu0 0.0
      %8590 = vmatpush1.msra.mxu0 0.0
      %8591 = vmatprep.subr.mxu0 0.0
      %8592 = vmatpush1.msra.mxu0 0.0
      %8593 = vmatprep.subr.mxu0 0.0
      %8594 = vmatpush1.msra.mxu0 0.0
      %8595 = vmatprep.subr.mxu0 0.0
      %8596 = vmatpush1.msra.mxu0 0.0
      %8597 = vmatprep.subr.mxu0 0.0
      %8598 = vmatpush1.msra.mxu0 0.0
      %8599 = vmatprep.subr.mxu0 0.0
      %8600 = vmatpush1.msra.mxu0 0.0
      %8601 = vmatprep.mubr.f32.mxu0 0.0
      %8602 = vmatmul.mubr.f32.gmra.mrb[0].mxu0 %v8503
      %v8603 = vpop.f32.mrb[0].mxu0
      %v8604 = vadd.f32 0.0, %v8603
      %v8605 = vpop.f32.mrb[0].mxu0
      %8606 = vmatprep.mubr.f32.mxu0 0.0
      %8607 = vmatmul.mubr.f32.gmra.mrb[0].mxu0 %v8504
      %v8608 = vpop.f32.mrb[0].mxu0
      %v8609 = vadd.f32 0.0, %v8608
      %v8610 = vpop.f32.mrb[0].mxu0
      %8611 = vmatprep.mubr.f32.mxu0 0.0
      %8612 = vmatmul.mubr.f32.gmra.mrb[0].mxu0 %v8505
      %v8613 = vpop.f32.mrb[0].mxu0
      %v8614 = vadd.f32 0.0, %v8613
      %v8615 = vpop.f32.mrb[0].mxu0
      %8616 = vmatprep.mubr.f32.mxu0 0.0
      %8617 = vmatmul.mubr.f32.gmra.mrb[0].mxu0 %v8506
      %v8618 = vpop.f32.mrb[0].mxu0
      %v8619 = vadd.f32 0.0, %v8618
      %v8620 = vpop.f32.mrb[0].mxu0
      %8621 = vmatprep.mubr.f32.mxu0 0.0
      %8622 = vmatmul.mubr.f32.gmra.mrb[0].mxu0 %v8507
      %v8623 = vpop.f32.mrb[0].mxu0
      %v8624 = vadd.f32 0.0, %v8623
      %v8625 = vpop.f32.mrb[0].mxu0
      %8626 = vmatprep.mubr.f32.mxu0 0.0
      %8627 = vmatmul.mubr.f32.gmra.mrb[0].mxu0 %v8508
      %v8628 = vpop.f32.mrb[0].mxu0
      %v8629 = vadd.f32 0.0, %v8628
      %v8630 = vpop.f32.mrb[0].mxu0
      %8631 = vmatprep.mubr.f32.mxu0 0.0
      %8632 = vmatmul.mubr.f32.gmra.mrb[0].mxu0 %v8509
      %v8633 = vpop.f32.mrb[0].mxu0
      %v8634 = vadd.f32 0.0, %v8633
      %v8635 = vpop.f32.mrb[0].mxu0
      %8636 = vmatprep.mubr.f32.mxu0 0.0
      %8637 = vmatmul.mubr.f32.gmra.mrb[0].mxu0 %v8510
      %v8638 = vpop.f32.mrb[0].mxu0
      %v8639 = vadd.f32 0.0, %v8638
      %v8640 = vpop.f32.mrb[0].mxu0
      %8641 = vmatprep.mubr.f32.mxu0 0.0
      %8642 = vmatmul.mubr.f32.gmra.mrb[0].mxu0 %v8511
      %v8643 = vpop.f32.mrb[0].mxu0
      %v8644 = vadd.f32 0.0, %v8643
      %v8645 = vpop.f32.mrb[0].mxu0
      %8646 = vmatprep.mubr.f32.mxu0 0.0
      %8647 = vmatmul.mubr.f32.gmra.mrb[0].mxu0 %v8512
      %v8648 = vpop.f32.mrb[0].mxu0
      %v8649 = vadd.f32 0.0, %v8648
      %v8650 = vpop.f32.mrb[0].mxu0
      %8651 = vmatprep.mubr.f32.mxu0 0.0
      %8652 = vmatmul.mubr.f32.gmra.mrb[0].mxu0 %v8513
      %v8653 = vpop.f32.mrb[0].mxu0
      %v8654 = vadd.f32 0.0, %v8653
      %v8655 = vpop.f32.mrb[0].mxu0
      %8656 = vmatprep.mubr.f32.mxu0 0.0
      %8657 = vmatmul.mubr.f32.gmra.mrb[0].mxu0 %v8514
      %v8658 = vpop.f32.mrb[0].mxu0
      %v8659 = vadd.f32 0.0, %v8658
      %v8660 = vpop.f32.mrb[0].mxu0
      %8661 = vmatprep.mubr.f32.mxu0 0.0
      %8662 = vmatmul.mubr.f32.gmra.mrb[0].mxu0 %v8515
      %v8663 = vpop.f32.mrb[0].mxu0
      %v8664 = vadd.f32 0.0, %v8663
      %v8665 = vpop.f32.mrb[0].mxu0
      %8666 = vmatprep.mubr.f32.mxu0 0.0
      %8667 = vmatmul.mubr.f32.gmra.mrb[0].mxu0 %v8516
      %v8668 = vpop.f32.mrb[0].mxu0
      %v8669 = vadd.f32 0.0, %v8668
      %v8670 = vpop.f32.mrb[0].mxu0
      %8671 = vmatprep.mubr.f32.mxu0 0.0
      %8672 = vmatmul.mubr.f32.gmra.mrb[0].mxu0 %v8517
      %v8673 = vpop.f32.mrb[0].mxu0
      %v8674 = vadd.f32 0.0, %v8673
      %v8675 = vpop.f32.mrb[0].mxu0
      %8676 = vmatprep.mubr.f32.mxu0 0.0
      %8677 = vmatmul.mubr.f32.gmra.mrb[0].mxu0 %v8518
      %v8678 = vpop.f32.mrb[0].mxu0
      %v8679 = vadd.f32 0.0, %v8678
      %v8680 = vpop.f32.mrb[0].mxu0
      %8681 = vmatprep.mubr.f32.mxu0 0.0
      %8682 = vmatmul.mubr.f32.gmra.mrb[0].mxu0 %v8519
      %v8683 = vpop.f32.mrb[0].mxu0
      %v8684 = vadd.f32 0.0, %v8683
      %v8685 = vpop.f32.mrb[0].mxu0
      %8686 = vmatprep.mubr.f32.mxu0 0.0
      %8687 = vmatmul.mubr.f32.gmra.mrb[0].mxu0 %v8520
      %v8688 = vpop.f32.mrb[0].mxu0
      %v8689 = vadd.f32 0.0, %v8688
      %v8690 = vpop.f32.mrb[0].mxu0
      %8691 = vdwg.mxu0
      %v8692 = vadd.f32 %v8485, %v8604
      %v8693 = vadd.f32 %v8486, %v8609
      %v8694 = vadd.f32 %v8487, %v8614
      %v8695 = vadd.f32 %v8488, %v8619
      %v8696 = vadd.f32 %v8489, %v8624
      %v8697 = vadd.f32 %v8490, %v8629
      %v8698 = vadd.f32 %v8491, %v8634
      %v8699 = vadd.f32 %v8492, %v8639
      %v8700 = vadd.f32 %v8493, %v8644
      %v8701 = vadd.f32 %v8494, %v8649
      %v8702 = vadd.f32 %v8495, %v8654
      %v8703 = vadd.f32 %v8496, %v8659
      %v8704 = vadd.f32 %v8497, %v8664
      %v8705 = vadd.f32 %v8498, %v8669
      %v8706 = vadd.f32 %v8499, %v8674
      %v8707 = vadd.f32 %v8500, %v8679
      %v8708 = vadd.f32 %v8501, %v8684
      %v8709 = vadd.f32 %v8502, %v8689
      %v8710 = vld [vmem:[#allocation2 + $0xb5] sm:$0xff]
      %v8711 = vld [vmem:[#allocation2 + $0xbd] sm:$0xff]
      %v8712 = vld [vmem:[#allocation2 + $0xc5] sm:$0xff]
      %v8713 = vld [vmem:[#allocation2 + $0xcd] sm:$0xff]
      %v8714 = vld [vmem:[#allocation2 + $0xd5] sm:$0xff]
      %v8715 = vld [vmem:[#allocation2 + $0xdd] sm:$0xff]
      %v8716 = vld [vmem:[#allocation2 + $0xe5] sm:$0xff]
      %v8717 = vld [vmem:[#allocation2 + $0xed] sm:$0xff]
      %v8718 = vld [vmem:[#allocation2 + $0xf5] sm:$0xff]
      %v8719 = vld [vmem:[#allocation2 + $0xfd] sm:$0xff]
      %v8720 = vld [vmem:[#allocation2 + $0x105] sm:$0xff]
      %v8721 = vld [vmem:[#allocation2 + $0x10d] sm:$0xff]
      %v8722 = vld [vmem:[#allocation2 + $0x115] sm:$0xff]
      %v8723 = vld [vmem:[#allocation2 + $0x11d] sm:$0xff]
      %v8724 = vld [vmem:[#allocation2 + $0x125] sm:$0xff]
      %v8725 = vld [vmem:[#allocation2 + $0x12d] sm:$0xff]
      %v8726 = vld [vmem:[#allocation2 + $0x135] sm:$0xff]
      %v8727 = vld [vmem:[#allocation2 + $0x13d] sm:$0xff]
      %v8728 = vld [vmem:[%s6606] sm:$0xff]
      %v8729 = vld [vmem:[%s6606 + $0x8] sm:$0xff]
      %v8730 = vld [vmem:[%s6606 + $0x10] sm:$0xff]
      %v8731 = vld [vmem:[%s6606 + $0x18] sm:$0xff]
      %v8732 = vld [vmem:[%s6606 + $0x20] sm:$0xff]
      %v8733 = vld [vmem:[%s6606 + $0x28] sm:$0xff]
      %v8734 = vld [vmem:[%s6606 + $0x30] sm:$0xff]
      %v8735 = vld [vmem:[%s6606 + $0x38] sm:$0xff]
      %v8736 = vld [vmem:[%s6606 + $0x40] sm:$0xff]
      %v8737 = vld [vmem:[%s6606 + $0x48] sm:$0xff]
      %v8738 = vld [vmem:[%s6606 + $0x50] sm:$0xff]
      %v8739 = vld [vmem:[%s6606 + $0x58] sm:$0xff]
      %v8740 = vld [vmem:[%s6606 + $0x60] sm:$0xff]
      %v8741 = vld [vmem:[%s6606 + $0x68] sm:$0xff]
      %v8742 = vld [vmem:[%s6606 + $0x70] sm:$0xff]
      %v8743 = vld [vmem:[%s6606 + $0x78] sm:$0xff]
      %8744 = vmatprep.subr.mxu0 0.0
      %8745 = vmatpush1.msra.mxu0 %v8728
      %8746 = vmatprep.subr.mxu0 0.0
      %8747 = vmatpush1.msra.mxu0 %v8729
      %8748 = vmatprep.subr.mxu0 0.0
      %8749 = vmatpush1.msra.mxu0 %v8730
      %8750 = vmatprep.subr.mxu0 0.0
      %8751 = vmatpush1.msra.mxu0 %v8731
      %8752 = vmatprep.subr.mxu0 0.0
      %8753 = vmatpush1.msra.mxu0 %v8732
      %8754 = vmatprep.subr.mxu0 0.0
      %8755 = vmatpush1.msra.mxu0 %v8733
      %8756 = vmatprep.subr.mxu0 0.0
      %8757 = vmatpush1.msra.mxu0 %v8734
      %8758 = vmatprep.subr.mxu0 0.0
      %8759 = vmatpush1.msra.mxu0 %v8735
      %8760 = vmatprep.subr.mxu0 0.0
      %8761 = vmatpush1.msra.mxu0 %v8736
      %8762 = vmatprep.subr.mxu0 0.0
      %8763 = vmatpush1.msra.mxu0 %v8737
      %8764 = vmatprep.subr.mxu0 0.0
      %8765 = vmatpush1.msra.mxu0 %v8738
      %8766 = vmatprep.subr.mxu0 0.0
      %8767 = vmatpush1.msra.mxu0 %v8739
      %8768 = vmatprep.subr.mxu0 0.0
      %8769 = vmatpush1.msra.mxu0 %v8740
      %8770 = vmatprep.subr.mxu0 0.0
      %8771 = vmatpush1.msra.mxu0 %v8741
      %8772 = vmatprep.subr.mxu0 0.0
      %8773 = vmatpush1.msra.mxu0 %v8742
      %8774 = vmatprep.subr.mxu0 0.0
      %8775 = vmatpush1.msra.mxu0 %v8743
      %8776 = vmatprep.subr.mxu0 0.0
      %8777 = vmatpush1.msra.mxu0 0.0
      %8778 = vmatprep.subr.mxu0 0.0
      %8779 = vmatpush1.msra.mxu0 0.0
      %8780 = vmatprep.subr.mxu0 0.0
      %8781 = vmatpush1.msra.mxu0 0.0
      %8782 = vmatprep.subr.mxu0 0.0
      %8783 = vmatpush1.msra.mxu0 0.0
      %8784 = vmatprep.subr.mxu0 0.0
      %8785 = vmatpush1.msra.mxu0 0.0
      %8786 = vmatprep.subr.mxu0 0.0
      %8787 = vmatpush1.msra.mxu0 0.0
      %8788 = vmatprep.subr.mxu0 0.0
      %8789 = vmatpush1.msra.mxu0 0.0
      %8790 = vmatprep.subr.mxu0 0.0
      %8791 = vmatpush1.msra.mxu0 0.0
      %8792 = vmatprep.subr.mxu0 0.0
      %8793 = vmatpush1.msra.mxu0 0.0
      %8794 = vmatprep.subr.mxu0 0.0
      %8795 = vmatpush1.msra.mxu0 0.0
      %8796 = vmatprep.subr.mxu0 0.0
      %8797 = vmatpush1.msra.mxu0 0.0
      %8798 = vmatprep.subr.mxu0 0.0
      %8799 = vmatpush1.msra.mxu0 0.0
      %8800 = vmatprep.subr.mxu0 0.0
      %8801 = vmatpush1.msra.mxu0 0.0
      %8802 = vmatprep.subr.mxu0 0.0
      %8803 = vmatpush1.msra.mxu0 0.0
      %8804 = vmatprep.subr.mxu0 0.0
      %8805 = vmatpush1.msra.mxu0 0.0
      %8806 = vmatprep.subr.mxu0 0.0
      %8807 = vmatpush1.msra.mxu0 0.0
      %8808 = vmatprep.mubr.f32.mxu0 0.0
      %8809 = vmatmul.mubr.f32.gmra.mrb[0].mxu0 %v8710
      %v8810 = vpop.f32.mrb[0].mxu0
      %v8811 = vadd.f32 0.0, %v8810
      %v8812 = vpop.f32.mrb[0].mxu0
      %8813 = vmatprep.mubr.f32.mxu0 0.0
      %8814 = vmatmul.mubr.f32.gmra.mrb[0].mxu0 %v8711
      %v8815 = vpop.f32.mrb[0].mxu0
      %v8816 = vadd.f32 0.0, %v8815
      %v8817 = vpop.f32.mrb[0].mxu0
      %8818 = vmatprep.mubr.f32.mxu0 0.0
      %8819 = vmatmul.mubr.f32.gmra.mrb[0].mxu0 %v8712
      %v8820 = vpop.f32.mrb[0].mxu0
      %v8821 = vadd.f32 0.0, %v8820
      %v8822 = vpop.f32.mrb[0].mxu0
      %8823 = vmatprep.mubr.f32.mxu0 0.0
      %8824 = vmatmul.mubr.f32.gmra.mrb[0].mxu0 %v8713
      %v8825 = vpop.f32.mrb[0].mxu0
      %v8826 = vadd.f32 0.0, %v8825
      %v8827 = vpop.f32.mrb[0].mxu0
      %8828 = vmatprep.mubr.f32.mxu0 0.0
      %8829 = vmatmul.mubr.f32.gmra.mrb[0].mxu0 %v8714
      %v8830 = vpop.f32.mrb[0].mxu0
      %v8831 = vadd.f32 0.0, %v8830
      %v8832 = vpop.f32.mrb[0].mxu0
      %8833 = vmatprep.mubr.f32.mxu0 0.0
      %8834 = vmatmul.mubr.f32.gmra.mrb[0].mxu0 %v8715
      %v8835 = vpop.f32.mrb[0].mxu0
      %v8836 = vadd.f32 0.0, %v8835
      %v8837 = vpop.f32.mrb[0].mxu0
      %8838 = vmatprep.mubr.f32.mxu0 0.0
      %8839 = vmatmul.mubr.f32.gmra.mrb[0].mxu0 %v8716
      %v8840 = vpop.f32.mrb[0].mxu0
      %v8841 = vadd.f32 0.0, %v8840
      %v8842 = vpop.f32.mrb[0].mxu0
      %8843 = vmatprep.mubr.f32.mxu0 0.0
      %8844 = vmatmul.mubr.f32.gmra.mrb[0].mxu0 %v8717
      %v8845 = vpop.f32.mrb[0].mxu0
      %v8846 = vadd.f32 0.0, %v8845
      %v8847 = vpop.f32.mrb[0].mxu0
      %8848 = vmatprep.mubr.f32.mxu0 0.0
      %8849 = vmatmul.mubr.f32.gmra.mrb[0].mxu0 %v8718
      %v8850 = vpop.f32.mrb[0].mxu0
      %v8851 = vadd.f32 0.0, %v8850
      %v8852 = vpop.f32.mrb[0].mxu0
      %8853 = vmatprep.mubr.f32.mxu0 0.0
      %8854 = vmatmul.mubr.f32.gmra.mrb[0].mxu0 %v8719
      %v8855 = vpop.f32.mrb[0].mxu0
      %v8856 = vadd.f32 0.0, %v8855
      %v8857 = vpop.f32.mrb[0].mxu0
      %8858 = vmatprep.mubr.f32.mxu0 0.0
      %8859 = vmatmul.mubr.f32.gmra.mrb[0].mxu0 %v8720
      %v8860 = vpop.f32.mrb[0].mxu0
      %v8861 = vadd.f32 0.0, %v8860
      %v8862 = vpop.f32.mrb[0].mxu0
      %8863 = vmatprep.mubr.f32.mxu0 0.0
      %8864 = vmatmul.mubr.f32.gmra.mrb[0].mxu0 %v8721
      %v8865 = vpop.f32.mrb[0].mxu0
      %v8866 = vadd.f32 0.0, %v8865
      %v8867 = vpop.f32.mrb[0].mxu0
      %8868 = vmatprep.mubr.f32.mxu0 0.0
      %8869 = vmatmul.mubr.f32.gmra.mrb[0].mxu0 %v8722
      %v8870 = vpop.f32.mrb[0].mxu0
      %v8871 = vadd.f32 0.0, %v8870
      %v8872 = vpop.f32.mrb[0].mxu0
      %8873 = vmatprep.mubr.f32.mxu0 0.0
      %8874 = vmatmul.mubr.f32.gmra.mrb[0].mxu0 %v8723
      %v8875 = vpop.f32.mrb[0].mxu0
      %v8876 = vadd.f32 0.0, %v8875
      %v8877 = vpop.f32.mrb[0].mxu0
      %8878 = vmatprep.mubr.f32.mxu0 0.0
      %8879 = vmatmul.mubr.f32.gmra.mrb[0].mxu0 %v8724
      %v8880 = vpop.f32.mrb[0].mxu0
      %v8881 = vadd.f32 0.0, %v8880
      %v8882 = vpop.f32.mrb[0].mxu0
      %8883 = vmatprep.mubr.f32.mxu0 0.0
      %8884 = vmatmul.mubr.f32.gmra.mrb[0].mxu0 %v8725
      %v8885 = vpop.f32.mrb[0].mxu0
      %v8886 = vadd.f32 0.0, %v8885
      %v8887 = vpop.f32.mrb[0].mxu0
      %8888 = vmatprep.mubr.f32.mxu0 0.0
      %8889 = vmatmul.mubr.f32.gmra.mrb[0].mxu0 %v8726
      %v8890 = vpop.f32.mrb[0].mxu0
      %v8891 = vadd.f32 0.0, %v8890
      %v8892 = vpop.f32.mrb[0].mxu0
      %8893 = vmatprep.mubr.f32.mxu0 0.0
      %8894 = vmatmul.mubr.f32.gmra.mrb[0].mxu0 %v8727
      %v8895 = vpop.f32.mrb[0].mxu0
      %v8896 = vadd.f32 0.0, %v8895
      %v8897 = vpop.f32.mrb[0].mxu0
      %8898 = vdwg.mxu0
      %v8899 = vadd.f32 %v8692, %v8811
      %v8900 = vadd.f32 %v8693, %v8816
      %v8901 = vadd.f32 %v8694, %v8821
      %v8902 = vadd.f32 %v8695, %v8826
      %v8903 = vadd.f32 %v8696, %v8831
      %v8904 = vadd.f32 %v8697, %v8836
      %v8905 = vadd.f32 %v8698, %v8841
      %v8906 = vadd.f32 %v8699, %v8846
      %v8907 = vadd.f32 %v8700, %v8851
      %v8908 = vadd.f32 %v8701, %v8856
      %v8909 = vadd.f32 %v8702, %v8861
      %v8910 = vadd.f32 %v8703, %v8866
      %v8911 = vadd.f32 %v8704, %v8871
      %v8912 = vadd.f32 %v8705, %v8876
      %v8913 = vadd.f32 %v8706, %v8881
      %v8914 = vadd.f32 %v8707, %v8886
      %v8915 = vadd.f32 %v8708, %v8891
      %v8916 = vadd.f32 %v8709, %v8896
      %v8917 = vld [vmem:[#allocation2 + $0xb6] sm:$0xff]
      %v8918 = vld [vmem:[#allocation2 + $0xbe] sm:$0xff]
      %v8919 = vld [vmem:[#allocation2 + $0xc6] sm:$0xff]
      %v8920 = vld [vmem:[#allocation2 + $0xce] sm:$0xff]
      %v8921 = vld [vmem:[#allocation2 + $0xd6] sm:$0xff]
      %v8922 = vld [vmem:[#allocation2 + $0xde] sm:$0xff]
      %v8923 = vld [vmem:[#allocation2 + $0xe6] sm:$0xff]
      %v8924 = vld [vmem:[#allocation2 + $0xee] sm:$0xff]
      %v8925 = vld [vmem:[#allocation2 + $0xf6] sm:$0xff]
      %v8926 = vld [vmem:[#allocation2 + $0xfe] sm:$0xff]
      %v8927 = vld [vmem:[#allocation2 + $0x106] sm:$0xff]
      %v8928 = vld [vmem:[#allocation2 + $0x10e] sm:$0xff]
      %v8929 = vld [vmem:[#allocation2 + $0x116] sm:$0xff]
      %v8930 = vld [vmem:[#allocation2 + $0x11e] sm:$0xff]
      %v8931 = vld [vmem:[#allocation2 + $0x126] sm:$0xff]
      %v8932 = vld [vmem:[#allocation2 + $0x12e] sm:$0xff]
      %v8933 = vld [vmem:[#allocation2 + $0x136] sm:$0xff]
      %v8934 = vld [vmem:[#allocation2 + $0x13e] sm:$0xff]
      %v8935 = vld [vmem:[%s6814] sm:$0xff]
      %v8936 = vld [vmem:[%s6814 + $0x8] sm:$0xff]
      %v8937 = vld [vmem:[%s6814 + $0x10] sm:$0xff]
      %v8938 = vld [vmem:[%s6814 + $0x18] sm:$0xff]
      %v8939 = vld [vmem:[%s6814 + $0x20] sm:$0xff]
      %v8940 = vld [vmem:[%s6814 + $0x28] sm:$0xff]
      %v8941 = vld [vmem:[%s6814 + $0x30] sm:$0xff]
      %v8942 = vld [vmem:[%s6814 + $0x38] sm:$0xff]
      %v8943 = vld [vmem:[%s6814 + $0x40] sm:$0xff]
      %v8944 = vld [vmem:[%s6814 + $0x48] sm:$0xff]
      %v8945 = vld [vmem:[%s6814 + $0x50] sm:$0xff]
      %v8946 = vld [vmem:[%s6814 + $0x58] sm:$0xff]
      %v8947 = vld [vmem:[%s6814 + $0x60] sm:$0xff]
      %v8948 = vld [vmem:[%s6814 + $0x68] sm:$0xff]
      %v8949 = vld [vmem:[%s6814 + $0x70] sm:$0xff]
      %v8950 = vld [vmem:[%s6814 + $0x78] sm:$0xff]
      %8951 = vmatprep.subr.mxu0 0.0
      %8952 = vmatpush1.msra.mxu0 %v8935
      %8953 = vmatprep.subr.mxu0 0.0
      %8954 = vmatpush1.msra.mxu0 %v8936
      %8955 = vmatprep.subr.mxu0 0.0
      %8956 = vmatpush1.msra.mxu0 %v8937
      %8957 = vmatprep.subr.mxu0 0.0
      %8958 = vmatpush1.msra.mxu0 %v8938
      %8959 = vmatprep.subr.mxu0 0.0
      %8960 = vmatpush1.msra.mxu0 %v8939
      %8961 = vmatprep.subr.mxu0 0.0
      %8962 = vmatpush1.msra.mxu0 %v8940
      %8963 = vmatprep.subr.mxu0 0.0
      %8964 = vmatpush1.msra.mxu0 %v8941
      %8965 = vmatprep.subr.mxu0 0.0
      %8966 = vmatpush1.msra.mxu0 %v8942
      %8967 = vmatprep.subr.mxu0 0.0
      %8968 = vmatpush1.msra.mxu0 %v8943
      %8969 = vmatprep.subr.mxu0 0.0
      %8970 = vmatpush1.msra.mxu0 %v8944
      %8971 = vmatprep.subr.mxu0 0.0
      %8972 = vmatpush1.msra.mxu0 %v8945
      %8973 = vmatprep.subr.mxu0 0.0
      %8974 = vmatpush1.msra.mxu0 %v8946
      %8975 = vmatprep.subr.mxu0 0.0
      %8976 = vmatpush1.msra.mxu0 %v8947
      %8977 = vmatprep.subr.mxu0 0.0
      %8978 = vmatpush1.msra.mxu0 %v8948
      %8979 = vmatprep.subr.mxu0 0.0
      %8980 = vmatpush1.msra.mxu0 %v8949
      %8981 = vmatprep.subr.mxu0 0.0
      %8982 = vmatpush1.msra.mxu0 %v8950
      %8983 = vmatprep.subr.mxu0 0.0
      %8984 = vmatpush1.msra.mxu0 0.0
      %8985 = vmatprep.subr.mxu0 0.0
      %8986 = vmatpush1.msra.mxu0 0.0
      %8987 = vmatprep.subr.mxu0 0.0
      %8988 = vmatpush1.msra.mxu0 0.0
      %8989 = vmatprep.subr.mxu0 0.0
      %8990 = vmatpush1.msra.mxu0 0.0
      %8991 = vmatprep.subr.mxu0 0.0
      %8992 = vmatpush1.msra.mxu0 0.0
      %8993 = vmatprep.subr.mxu0 0.0
      %8994 = vmatpush1.msra.mxu0 0.0
      %8995 = vmatprep.subr.mxu0 0.0
      %8996 = vmatpush1.msra.mxu0 0.0
      %8997 = vmatprep.subr.mxu0 0.0
      %8998 = vmatpush1.msra.mxu0 0.0
      %8999 = vmatprep.subr.mxu0 0.0
      %9000 = vmatpush1.msra.mxu0 0.0
      %9001 = vmatprep.subr.mxu0 0.0
      %9002 = vmatpush1.msra.mxu0 0.0
      %9003 = vmatprep.subr.mxu0 0.0
      %9004 = vmatpush1.msra.mxu0 0.0
      %9005 = vmatprep.subr.mxu0 0.0
      %9006 = vmatpush1.msra.mxu0 0.0
      %9007 = vmatprep.subr.mxu0 0.0
      %9008 = vmatpush1.msra.mxu0 0.0
      %9009 = vmatprep.subr.mxu0 0.0
      %9010 = vmatpush1.msra.mxu0 0.0
      %9011 = vmatprep.subr.mxu0 0.0
      %9012 = vmatpush1.msra.mxu0 0.0
      %9013 = vmatprep.subr.mxu0 0.0
      %9014 = vmatpush1.msra.mxu0 0.0
      %9015 = vmatprep.mubr.f32.mxu0 0.0
      %9016 = vmatmul.mubr.f32.gmra.mrb[0].mxu0 %v8917
      %v9017 = vpop.f32.mrb[0].mxu0
      %v9018 = vadd.f32 0.0, %v9017
      %v9019 = vpop.f32.mrb[0].mxu0
      %9020 = vmatprep.mubr.f32.mxu0 0.0
      %9021 = vmatmul.mubr.f32.gmra.mrb[0].mxu0 %v8918
      %v9022 = vpop.f32.mrb[0].mxu0
      %v9023 = vadd.f32 0.0, %v9022
      %v9024 = vpop.f32.mrb[0].mxu0
      %9025 = vmatprep.mubr.f32.mxu0 0.0
      %9026 = vmatmul.mubr.f32.gmra.mrb[0].mxu0 %v8919
      %v9027 = vpop.f32.mrb[0].mxu0
      %v9028 = vadd.f32 0.0, %v9027
      %v9029 = vpop.f32.mrb[0].mxu0
      %9030 = vmatprep.mubr.f32.mxu0 0.0
      %9031 = vmatmul.mubr.f32.gmra.mrb[0].mxu0 %v8920
      %v9032 = vpop.f32.mrb[0].mxu0
      %v9033 = vadd.f32 0.0, %v9032
      %v9034 = vpop.f32.mrb[0].mxu0
      %9035 = vmatprep.mubr.f32.mxu0 0.0
      %9036 = vmatmul.mubr.f32.gmra.mrb[0].mxu0 %v8921
      %v9037 = vpop.f32.mrb[0].mxu0
      %v9038 = vadd.f32 0.0, %v9037
      %v9039 = vpop.f32.mrb[0].mxu0
      %9040 = vmatprep.mubr.f32.mxu0 0.0
      %9041 = vmatmul.mubr.f32.gmra.mrb[0].mxu0 %v8922
      %v9042 = vpop.f32.mrb[0].mxu0
      %v9043 = vadd.f32 0.0, %v9042
      %v9044 = vpop.f32.mrb[0].mxu0
      %9045 = vmatprep.mubr.f32.mxu0 0.0
      %9046 = vmatmul.mubr.f32.gmra.mrb[0].mxu0 %v8923
      %v9047 = vpop.f32.mrb[0].mxu0
      %v9048 = vadd.f32 0.0, %v9047
      %v9049 = vpop.f32.mrb[0].mxu0
      %9050 = vmatprep.mubr.f32.mxu0 0.0
      %9051 = vmatmul.mubr.f32.gmra.mrb[0].mxu0 %v8924
      %v9052 = vpop.f32.mrb[0].mxu0
      %v9053 = vadd.f32 0.0, %v9052
      %v9054 = vpop.f32.mrb[0].mxu0
      %9055 = vmatprep.mubr.f32.mxu0 0.0
      %9056 = vmatmul.mubr.f32.gmra.mrb[0].mxu0 %v8925
      %v9057 = vpop.f32.mrb[0].mxu0
      %v9058 = vadd.f32 0.0, %v9057
      %v9059 = vpop.f32.mrb[0].mxu0
      %9060 = vmatprep.mubr.f32.mxu0 0.0
      %9061 = vmatmul.mubr.f32.gmra.mrb[0].mxu0 %v8926
      %v9062 = vpop.f32.mrb[0].mxu0
      %v9063 = vadd.f32 0.0, %v9062
      %v9064 = vpop.f32.mrb[0].mxu0
      %9065 = vmatprep.mubr.f32.mxu0 0.0
      %9066 = vmatmul.mubr.f32.gmra.mrb[0].mxu0 %v8927
      %v9067 = vpop.f32.mrb[0].mxu0
      %v9068 = vadd.f32 0.0, %v9067
      %v9069 = vpop.f32.mrb[0].mxu0
      %9070 = vmatprep.mubr.f32.mxu0 0.0
      %9071 = vmatmul.mubr.f32.gmra.mrb[0].mxu0 %v8928
      %v9072 = vpop.f32.mrb[0].mxu0
      %v9073 = vadd.f32 0.0, %v9072
      %v9074 = vpop.f32.mrb[0].mxu0
      %9075 = vmatprep.mubr.f32.mxu0 0.0
      %9076 = vmatmul.mubr.f32.gmra.mrb[0].mxu0 %v8929
      %v9077 = vpop.f32.mrb[0].mxu0
      %v9078 = vadd.f32 0.0, %v9077
      %v9079 = vpop.f32.mrb[0].mxu0
      %9080 = vmatprep.mubr.f32.mxu0 0.0
      %9081 = vmatmul.mubr.f32.gmra.mrb[0].mxu0 %v8930
      %v9082 = vpop.f32.mrb[0].mxu0
      %v9083 = vadd.f32 0.0, %v9082
      %v9084 = vpop.f32.mrb[0].mxu0
      %9085 = vmatprep.mubr.f32.mxu0 0.0
      %9086 = vmatmul.mubr.f32.gmra.mrb[0].mxu0 %v8931
      %v9087 = vpop.f32.mrb[0].mxu0
      %v9088 = vadd.f32 0.0, %v9087
      %v9089 = vpop.f32.mrb[0].mxu0
      %9090 = vmatprep.mubr.f32.mxu0 0.0
      %9091 = vmatmul.mubr.f32.gmra.mrb[0].mxu0 %v8932
      %v9092 = vpop.f32.mrb[0].mxu0
      %v9093 = vadd.f32 0.0, %v9092
      %v9094 = vpop.f32.mrb[0].mxu0
      %9095 = vmatprep.mubr.f32.mxu0 0.0
      %9096 = vmatmul.mubr.f32.gmra.mrb[0].mxu0 %v8933
      %v9097 = vpop.f32.mrb[0].mxu0
      %v9098 = vadd.f32 0.0, %v9097
      %v9099 = vpop.f32.mrb[0].mxu0
      %9100 = vmatprep.mubr.f32.mxu0 0.0
      %9101 = vmatmul.mubr.f32.gmra.mrb[0].mxu0 %v8934
      %v9102 = vpop.f32.mrb[0].mxu0
      %v9103 = vadd.f32 0.0, %v9102
      %v9104 = vpop.f32.mrb[0].mxu0
      %9105 = vdwg.mxu0
      %v9106 = vadd.f32 %v8899, %v9018
      %v9107 = vadd.f32 %v8900, %v9023
      %v9108 = vadd.f32 %v8901, %v9028
      %v9109 = vadd.f32 %v8902, %v9033
      %v9110 = vadd.f32 %v8903, %v9038
      %v9111 = vadd.f32 %v8904, %v9043
      %v9112 = vadd.f32 %v8905, %v9048
      %v9113 = vadd.f32 %v8906, %v9053
      %v9114 = vadd.f32 %v8907, %v9058
      %v9115 = vadd.f32 %v8908, %v9063
      %v9116 = vadd.f32 %v8909, %v9068
      %v9117 = vadd.f32 %v8910, %v9073
      %v9118 = vadd.f32 %v8911, %v9078
      %v9119 = vadd.f32 %v8912, %v9083
      %v9120 = vadd.f32 %v8913, %v9088
      %v9121 = vadd.f32 %v8914, %v9093
      %v9122 = vadd.f32 %v8915, %v9098
      %v9123 = vadd.f32 %v8916, %v9103
      %v9124 = vld [vmem:[%s4] sm:$0x1]
      %v9126 = vlaneseq
      %v9127 = vshrl.u32 %v9126, 7
      %v9128 = vsub.s32 0, %v9127
      %v9129 = vrot.slane %v9124, %v9128
      %v9131 = vadd.f32 %v9106, %v9129
      %v9132 = vadd.f32 %v9107, %v9129
      %v9133 = vadd.f32 %v9108, %v9129
      %v9134 = vadd.f32 %v9109, %v9129
      %v9135 = vadd.f32 %v9110, %v9129
      %v9136 = vadd.f32 %v9111, %v9129
      %v9137 = vadd.f32 %v9112, %v9129
      %v9138 = vadd.f32 %v9113, %v9129
      %v9139 = vadd.f32 %v9114, %v9129
      %v9140 = vadd.f32 %v9115, %v9129
      %v9141 = vadd.f32 %v9116, %v9129
      %v9142 = vadd.f32 %v9117, %v9129
      %v9143 = vadd.f32 %v9118, %v9129
      %v9144 = vadd.f32 %v9119, %v9129
      %v9145 = vadd.f32 %v9120, %v9129
      %v9146 = vadd.f32 %v9121, %v9129
      %v9147 = vadd.f32 %v9122, %v9129
      %v9148 = vadd.f32 %v9123, %v9129
      %v9149 = vmax.f32 %v9131, 0.0
      %v9150 = vmax.f32 %v9132, 0.0
      %v9151 = vmax.f32 %v9133, 0.0
      %v9152 = vmax.f32 %v9134, 0.0
      %v9153 = vmax.f32 %v9135, 0.0
      %v9154 = vmax.f32 %v9136, 0.0
      %v9155 = vmax.f32 %v9137, 0.0
      %v9156 = vmax.f32 %v9138, 0.0
      %v9157 = vmax.f32 %v9139, 0.0
      %v9158 = vmax.f32 %v9140, 0.0
      %v9159 = vmax.f32 %v9141, 0.0
      %v9160 = vmax.f32 %v9142, 0.0
      %v9161 = vmax.f32 %v9143, 0.0
      %v9162 = vmax.f32 %v9144, 0.0
      %v9163 = vmax.f32 %v9145, 0.0
      %v9164 = vmax.f32 %v9146, 0.0
      %v9165 = vmax.f32 %v9147, 0.0
      %v9166 = vmax.f32 %v9148, 0.0
      %v9167 = vld [vmem:[%s5] sm:$0xff]
      %v9168 = vld [vmem:[%s5 + $0x8] sm:$0xff]
      %v9169 = vld [vmem:[%s5 + $0x10] sm:$0xff]
      %v9170 = vld [vmem:[%s5 + $0x18] sm:$0xff]
      %v9171 = vld [vmem:[%s5 + $0x20] sm:$0xff]
      %v9172 = vld [vmem:[%s5 + $0x28] sm:$0xff]
      %v9173 = vld [vmem:[%s5 + $0x30] sm:$0xff]
      %v9174 = vld [vmem:[%s5 + $0x38] sm:$0xff]
      %v9175 = vld [vmem:[%s5 + $0x40] sm:$0xff]
      %v9176 = vld [vmem:[%s5 + $0x48] sm:$0xff]
      %v9177 = vld [vmem:[%s5 + $0x50] sm:$0xff]
      %v9178 = vld [vmem:[%s5 + $0x58] sm:$0xff]
      %v9179 = vld [vmem:[%s5 + $0x60] sm:$0xff]
      %v9180 = vld [vmem:[%s5 + $0x68] sm:$0xff]
      %v9181 = vld [vmem:[%s5 + $0x70] sm:$0xff]
      %v9182 = vld [vmem:[%s5 + $0x78] sm:$0xff]
      %v9183 = vld [vmem:[%s6] sm:$0x1]
      %v9185 = vlaneseq
      %v9186 = vshrl.u32 %v9185, 7
      %v9187 = vsub.s32 0, %v9186
      %v9188 = vrot.slane %v9183, %v9187
      %9190 = vmatprep.subr.mxu0 0.0
      %9191 = vmatpush1.msra.mxu0 %v9167
      %9192 = vmatprep.subr.mxu0 0.0
      %9193 = vmatpush1.msra.mxu0 %v9168
      %9194 = vmatprep.subr.mxu0 0.0
      %9195 = vmatpush1.msra.mxu0 %v9169
      %9196 = vmatprep.subr.mxu0 0.0
      %9197 = vmatpush1.msra.mxu0 %v9170
      %9198 = vmatprep.subr.mxu0 0.0
      %9199 = vmatpush1.msra.mxu0 %v9171
      %9200 = vmatprep.subr.mxu0 0.0
      %9201 = vmatpush1.msra.mxu0 %v9172
      %9202 = vmatprep.subr.mxu0 0.0
      %9203 = vmatpush1.msra.mxu0 %v9173
      %9204 = vmatprep.subr.mxu0 0.0
      %9205 = vmatpush1.msra.mxu0 %v9174
      %9206 = vmatprep.subr.mxu0 0.0
      %9207 = vmatpush1.msra.mxu0 %v9175
      %9208 = vmatprep.subr.mxu0 0.0
      %9209 = vmatpush1.msra.mxu0 %v9176
      %9210 = vmatprep.subr.mxu0 0.0
      %9211 = vmatpush1.msra.mxu0 %v9177
      %9212 = vmatprep.subr.mxu0 0.0
      %9213 = vmatpush1.msra.mxu0 %v9178
      %9214 = vmatprep.subr.mxu0 0.0
      %9215 = vmatpush1.msra.mxu0 %v9179
      %9216 = vmatprep.subr.mxu0 0.0
      %9217 = vmatpush1.msra.mxu0 %v9180
      %9218 = vmatprep.subr.mxu0 0.0
      %9219 = vmatpush1.msra.mxu0 %v9181
      %9220 = vmatprep.subr.mxu0 0.0
      %9221 = vmatpush1.msra.mxu0 %v9182
      %9222 = vmatprep.subr.mxu0 0.0
      %9223 = vmatpush1.msra.mxu0 0.0
      %9224 = vmatprep.subr.mxu0 0.0
      %9225 = vmatpush1.msra.mxu0 0.0
      %9226 = vmatprep.subr.mxu0 0.0
      %9227 = vmatpush1.msra.mxu0 0.0
      %9228 = vmatprep.subr.mxu0 0.0
      %9229 = vmatpush1.msra.mxu0 0.0
      %9230 = vmatprep.subr.mxu0 0.0
      %9231 = vmatpush1.msra.mxu0 0.0
      %9232 = vmatprep.subr.mxu0 0.0
      %9233 = vmatpush1.msra.mxu0 0.0
      %9234 = vmatprep.subr.mxu0 0.0
      %9235 = vmatpush1.msra.mxu0 0.0
      %9236 = vmatprep.subr.mxu0 0.0
      %9237 = vmatpush1.msra.mxu0 0.0
      %9238 = vmatprep.subr.mxu0 0.0
      %9239 = vmatpush1.msra.mxu0 0.0
      %9240 = vmatprep.subr.mxu0 0.0
      %9241 = vmatpush1.msra.mxu0 0.0
      %9242 = vmatprep.subr.mxu0 0.0
      %9243 = vmatpush1.msra.mxu0 0.0
      %9244 = vmatprep.subr.mxu0 0.0
      %9245 = vmatpush1.msra.mxu0 0.0
      %9246 = vmatprep.subr.mxu0 0.0
      %9247 = vmatpush1.msra.mxu0 0.0
      %9248 = vmatprep.subr.mxu0 0.0
      %9249 = vmatpush1.msra.mxu0 0.0
      %9250 = vmatprep.subr.mxu0 0.0
      %9251 = vmatpush1.msra.mxu0 0.0
      %9252 = vmatprep.subr.mxu0 0.0
      %9253 = vmatpush1.msra.mxu0 0.0
      %9254 = vmatprep.mubr.f32.mxu0 0.0
      %9255 = vmatmul.mubr.f32.gmra.mrb[0].mxu0 %v9149
      %v9256 = vpop.f32.mrb[0].mxu0
      %v9257 = vadd.f32 %v9188, %v9256
      %v9258 = vpop.f32.mrb[0].mxu0
      %9259 = vmatprep.mubr.f32.mxu0 0.0
      %9260 = vmatmul.mubr.f32.gmra.mrb[0].mxu0 %v9150
      %v9261 = vpop.f32.mrb[0].mxu0
      %v9262 = vadd.f32 %v9188, %v9261
      %v9263 = vpop.f32.mrb[0].mxu0
      %9264 = vmatprep.mubr.f32.mxu0 0.0
      %9265 = vmatmul.mubr.f32.gmra.mrb[0].mxu0 %v9151
      %v9266 = vpop.f32.mrb[0].mxu0
      %v9267 = vadd.f32 %v9188, %v9266
      %v9268 = vpop.f32.mrb[0].mxu0
      %9269 = vmatprep.mubr.f32.mxu0 0.0
      %9270 = vmatmul.mubr.f32.gmra.mrb[0].mxu0 %v9152
      %v9271 = vpop.f32.mrb[0].mxu0
      %v9272 = vadd.f32 %v9188, %v9271
      %v9273 = vpop.f32.mrb[0].mxu0
      %9274 = vmatprep.mubr.f32.mxu0 0.0
      %9275 = vmatmul.mubr.f32.gmra.mrb[0].mxu0 %v9153
      %v9276 = vpop.f32.mrb[0].mxu0
      %v9277 = vadd.f32 %v9188, %v9276
      %v9278 = vpop.f32.mrb[0].mxu0
      %9279 = vmatprep.mubr.f32.mxu0 0.0
      %9280 = vmatmul.mubr.f32.gmra.mrb[0].mxu0 %v9154
      %v9281 = vpop.f32.mrb[0].mxu0
      %v9282 = vadd.f32 %v9188, %v9281
      %v9283 = vpop.f32.mrb[0].mxu0
      %9284 = vmatprep.mubr.f32.mxu0 0.0
      %9285 = vmatmul.mubr.f32.gmra.mrb[0].mxu0 %v9155
      %v9286 = vpop.f32.mrb[0].mxu0
      %v9287 = vadd.f32 %v9188, %v9286
      %v9288 = vpop.f32.mrb[0].mxu0
      %9289 = vmatprep.mubr.f32.mxu0 0.0
      %9290 = vmatmul.mubr.f32.gmra.mrb[0].mxu0 %v9156
      %v9291 = vpop.f32.mrb[0].mxu0
      %v9292 = vadd.f32 %v9188, %v9291
      %v9293 = vpop.f32.mrb[0].mxu0
      %9294 = vmatprep.mubr.f32.mxu0 0.0
      %9295 = vmatmul.mubr.f32.gmra.mrb[0].mxu0 %v9157
      %v9296 = vpop.f32.mrb[0].mxu0
      %v9297 = vadd.f32 %v9188, %v9296
      %v9298 = vpop.f32.mrb[0].mxu0
      %9299 = vmatprep.mubr.f32.mxu0 0.0
      %9300 = vmatmul.mubr.f32.gmra.mrb[0].mxu0 %v9158
      %v9301 = vpop.f32.mrb[0].mxu0
      %v9302 = vadd.f32 %v9188, %v9301
      %v9303 = vpop.f32.mrb[0].mxu0
      %9304 = vmatprep.mubr.f32.mxu0 0.0
      %9305 = vmatmul.mubr.f32.gmra.mrb[0].mxu0 %v9159
      %v9306 = vpop.f32.mrb[0].mxu0
      %v9307 = vadd.f32 %v9188, %v9306
      %v9308 = vpop.f32.mrb[0].mxu0
      %9309 = vmatprep.mubr.f32.mxu0 0.0
      %9310 = vmatmul.mubr.f32.gmra.mrb[0].mxu0 %v9160
      %v9311 = vpop.f32.mrb[0].mxu0
      %v9312 = vadd.f32 %v9188, %v9311
      %v9313 = vpop.f32.mrb[0].mxu0
      %9314 = vmatprep.mubr.f32.mxu0 0.0
      %9315 = vmatmul.mubr.f32.gmra.mrb[0].mxu0 %v9161
      %v9316 = vpop.f32.mrb[0].mxu0
      %v9317 = vadd.f32 %v9188, %v9316
      %v9318 = vpop.f32.mrb[0].mxu0
      %9319 = vmatprep.mubr.f32.mxu0 0.0
      %9320 = vmatmul.mubr.f32.gmra.mrb[0].mxu0 %v9162
      %v9321 = vpop.f32.mrb[0].mxu0
      %v9322 = vadd.f32 %v9188, %v9321
      %v9323 = vpop.f32.mrb[0].mxu0
      %9324 = vmatprep.mubr.f32.mxu0 0.0
      %9325 = vmatmul.mubr.f32.gmra.mrb[0].mxu0 %v9163
      %v9326 = vpop.f32.mrb[0].mxu0
      %v9327 = vadd.f32 %v9188, %v9326
      %v9328 = vpop.f32.mrb[0].mxu0
      %9329 = vmatprep.mubr.f32.mxu0 0.0
      %9330 = vmatmul.mubr.f32.gmra.mrb[0].mxu0 %v9164
      %v9331 = vpop.f32.mrb[0].mxu0
      %v9332 = vadd.f32 %v9188, %v9331
      %v9333 = vpop.f32.mrb[0].mxu0
      %9334 = vmatprep.mubr.f32.mxu0 0.0
      %9335 = vmatmul.mubr.f32.gmra.mrb[0].mxu0 %v9165
      %v9336 = vpop.f32.mrb[0].mxu0
      %v9337 = vadd.f32 %v9188, %v9336
      %v9338 = vpop.f32.mrb[0].mxu0
      %9339 = vmatprep.mubr.f32.mxu0 0.0
      %9340 = vmatmul.mubr.f32.gmra.mrb[0].mxu0 %v9166
      %v9341 = vpop.f32.mrb[0].mxu0
      %v9342 = vadd.f32 %v9188, %v9341
      %v9343 = vpop.f32.mrb[0].mxu0
      %9344 = vdwg.mxu0
      %v9345 = vld [vmem:[%s273 + $0xa3] sm:$0xff]
      %v9346 = vld [vmem:[%s273 + $0xab] sm:$0xff]
      %v9347 = vld [vmem:[%s273 + $0xb3] sm:$0xff]
      %v9348 = vld [vmem:[%s273 + $0xbb] sm:$0xff]
      %v9349 = vld [vmem:[%s273 + $0xc3] sm:$0xff]
      %v9350 = vld [vmem:[%s273 + $0xcb] sm:$0xff]
      %v9351 = vld [vmem:[%s273 + $0xd3] sm:$0xff]
      %v9352 = vld [vmem:[%s273 + $0xdb] sm:$0xff]
      %v9353 = vld [vmem:[%s273 + $0xe3] sm:$0xff]
      %v9354 = vld [vmem:[%s273 + $0xeb] sm:$0xff]
      %v9355 = vld [vmem:[%s273 + $0xf3] sm:$0xff]
      %v9356 = vld [vmem:[%s273 + $0xfb] sm:$0xff]
      %v9357 = vld [vmem:[%s273 + $0x103] sm:$0xff]
      %v9358 = vld [vmem:[%s273 + $0x10b] sm:$0xff]
      %v9359 = vld [vmem:[%s273 + $0x113] sm:$0xff]
      %v9360 = vld [vmem:[%s273 + $0x11b] sm:$0xff]
      %v9361 = vld [vmem:[%s273 + $0x123] sm:$0xff]
      %v9362 = vld [vmem:[%s273 + $0x12b] sm:$0xff]
      %v9363 = vadd.f32 %v9257, %v9345
      %v9364 = vadd.f32 %v9262, %v9346
      %v9365 = vadd.f32 %v9267, %v9347
      %v9366 = vadd.f32 %v9272, %v9348
      %v9367 = vadd.f32 %v9277, %v9349
      %v9368 = vadd.f32 %v9282, %v9350
      %v9369 = vadd.f32 %v9287, %v9351
      %v9370 = vadd.f32 %v9292, %v9352
      %v9371 = vadd.f32 %v9297, %v9353
      %v9372 = vadd.f32 %v9302, %v9354
      %v9373 = vadd.f32 %v9307, %v9355
      %v9374 = vadd.f32 %v9312, %v9356
      %v9375 = vadd.f32 %v9317, %v9357
      %v9376 = vadd.f32 %v9322, %v9358
      %v9377 = vadd.f32 %v9327, %v9359
      %v9378 = vadd.f32 %v9332, %v9360
      %v9379 = vadd.f32 %v9337, %v9361
      %v9380 = vadd.f32 %v9342, %v9362
      %v9381 = vmax.f32 %v9363, 0.0
      %v9382 = vmax.f32 %v9364, 0.0
      %v9383 = vmax.f32 %v9365, 0.0
      %v9384 = vmax.f32 %v9366, 0.0
      %v9385 = vmax.f32 %v9367, 0.0
      %v9386 = vmax.f32 %v9368, 0.0
      %v9387 = vmax.f32 %v9369, 0.0
      %v9388 = vmax.f32 %v9370, 0.0
      %v9389 = vmax.f32 %v9371, 0.0
      %v9390 = vmax.f32 %v9372, 0.0
      %v9391 = vmax.f32 %v9373, 0.0
      %v9392 = vmax.f32 %v9374, 0.0
      %v9393 = vmax.f32 %v9375, 0.0
      %v9394 = vmax.f32 %v9376, 0.0
      %v9395 = vmax.f32 %v9377, 0.0
      %v9396 = vmax.f32 %v9378, 0.0
      %v9397 = vmax.f32 %v9379, 0.0
      %v9398 = vmax.f32 %v9380, 0.0
      %9399 = vst.msk [vmem:[%s278 + $0x90] sm:$0xff] %vm649, %v9381
      %9400 = vst.msk [vmem:[%s278 + $0x98] sm:$0xff] %vm649, %v9382
      %9401 = vst.msk [vmem:[%s278 + $0xa0] sm:$0xff] %vm649, %v9383
      %9402 = vst.msk [vmem:[%s278 + $0xa8] sm:$0xff] %vm649, %v9384
      %9403 = vst.msk [vmem:[%s278 + $0xb0] sm:$0xff] %vm649, %v9385
      %9404 = vst.msk [vmem:[%s278 + $0xb8] sm:$0xff] %vm649, %v9386
      %9405 = vst.msk [vmem:[%s278 + $0xc0] sm:$0xff] %vm649, %v9387
      %9406 = vst.msk [vmem:[%s278 + $0xc8] sm:$0xff] %vm649, %v9388
      %9407 = vst.msk [vmem:[%s278 + $0xd0] sm:$0xff] %vm649, %v9389
      %9408 = vst.msk [vmem:[%s278 + $0xd8] sm:$0xff] %vm649, %v9390
      %9409 = vst.msk [vmem:[%s278 + $0xe0] sm:$0xff] %vm649, %v9391
      %9410 = vst.msk [vmem:[%s278 + $0xe8] sm:$0xff] %vm649, %v9392
      %9411 = vst.msk [vmem:[%s278 + $0xf0] sm:$0xff] %vm649, %v9393
      %9412 = vst.msk [vmem:[%s278 + $0xf8] sm:$0xff] %vm649, %v9394
      %9413 = vst.msk [vmem:[%s278 + $0x100] sm:$0xff] %vm649, %v9395
      %9414 = vst.msk [vmem:[%s278 + $0x108] sm:$0xff] %vm649, %v9396
      %9415 = vst.msk [vmem:[%s278 + $0x110] sm:$0xff] %vm649, %v9397
      %9416 = vst.msk [vmem:[%s278 + $0x118] sm:$0xff] %vm649, %v9398
      %p9417 = scmp.lt.s32.totalorder %s18, 1
      %s9418 = scalar_select %p9417, %s18, 1
      %s9419 = smul.addr %s9418, 36
      %s9420 = smul.addr %s9419, 8
      %s9421 = scalar_lea.vmem %s7, %s9420
      // Predicated region
      $region49: #{eresidual_block_forward.1} parent=47 // pred_check
        %p9422 = pneg %p188
      $region50: #{eresidual_block_forward.1} parent=47 // pred_check_branch
        %9424 = sbr.rel (%p9422) target = $region52
      $region51: #{eresidual_block_forward.1} parent=47 // pred_region
        _
      $region52: #{eresidual_block_forward.1} parent=47 // pred_fallthru
        _
    $region48: #{eresidual_block_forward.1} parent=5 // pred_fallthru
      _
    %p9425 = scmp.le.s32.totalorder 2, %s13
    // Predicated region
    $region53: #{eresidual_block_forward.1} parent=5 // pred_check
      %p9426 = pneg %p9425
    $region54: #{eresidual_block_forward.1} parent=5 // pred_check_branch
      %9428 = sbr.rel (%p9426) target = $region56
    $region55: #{eresidual_block_forward.1} parent=5 // pred_region
      %s9429 = ssub.s32 %s13, 2
      // Predicated region
      $region57: #{eresidual_block_forward.1} parent=55 // pred_check
        %p9430 = pneg %p194
      $region58: #{eresidual_block_forward.1} parent=55 // pred_check_branch
        %9432 = sbr.rel (%p9430) target = $region60
      $region59: #{eresidual_block_forward.1} parent=55 // pred_region
        %p9433 = scmp.lt.s32.totalorder %s19, 1
        %s9434 = scalar_select %p9433, %s19, 1
        %s9435 = smul.addr %s9434, 36
        %s9436 = smul.addr %s9435, 8
        %s9437 = scalar_lea.vmem %s7, %s9436
      $region60: #{eresidual_block_forward.1} parent=55 // pred_fallthru
        _
    $region56: #{eresidual_block_forward.1} parent=5 // pred_fallthru
      _
  $region6: #{eresidual_block_forward.1} parent=0 // loop_footer
    %s17 = sadd.s32 1, %s13
  $region7: #{eresidual_block_forward.1} parent=0 // loop_footer_branch
    %12 = sbr.rel target = $region3
  $region8: #{eresidual_block_forward.1} parent=0 // loop_exit
    _

</llo_original>
